<compile_context>
chip_gen: v7x
topology: tpu7x:2x2x1
jax: 0.10.0
libtpu: 0.0.40
codegen_flags: <defaults>
</compile_context>

<pallas_src>
import jax
import jax.numpy as jnp
from jax.experimental import pallas as pl
from jax.experimental.pallas import tpu as pltpu

LANE = 128


def basic_block_kernel(x_ref, w1_ref, s1_ref, b1_ref, w2_ref, s2_ref, b2_ref,
                       y_ref, pad_ref):
    """One image per grid step: conv3x3 -> bn -> relu -> conv3x3 -> bn -> +id -> relu.

    x_ref   : (1, H, W, Cp)      bf16   one image (channels padded to Cp, lane-dense)
    w*_ref  : (3, 3, Cp, Cp)     bf16   conv weights (HWIO, channel-padded)
    s*,b*   : (1, Cp)            f32    folded BN scale / bias
    y_ref   : (1, H, W, Cp)      f32    output block
    pad_ref : (H+2, W+2, Cp)     bf16   VMEM scratch with 1-px zero halo,
                                        reused as the input of both convs.
    """
    H = x_ref.shape[1]
    W = x_ref.shape[2]
    Cp = x_ref.shape[3]

    # ---- zero only the 1-pixel halo of the padded scratch (not the whole
    # buffer).  Done every step: under megacore sharding each core has its own
    # scratch and only one core ever sees program_id == 0.
    zero_row = jnp.zeros((1, W + 2, Cp), dtype=pad_ref.dtype)
    zero_col = jnp.zeros((H, 1, Cp), dtype=pad_ref.dtype)
    pad_ref[0:1, :, :] = zero_row
    pad_ref[H + 1:H + 2, :, :] = zero_row
    pad_ref[1:H + 1, 0:1, :] = zero_col
    pad_ref[1:H + 1, W + 1:W + 2, :] = zero_col

    def conv3x3(w_ref):
        """3x3 stride-1 conv as 9 lane-dense (H*W, Cp) @ (Cp, Cp) MXU matmuls."""
        acc = jnp.zeros((H * W, Cp), dtype=jnp.float32)
        for kh in range(3):
            for kw in range(3):
                tap = pad_ref[kh:kh + H, kw:kw + W, :].reshape(H * W, Cp)
                acc = acc + jnp.dot(tap, w_ref[kh, kw],
                                    preferred_element_type=jnp.float32)
        return acc

    # ---- conv1 -> bn1 (folded) -> relu
    pad_ref[1:H + 1, 1:W + 1, :] = x_ref[0]        # interior write only
    out1 = jnp.maximum(conv3x3(w1_ref) * s1_ref[...] + b1_ref[...], 0.0)

    # Reuse the same padded scratch as conv2's input (halo is still zero).
    pad_ref[1:H + 1, 1:W + 1, :] = out1.reshape(H, W, Cp).astype(pad_ref.dtype)

    # ---- conv2 -> bn2 (folded) -> + identity -> relu (elementwise in f32)
    out2 = conv3x3(w2_ref) * s2_ref[...] + b2_ref[...]
    identity = x_ref[0].reshape(H * W, Cp).astype(jnp.float32)
    y_ref[0] = jnp.maximum(out2 + identity, 0.0).reshape(H, W, Cp)


def basic_block_pallas(x_nchw, params, eps=1e-5):
    """Wrapper: NCHW f32 in/out.  Layout transform + BN folding outside,
    all conv / BN / relu / residual compute inside the Pallas kernel."""
    (w1, g1, b1, m1, v1, w2, g2, b2, m2, v2) = params

    N, Cin, H, W = x_nchw.shape
    Cout = w1.shape[0]
    # identity residual requires inplanes == planes (stride=1, downsample=None)
    assert Cin == Cout and w1.shape[1] == Cin, \
        "BasicBlock kernel only supports stride=1 / no-downsample (Cin == Cout)"

    Cp = ((Cout + LANE - 1) // LANE) * LANE        # lane-dense channel count

    # NCHW -> NHWC, cast to bf16, pad channels up to Cp (zeros)
    x = jnp.transpose(x_nchw, (0, 2, 3, 1)).astype(jnp.bfloat16)
    x = jnp.pad(x, ((0, 0), (0, 0), (0, 0), (0, Cp - Cin)))

    # PyTorch OIHW -> HWIO, bf16, zero-pad Cin/Cout up to Cp
    def prep_w(w):
        w = jnp.transpose(w, (2, 3, 1, 0)).astype(jnp.bfloat16)
        return jnp.pad(w, ((0, 0), (0, 0),
                           (0, Cp - w.shape[2]), (0, Cp - w.shape[3])))
    w1p = prep_w(w1)
    w2p = prep_w(w2)

    # fold inference-mode BatchNorm into per-channel scale/bias (f32, padded)
    def fold_bn(g, b, m, v):
        inv = (g / jnp.sqrt(v + eps)).astype(jnp.float32)
        scale = jnp.pad(inv, (0, Cp - Cout)).reshape(1, Cp)
        bias = jnp.pad((b - m * inv).astype(jnp.float32),
                       (0, Cp - Cout)).reshape(1, Cp)
        return scale, bias
    s1, bb1 = fold_bn(g1, b1, m1, v1)
    s2, bb2 = fold_bn(g2, b2, m2, v2)

    img_map = lambda n: (n, 0, 0, 0)
    w_map = lambda n: (0, 0, 0, 0)     # constant -> weights stay resident
    sb_map = lambda n: (0, 0)

    in_specs = [
        pl.BlockSpec((1, H, W, Cp), img_map),       # x (one image / step)
        pl.BlockSpec((3, 3, Cp, Cp), w_map),        # w1 (resident)
        pl.BlockSpec((1, Cp), sb_map),              # s1
        pl.BlockSpec((1, Cp), sb_map),              # b1
        pl.BlockSpec((3, 3, Cp, Cp), w_map),        # w2 (resident)
        pl.BlockSpec((1, Cp), sb_map),              # s2
        pl.BlockSpec((1, Cp), sb_map),              # b2
    ]
    out_specs = pl.BlockSpec((1, H, W, Cp), img_map)

    # advisory cost hint for the XLA scheduler
    flops = 4 * N * H * W * 9 * Cp * Cp            # 2 convs, 2 flops/MAC
    bytes_accessed = (x.size * 2 + w1p.size * 2 + w2p.size * 2
                      + 4 * Cp * 4 + N * H * W * Cp * 4)

    y = pl.pallas_call(
        basic_block_kernel,
        out_shape=jax.ShapeDtypeStruct((N, H, W, Cp), jnp.float32),
        grid_spec=pltpu.PrefetchScalarGridSpec(
            num_scalar_prefetch=0,
            grid=(N,),
            in_specs=in_specs,
            out_specs=out_specs,
            scratch_shapes=[
                pltpu.VMEM((H + 2, W + 2, Cp), jnp.bfloat16),   # shared padded scratch
            ]),
        compiler_params=pltpu.CompilerParams(
            dimension_semantics=("parallel",)),
        cost_estimate=pl.CostEstimate(flops=flops, transcendentals=0,
                                      bytes_accessed=bytes_accessed),
    )(x, w1p, s1, bb1, w2p, s2, bb2)

    # drop channel padding, NHWC -> NCHW
    return jnp.transpose(y[..., :Cout], (0, 3, 1, 2))


def basic_block_reference(x, params, eps=1e-5):
    """Pure-JAX f32 reference (NCHW, matches PyTorch eval-mode BasicBlock)."""
    (w1, g1, b1, m1, v1, w2, g2, b2, m2, v2) = params
    dn = ('NCHW', 'OIHW', 'NCHW')

    def bn(o, g, b, m, v):
        inv = (g / jnp.sqrt(v + eps))[None, :, None, None]
        return (o - m[None, :, None, None]) * inv + b[None, :, None, None]

    out = jax.lax.conv_general_dilated(x, w1, (1, 1), ((1, 1), (1, 1)),
                                       dimension_numbers=dn)
    out = jax.nn.relu(bn(out, g1, b1, m1, v1))
    out = jax.lax.conv_general_dilated(out, w2, (1, 1), ((1, 1), (1, 1)),
                                       dimension_numbers=dn)
    out = bn(out, g2, b2, m2, v2)
    return jax.nn.relu(out + x)


if __name__ == "__main__":
    # BasicBlock(inplanes=4, planes=4, stride=1, downsample=None)
    N, C, H, W = 2, 4, 16, 16
    inplanes = planes = C

    key = jax.random.PRNGKey(0)
    keys = jax.random.split(key, 11)

    x = jax.random.normal(keys[0], (N, C, H, W), dtype=jnp.float32)

    w1 = 0.1 * jax.random.normal(keys[1], (planes, inplanes, 3, 3), jnp.float32)
    w2 = 0.1 * jax.random.normal(keys[2], (planes, planes, 3, 3), jnp.float32)
    g1 = 1.0 + 0.1 * jax.random.normal(keys[3], (planes,), jnp.float32)
    b1 = 0.1 * jax.random.normal(keys[4], (planes,), jnp.float32)
    m1 = 0.1 * jax.random.normal(keys[5], (planes,), jnp.float32)
    v1 = 1.0 + 0.5 * jax.random.uniform(keys[6], (planes,), jnp.float32)
    g2 = 1.0 + 0.1 * jax.random.normal(keys[7], (planes,), jnp.float32)
    b2 = 0.1 * jax.random.normal(keys[8], (planes,), jnp.float32)
    m2 = 0.1 * jax.random.normal(keys[9], (planes,), jnp.float32)
    v2 = 1.0 + 0.5 * jax.random.uniform(keys[10], (planes,), jnp.float32)

    params = (w1, g1, b1, m1, v1, w2, g2, b2, m2, v2)

    fwd = jax.jit(basic_block_pallas)
    y = jax.block_until_ready(fwd(x, params))

    y_ref = jax.block_until_ready(basic_block_reference(x, params))

    assert y.shape == (N, C, H, W)
    # bf16 matmul inputs (f32 accumulation) -> relaxed tolerance vs f32 reference
    assert jnp.allclose(y, y_ref, atol=5e-2, rtol=5e-2), \
        f"max abs err {jnp.max(jnp.abs(y - y_ref))}"

    print("KERNEL_OK")
</pallas_src>

<mosaic_0001>
module attributes {stable_mosaic.version = 11 : i64} {
  func.func @basic_block_kernel(%arg0: i32, %arg1: memref<1x16x16x128xbf16, #tpu.memory_space<vmem>>, %arg2: memref<3x3x128x128xbf16, #tpu.memory_space<vmem>>, %arg3: memref<1x128xf32, #tpu.memory_space<vmem>>, %arg4: memref<1x128xf32, #tpu.memory_space<vmem>>, %arg5: memref<3x3x128x128xbf16, #tpu.memory_space<vmem>>, %arg6: memref<1x128xf32, #tpu.memory_space<vmem>>, %arg7: memref<1x128xf32, #tpu.memory_space<vmem>>, %arg8: memref<1x16x16x128xf32, #tpu.memory_space<vmem>>, %arg9: memref<18x18x128xbf16, #tpu.memory_space<vmem>>) attributes {dimension_semantics = [#tpu.dimension_semantics<parallel>], iteration_bounds = array<i64: 2>, scalar_prefetch = 0 : i64, scratch_operands = 1 : i64, tpu.core_type = #tpu.core_type<tc>, window_params = [{transform_indices = @transform_0, window_bounds = array<i64: 1, 16, 16, 128>}, {pipeline_mode = #tpu.pipeline_mode<synchronous>, transform_indices = @transform_1, window_bounds = array<i64: 3, 3, 128, 128>}, {pipeline_mode = #tpu.pipeline_mode<synchronous>, transform_indices = @transform_2, window_bounds = array<i64: 1, 128>}, {pipeline_mode = #tpu.pipeline_mode<synchronous>, transform_indices = @transform_3, window_bounds = array<i64: 1, 128>}, {pipeline_mode = #tpu.pipeline_mode<synchronous>, transform_indices = @transform_4, window_bounds = array<i64: 3, 3, 128, 128>}, {pipeline_mode = #tpu.pipeline_mode<synchronous>, transform_indices = @transform_5, window_bounds = array<i64: 1, 128>}, {pipeline_mode = #tpu.pipeline_mode<synchronous>, transform_indices = @transform_6, window_bounds = array<i64: 1, 128>}, {transform_indices = @transform_7, window_bounds = array<i64: 1, 16, 16, 128>}]} {
    %cst = arith.constant 0.000000e+00 : bf16
    %0 = vector.broadcast %cst : bf16 to vector<1x18x128xbf16>
    %cst_0 = arith.constant 0.000000e+00 : bf16
    %1 = vector.broadcast %cst_0 : bf16 to vector<16x1x128xbf16>
    %c0 = arith.constant 0 : index
    %c0_1 = arith.constant 0 : index
    %c0_2 = arith.constant 0 : index
    %2 = vector.load %arg9[%c0, %c0_1, %c0_2] : memref<18x18x128xbf16, #tpu.memory_space<vmem>>, vector<1x18x128xbf16>
    tpu.vector_store %arg9[%c0, %c0_1, %c0_2], %0 {strides = array<i32>} : memref<18x18x128xbf16, #tpu.memory_space<vmem>>, vector<1x18x128xbf16>,
    %c17 = arith.constant 17 : index
    %c0_3 = arith.constant 0 : index
    %c0_4 = arith.constant 0 : index
    %3 = vector.load %arg9[%c17, %c0_3, %c0_4] : memref<18x18x128xbf16, #tpu.memory_space<vmem>>, vector<1x18x128xbf16>
    tpu.vector_store %arg9[%c17, %c0_3, %c0_4], %0 {strides = array<i32>} : memref<18x18x128xbf16, #tpu.memory_space<vmem>>, vector<1x18x128xbf16>,
    %c1 = arith.constant 1 : index
    %c0_5 = arith.constant 0 : index
    %c0_6 = arith.constant 0 : index
    %4 = vector.load %arg9[%c1, %c0_5, %c0_6] : memref<18x18x128xbf16, #tpu.memory_space<vmem>>, vector<16x1x128xbf16>
    tpu.vector_store %arg9[%c1, %c0_5, %c0_6], %1 {strides = array<i32>} : memref<18x18x128xbf16, #tpu.memory_space<vmem>>, vector<16x1x128xbf16>,
    %c1_7 = arith.constant 1 : index
    %c17_8 = arith.constant 17 : index
    %c0_9 = arith.constant 0 : index
    %5 = vector.load %arg9[%c1_7, %c17_8, %c0_9] : memref<18x18x128xbf16, #tpu.memory_space<vmem>>, vector<16x1x128xbf16>
    tpu.vector_store %arg9[%c1_7, %c17_8, %c0_9], %1 {strides = array<i32>} : memref<18x18x128xbf16, #tpu.memory_space<vmem>>, vector<16x1x128xbf16>,
    %c0_10 = arith.constant 0 : index
    %c0_11 = arith.constant 0 : index
    %c0_12 = arith.constant 0 : index
    %c0_13 = arith.constant 0 : index
    %6 = vector.load %arg1[%c0_10, %c0_11, %c0_12, %c0_13] : memref<1x16x16x128xbf16, #tpu.memory_space<vmem>>, vector<1x16x16x128xbf16>
    %7 = vector.shape_cast %6 : vector<1x16x16x128xbf16> to vector<16x16x128xbf16>
    %c1_14 = arith.constant 1 : index
    %c1_15 = arith.constant 1 : index
    %c0_16 = arith.constant 0 : index
    %8 = vector.load %arg9[%c1_14, %c1_15, %c0_16] : memref<18x18x128xbf16, #tpu.memory_space<vmem>>, vector<16x16x128xbf16>
    tpu.vector_store %arg9[%c1_14, %c1_15, %c0_16], %7 {strides = array<i32>} : memref<18x18x128xbf16, #tpu.memory_space<vmem>>, vector<16x16x128xbf16>,
    %cst_17 = arith.constant 0.000000e+00 : f32
    %9 = vector.broadcast %cst_17 : f32 to vector<256x128xf32>
    %c0_18 = arith.constant 0 : index
    %c0_19 = arith.constant 0 : index
    %c0_20 = arith.constant 0 : index
    %10 = vector.load %arg9[%c0_18, %c0_19, %c0_20] : memref<18x18x128xbf16, #tpu.memory_space<vmem>>, vector<16x16x128xbf16>
    %11 = vector.shape_cast %10 : vector<16x16x128xbf16> to vector<256x128xbf16>
    %c0_21 = arith.constant 0 : index
    %c0_22 = arith.constant 0 : index
    %c0_23 = arith.constant 0 : index
    %c0_24 = arith.constant 0 : index
    %12 = vector.load %arg2[%c0_21, %c0_22, %c0_23, %c0_24] : memref<3x3x128x128xbf16, #tpu.memory_space<vmem>>, vector<1x1x128x128xbf16>
    %13 = vector.shape_cast %12 : vector<1x1x128x128xbf16> to vector<128x128xbf16>
    %cst_25 = arith.constant dense<0.000000e+00> : vector<256x128xf32>
    %14 = tpu.matmul %11, %13, %cst_25 {dimension_numbers = #tpu.dot_dimension_numbers<[1], [0], [0], [1], [0, 0, 1, 1], [], []>} : vector<256x128xbf16>, vector<128x128xbf16>, vector<256x128xf32> -> vector<256x128xf32>
    %15 = arith.addf %9, %14 : vector<256x128xf32>
    %c0_26 = arith.constant 0 : index
    %c1_27 = arith.constant 1 : index
    %c0_28 = arith.constant 0 : index
    %16 = vector.load %arg9[%c0_26, %c1_27, %c0_28] : memref<18x18x128xbf16, #tpu.memory_space<vmem>>, vector<16x16x128xbf16>
    %17 = vector.shape_cast %16 : vector<16x16x128xbf16> to vector<256x128xbf16>
    %c0_29 = arith.constant 0 : index
    %c1_30 = arith.constant 1 : index
    %c0_31 = arith.constant 0 : index
    %c0_32 = arith.constant 0 : index
    %18 = vector.load %arg2[%c0_29, %c1_30, %c0_31, %c0_32] : memref<3x3x128x128xbf16, #tpu.memory_space<vmem>>, vector<1x1x128x128xbf16>
    %19 = vector.shape_cast %18 : vector<1x1x128x128xbf16> to vector<128x128xbf16>
    %cst_33 = arith.constant dense<0.000000e+00> : vector<256x128xf32>
    %20 = tpu.matmul %17, %19, %cst_33 {dimension_numbers = #tpu.dot_dimension_numbers<[1], [0], [0], [1], [0, 0, 1, 1], [], []>} : vector<256x128xbf16>, vector<128x128xbf16>, vector<256x128xf32> -> vector<256x128xf32>
    %21 = arith.addf %15, %20 : vector<256x128xf32>
    %c0_34 = arith.constant 0 : index
    %c2 = arith.constant 2 : index
    %c0_35 = arith.constant 0 : index
    %22 = vector.load %arg9[%c0_34, %c2, %c0_35] : memref<18x18x128xbf16, #tpu.memory_space<vmem>>, vector<16x16x128xbf16>
    %23 = vector.shape_cast %22 : vector<16x16x128xbf16> to vector<256x128xbf16>
    %c0_36 = arith.constant 0 : index
    %c2_37 = arith.constant 2 : index
    %c0_38 = arith.constant 0 : index
    %c0_39 = arith.constant 0 : index
    %24 = vector.load %arg2[%c0_36, %c2_37, %c0_38, %c0_39] : memref<3x3x128x128xbf16, #tpu.memory_space<vmem>>, vector<1x1x128x128xbf16>
    %25 = vector.shape_cast %24 : vector<1x1x128x128xbf16> to vector<128x128xbf16>
    %cst_40 = arith.constant dense<0.000000e+00> : vector<256x128xf32>
    %26 = tpu.matmul %23, %25, %cst_40 {dimension_numbers = #tpu.dot_dimension_numbers<[1], [0], [0], [1], [0, 0, 1, 1], [], []>} : vector<256x128xbf16>, vector<128x128xbf16>, vector<256x128xf32> -> vector<256x128xf32>
    %27 = arith.addf %21, %26 : vector<256x128xf32>
    %c1_41 = arith.constant 1 : index
    %c0_42 = arith.constant 0 : index
    %c0_43 = arith.constant 0 : index
    %28 = vector.load %arg9[%c1_41, %c0_42, %c0_43] : memref<18x18x128xbf16, #tpu.memory_space<vmem>>, vector<16x16x128xbf16>
    %29 = vector.shape_cast %28 : vector<16x16x128xbf16> to vector<256x128xbf16>
    %c1_44 = arith.constant 1 : index
    %c0_45 = arith.constant 0 : index
    %c0_46 = arith.constant 0 : index
    %c0_47 = arith.constant 0 : index
    %30 = vector.load %arg2[%c1_44, %c0_45, %c0_46, %c0_47] : memref<3x3x128x128xbf16, #tpu.memory_space<vmem>>, vector<1x1x128x128xbf16>
    %31 = vector.shape_cast %30 : vector<1x1x128x128xbf16> to vector<128x128xbf16>
    %cst_48 = arith.constant dense<0.000000e+00> : vector<256x128xf32>
    %32 = tpu.matmul %29, %31, %cst_48 {dimension_numbers = #tpu.dot_dimension_numbers<[1], [0], [0], [1], [0, 0, 1, 1], [], []>} : vector<256x128xbf16>, vector<128x128xbf16>, vector<256x128xf32> -> vector<256x128xf32>
    %33 = arith.addf %27, %32 : vector<256x128xf32>
    %c1_49 = arith.constant 1 : index
    %c1_50 = arith.constant 1 : index
    %c0_51 = arith.constant 0 : index
    %34 = vector.load %arg9[%c1_49, %c1_50, %c0_51] : memref<18x18x128xbf16, #tpu.memory_space<vmem>>, vector<16x16x128xbf16>
    %35 = vector.shape_cast %34 : vector<16x16x128xbf16> to vector<256x128xbf16>
    %c1_52 = arith.constant 1 : index
    %c1_53 = arith.constant 1 : index
    %c0_54 = arith.constant 0 : index
    %c0_55 = arith.constant 0 : index
    %36 = vector.load %arg2[%c1_52, %c1_53, %c0_54, %c0_55] : memref<3x3x128x128xbf16, #tpu.memory_space<vmem>>, vector<1x1x128x128xbf16>
    %37 = vector.shape_cast %36 : vector<1x1x128x128xbf16> to vector<128x128xbf16>
    %cst_56 = arith.constant dense<0.000000e+00> : vector<256x128xf32>
    %38 = tpu.matmul %35, %37, %cst_56 {dimension_numbers = #tpu.dot_dimension_numbers<[1], [0], [0], [1], [0, 0, 1, 1], [], []>} : vector<256x128xbf16>, vector<128x128xbf16>, vector<256x128xf32> -> vector<256x128xf32>
    %39 = arith.addf %33, %38 : vector<256x128xf32>
    %c1_57 = arith.constant 1 : index
    %c2_58 = arith.constant 2 : index
    %c0_59 = arith.constant 0 : index
    %40 = vector.load %arg9[%c1_57, %c2_58, %c0_59] : memref<18x18x128xbf16, #tpu.memory_space<vmem>>, vector<16x16x128xbf16>
    %41 = vector.shape_cast %40 : vector<16x16x128xbf16> to vector<256x128xbf16>
    %c1_60 = arith.constant 1 : index
    %c2_61 = arith.constant 2 : index
    %c0_62 = arith.constant 0 : index
    %c0_63 = arith.constant 0 : index
    %42 = vector.load %arg2[%c1_60, %c2_61, %c0_62, %c0_63] : memref<3x3x128x128xbf16, #tpu.memory_space<vmem>>, vector<1x1x128x128xbf16>
    %43 = vector.shape_cast %42 : vector<1x1x128x128xbf16> to vector<128x128xbf16>
    %cst_64 = arith.constant dense<0.000000e+00> : vector<256x128xf32>
    %44 = tpu.matmul %41, %43, %cst_64 {dimension_numbers = #tpu.dot_dimension_numbers<[1], [0], [0], [1], [0, 0, 1, 1], [], []>} : vector<256x128xbf16>, vector<128x128xbf16>, vector<256x128xf32> -> vector<256x128xf32>
    %45 = arith.addf %39, %44 : vector<256x128xf32>
    %c2_65 = arith.constant 2 : index
    %c0_66 = arith.constant 0 : index
    %c0_67 = arith.constant 0 : index
    %46 = vector.load %arg9[%c2_65, %c0_66, %c0_67] : memref<18x18x128xbf16, #tpu.memory_space<vmem>>, vector<16x16x128xbf16>
    %47 = vector.shape_cast %46 : vector<16x16x128xbf16> to vector<256x128xbf16>
    %c2_68 = arith.constant 2 : index
    %c0_69 = arith.constant 0 : index
    %c0_70 = arith.constant 0 : index
    %c0_71 = arith.constant 0 : index
    %48 = vector.load %arg2[%c2_68, %c0_69, %c0_70, %c0_71] : memref<3x3x128x128xbf16, #tpu.memory_space<vmem>>, vector<1x1x128x128xbf16>
    %49 = vector.shape_cast %48 : vector<1x1x128x128xbf16> to vector<128x128xbf16>
    %cst_72 = arith.constant dense<0.000000e+00> : vector<256x128xf32>
    %50 = tpu.matmul %47, %49, %cst_72 {dimension_numbers = #tpu.dot_dimension_numbers<[1], [0], [0], [1], [0, 0, 1, 1], [], []>} : vector<256x128xbf16>, vector<128x128xbf16>, vector<256x128xf32> -> vector<256x128xf32>
    %51 = arith.addf %45, %50 : vector<256x128xf32>
    %c2_73 = arith.constant 2 : index
    %c1_74 = arith.constant 1 : index
    %c0_75 = arith.constant 0 : index
    %52 = vector.load %arg9[%c2_73, %c1_74, %c0_75] : memref<18x18x128xbf16, #tpu.memory_space<vmem>>, vector<16x16x128xbf16>
    %53 = vector.shape_cast %52 : vector<16x16x128xbf16> to vector<256x128xbf16>
    %c2_76 = arith.constant 2 : index
    %c1_77 = arith.constant 1 : index
    %c0_78 = arith.constant 0 : index
    %c0_79 = arith.constant 0 : index
    %54 = vector.load %arg2[%c2_76, %c1_77, %c0_78, %c0_79] : memref<3x3x128x128xbf16, #tpu.memory_space<vmem>>, vector<1x1x128x128xbf16>
    %55 = vector.shape_cast %54 : vector<1x1x128x128xbf16> to vector<128x128xbf16>
    %cst_80 = arith.constant dense<0.000000e+00> : vector<256x128xf32>
    %56 = tpu.matmul %53, %55, %cst_80 {dimension_numbers = #tpu.dot_dimension_numbers<[1], [0], [0], [1], [0, 0, 1, 1], [], []>} : vector<256x128xbf16>, vector<128x128xbf16>, vector<256x128xf32> -> vector<256x128xf32>
    %57 = arith.addf %51, %56 : vector<256x128xf32>
    %c2_81 = arith.constant 2 : index
    %c2_82 = arith.constant 2 : index
    %c0_83 = arith.constant 0 : index
    %58 = vector.load %arg9[%c2_81, %c2_82, %c0_83] : memref<18x18x128xbf16, #tpu.memory_space<vmem>>, vector<16x16x128xbf16>
    %59 = vector.shape_cast %58 : vector<16x16x128xbf16> to vector<256x128xbf16>
    %c2_84 = arith.constant 2 : index
    %c2_85 = arith.constant 2 : index
    %c0_86 = arith.constant 0 : index
    %c0_87 = arith.constant 0 : index
    %60 = vector.load %arg2[%c2_84, %c2_85, %c0_86, %c0_87] : memref<3x3x128x128xbf16, #tpu.memory_space<vmem>>, vector<1x1x128x128xbf16>
    %61 = vector.shape_cast %60 : vector<1x1x128x128xbf16> to vector<128x128xbf16>
    %cst_88 = arith.constant dense<0.000000e+00> : vector<256x128xf32>
    %62 = tpu.matmul %59, %61, %cst_88 {dimension_numbers = #tpu.dot_dimension_numbers<[1], [0], [0], [1], [0, 0, 1, 1], [], []>} : vector<256x128xbf16>, vector<128x128xbf16>, vector<256x128xf32> -> vector<256x128xf32>
    %63 = arith.addf %57, %62 : vector<256x128xf32>
    %c0_89 = arith.constant 0 : index
    %c0_90 = arith.constant 0 : index
    %64 = vector.load %arg3[%c0_89, %c0_90] : memref<1x128xf32, #tpu.memory_space<vmem>>, vector<1x128xf32>
    %65 = vector.broadcast %64 : vector<1x128xf32> to vector<256x128xf32>
    %66 = arith.mulf %63, %65 : vector<256x128xf32>
    %c0_91 = arith.constant 0 : index
    %c0_92 = arith.constant 0 : index
    %67 = vector.load %arg4[%c0_91, %c0_92] : memref<1x128xf32, #tpu.memory_space<vmem>>, vector<1x128xf32>
    %68 = vector.broadcast %67 : vector<1x128xf32> to vector<256x128xf32>
    %69 = arith.addf %66, %68 : vector<256x128xf32>
    %cst_93 = arith.constant 0.000000e+00 : f32
    %70 = vector.broadcast %cst_93 : f32 to vector<256x128xf32>
    %71 = arith.maximumf %69, %70 : vector<256x128xf32>
    %72 = vector.shape_cast %71 : vector<256x128xf32> to vector<16x16x128xf32>
    %73 = arith.truncf %72 : vector<16x16x128xf32> to vector<16x16x128xbf16>
    %c1_94 = arith.constant 1 : index
    %c1_95 = arith.constant 1 : index
    %c0_96 = arith.constant 0 : index
    %74 = vector.load %arg9[%c1_94, %c1_95, %c0_96] : memref<18x18x128xbf16, #tpu.memory_space<vmem>>, vector<16x16x128xbf16>
    tpu.vector_store %arg9[%c1_94, %c1_95, %c0_96], %73 {strides = array<i32>} : memref<18x18x128xbf16, #tpu.memory_space<vmem>>, vector<16x16x128xbf16>,
    %cst_97 = arith.constant 0.000000e+00 : f32
    %75 = vector.broadcast %cst_97 : f32 to vector<256x128xf32>
    %c0_98 = arith.constant 0 : index
    %c0_99 = arith.constant 0 : index
    %c0_100 = arith.constant 0 : index
    %76 = vector.load %arg9[%c0_98, %c0_99, %c0_100] : memref<18x18x128xbf16, #tpu.memory_space<vmem>>, vector<16x16x128xbf16>
    %77 = vector.shape_cast %76 : vector<16x16x128xbf16> to vector<256x128xbf16>
    %c0_101 = arith.constant 0 : index
    %c0_102 = arith.constant 0 : index
    %c0_103 = arith.constant 0 : index
    %c0_104 = arith.constant 0 : index
    %78 = vector.load %arg5[%c0_101, %c0_102, %c0_103, %c0_104] : memref<3x3x128x128xbf16, #tpu.memory_space<vmem>>, vector<1x1x128x128xbf16>
    %79 = vector.shape_cast %78 : vector<1x1x128x128xbf16> to vector<128x128xbf16>
    %cst_105 = arith.constant dense<0.000000e+00> : vector<256x128xf32>
    %80 = tpu.matmul %77, %79, %cst_105 {dimension_numbers = #tpu.dot_dimension_numbers<[1], [0], [0], [1], [0, 0, 1, 1], [], []>} : vector<256x128xbf16>, vector<128x128xbf16>, vector<256x128xf32> -> vector<256x128xf32>
    %81 = arith.addf %75, %80 : vector<256x128xf32>
    %c0_106 = arith.constant 0 : index
    %c1_107 = arith.constant 1 : index
    %c0_108 = arith.constant 0 : index
    %82 = vector.load %arg9[%c0_106, %c1_107, %c0_108] : memref<18x18x128xbf16, #tpu.memory_space<vmem>>, vector<16x16x128xbf16>
    %83 = vector.shape_cast %82 : vector<16x16x128xbf16> to vector<256x128xbf16>
    %c0_109 = arith.constant 0 : index
    %c1_110 = arith.constant 1 : index
    %c0_111 = arith.constant 0 : index
    %c0_112 = arith.constant 0 : index
    %84 = vector.load %arg5[%c0_109, %c1_110, %c0_111, %c0_112] : memref<3x3x128x128xbf16, #tpu.memory_space<vmem>>, vector<1x1x128x128xbf16>
    %85 = vector.shape_cast %84 : vector<1x1x128x128xbf16> to vector<128x128xbf16>
    %cst_113 = arith.constant dense<0.000000e+00> : vector<256x128xf32>
    %86 = tpu.matmul %83, %85, %cst_113 {dimension_numbers = #tpu.dot_dimension_numbers<[1], [0], [0], [1], [0, 0, 1, 1], [], []>} : vector<256x128xbf16>, vector<128x128xbf16>, vector<256x128xf32> -> vector<256x128xf32>
    %87 = arith.addf %81, %86 : vector<256x128xf32>
    %c0_114 = arith.constant 0 : index
    %c2_115 = arith.constant 2 : index
    %c0_116 = arith.constant 0 : index
    %88 = vector.load %arg9[%c0_114, %c2_115, %c0_116] : memref<18x18x128xbf16, #tpu.memory_space<vmem>>, vector<16x16x128xbf16>
    %89 = vector.shape_cast %88 : vector<16x16x128xbf16> to vector<256x128xbf16>
    %c0_117 = arith.constant 0 : index
    %c2_118 = arith.constant 2 : index
    %c0_119 = arith.constant 0 : index
    %c0_120 = arith.constant 0 : index
    %90 = vector.load %arg5[%c0_117, %c2_118, %c0_119, %c0_120] : memref<3x3x128x128xbf16, #tpu.memory_space<vmem>>, vector<1x1x128x128xbf16>
    %91 = vector.shape_cast %90 : vector<1x1x128x128xbf16> to vector<128x128xbf16>
    %cst_121 = arith.constant dense<0.000000e+00> : vector<256x128xf32>
    %92 = tpu.matmul %89, %91, %cst_121 {dimension_numbers = #tpu.dot_dimension_numbers<[1], [0], [0], [1], [0, 0, 1, 1], [], []>} : vector<256x128xbf16>, vector<128x128xbf16>, vector<256x128xf32> -> vector<256x128xf32>
    %93 = arith.addf %87, %92 : vector<256x128xf32>
    %c1_122 = arith.constant 1 : index
    %c0_123 = arith.constant 0 : index
    %c0_124 = arith.constant 0 : index
    %94 = vector.load %arg9[%c1_122, %c0_123, %c0_124] : memref<18x18x128xbf16, #tpu.memory_space<vmem>>, vector<16x16x128xbf16>
    %95 = vector.shape_cast %94 : vector<16x16x128xbf16> to vector<256x128xbf16>
    %c1_125 = arith.constant 1 : index
    %c0_126 = arith.constant 0 : index
    %c0_127 = arith.constant 0 : index
    %c0_128 = arith.constant 0 : index
    %96 = vector.load %arg5[%c1_125, %c0_126, %c0_127, %c0_128] : memref<3x3x128x128xbf16, #tpu.memory_space<vmem>>, vector<1x1x128x128xbf16>
    %97 = vector.shape_cast %96 : vector<1x1x128x128xbf16> to vector<128x128xbf16>
    %cst_129 = arith.constant dense<0.000000e+00> : vector<256x128xf32>
    %98 = tpu.matmul %95, %97, %cst_129 {dimension_numbers = #tpu.dot_dimension_numbers<[1], [0], [0], [1], [0, 0, 1, 1], [], []>} : vector<256x128xbf16>, vector<128x128xbf16>, vector<256x128xf32> -> vector<256x128xf32>
    %99 = arith.addf %93, %98 : vector<256x128xf32>
    %c1_130 = arith.constant 1 : index
    %c1_131 = arith.constant 1 : index
    %c0_132 = arith.constant 0 : index
    %100 = vector.load %arg9[%c1_130, %c1_131, %c0_132] : memref<18x18x128xbf16, #tpu.memory_space<vmem>>, vector<16x16x128xbf16>
    %101 = vector.shape_cast %100 : vector<16x16x128xbf16> to vector<256x128xbf16>
    %c1_133 = arith.constant 1 : index
    %c1_134 = arith.constant 1 : index
    %c0_135 = arith.constant 0 : index
    %c0_136 = arith.constant 0 : index
    %102 = vector.load %arg5[%c1_133, %c1_134, %c0_135, %c0_136] : memref<3x3x128x128xbf16, #tpu.memory_space<vmem>>, vector<1x1x128x128xbf16>
    %103 = vector.shape_cast %102 : vector<1x1x128x128xbf16> to vector<128x128xbf16>
    %cst_137 = arith.constant dense<0.000000e+00> : vector<256x128xf32>
    %104 = tpu.matmul %101, %103, %cst_137 {dimension_numbers = #tpu.dot_dimension_numbers<[1], [0], [0], [1], [0, 0, 1, 1], [], []>} : vector<256x128xbf16>, vector<128x128xbf16>, vector<256x128xf32> -> vector<256x128xf32>
    %105 = arith.addf %99, %104 : vector<256x128xf32>
    %c1_138 = arith.constant 1 : index
    %c2_139 = arith.constant 2 : index
    %c0_140 = arith.constant 0 : index
    %106 = vector.load %arg9[%c1_138, %c2_139, %c0_140] : memref<18x18x128xbf16, #tpu.memory_space<vmem>>, vector<16x16x128xbf16>
    %107 = vector.shape_cast %106 : vector<16x16x128xbf16> to vector<256x128xbf16>
    %c1_141 = arith.constant 1 : index
    %c2_142 = arith.constant 2 : index
    %c0_143 = arith.constant 0 : index
    %c0_144 = arith.constant 0 : index
    %108 = vector.load %arg5[%c1_141, %c2_142, %c0_143, %c0_144] : memref<3x3x128x128xbf16, #tpu.memory_space<vmem>>, vector<1x1x128x128xbf16>
    %109 = vector.shape_cast %108 : vector<1x1x128x128xbf16> to vector<128x128xbf16>
    %cst_145 = arith.constant dense<0.000000e+00> : vector<256x128xf32>
    %110 = tpu.matmul %107, %109, %cst_145 {dimension_numbers = #tpu.dot_dimension_numbers<[1], [0], [0], [1], [0, 0, 1, 1], [], []>} : vector<256x128xbf16>, vector<128x128xbf16>, vector<256x128xf32> -> vector<256x128xf32>
    %111 = arith.addf %105, %110 : vector<256x128xf32>
    %c2_146 = arith.constant 2 : index
    %c0_147 = arith.constant 0 : index
    %c0_148 = arith.constant 0 : index
    %112 = vector.load %arg9[%c2_146, %c0_147, %c0_148] : memref<18x18x128xbf16, #tpu.memory_space<vmem>>, vector<16x16x128xbf16>
    %113 = vector.shape_cast %112 : vector<16x16x128xbf16> to vector<256x128xbf16>
    %c2_149 = arith.constant 2 : index
    %c0_150 = arith.constant 0 : index
    %c0_151 = arith.constant 0 : index
    %c0_152 = arith.constant 0 : index
    %114 = vector.load %arg5[%c2_149, %c0_150, %c0_151, %c0_152] : memref<3x3x128x128xbf16, #tpu.memory_space<vmem>>, vector<1x1x128x128xbf16>
    %115 = vector.shape_cast %114 : vector<1x1x128x128xbf16> to vector<128x128xbf16>
    %cst_153 = arith.constant dense<0.000000e+00> : vector<256x128xf32>
    %116 = tpu.matmul %113, %115, %cst_153 {dimension_numbers = #tpu.dot_dimension_numbers<[1], [0], [0], [1], [0, 0, 1, 1], [], []>} : vector<256x128xbf16>, vector<128x128xbf16>, vector<256x128xf32> -> vector<256x128xf32>
    %117 = arith.addf %111, %116 : vector<256x128xf32>
    %c2_154 = arith.constant 2 : index
    %c1_155 = arith.constant 1 : index
    %c0_156 = arith.constant 0 : index
    %118 = vector.load %arg9[%c2_154, %c1_155, %c0_156] : memref<18x18x128xbf16, #tpu.memory_space<vmem>>, vector<16x16x128xbf16>
    %119 = vector.shape_cast %118 : vector<16x16x128xbf16> to vector<256x128xbf16>
    %c2_157 = arith.constant 2 : index
    %c1_158 = arith.constant 1 : index
    %c0_159 = arith.constant 0 : index
    %c0_160 = arith.constant 0 : index
    %120 = vector.load %arg5[%c2_157, %c1_158, %c0_159, %c0_160] : memref<3x3x128x128xbf16, #tpu.memory_space<vmem>>, vector<1x1x128x128xbf16>
    %121 = vector.shape_cast %120 : vector<1x1x128x128xbf16> to vector<128x128xbf16>
    %cst_161 = arith.constant dense<0.000000e+00> : vector<256x128xf32>
    %122 = tpu.matmul %119, %121, %cst_161 {dimension_numbers = #tpu.dot_dimension_numbers<[1], [0], [0], [1], [0, 0, 1, 1], [], []>} : vector<256x128xbf16>, vector<128x128xbf16>, vector<256x128xf32> -> vector<256x128xf32>
    %123 = arith.addf %117, %122 : vector<256x128xf32>
    %c2_162 = arith.constant 2 : index
    %c2_163 = arith.constant 2 : index
    %c0_164 = arith.constant 0 : index
    %124 = vector.load %arg9[%c2_162, %c2_163, %c0_164] : memref<18x18x128xbf16, #tpu.memory_space<vmem>>, vector<16x16x128xbf16>
    %125 = vector.shape_cast %124 : vector<16x16x128xbf16> to vector<256x128xbf16>
    %c2_165 = arith.constant 2 : index
    %c2_166 = arith.constant 2 : index
    %c0_167 = arith.constant 0 : index
    %c0_168 = arith.constant 0 : index
    %126 = vector.load %arg5[%c2_165, %c2_166, %c0_167, %c0_168] : memref<3x3x128x128xbf16, #tpu.memory_space<vmem>>, vector<1x1x128x128xbf16>
    %127 = vector.shape_cast %126 : vector<1x1x128x128xbf16> to vector<128x128xbf16>
    %cst_169 = arith.constant dense<0.000000e+00> : vector<256x128xf32>
    %128 = tpu.matmul %125, %127, %cst_169 {dimension_numbers = #tpu.dot_dimension_numbers<[1], [0], [0], [1], [0, 0, 1, 1], [], []>} : vector<256x128xbf16>, vector<128x128xbf16>, vector<256x128xf32> -> vector<256x128xf32>
    %129 = arith.addf %123, %128 : vector<256x128xf32>
    %c0_170 = arith.constant 0 : index
    %c0_171 = arith.constant 0 : index
    %130 = vector.load %arg6[%c0_170, %c0_171] : memref<1x128xf32, #tpu.memory_space<vmem>>, vector<1x128xf32>
    %131 = vector.broadcast %130 : vector<1x128xf32> to vector<256x128xf32>
    %132 = arith.mulf %129, %131 : vector<256x128xf32>
    %c0_172 = arith.constant 0 : index
    %c0_173 = arith.constant 0 : index
    %133 = vector.load %arg7[%c0_172, %c0_173] : memref<1x128xf32, #tpu.memory_space<vmem>>, vector<1x128xf32>
    %134 = vector.broadcast %133 : vector<1x128xf32> to vector<256x128xf32>
    %135 = arith.addf %132, %134 : vector<256x128xf32>
    %c0_174 = arith.constant 0 : index
    %c0_175 = arith.constant 0 : index
    %c0_176 = arith.constant 0 : index
    %c0_177 = arith.constant 0 : index
    %136 = vector.load %arg1[%c0_174, %c0_175, %c0_176, %c0_177] : memref<1x16x16x128xbf16, #tpu.memory_space<vmem>>, vector<1x16x16x128xbf16>
    %137 = vector.shape_cast %136 : vector<1x16x16x128xbf16> to vector<16x16x128xbf16>
    %138 = vector.shape_cast %137 : vector<16x16x128xbf16> to vector<256x128xbf16>
    %139 = arith.extf %138 : vector<256x128xbf16> to vector<256x128xf32>
    %140 = arith.addf %135, %139 : vector<256x128xf32>
    %cst_178 = arith.constant 0.000000e+00 : f32
    %141 = vector.broadcast %cst_178 : f32 to vector<256x128xf32>
    %142 = arith.maximumf %140, %141 : vector<256x128xf32>
    %143 = vector.shape_cast %142 : vector<256x128xf32> to vector<16x16x128xf32>
    %c0_179 = arith.constant 0 : index
    %c0_180 = arith.constant 0 : index
    %c0_181 = arith.constant 0 : index
    %c0_182 = arith.constant 0 : index
    %144 = vector.load %arg8[%c0_179, %c0_180, %c0_181, %c0_182] : memref<1x16x16x128xf32, #tpu.memory_space<vmem>>, vector<1x16x16x128xf32>
    %145 = vector.shape_cast %144 : vector<1x16x16x128xf32> to vector<16x16x128xf32>
    %146 = vector.shape_cast %143 : vector<16x16x128xf32> to vector<1x16x16x128xf32>
    tpu.vector_store %arg8[%c0_179, %c0_180, %c0_181, %c0_182], %146 {strides = array<i32>} : memref<1x16x16x128xf32, #tpu.memory_space<vmem>>, vector<1x16x16x128xf32>,
    return
  }
  func.func @transform_0(%arg0: i32) -> (i32, i32, i32, i32) {
    %c0_i32 = arith.constant 0 : i32
    %c0_i32_0 = arith.constant 0 : i32
    %c0_i32_1 = arith.constant 0 : i32
    %c0_i32_2 = arith.constant 0 : i32
    return %arg0, %c0_i32, %c0_i32_0, %c0_i32_1 : i32, i32, i32, i32
  }
  func.func @transform_1(%arg0: i32) -> (i32, i32, i32, i32) {
    %c0_i32 = arith.constant 0 : i32
    %c0_i32_0 = arith.constant 0 : i32
    %c0_i32_1 = arith.constant 0 : i32
    %c0_i32_2 = arith.constant 0 : i32
    %c0_i32_3 = arith.constant 0 : i32
    return %c0_i32, %c0_i32_0, %c0_i32_1, %c0_i32_2 : i32, i32, i32, i32
  }
  func.func @transform_2(%arg0: i32) -> (i32, i32) {
    %c0_i32 = arith.constant 0 : i32
    %c0_i32_0 = arith.constant 0 : i32
    %c0_i32_1 = arith.constant 0 : i32
    return %c0_i32, %c0_i32_0 : i32, i32
  }
  func.func @transform_3(%arg0: i32) -> (i32, i32) {
    %c0_i32 = arith.constant 0 : i32
    %c0_i32_0 = arith.constant 0 : i32
    %c0_i32_1 = arith.constant 0 : i32
    return %c0_i32, %c0_i32_0 : i32, i32
  }
  func.func @transform_4(%arg0: i32) -> (i32, i32, i32, i32) {
    %c0_i32 = arith.constant 0 : i32
    %c0_i32_0 = arith.constant 0 : i32
    %c0_i32_1 = arith.constant 0 : i32
    %c0_i32_2 = arith.constant 0 : i32
    %c0_i32_3 = arith.constant 0 : i32
    return %c0_i32, %c0_i32_0, %c0_i32_1, %c0_i32_2 : i32, i32, i32, i32
  }
  func.func @transform_5(%arg0: i32) -> (i32, i32) {
    %c0_i32 = arith.constant 0 : i32
    %c0_i32_0 = arith.constant 0 : i32
    %c0_i32_1 = arith.constant 0 : i32
    return %c0_i32, %c0_i32_0 : i32, i32
  }
  func.func @transform_6(%arg0: i32) -> (i32, i32) {
    %c0_i32 = arith.constant 0 : i32
    %c0_i32_0 = arith.constant 0 : i32
    %c0_i32_1 = arith.constant 0 : i32
    return %c0_i32, %c0_i32_0 : i32, i32
  }
  func.func @transform_7(%arg0: i32) -> (i32, i32, i32, i32) {
    %c0_i32 = arith.constant 0 : i32
    %c0_i32_0 = arith.constant 0 : i32
    %c0_i32_1 = arith.constant 0 : i32
    %c0_i32_2 = arith.constant 0 : i32
    return %arg0, %c0_i32, %c0_i32_0, %c0_i32_1 : i32, i32, i32, i32
  }
}

</mosaic_0001>

<llo_original>
// kernel: basic_block_pallas.1
$region0: #{basic_block_pallas.1}
  #allocation0 [shape = 'u32[]', space=smem, size = 0x4, offset = 0x4, fixed_abs, tag = 'smem constant byte address 0x4 - core index']
  #allocation1 [shape = 'u32[144,128]{1,0:T(1,128)}', space=vmem, size = 0x12000, scoped, tag = 'internal scratch']
  #allocation2 [shape = 'bf16[18,18,128]{2,1,0:T(8,128)(2,1)}', space=vmem, size = 0x1b000, scoped, tag = 'scratch operand']
  %s0 = inlined_call_operand.vmem [shape: bf16[2,16,16,128], index: 0, kind: input, shape index: {}]
  %s1 = inlined_call_operand.vmem [shape: bf16[3,3,128,128], index: 1, kind: input, shape index: {}]
  %s2 = inlined_call_operand.vmem [shape: f32[1,128], index: 2, kind: input, shape index: {}]
  %s3 = inlined_call_operand.vmem [shape: f32[1,128], index: 3, kind: input, shape index: {}]
  %s4 = inlined_call_operand.vmem [shape: bf16[3,3,128,128], index: 4, kind: input, shape index: {}]
  %s5 = inlined_call_operand.vmem [shape: f32[1,128], index: 5, kind: input, shape index: {}]
  %s6 = inlined_call_operand.vmem [shape: f32[1,128], index: 6, kind: input, shape index: {}]
  %s7 = inlined_call_operand.vmem [shape: f32[2,16,16,128], index: 7, kind: output, shape index: {}]
  %s8 = sld [smem:[#allocation0]]
  $region61: #{basic_block_pallas.1} parent=0
    _
  %s10 = ssub.s32 1, %s8
  %s11 = scalar_select 0, %s10, %s8
  loop: start=0, step=1, limit=4
  $region2: #{basic_block_pallas.1} parent=0 // loop_pre_header
    _
  $region3: #{basic_block_pallas.1} parent=0 // loop_header
    %s13 = sphi 0, %s17
    %p14 = scmp.ge.s32.totalorder %s13, 4
    %s23 = sphi 0, %s25
    %s26 = sphi 0, %s23
    %s27 = sphi 0, %s26
    %s43 = sphi 0, %s27
    %s47 = sphi 0, %s47
    %s49 = sphi 0, %s47
    %s50 = sphi 0, %s49
    %s64 = sphi 0, %s50
    %s68 = sphi 0, %s68
    %s70 = sphi 0, %s68
    %s71 = sphi 0, %s70
    %s85 = sphi 0, %s71
    %s89 = sphi 0, %s89
    %s91 = sphi 0, %s89
    %s92 = sphi 0, %s91
    %s106 = sphi 0, %s92
    %s110 = sphi 0, %s110
    %s112 = sphi 0, %s110
    %s113 = sphi 0, %s112
    %s127 = sphi 0, %s113
    %s131 = sphi 0, %s131
    %s133 = sphi 0, %s131
    %s134 = sphi 0, %s133
    %s148 = sphi 0, %s134
    %s152 = sphi 0, %s152
    %s154 = sphi 0, %s152
    %s155 = sphi 0, %s154
    %s169 = sphi 0, %s155
    %s175 = sphi 0, %s177
    %s178 = sphi 0, %s175
    %s179 = sphi 0, %s178
    %s195 = sphi 0, %s179
  $region4: #{basic_block_pallas.1} parent=0 // loop_header_branch
    %16 = sbr.rel (%p14) target = $region8
  $region5: #{basic_block_pallas.1} parent=0 // loop_body
    %s18 = ssub.s32 %s13, 1
    %s19 = ssub.s32 %s13, 2
    %s20 = sadd.s32 %s13, 1
    %s21 = ssub.s32 %s13, %s20
    %p22 = scmp.eq.s32.totalorder %s21, 0
    %s24 = sadd.s32 %s23, 1
    %s25 = scalar_select %p22, %s23, %s24
    %p28 = pneg %p22
    %p29 = scmp.eq.s32.totalorder %s13, 1
    %p30 = por %p28, %p29
    %p31 = scmp.ne.s32.totalorder %s23, %s26
    %p32 = scmp.eq.s32.totalorder %s13, 0
    %p33 = por %p31, %p32
    %p34 = scmp.ne.s32.totalorder %s23, %s26
    %p35 = scmp.eq.s32.totalorder %s18, 1
    %p36 = por %p34, %p35
    %p37 = scmp.ne.s32.totalorder %s26, %s27
    %p38 = scmp.eq.s32.totalorder %s18, 0
    %p39 = por %p37, %p38
    %p40 = scmp.ne.s32.totalorder %s26, %s27
    %p41 = scmp.eq.s32.totalorder %s19, 1
    %p42 = por %p40, %p41
    %p44 = scmp.ne.s32.totalorder %s27, %s43
    %p45 = scmp.eq.s32.totalorder %s19, 0
    %p46 = por %p44, %p45
    %s48 = sadd.s32 %s47, 1
    %p51 = scmp.eq.s32.totalorder %s13, 1
    %p52 = scmp.ne.s32.totalorder %s47, %s49
    %p53 = scmp.eq.s32.totalorder %s13, 0
    %p54 = por %p52, %p53
    %p55 = scmp.ne.s32.totalorder %s47, %s49
    %p56 = scmp.eq.s32.totalorder %s18, 1
    %p57 = por %p55, %p56
    %p58 = scmp.ne.s32.totalorder %s49, %s50
    %p59 = scmp.eq.s32.totalorder %s18, 0
    %p60 = por %p58, %p59
    %p61 = scmp.ne.s32.totalorder %s49, %s50
    %p62 = scmp.eq.s32.totalorder %s19, 1
    %p63 = por %p61, %p62
    %p65 = scmp.ne.s32.totalorder %s50, %s64
    %p66 = scmp.eq.s32.totalorder %s19, 0
    %p67 = por %p65, %p66
    %s69 = sadd.s32 %s68, 1
    %p72 = scmp.eq.s32.totalorder %s13, 1
    %p73 = scmp.ne.s32.totalorder %s68, %s70
    %p74 = scmp.eq.s32.totalorder %s13, 0
    %p75 = por %p73, %p74
    %p76 = scmp.ne.s32.totalorder %s68, %s70
    %p77 = scmp.eq.s32.totalorder %s18, 1
    %p78 = por %p76, %p77
    %p79 = scmp.ne.s32.totalorder %s70, %s71
    %p80 = scmp.eq.s32.totalorder %s18, 0
    %p81 = por %p79, %p80
    %p82 = scmp.ne.s32.totalorder %s70, %s71
    %p83 = scmp.eq.s32.totalorder %s19, 1
    %p84 = por %p82, %p83
    %p86 = scmp.ne.s32.totalorder %s71, %s85
    %p87 = scmp.eq.s32.totalorder %s19, 0
    %p88 = por %p86, %p87
    %s90 = sadd.s32 %s89, 1
    %p93 = scmp.eq.s32.totalorder %s13, 1
    %p94 = scmp.ne.s32.totalorder %s89, %s91
    %p95 = scmp.eq.s32.totalorder %s13, 0
    %p96 = por %p94, %p95
    %p97 = scmp.ne.s32.totalorder %s89, %s91
    %p98 = scmp.eq.s32.totalorder %s18, 1
    %p99 = por %p97, %p98
    %p100 = scmp.ne.s32.totalorder %s91, %s92
    %p101 = scmp.eq.s32.totalorder %s18, 0
    %p102 = por %p100, %p101
    %p103 = scmp.ne.s32.totalorder %s91, %s92
    %p104 = scmp.eq.s32.totalorder %s19, 1
    %p105 = por %p103, %p104
    %p107 = scmp.ne.s32.totalorder %s92, %s106
    %p108 = scmp.eq.s32.totalorder %s19, 0
    %p109 = por %p107, %p108
    %s111 = sadd.s32 %s110, 1
    %p114 = scmp.eq.s32.totalorder %s13, 1
    %p115 = scmp.ne.s32.totalorder %s110, %s112
    %p116 = scmp.eq.s32.totalorder %s13, 0
    %p117 = por %p115, %p116
    %p118 = scmp.ne.s32.totalorder %s110, %s112
    %p119 = scmp.eq.s32.totalorder %s18, 1
    %p120 = por %p118, %p119
    %p121 = scmp.ne.s32.totalorder %s112, %s113
    %p122 = scmp.eq.s32.totalorder %s18, 0
    %p123 = por %p121, %p122
    %p124 = scmp.ne.s32.totalorder %s112, %s113
    %p125 = scmp.eq.s32.totalorder %s19, 1
    %p126 = por %p124, %p125
    %p128 = scmp.ne.s32.totalorder %s113, %s127
    %p129 = scmp.eq.s32.totalorder %s19, 0
    %p130 = por %p128, %p129
    %s132 = sadd.s32 %s131, 1
    %p135 = scmp.eq.s32.totalorder %s13, 1
    %p136 = scmp.ne.s32.totalorder %s131, %s133
    %p137 = scmp.eq.s32.totalorder %s13, 0
    %p138 = por %p136, %p137
    %p139 = scmp.ne.s32.totalorder %s131, %s133
    %p140 = scmp.eq.s32.totalorder %s18, 1
    %p141 = por %p139, %p140
    %p142 = scmp.ne.s32.totalorder %s133, %s134
    %p143 = scmp.eq.s32.totalorder %s18, 0
    %p144 = por %p142, %p143
    %p145 = scmp.ne.s32.totalorder %s133, %s134
    %p146 = scmp.eq.s32.totalorder %s19, 1
    %p147 = por %p145, %p146
    %p149 = scmp.ne.s32.totalorder %s134, %s148
    %p150 = scmp.eq.s32.totalorder %s19, 0
    %p151 = por %p149, %p150
    %s153 = sadd.s32 %s152, 1
    %p156 = scmp.eq.s32.totalorder %s13, 1
    %p157 = scmp.ne.s32.totalorder %s152, %s154
    %p158 = scmp.eq.s32.totalorder %s13, 0
    %p159 = por %p157, %p158
    %p160 = scmp.ne.s32.totalorder %s152, %s154
    %p161 = scmp.eq.s32.totalorder %s18, 1
    %p162 = por %p160, %p161
    %p163 = scmp.ne.s32.totalorder %s154, %s155
    %p164 = scmp.eq.s32.totalorder %s18, 0
    %p165 = por %p163, %p164
    %p166 = scmp.ne.s32.totalorder %s154, %s155
    %p167 = scmp.eq.s32.totalorder %s19, 1
    %p168 = por %p166, %p167
    %p170 = scmp.ne.s32.totalorder %s155, %s169
    %p171 = scmp.eq.s32.totalorder %s19, 0
    %p172 = por %p170, %p171
    %s173 = ssub.s32 %s13, %s20
    %p174 = scmp.eq.s32.totalorder %s173, 0
    %s176 = sadd.s32 %s175, 1
    %s177 = scalar_select %p174, %s175, %s176
    %p180 = pneg %p174
    %p181 = scmp.eq.s32.totalorder %s13, 1
    %p182 = por %p180, %p181
    %p183 = scmp.ne.s32.totalorder %s175, %s178
    %p184 = scmp.eq.s32.totalorder %s13, 0
    %p185 = por %p183, %p184
    %p186 = scmp.ne.s32.totalorder %s175, %s178
    %p187 = scmp.eq.s32.totalorder %s18, 1
    %p188 = por %p186, %p187
    %p189 = scmp.ne.s32.totalorder %s178, %s179
    %p190 = scmp.eq.s32.totalorder %s18, 0
    %p191 = por %p189, %p190
    %p192 = scmp.ne.s32.totalorder %s178, %s179
    %p193 = scmp.eq.s32.totalorder %s19, 1
    %p194 = por %p192, %p193
    %p196 = scmp.ne.s32.totalorder %s179, %s195
    %p197 = scmp.eq.s32.totalorder %s19, 0
    %p198 = por %p196, %p197
    %p199 = scmp.le.s32.totalorder 1, %s13
    %p200 = scmp.lt.s32.totalorder %s13, 3
    %p201 = pnand %p199, %p200
    %p202 = pneg %p201
    // Predicated region
    $region9: #{basic_block_pallas.1} parent=5 // pred_check
      _
    $region10: #{basic_block_pallas.1} parent=5 // pred_check_branch
      %204 = sbr.rel (%p201) target = $region12
    $region11: #{basic_block_pallas.1} parent=5 // pred_region
      %s205 = ssub.s32 %s13, 1
      // Predicated region
      $region13: #{basic_block_pallas.1} parent=11 // pred_check
        %p206 = pneg %p60
      $region14: #{basic_block_pallas.1} parent=11 // pred_check_branch
        %208 = sbr.rel (%p206) target = $region16
      $region15: #{basic_block_pallas.1} parent=11 // pred_region
        _
      $region16: #{basic_block_pallas.1} parent=11 // pred_fallthru
        _
      // Predicated region
      $region17: #{basic_block_pallas.1} parent=11 // pred_check
        %p209 = pneg %p81
      $region18: #{basic_block_pallas.1} parent=11 // pred_check_branch
        %211 = sbr.rel (%p209) target = $region20
      $region19: #{basic_block_pallas.1} parent=11 // pred_region
        _
      $region20: #{basic_block_pallas.1} parent=11 // pred_fallthru
        _
      // Predicated region
      $region21: #{basic_block_pallas.1} parent=11 // pred_check
        %p212 = pneg %p102
      $region22: #{basic_block_pallas.1} parent=11 // pred_check_branch
        %214 = sbr.rel (%p212) target = $region24
      $region23: #{basic_block_pallas.1} parent=11 // pred_region
        _
      $region24: #{basic_block_pallas.1} parent=11 // pred_fallthru
        _
      // Predicated region
      $region25: #{basic_block_pallas.1} parent=11 // pred_check
        %p215 = pneg %p123
      $region26: #{basic_block_pallas.1} parent=11 // pred_check_branch
        %217 = sbr.rel (%p215) target = $region28
      $region27: #{basic_block_pallas.1} parent=11 // pred_region
        _
      $region28: #{basic_block_pallas.1} parent=11 // pred_fallthru
        _
      // Predicated region
      $region29: #{basic_block_pallas.1} parent=11 // pred_check
        %p218 = pneg %p144
      $region30: #{basic_block_pallas.1} parent=11 // pred_check_branch
        %220 = sbr.rel (%p218) target = $region32
      $region31: #{basic_block_pallas.1} parent=11 // pred_region
        _
      $region32: #{basic_block_pallas.1} parent=11 // pred_fallthru
        _
      // Predicated region
      $region33: #{basic_block_pallas.1} parent=11 // pred_check
        %p221 = pneg %p165
      $region34: #{basic_block_pallas.1} parent=11 // pred_check_branch
        %223 = sbr.rel (%p221) target = $region36
      $region35: #{basic_block_pallas.1} parent=11 // pred_region
        _
      $region36: #{basic_block_pallas.1} parent=11 // pred_fallthru
        _
    $region12: #{basic_block_pallas.1} parent=5 // pred_fallthru
      _
    %p224 = scmp.lt.s32.totalorder %s13, 2
    // Predicated region
    $region37: #{basic_block_pallas.1} parent=5 // pred_check
      %p225 = pneg %p224
    $region38: #{basic_block_pallas.1} parent=5 // pred_check_branch
      %227 = sbr.rel (%p225) target = $region40
    $region39: #{basic_block_pallas.1} parent=5 // pred_region
      // Predicated region
      $region41: #{basic_block_pallas.1} parent=39 // pred_check
        %p228 = pneg %p33
      $region42: #{basic_block_pallas.1} parent=39 // pred_check_branch
        %230 = sbr.rel (%p228) target = $region44
      $region43: #{basic_block_pallas.1} parent=39 // pred_region
        %p231 = scmp.lt.s32.totalorder %s13, 1
        %s232 = scalar_select %p231, %s13, 1
        %s233 = smul.addr %s232, 32
        %s234 = smul.addr %s233, 4
        %s235 = scalar_lea.vmem %s0, %s234
      $region44: #{basic_block_pallas.1} parent=39 // pred_fallthru
        _
    $region40: #{basic_block_pallas.1} parent=5 // pred_fallthru
      _
    %p236 = scmp.le.s32.totalorder 1, %s13
    %p237 = scmp.lt.s32.totalorder %s13, 3
    %p238 = pnand %p236, %p237
    %p239 = pneg %p238
    // Predicated region
    $region45: #{basic_block_pallas.1} parent=5 // pred_check
      _
    $region46: #{basic_block_pallas.1} parent=5 // pred_check_branch
      %241 = sbr.rel (%p238) target = $region48
    $region47: #{basic_block_pallas.1} parent=5 // pred_region
      %s242 = ssub.s32 %s13, 1
      %p243 = scmp.lt.s32.totalorder %s18, 1
      %s244 = scalar_select %p243, %s18, 1
      %s245 = smul.addr %s244, 32
      %s246 = smul.addr %s245, 4
      %s247 = scalar_lea.vmem %s0, %s246
      %p248 = pneg %p39
      %p249 = pneg %p36
      %p250 = pneg %p60
      %p251 = pneg %p57
      %p252 = pneg %p81
      %p253 = pneg %p78
      %p254 = pneg %p102
      %p255 = pneg %p99
      %p256 = pneg %p123
      %p257 = pneg %p120
      %p258 = pneg %p144
      %p259 = pneg %p141
      %p260 = pneg %p165
      %p261 = pneg %p162
      %p262 = pneg %p191
      %p263 = pneg %p188
      %p264 = scmp.lt.s32.totalorder %s18, 1
      %s265 = scalar_select %p264, %s18, 1
      %s266 = smul.addr %s265, 32
      %s267 = smul.addr %s266, 8
      %s268 = scalar_lea.vmem %s7, %s267
      %p269 = scmp.lt.s32.totalorder %s18, 1
      %s270 = scalar_select %p269, %s18, 1
      %s271 = smul.addr %s270, 32
      %s272 = smul.addr %s271, 4
      %s273 = scalar_lea.vmem %s0, %s272
      %p274 = scmp.lt.s32.totalorder %s18, 1
      %s275 = scalar_select %p274, %s18, 1
      %s276 = smul.addr %s275, 32
      %s277 = smul.addr %s276, 8
      %s278 = scalar_lea.vmem %s7, %s277
      %280 = vst [vmem:[#allocation2] sm:$0xf] 0
      %281 = vst [vmem:[#allocation2 + $0x4] sm:$0xf] 0
      %282 = vst [vmem:[#allocation2 + $0x8] sm:$0x1] 0
      %s283 = scalar_lea.vmem [#allocation2], 204
      %284 = vst [vmem:[%s283] sm:$0xf] 0
      %285 = vst [vmem:[%s283 + $0x4] sm:$0xf] 0
      %286 = vst [vmem:[%s283 + $0x8] sm:$0x1] 0
      %s287 = scalar_lea.vmem [#allocation2], 12
      %vm288 = vcmask 1040384
      %vm289 = vsmask.f32 256
      %vm290 = vmand %vm288, %vm289
      %v291 = vld [vmem:[%s287] sm:$0x1]
      %v292 = vsel %vm290, 0, %v291
      %293 = vst [vmem:[%s287] sm:$0x1] %v292
      %v294 = vld [vmem:[%s287 + $0xc] sm:$0x1]
      %v295 = vsel %vm290, 0, %v294
      %296 = vst [vmem:[%s287 + $0xc] sm:$0x1] %v295
      %v297 = vld [vmem:[%s287 + $0x18] sm:$0x1]
      %v298 = vsel %vm290, 0, %v297
      %299 = vst [vmem:[%s287 + $0x18] sm:$0x1] %v298
      %v300 = vld [vmem:[%s287 + $0x24] sm:$0x1]
      %v301 = vsel %vm290, 0, %v300
      %302 = vst [vmem:[%s287 + $0x24] sm:$0x1] %v301
      %v303 = vld [vmem:[%s287 + $0x30] sm:$0x1]
      %v304 = vsel %vm290, 0, %v303
      %305 = vst [vmem:[%s287 + $0x30] sm:$0x1] %v304
      %v306 = vld [vmem:[%s287 + $0x3c] sm:$0x1]
      %v307 = vsel %vm290, 0, %v306
      %308 = vst [vmem:[%s287 + $0x3c] sm:$0x1] %v307
      %v309 = vld [vmem:[%s287 + $0x48] sm:$0x1]
      %v310 = vsel %vm290, 0, %v309
      %311 = vst [vmem:[%s287 + $0x48] sm:$0x1] %v310
      %v312 = vld [vmem:[%s287 + $0x54] sm:$0x1]
      %v313 = vsel %vm290, 0, %v312
      %314 = vst [vmem:[%s287 + $0x54] sm:$0x1] %v313
      %v315 = vld [vmem:[%s287 + $0x60] sm:$0x1]
      %v316 = vsel %vm290, 0, %v315
      %317 = vst [vmem:[%s287 + $0x60] sm:$0x1] %v316
      %v318 = vld [vmem:[%s287 + $0x6c] sm:$0x1]
      %v319 = vsel %vm290, 0, %v318
      %320 = vst [vmem:[%s287 + $0x6c] sm:$0x1] %v319
      %v321 = vld [vmem:[%s287 + $0x78] sm:$0x1]
      %v322 = vsel %vm290, 0, %v321
      %323 = vst [vmem:[%s287 + $0x78] sm:$0x1] %v322
      %v324 = vld [vmem:[%s287 + $0x84] sm:$0x1]
      %v325 = vsel %vm290, 0, %v324
      %326 = vst [vmem:[%s287 + $0x84] sm:$0x1] %v325
      %v327 = vld [vmem:[%s287 + $0x90] sm:$0x1]
      %v328 = vsel %vm290, 0, %v327
      %329 = vst [vmem:[%s287 + $0x90] sm:$0x1] %v328
      %v330 = vld [vmem:[%s287 + $0x9c] sm:$0x1]
      %v331 = vsel %vm290, 0, %v330
      %332 = vst [vmem:[%s287 + $0x9c] sm:$0x1] %v331
      %v333 = vld [vmem:[%s287 + $0xa8] sm:$0x1]
      %v334 = vsel %vm290, 0, %v333
      %335 = vst [vmem:[%s287 + $0xa8] sm:$0x1] %v334
      %v336 = vld [vmem:[%s287 + $0xb4] sm:$0x1]
      %v337 = vsel %vm290, 0, %v336
      %338 = vst [vmem:[%s287 + $0xb4] sm:$0x1] %v337
      %vm339 = vsmask.f32 7938
      %vm340 = vmand %vm288, %vm339
      %v341 = vld [vmem:[%s287 + $0x8] sm:$0x1]
      %v342 = vsel %vm340, 0, %v341
      %343 = vst [vmem:[%s287 + $0x8] sm:$0x1] %v342
      %v344 = vld [vmem:[%s287 + $0x14] sm:$0x1]
      %v345 = vsel %vm340, 0, %v344
      %346 = vst [vmem:[%s287 + $0x14] sm:$0x1] %v345
      %v347 = vld [vmem:[%s287 + $0x20] sm:$0x1]
      %v348 = vsel %vm340, 0, %v347
      %349 = vst [vmem:[%s287 + $0x20] sm:$0x1] %v348
      %v350 = vld [vmem:[%s287 + $0x2c] sm:$0x1]
      %v351 = vsel %vm340, 0, %v350
      %352 = vst [vmem:[%s287 + $0x2c] sm:$0x1] %v351
      %v353 = vld [vmem:[%s287 + $0x38] sm:$0x1]
      %v354 = vsel %vm340, 0, %v353
      %355 = vst [vmem:[%s287 + $0x38] sm:$0x1] %v354
      %v356 = vld [vmem:[%s287 + $0x44] sm:$0x1]
      %v357 = vsel %vm340, 0, %v356
      %358 = vst [vmem:[%s287 + $0x44] sm:$0x1] %v357
      %v359 = vld [vmem:[%s287 + $0x50] sm:$0x1]
      %v360 = vsel %vm340, 0, %v359
      %361 = vst [vmem:[%s287 + $0x50] sm:$0x1] %v360
      %v362 = vld [vmem:[%s287 + $0x5c] sm:$0x1]
      %v363 = vsel %vm340, 0, %v362
      %364 = vst [vmem:[%s287 + $0x5c] sm:$0x1] %v363
      %v365 = vld [vmem:[%s287 + $0x68] sm:$0x1]
      %v366 = vsel %vm340, 0, %v365
      %367 = vst [vmem:[%s287 + $0x68] sm:$0x1] %v366
      %v368 = vld [vmem:[%s287 + $0x74] sm:$0x1]
      %v369 = vsel %vm340, 0, %v368
      %370 = vst [vmem:[%s287 + $0x74] sm:$0x1] %v369
      %v371 = vld [vmem:[%s287 + $0x80] sm:$0x1]
      %v372 = vsel %vm340, 0, %v371
      %373 = vst [vmem:[%s287 + $0x80] sm:$0x1] %v372
      %v374 = vld [vmem:[%s287 + $0x8c] sm:$0x1]
      %v375 = vsel %vm340, 0, %v374
      %376 = vst [vmem:[%s287 + $0x8c] sm:$0x1] %v375
      %v377 = vld [vmem:[%s287 + $0x98] sm:$0x1]
      %v378 = vsel %vm340, 0, %v377
      %379 = vst [vmem:[%s287 + $0x98] sm:$0x1] %v378
      %v380 = vld [vmem:[%s287 + $0xa4] sm:$0x1]
      %v381 = vsel %vm340, 0, %v380
      %382 = vst [vmem:[%s287 + $0xa4] sm:$0x1] %v381
      %v383 = vld [vmem:[%s287 + $0xb0] sm:$0x1]
      %v384 = vsel %vm340, 0, %v383
      %385 = vst [vmem:[%s287 + $0xb0] sm:$0x1] %v384
      %v386 = vld [vmem:[%s287 + $0xbc] sm:$0x1]
      %v387 = vsel %vm340, 0, %v386
      %388 = vst [vmem:[%s287 + $0xbc] sm:$0x1] %v387
      %v389 = vld [vmem:[%s273] sm:$0xf]
      %v390 = vld [vmem:[%s273 + $0x4] sm:$0xf]
      %v391 = vld [vmem:[%s273 + $0x8] sm:$0xf]
      %v392 = vld [vmem:[%s273 + $0xc] sm:$0xf]
      %v393 = vld [vmem:[%s273 + $0x10] sm:$0xf]
      %v394 = vld [vmem:[%s273 + $0x14] sm:$0xf]
      %v395 = vld [vmem:[%s273 + $0x18] sm:$0xf]
      %v396 = vld [vmem:[%s273 + $0x1c] sm:$0xf]
      %v397 = vld [vmem:[%s273 + $0x20] sm:$0xf]
      %v398 = vld [vmem:[%s273 + $0x24] sm:$0xf]
      %v399 = vld [vmem:[%s273 + $0x28] sm:$0xf]
      %v400 = vld [vmem:[%s273 + $0x2c] sm:$0xf]
      %v401 = vld [vmem:[%s273 + $0x30] sm:$0xf]
      %v402 = vld [vmem:[%s273 + $0x34] sm:$0xf]
      %v403 = vld [vmem:[%s273 + $0x38] sm:$0xf]
      %v404 = vld [vmem:[%s273 + $0x3c] sm:$0xf]
      %v405 = vld [vmem:[%s273 + $0x40] sm:$0xf]
      %v406 = vld [vmem:[%s273 + $0x44] sm:$0xf]
      %v407 = vld [vmem:[%s273 + $0x48] sm:$0xf]
      %v408 = vld [vmem:[%s273 + $0x4c] sm:$0xf]
      %v409 = vld [vmem:[%s273 + $0x50] sm:$0xf]
      %v410 = vld [vmem:[%s273 + $0x54] sm:$0xf]
      %v411 = vld [vmem:[%s273 + $0x58] sm:$0xf]
      %v412 = vld [vmem:[%s273 + $0x5c] sm:$0xf]
      %v413 = vld [vmem:[%s273 + $0x60] sm:$0xf]
      %v414 = vld [vmem:[%s273 + $0x64] sm:$0xf]
      %v415 = vld [vmem:[%s273 + $0x68] sm:$0xf]
      %v416 = vld [vmem:[%s273 + $0x6c] sm:$0xf]
      %v417 = vld [vmem:[%s273 + $0x70] sm:$0xf]
      %v418 = vld [vmem:[%s273 + $0x74] sm:$0xf]
      %v419 = vld [vmem:[%s273 + $0x78] sm:$0xf]
      %v420 = vld [vmem:[%s273 + $0x7c] sm:$0xf]
      %vm421 = vsmask.f32 4368
      %vm422 = vmor %vm289, %vm421
      %v424 = vshrl.u32 %v389, 16
      %v426 = vrot.slane %v424, 7
      %v427 = vshll.u32 %v389, 16
      %v429 = vor.u32 %v426, %v427
      %v430 = vrot.slane %v426, 4
      %v432 = vshrl.u32 %v390, 16
      %v434 = vrot.slane %v432, 7
      %v435 = vshll.u32 %v390, 16
      %v437 = vor.u32 %v434, %v435
      %v438 = vsel %vm422, %v430, %v437
      %v439 = vrot.slane %v434, 4
      %v441 = vshrl.u32 %v391, 16
      %v443 = vrot.slane %v441, 7
      %v444 = vshll.u32 %v391, 16
      %v446 = vor.u32 %v443, %v444
      %v447 = vrot.slane %v443, 4
      %v449 = vshrl.u32 %v392, 16
      %v451 = vrot.slane %v449, 7
      %v452 = vshll.u32 %v392, 16
      %v454 = vor.u32 %v451, %v452
      %v455 = vsel %vm422, %v447, %v454
      %v456 = vrot.slane %v451, 4
      %v458 = vshrl.u32 %v393, 16
      %v460 = vrot.slane %v458, 7
      %v461 = vshll.u32 %v393, 16
      %v463 = vor.u32 %v460, %v461
      %v464 = vrot.slane %v460, 4
      %v466 = vshrl.u32 %v394, 16
      %v468 = vrot.slane %v466, 7
      %v469 = vshll.u32 %v394, 16
      %v471 = vor.u32 %v468, %v469
      %v472 = vsel %vm422, %v464, %v471
      %v473 = vrot.slane %v468, 4
      %v475 = vshrl.u32 %v395, 16
      %v477 = vrot.slane %v475, 7
      %v478 = vshll.u32 %v395, 16
      %v480 = vor.u32 %v477, %v478
      %v481 = vrot.slane %v477, 4
      %v483 = vshrl.u32 %v396, 16
      %v485 = vrot.slane %v483, 7
      %v486 = vshll.u32 %v396, 16
      %v488 = vor.u32 %v485, %v486
      %v489 = vsel %vm422, %v481, %v488
      %v490 = vrot.slane %v485, 4
      %v492 = vshrl.u32 %v397, 16
      %v494 = vrot.slane %v492, 7
      %v495 = vshll.u32 %v397, 16
      %v497 = vor.u32 %v494, %v495
      %v498 = vrot.slane %v494, 4
      %v500 = vshrl.u32 %v398, 16
      %v502 = vrot.slane %v500, 7
      %v503 = vshll.u32 %v398, 16
      %v505 = vor.u32 %v502, %v503
      %v506 = vsel %vm422, %v498, %v505
      %v507 = vrot.slane %v502, 4
      %v509 = vshrl.u32 %v399, 16
      %v511 = vrot.slane %v509, 7
      %v512 = vshll.u32 %v399, 16
      %v514 = vor.u32 %v511, %v512
      %v515 = vrot.slane %v511, 4
      %v517 = vshrl.u32 %v400, 16
      %v519 = vrot.slane %v517, 7
      %v520 = vshll.u32 %v400, 16
      %v522 = vor.u32 %v519, %v520
      %v523 = vsel %vm422, %v515, %v522
      %v524 = vrot.slane %v519, 4
      %v526 = vshrl.u32 %v401, 16
      %v528 = vrot.slane %v526, 7
      %v529 = vshll.u32 %v401, 16
      %v531 = vor.u32 %v528, %v529
      %v532 = vrot.slane %v528, 4
      %v534 = vshrl.u32 %v402, 16
      %v536 = vrot.slane %v534, 7
      %v537 = vshll.u32 %v402, 16
      %v539 = vor.u32 %v536, %v537
      %v540 = vsel %vm422, %v532, %v539
      %v541 = vrot.slane %v536, 4
      %v543 = vshrl.u32 %v403, 16
      %v545 = vrot.slane %v543, 7
      %v546 = vshll.u32 %v403, 16
      %v548 = vor.u32 %v545, %v546
      %v549 = vrot.slane %v545, 4
      %v551 = vshrl.u32 %v404, 16
      %v553 = vrot.slane %v551, 7
      %v554 = vshll.u32 %v404, 16
      %v556 = vor.u32 %v553, %v554
      %v557 = vsel %vm422, %v549, %v556
      %v558 = vrot.slane %v553, 4
      %v560 = vshrl.u32 %v405, 16
      %v562 = vrot.slane %v560, 7
      %v563 = vshll.u32 %v405, 16
      %v565 = vor.u32 %v562, %v563
      %v566 = vrot.slane %v562, 4
      %v568 = vshrl.u32 %v406, 16
      %v570 = vrot.slane %v568, 7
      %v571 = vshll.u32 %v406, 16
      %v573 = vor.u32 %v570, %v571
      %v574 = vsel %vm422, %v566, %v573
      %v575 = vrot.slane %v570, 4
      %v577 = vshrl.u32 %v407, 16
      %v579 = vrot.slane %v577, 7
      %v580 = vshll.u32 %v407, 16
      %v582 = vor.u32 %v579, %v580
      %v583 = vrot.slane %v579, 4
      %v585 = vshrl.u32 %v408, 16
      %v587 = vrot.slane %v585, 7
      %v588 = vshll.u32 %v408, 16
      %v590 = vor.u32 %v587, %v588
      %v591 = vsel %vm422, %v583, %v590
      %v592 = vrot.slane %v587, 4
      %v594 = vshrl.u32 %v409, 16
      %v596 = vrot.slane %v594, 7
      %v597 = vshll.u32 %v409, 16
      %v599 = vor.u32 %v596, %v597
      %v600 = vrot.slane %v596, 4
      %v602 = vshrl.u32 %v410, 16
      %v604 = vrot.slane %v602, 7
      %v605 = vshll.u32 %v410, 16
      %v607 = vor.u32 %v604, %v605
      %v608 = vsel %vm422, %v600, %v607
      %v609 = vrot.slane %v604, 4
      %v611 = vshrl.u32 %v411, 16
      %v613 = vrot.slane %v611, 7
      %v614 = vshll.u32 %v411, 16
      %v616 = vor.u32 %v613, %v614
      %v617 = vrot.slane %v613, 4
      %v619 = vshrl.u32 %v412, 16
      %v621 = vrot.slane %v619, 7
      %v622 = vshll.u32 %v412, 16
      %v624 = vor.u32 %v621, %v622
      %v625 = vsel %vm422, %v617, %v624
      %v626 = vrot.slane %v621, 4
      %v628 = vshrl.u32 %v413, 16
      %v630 = vrot.slane %v628, 7
      %v631 = vshll.u32 %v413, 16
      %v633 = vor.u32 %v630, %v631
      %v634 = vrot.slane %v630, 4
      %v636 = vshrl.u32 %v414, 16
      %v638 = vrot.slane %v636, 7
      %v639 = vshll.u32 %v414, 16
      %v641 = vor.u32 %v638, %v639
      %v642 = vsel %vm422, %v634, %v641
      %v643 = vrot.slane %v638, 4
      %v645 = vshrl.u32 %v415, 16
      %v647 = vrot.slane %v645, 7
      %v648 = vshll.u32 %v415, 16
      %v650 = vor.u32 %v647, %v648
      %v651 = vrot.slane %v647, 4
      %v653 = vshrl.u32 %v416, 16
      %v655 = vrot.slane %v653, 7
      %v656 = vshll.u32 %v416, 16
      %v658 = vor.u32 %v655, %v656
      %v659 = vsel %vm422, %v651, %v658
      %v660 = vrot.slane %v655, 4
      %v662 = vshrl.u32 %v417, 16
      %v664 = vrot.slane %v662, 7
      %v665 = vshll.u32 %v417, 16
      %v667 = vor.u32 %v664, %v665
      %v668 = vrot.slane %v664, 4
      %v670 = vshrl.u32 %v418, 16
      %v672 = vrot.slane %v670, 7
      %v673 = vshll.u32 %v418, 16
      %v675 = vor.u32 %v672, %v673
      %v676 = vsel %vm422, %v668, %v675
      %v677 = vrot.slane %v672, 4
      %v679 = vshrl.u32 %v419, 16
      %v681 = vrot.slane %v679, 7
      %v682 = vshll.u32 %v419, 16
      %v684 = vor.u32 %v681, %v682
      %v685 = vrot.slane %v681, 4
      %v687 = vshrl.u32 %v420, 16
      %v689 = vrot.slane %v687, 7
      %v690 = vshll.u32 %v420, 16
      %v692 = vor.u32 %v689, %v690
      %v693 = vsel %vm422, %v685, %v692
      %v694 = vrot.slane %v689, 4
      %vm743 = vcmask 1043456
      %vm744 = vmand %vm743, %vm339
      %v745 = vld [vmem:[%s287] sm:$0xf]
      %v746 = vsel %vm744, %v429, %v745
      %747 = vst [vmem:[%s287] sm:$0xf] %v746
      %748 = vst [vmem:[%s287 + $0x4] sm:$0xf] %v438
      %v749 = vld [vmem:[%s287 + $0x8] sm:$0x1]
      %v750 = vsel %vm290, %v439, %v749
      %751 = vst [vmem:[%s287 + $0x8] sm:$0x1] %v750
      %v752 = vld [vmem:[%s287 + $0xc] sm:$0xf]
      %v753 = vsel %vm744, %v446, %v752
      %754 = vst [vmem:[%s287 + $0xc] sm:$0xf] %v753
      %755 = vst [vmem:[%s287 + $0x10] sm:$0xf] %v455
      %v756 = vld [vmem:[%s287 + $0x14] sm:$0x1]
      %v757 = vsel %vm290, %v456, %v756
      %758 = vst [vmem:[%s287 + $0x14] sm:$0x1] %v757
      %v759 = vld [vmem:[%s287 + $0x18] sm:$0xf]
      %v760 = vsel %vm744, %v463, %v759
      %761 = vst [vmem:[%s287 + $0x18] sm:$0xf] %v760
      %762 = vst [vmem:[%s287 + $0x1c] sm:$0xf] %v472
      %v763 = vld [vmem:[%s287 + $0x20] sm:$0x1]
      %v764 = vsel %vm290, %v473, %v763
      %765 = vst [vmem:[%s287 + $0x20] sm:$0x1] %v764
      %v766 = vld [vmem:[%s287 + $0x24] sm:$0xf]
      %v767 = vsel %vm744, %v480, %v766
      %768 = vst [vmem:[%s287 + $0x24] sm:$0xf] %v767
      %769 = vst [vmem:[%s287 + $0x28] sm:$0xf] %v489
      %v770 = vld [vmem:[%s287 + $0x2c] sm:$0x1]
      %v771 = vsel %vm290, %v490, %v770
      %772 = vst [vmem:[%s287 + $0x2c] sm:$0x1] %v771
      %v773 = vld [vmem:[%s287 + $0x30] sm:$0xf]
      %v774 = vsel %vm744, %v497, %v773
      %775 = vst [vmem:[%s287 + $0x30] sm:$0xf] %v774
      %776 = vst [vmem:[%s287 + $0x34] sm:$0xf] %v506
      %v777 = vld [vmem:[%s287 + $0x38] sm:$0x1]
      %v778 = vsel %vm290, %v507, %v777
      %779 = vst [vmem:[%s287 + $0x38] sm:$0x1] %v778
      %v780 = vld [vmem:[%s287 + $0x3c] sm:$0xf]
      %v781 = vsel %vm744, %v514, %v780
      %782 = vst [vmem:[%s287 + $0x3c] sm:$0xf] %v781
      %783 = vst [vmem:[%s287 + $0x40] sm:$0xf] %v523
      %v784 = vld [vmem:[%s287 + $0x44] sm:$0x1]
      %v785 = vsel %vm290, %v524, %v784
      %786 = vst [vmem:[%s287 + $0x44] sm:$0x1] %v785
      %v787 = vld [vmem:[%s287 + $0x48] sm:$0xf]
      %v788 = vsel %vm744, %v531, %v787
      %789 = vst [vmem:[%s287 + $0x48] sm:$0xf] %v788
      %790 = vst [vmem:[%s287 + $0x4c] sm:$0xf] %v540
      %v791 = vld [vmem:[%s287 + $0x50] sm:$0x1]
      %v792 = vsel %vm290, %v541, %v791
      %793 = vst [vmem:[%s287 + $0x50] sm:$0x1] %v792
      %v794 = vld [vmem:[%s287 + $0x54] sm:$0xf]
      %v795 = vsel %vm744, %v548, %v794
      %796 = vst [vmem:[%s287 + $0x54] sm:$0xf] %v795
      %797 = vst [vmem:[%s287 + $0x58] sm:$0xf] %v557
      %v798 = vld [vmem:[%s287 + $0x5c] sm:$0x1]
      %v799 = vsel %vm290, %v558, %v798
      %800 = vst [vmem:[%s287 + $0x5c] sm:$0x1] %v799
      %v801 = vld [vmem:[%s287 + $0x60] sm:$0xf]
      %v802 = vsel %vm744, %v565, %v801
      %803 = vst [vmem:[%s287 + $0x60] sm:$0xf] %v802
      %804 = vst [vmem:[%s287 + $0x64] sm:$0xf] %v574
      %v805 = vld [vmem:[%s287 + $0x68] sm:$0x1]
      %v806 = vsel %vm290, %v575, %v805
      %807 = vst [vmem:[%s287 + $0x68] sm:$0x1] %v806
      %v808 = vld [vmem:[%s287 + $0x6c] sm:$0xf]
      %v809 = vsel %vm744, %v582, %v808
      %810 = vst [vmem:[%s287 + $0x6c] sm:$0xf] %v809
      %811 = vst [vmem:[%s287 + $0x70] sm:$0xf] %v591
      %v812 = vld [vmem:[%s287 + $0x74] sm:$0x1]
      %v813 = vsel %vm290, %v592, %v812
      %814 = vst [vmem:[%s287 + $0x74] sm:$0x1] %v813
      %v815 = vld [vmem:[%s287 + $0x78] sm:$0xf]
      %v816 = vsel %vm744, %v599, %v815
      %817 = vst [vmem:[%s287 + $0x78] sm:$0xf] %v816
      %818 = vst [vmem:[%s287 + $0x7c] sm:$0xf] %v608
      %v819 = vld [vmem:[%s287 + $0x80] sm:$0x1]
      %v820 = vsel %vm290, %v609, %v819
      %821 = vst [vmem:[%s287 + $0x80] sm:$0x1] %v820
      %v822 = vld [vmem:[%s287 + $0x84] sm:$0xf]
      %v823 = vsel %vm744, %v616, %v822
      %824 = vst [vmem:[%s287 + $0x84] sm:$0xf] %v823
      %825 = vst [vmem:[%s287 + $0x88] sm:$0xf] %v625
      %v826 = vld [vmem:[%s287 + $0x8c] sm:$0x1]
      %v827 = vsel %vm290, %v626, %v826
      %828 = vst [vmem:[%s287 + $0x8c] sm:$0x1] %v827
      %v829 = vld [vmem:[%s287 + $0x90] sm:$0xf]
      %v830 = vsel %vm744, %v633, %v829
      %831 = vst [vmem:[%s287 + $0x90] sm:$0xf] %v830
      %832 = vst [vmem:[%s287 + $0x94] sm:$0xf] %v642
      %v833 = vld [vmem:[%s287 + $0x98] sm:$0x1]
      %v834 = vsel %vm290, %v643, %v833
      %835 = vst [vmem:[%s287 + $0x98] sm:$0x1] %v834
      %v836 = vld [vmem:[%s287 + $0x9c] sm:$0xf]
      %v837 = vsel %vm744, %v650, %v836
      %838 = vst [vmem:[%s287 + $0x9c] sm:$0xf] %v837
      %839 = vst [vmem:[%s287 + $0xa0] sm:$0xf] %v659
      %v840 = vld [vmem:[%s287 + $0xa4] sm:$0x1]
      %v841 = vsel %vm290, %v660, %v840
      %842 = vst [vmem:[%s287 + $0xa4] sm:$0x1] %v841
      %v843 = vld [vmem:[%s287 + $0xa8] sm:$0xf]
      %v844 = vsel %vm744, %v667, %v843
      %845 = vst [vmem:[%s287 + $0xa8] sm:$0xf] %v844
      %846 = vst [vmem:[%s287 + $0xac] sm:$0xf] %v676
      %v847 = vld [vmem:[%s287 + $0xb0] sm:$0x1]
      %v848 = vsel %vm290, %v677, %v847
      %849 = vst [vmem:[%s287 + $0xb0] sm:$0x1] %v848
      %v850 = vld [vmem:[%s287 + $0xb4] sm:$0xf]
      %v851 = vsel %vm744, %v684, %v850
      %852 = vst [vmem:[%s287 + $0xb4] sm:$0xf] %v851
      %853 = vst [vmem:[%s287 + $0xb8] sm:$0xf] %v693
      %v854 = vld [vmem:[%s287 + $0xbc] sm:$0x1]
      %v855 = vsel %vm290, %v694, %v854
      %856 = vst [vmem:[%s287 + $0xbc] sm:$0x1] %v855
      %v857 = vld [vmem:[#allocation2] sm:$0xf]
      %v858 = vld [vmem:[#allocation2 + $0x4] sm:$0xf]
      %v859 = vld [vmem:[#allocation2 + $0xc] sm:$0xf]
      %v860 = vld [vmem:[#allocation2 + $0x10] sm:$0xf]
      %v861 = vld [vmem:[#allocation2 + $0x18] sm:$0xf]
      %v862 = vld [vmem:[#allocation2 + $0x1c] sm:$0xf]
      %v863 = vld [vmem:[#allocation2 + $0x24] sm:$0xf]
      %v864 = vld [vmem:[#allocation2 + $0x28] sm:$0xf]
      %v865 = vld [vmem:[#allocation2 + $0x30] sm:$0xf]
      %v866 = vld [vmem:[#allocation2 + $0x34] sm:$0xf]
      %v867 = vld [vmem:[#allocation2 + $0x3c] sm:$0xf]
      %v868 = vld [vmem:[#allocation2 + $0x40] sm:$0xf]
      %v869 = vld [vmem:[#allocation2 + $0x48] sm:$0xf]
      %v870 = vld [vmem:[#allocation2 + $0x4c] sm:$0xf]
      %v871 = vld [vmem:[#allocation2 + $0x54] sm:$0xf]
      %v872 = vld [vmem:[#allocation2 + $0x58] sm:$0xf]
      %v873 = vld [vmem:[#allocation2 + $0x60] sm:$0xf]
      %v874 = vld [vmem:[#allocation2 + $0x64] sm:$0xf]
      %v875 = vld [vmem:[#allocation2 + $0x6c] sm:$0xf]
      %v876 = vld [vmem:[#allocation2 + $0x70] sm:$0xf]
      %v877 = vld [vmem:[#allocation2 + $0x78] sm:$0xf]
      %v878 = vld [vmem:[#allocation2 + $0x7c] sm:$0xf]
      %v879 = vld [vmem:[#allocation2 + $0x84] sm:$0xf]
      %v880 = vld [vmem:[#allocation2 + $0x88] sm:$0xf]
      %v881 = vld [vmem:[#allocation2 + $0x90] sm:$0xf]
      %v882 = vld [vmem:[#allocation2 + $0x94] sm:$0xf]
      %v883 = vld [vmem:[#allocation2 + $0x9c] sm:$0xf]
      %v884 = vld [vmem:[#allocation2 + $0xa0] sm:$0xf]
      %v885 = vld [vmem:[#allocation2 + $0xa8] sm:$0xf]
      %v886 = vld [vmem:[#allocation2 + $0xac] sm:$0xf]
      %v887 = vld [vmem:[#allocation2 + $0xb4] sm:$0xf]
      %v888 = vld [vmem:[#allocation2 + $0xb8] sm:$0xf]
      %v889 = vld [vmem:[%s1] sm:$0xf]
      %v890 = vld [vmem:[%s1 + $0x4] sm:$0xf]
      %v891 = vld [vmem:[%s1 + $0x8] sm:$0xf]
      %v892 = vld [vmem:[%s1 + $0xc] sm:$0xf]
      %v893 = vld [vmem:[%s1 + $0x10] sm:$0xf]
      %v894 = vld [vmem:[%s1 + $0x14] sm:$0xf]
      %v895 = vld [vmem:[%s1 + $0x18] sm:$0xf]
      %v896 = vld [vmem:[%s1 + $0x1c] sm:$0xf]
      %v897 = vld [vmem:[%s1 + $0x20] sm:$0xf]
      %v898 = vld [vmem:[%s1 + $0x24] sm:$0xf]
      %v899 = vld [vmem:[%s1 + $0x28] sm:$0xf]
      %v900 = vld [vmem:[%s1 + $0x2c] sm:$0xf]
      %v901 = vld [vmem:[%s1 + $0x30] sm:$0xf]
      %v902 = vld [vmem:[%s1 + $0x34] sm:$0xf]
      %v903 = vld [vmem:[%s1 + $0x38] sm:$0xf]
      %v904 = vld [vmem:[%s1 + $0x3c] sm:$0xf]
      %v905 = vld [vmem:[#allocation2 + $0x8] sm:$0x1]
      %v906 = vld [vmem:[#allocation2 + $0x14] sm:$0x1]
      %v907 = vld [vmem:[#allocation2 + $0x20] sm:$0x1]
      %v908 = vld [vmem:[#allocation2 + $0x2c] sm:$0x1]
      %v909 = vld [vmem:[#allocation2 + $0x38] sm:$0x1]
      %v910 = vld [vmem:[#allocation2 + $0x44] sm:$0x1]
      %v911 = vld [vmem:[#allocation2 + $0x50] sm:$0x1]
      %v912 = vld [vmem:[#allocation2 + $0x5c] sm:$0x1]
      %v913 = vld [vmem:[#allocation2 + $0x68] sm:$0x1]
      %v914 = vld [vmem:[#allocation2 + $0x74] sm:$0x1]
      %v915 = vld [vmem:[#allocation2 + $0x80] sm:$0x1]
      %v916 = vld [vmem:[#allocation2 + $0x8c] sm:$0x1]
      %v917 = vld [vmem:[#allocation2 + $0x98] sm:$0x1]
      %v918 = vld [vmem:[#allocation2 + $0xa4] sm:$0x1]
      %v919 = vld [vmem:[#allocation2 + $0xb0] sm:$0x1]
      %v920 = vld [vmem:[#allocation2 + $0xbc] sm:$0x1]
      %vm921 = vsmask.f32 3328
      %vm922 = vsmask.f32 7440
      %vm923 = vmor %vm921, %vm922
      %v925 = vshrl.u32 %v857, 16
      %v927 = vrot.slane %v925, 4
      %v928 = vshll.u32 %v857, 16
      %v930 = vrot.slane %v928, 5
      %v931 = vor.u32 %v927, %v930
      %v932 = vrot.slane %v931, 4
      %v934 = vshll.u32 %v858, 16
      %v936 = vrot.slane %v934, 5
      %v937 = vsel %vm923, %v932, %v936
      %v938 = vshrl.u32 %v858, 16
      %v940 = vrot.slane %v938, 4
      %v941 = vor.u32 %v940, %v936
      %v942 = vrot.slane %v941, 4
      %v944 = vshll.u32 %v905, 16
      %v946 = vrot.slane %v944, 5
      %v947 = vsel %vm923, %v942, %v946
      %v949 = vshrl.u32 %v859, 16
      %v951 = vrot.slane %v949, 4
      %v952 = vshll.u32 %v859, 16
      %v954 = vrot.slane %v952, 5
      %v955 = vor.u32 %v951, %v954
      %v956 = vrot.slane %v955, 4
      %v958 = vshll.u32 %v860, 16
      %v960 = vrot.slane %v958, 5
      %v961 = vsel %vm923, %v956, %v960
      %v962 = vshrl.u32 %v860, 16
      %v964 = vrot.slane %v962, 4
      %v965 = vor.u32 %v964, %v960
      %v966 = vrot.slane %v965, 4
      %v968 = vshll.u32 %v906, 16
      %v970 = vrot.slane %v968, 5
      %v971 = vsel %vm923, %v966, %v970
      %v973 = vshrl.u32 %v861, 16
      %v975 = vrot.slane %v973, 4
      %v976 = vshll.u32 %v861, 16
      %v978 = vrot.slane %v976, 5
      %v979 = vor.u32 %v975, %v978
      %v980 = vrot.slane %v979, 4
      %v982 = vshll.u32 %v862, 16
      %v984 = vrot.slane %v982, 5
      %v985 = vsel %vm923, %v980, %v984
      %v986 = vshrl.u32 %v862, 16
      %v988 = vrot.slane %v986, 4
      %v989 = vor.u32 %v988, %v984
      %v990 = vrot.slane %v989, 4
      %v992 = vshll.u32 %v907, 16
      %v994 = vrot.slane %v992, 5
      %v995 = vsel %vm923, %v990, %v994
      %v997 = vshrl.u32 %v863, 16
      %v999 = vrot.slane %v997, 4
      %v1000 = vshll.u32 %v863, 16
      %v1002 = vrot.slane %v1000, 5
      %v1003 = vor.u32 %v999, %v1002
      %v1004 = vrot.slane %v1003, 4
      %v1006 = vshll.u32 %v864, 16
      %v1008 = vrot.slane %v1006, 5
      %v1009 = vsel %vm923, %v1004, %v1008
      %v1010 = vshrl.u32 %v864, 16
      %v1012 = vrot.slane %v1010, 4
      %v1013 = vor.u32 %v1012, %v1008
      %v1014 = vrot.slane %v1013, 4
      %v1016 = vshll.u32 %v908, 16
      %v1018 = vrot.slane %v1016, 5
      %v1019 = vsel %vm923, %v1014, %v1018
      %v1021 = vshrl.u32 %v865, 16
      %v1023 = vrot.slane %v1021, 4
      %v1024 = vshll.u32 %v865, 16
      %v1026 = vrot.slane %v1024, 5
      %v1027 = vor.u32 %v1023, %v1026
      %v1028 = vrot.slane %v1027, 4
      %v1030 = vshll.u32 %v866, 16
      %v1032 = vrot.slane %v1030, 5
      %v1033 = vsel %vm923, %v1028, %v1032
      %v1034 = vshrl.u32 %v866, 16
      %v1036 = vrot.slane %v1034, 4
      %v1037 = vor.u32 %v1036, %v1032
      %v1038 = vrot.slane %v1037, 4
      %v1040 = vshll.u32 %v909, 16
      %v1042 = vrot.slane %v1040, 5
      %v1043 = vsel %vm923, %v1038, %v1042
      %v1045 = vshrl.u32 %v867, 16
      %v1047 = vrot.slane %v1045, 4
      %v1048 = vshll.u32 %v867, 16
      %v1050 = vrot.slane %v1048, 5
      %v1051 = vor.u32 %v1047, %v1050
      %v1052 = vrot.slane %v1051, 4
      %v1054 = vshll.u32 %v868, 16
      %v1056 = vrot.slane %v1054, 5
      %v1057 = vsel %vm923, %v1052, %v1056
      %v1058 = vshrl.u32 %v868, 16
      %v1060 = vrot.slane %v1058, 4
      %v1061 = vor.u32 %v1060, %v1056
      %v1062 = vrot.slane %v1061, 4
      %v1064 = vshll.u32 %v910, 16
      %v1066 = vrot.slane %v1064, 5
      %v1067 = vsel %vm923, %v1062, %v1066
      %v1069 = vshrl.u32 %v869, 16
      %v1071 = vrot.slane %v1069, 4
      %v1072 = vshll.u32 %v869, 16
      %v1074 = vrot.slane %v1072, 5
      %v1075 = vor.u32 %v1071, %v1074
      %v1076 = vrot.slane %v1075, 4
      %v1078 = vshll.u32 %v870, 16
      %v1080 = vrot.slane %v1078, 5
      %v1081 = vsel %vm923, %v1076, %v1080
      %v1082 = vshrl.u32 %v870, 16
      %v1084 = vrot.slane %v1082, 4
      %v1085 = vor.u32 %v1084, %v1080
      %v1086 = vrot.slane %v1085, 4
      %v1088 = vshll.u32 %v911, 16
      %v1090 = vrot.slane %v1088, 5
      %v1091 = vsel %vm923, %v1086, %v1090
      %v1093 = vshrl.u32 %v871, 16
      %v1095 = vrot.slane %v1093, 4
      %v1096 = vshll.u32 %v871, 16
      %v1098 = vrot.slane %v1096, 5
      %v1099 = vor.u32 %v1095, %v1098
      %v1100 = vrot.slane %v1099, 4
      %v1102 = vshll.u32 %v872, 16
      %v1104 = vrot.slane %v1102, 5
      %v1105 = vsel %vm923, %v1100, %v1104
      %v1106 = vshrl.u32 %v872, 16
      %v1108 = vrot.slane %v1106, 4
      %v1109 = vor.u32 %v1108, %v1104
      %v1110 = vrot.slane %v1109, 4
      %v1112 = vshll.u32 %v912, 16
      %v1114 = vrot.slane %v1112, 5
      %v1115 = vsel %vm923, %v1110, %v1114
      %v1117 = vshrl.u32 %v873, 16
      %v1119 = vrot.slane %v1117, 4
      %v1120 = vshll.u32 %v873, 16
      %v1122 = vrot.slane %v1120, 5
      %v1123 = vor.u32 %v1119, %v1122
      %v1124 = vrot.slane %v1123, 4
      %v1126 = vshll.u32 %v874, 16
      %v1128 = vrot.slane %v1126, 5
      %v1129 = vsel %vm923, %v1124, %v1128
      %v1130 = vshrl.u32 %v874, 16
      %v1132 = vrot.slane %v1130, 4
      %v1133 = vor.u32 %v1132, %v1128
      %v1134 = vrot.slane %v1133, 4
      %v1136 = vshll.u32 %v913, 16
      %v1138 = vrot.slane %v1136, 5
      %v1139 = vsel %vm923, %v1134, %v1138
      %v1141 = vshrl.u32 %v875, 16
      %v1143 = vrot.slane %v1141, 4
      %v1144 = vshll.u32 %v875, 16
      %v1146 = vrot.slane %v1144, 5
      %v1147 = vor.u32 %v1143, %v1146
      %v1148 = vrot.slane %v1147, 4
      %v1150 = vshll.u32 %v876, 16
      %v1152 = vrot.slane %v1150, 5
      %v1153 = vsel %vm923, %v1148, %v1152
      %v1154 = vshrl.u32 %v876, 16
      %v1156 = vrot.slane %v1154, 4
      %v1157 = vor.u32 %v1156, %v1152
      %v1158 = vrot.slane %v1157, 4
      %v1160 = vshll.u32 %v914, 16
      %v1162 = vrot.slane %v1160, 5
      %v1163 = vsel %vm923, %v1158, %v1162
      %v1165 = vshrl.u32 %v877, 16
      %v1167 = vrot.slane %v1165, 4
      %v1168 = vshll.u32 %v877, 16
      %v1170 = vrot.slane %v1168, 5
      %v1171 = vor.u32 %v1167, %v1170
      %v1172 = vrot.slane %v1171, 4
      %v1174 = vshll.u32 %v878, 16
      %v1176 = vrot.slane %v1174, 5
      %v1177 = vsel %vm923, %v1172, %v1176
      %v1178 = vshrl.u32 %v878, 16
      %v1180 = vrot.slane %v1178, 4
      %v1181 = vor.u32 %v1180, %v1176
      %v1182 = vrot.slane %v1181, 4
      %v1184 = vshll.u32 %v915, 16
      %v1186 = vrot.slane %v1184, 5
      %v1187 = vsel %vm923, %v1182, %v1186
      %v1189 = vshrl.u32 %v879, 16
      %v1191 = vrot.slane %v1189, 4
      %v1192 = vshll.u32 %v879, 16
      %v1194 = vrot.slane %v1192, 5
      %v1195 = vor.u32 %v1191, %v1194
      %v1196 = vrot.slane %v1195, 4
      %v1198 = vshll.u32 %v880, 16
      %v1200 = vrot.slane %v1198, 5
      %v1201 = vsel %vm923, %v1196, %v1200
      %v1202 = vshrl.u32 %v880, 16
      %v1204 = vrot.slane %v1202, 4
      %v1205 = vor.u32 %v1204, %v1200
      %v1206 = vrot.slane %v1205, 4
      %v1208 = vshll.u32 %v916, 16
      %v1210 = vrot.slane %v1208, 5
      %v1211 = vsel %vm923, %v1206, %v1210
      %v1213 = vshrl.u32 %v881, 16
      %v1215 = vrot.slane %v1213, 4
      %v1216 = vshll.u32 %v881, 16
      %v1218 = vrot.slane %v1216, 5
      %v1219 = vor.u32 %v1215, %v1218
      %v1220 = vrot.slane %v1219, 4
      %v1222 = vshll.u32 %v882, 16
      %v1224 = vrot.slane %v1222, 5
      %v1225 = vsel %vm923, %v1220, %v1224
      %v1226 = vshrl.u32 %v882, 16
      %v1228 = vrot.slane %v1226, 4
      %v1229 = vor.u32 %v1228, %v1224
      %v1230 = vrot.slane %v1229, 4
      %v1232 = vshll.u32 %v917, 16
      %v1234 = vrot.slane %v1232, 5
      %v1235 = vsel %vm923, %v1230, %v1234
      %v1237 = vshrl.u32 %v883, 16
      %v1239 = vrot.slane %v1237, 4
      %v1240 = vshll.u32 %v883, 16
      %v1242 = vrot.slane %v1240, 5
      %v1243 = vor.u32 %v1239, %v1242
      %v1244 = vrot.slane %v1243, 4
      %v1246 = vshll.u32 %v884, 16
      %v1248 = vrot.slane %v1246, 5
      %v1249 = vsel %vm923, %v1244, %v1248
      %v1250 = vshrl.u32 %v884, 16
      %v1252 = vrot.slane %v1250, 4
      %v1253 = vor.u32 %v1252, %v1248
      %v1254 = vrot.slane %v1253, 4
      %v1256 = vshll.u32 %v918, 16
      %v1258 = vrot.slane %v1256, 5
      %v1259 = vsel %vm923, %v1254, %v1258
      %v1261 = vshrl.u32 %v885, 16
      %v1263 = vrot.slane %v1261, 4
      %v1264 = vshll.u32 %v885, 16
      %v1266 = vrot.slane %v1264, 5
      %v1267 = vor.u32 %v1263, %v1266
      %v1268 = vrot.slane %v1267, 4
      %v1270 = vshll.u32 %v886, 16
      %v1272 = vrot.slane %v1270, 5
      %v1273 = vsel %vm923, %v1268, %v1272
      %v1274 = vshrl.u32 %v886, 16
      %v1276 = vrot.slane %v1274, 4
      %v1277 = vor.u32 %v1276, %v1272
      %v1278 = vrot.slane %v1277, 4
      %v1280 = vshll.u32 %v919, 16
      %v1282 = vrot.slane %v1280, 5
      %v1283 = vsel %vm923, %v1278, %v1282
      %v1285 = vshrl.u32 %v887, 16
      %v1287 = vrot.slane %v1285, 4
      %v1288 = vshll.u32 %v887, 16
      %v1290 = vrot.slane %v1288, 5
      %v1291 = vor.u32 %v1287, %v1290
      %v1292 = vrot.slane %v1291, 4
      %v1294 = vshll.u32 %v888, 16
      %v1296 = vrot.slane %v1294, 5
      %v1297 = vsel %vm923, %v1292, %v1296
      %v1298 = vshrl.u32 %v888, 16
      %v1300 = vrot.slane %v1298, 4
      %v1301 = vor.u32 %v1300, %v1296
      %v1302 = vrot.slane %v1301, 4
      %v1304 = vshll.u32 %v920, 16
      %v1306 = vrot.slane %v1304, 5
      %v1307 = vsel %vm923, %v1302, %v1306
      %s1308 = scalar_lea.vmem %s1, 64
      %v1309 = vld [vmem:[%s1308] sm:$0xf]
      %v1310 = vld [vmem:[%s1308 + $0x4] sm:$0xf]
      %v1311 = vld [vmem:[%s1308 + $0x8] sm:$0xf]
      %v1312 = vld [vmem:[%s1308 + $0xc] sm:$0xf]
      %v1313 = vld [vmem:[%s1308 + $0x10] sm:$0xf]
      %v1314 = vld [vmem:[%s1308 + $0x14] sm:$0xf]
      %v1315 = vld [vmem:[%s1308 + $0x18] sm:$0xf]
      %v1316 = vld [vmem:[%s1308 + $0x1c] sm:$0xf]
      %v1317 = vld [vmem:[%s1308 + $0x20] sm:$0xf]
      %v1318 = vld [vmem:[%s1308 + $0x24] sm:$0xf]
      %v1319 = vld [vmem:[%s1308 + $0x28] sm:$0xf]
      %v1320 = vld [vmem:[%s1308 + $0x2c] sm:$0xf]
      %v1321 = vld [vmem:[%s1308 + $0x30] sm:$0xf]
      %v1322 = vld [vmem:[%s1308 + $0x34] sm:$0xf]
      %v1323 = vld [vmem:[%s1308 + $0x38] sm:$0xf]
      %v1324 = vld [vmem:[%s1308 + $0x3c] sm:$0xf]
      %v1325 = vunpack.c.l.b16 %v937
      %v1326 = vunpack.c.l.b16 %v947
      %v1327 = vunpack.c.l.b16 %v961
      %v1328 = vunpack.c.l.b16 %v971
      %v1329 = vunpack.c.l.b16 %v985
      %v1330 = vunpack.c.l.b16 %v995
      %v1331 = vunpack.c.l.b16 %v1009
      %v1332 = vunpack.c.l.b16 %v1019
      %v1333 = vunpack.c.l.b16 %v1033
      %v1334 = vunpack.c.l.b16 %v1043
      %v1335 = vunpack.c.l.b16 %v1057
      %v1336 = vunpack.c.l.b16 %v1067
      %v1337 = vunpack.c.l.b16 %v1081
      %v1338 = vunpack.c.l.b16 %v1091
      %v1339 = vunpack.c.l.b16 %v1105
      %v1340 = vunpack.c.l.b16 %v1115
      %v1341 = vunpack.c.l.b16 %v1129
      %v1342 = vunpack.c.l.b16 %v1139
      %v1343 = vunpack.c.l.b16 %v1153
      %v1344 = vunpack.c.l.b16 %v1163
      %v1345 = vunpack.c.l.b16 %v1177
      %v1346 = vunpack.c.l.b16 %v1187
      %v1347 = vunpack.c.l.b16 %v1201
      %v1348 = vunpack.c.l.b16 %v1211
      %v1349 = vunpack.c.l.b16 %v1225
      %v1350 = vunpack.c.l.b16 %v1235
      %v1351 = vunpack.c.l.b16 %v1249
      %v1352 = vunpack.c.l.b16 %v1259
      %v1353 = vunpack.c.l.b16 %v1273
      %v1354 = vunpack.c.l.b16 %v1283
      %v1355 = vunpack.c.l.b16 %v1297
      %v1356 = vunpack.c.l.b16 %v1307
      %v1357 = vpack.c.b16 %v1326, %v1325
      %v1358 = vpack.c.b16 %v1328, %v1327
      %v1359 = vpack.c.b16 %v1330, %v1329
      %v1360 = vpack.c.b16 %v1332, %v1331
      %v1361 = vpack.c.b16 %v1334, %v1333
      %v1362 = vpack.c.b16 %v1336, %v1335
      %v1363 = vpack.c.b16 %v1338, %v1337
      %v1364 = vpack.c.b16 %v1340, %v1339
      %v1365 = vpack.c.b16 %v1342, %v1341
      %v1366 = vpack.c.b16 %v1344, %v1343
      %v1367 = vpack.c.b16 %v1346, %v1345
      %v1368 = vpack.c.b16 %v1348, %v1347
      %v1369 = vpack.c.b16 %v1350, %v1349
      %v1370 = vpack.c.b16 %v1352, %v1351
      %v1371 = vpack.c.b16 %v1354, %v1353
      %v1372 = vpack.c.b16 %v1356, %v1355
      %v1405 = vunpack.c.l.b16 %v1309
      %v1406 = vunpack.c.l.b16 %v1310
      %v1407 = vunpack.c.l.b16 %v1311
      %v1408 = vunpack.c.l.b16 %v1312
      %v1409 = vunpack.c.l.b16 %v1313
      %v1410 = vunpack.c.l.b16 %v1314
      %v1411 = vunpack.c.l.b16 %v1315
      %v1412 = vunpack.c.l.b16 %v1316
      %v1413 = vunpack.c.l.b16 %v1317
      %v1414 = vunpack.c.l.b16 %v1318
      %v1415 = vunpack.c.l.b16 %v1319
      %v1416 = vunpack.c.l.b16 %v1320
      %v1417 = vunpack.c.l.b16 %v1321
      %v1418 = vunpack.c.l.b16 %v1322
      %v1419 = vunpack.c.l.b16 %v1323
      %v1420 = vunpack.c.l.b16 %v1324
      %v1421 = vpack.c.b16 %v1406, %v1405
      %v1422 = vpack.c.b16 %v1408, %v1407
      %v1423 = vpack.c.b16 %v1410, %v1409
      %v1424 = vpack.c.b16 %v1412, %v1411
      %v1425 = vpack.c.b16 %v1414, %v1413
      %v1426 = vpack.c.b16 %v1416, %v1415
      %v1427 = vpack.c.b16 %v1418, %v1417
      %v1428 = vpack.c.b16 %v1420, %v1419
      %1437 = vmatprep.subr.bf16.mxu0 0
      %1438 = vmatpush1.bf16.msra.mxu0 %v1421
      %1439 = vmatprep.subr.bf16.mxu0 0
      %1440 = vmatpush1.bf16.msra.mxu0 %v1422
      %1441 = vmatprep.subr.bf16.mxu0 0
      %1442 = vmatpush1.bf16.msra.mxu0 %v1423
      %1443 = vmatprep.subr.bf16.mxu0 0
      %1444 = vmatpush1.bf16.msra.mxu0 %v1424
      %1445 = vmatprep.subr.bf16.mxu0 0
      %1446 = vmatpush1.bf16.msra.mxu0 %v1425
      %1447 = vmatprep.subr.bf16.mxu0 0
      %1448 = vmatpush1.bf16.msra.mxu0 %v1426
      %1449 = vmatprep.subr.bf16.mxu0 0
      %1450 = vmatpush1.bf16.msra.mxu0 %v1427
      %1451 = vmatprep.subr.bf16.mxu0 0
      %1452 = vmatpush1.bf16.msra.mxu0 %v1428
      %1453 = vmatprep.subr.bf16.mxu0 0
      %1454 = vmatpush1.bf16.msra.mxu0 0
      %1455 = vmatprep.subr.bf16.mxu0 0
      %1456 = vmatpush1.bf16.msra.mxu0 0
      %1457 = vmatprep.subr.bf16.mxu0 0
      %1458 = vmatpush1.bf16.msra.mxu0 0
      %1459 = vmatprep.subr.bf16.mxu0 0
      %1460 = vmatpush1.bf16.msra.mxu0 0
      %1461 = vmatprep.subr.bf16.mxu0 0
      %1462 = vmatpush1.bf16.msra.mxu0 0
      %1463 = vmatprep.subr.bf16.mxu0 0
      %1464 = vmatpush1.bf16.msra.mxu0 0
      %1465 = vmatprep.subr.bf16.mxu0 0
      %1466 = vmatpush1.bf16.msra.mxu0 0
      %1467 = vmatprep.subr.bf16.mxu0 0
      %1468 = vmatpush1.bf16.msra.mxu0 0
      %1469 = vmatprep.mubr.bf16.mxu0 0
      %1470 = vmatmul.mubr.bf16.gmra.mrb[0].mxu0 %v1357
      %v1471 = vpop.f32.mrb[0].mxu0
      %v1472 = vadd.f32 0.0, %v1471
      %v1473 = vpop.f32.mrb[0].mxu0
      %v1474 = vpop.f32.mrb[0].mxu0
      %v1475 = vadd.f32 0.0, %v1474
      %v1476 = vpop.f32.mrb[0].mxu0
      %1477 = vmatprep.mubr.bf16.mxu0 0
      %1478 = vmatmul.mubr.bf16.gmra.mrb[0].mxu0 %v1358
      %v1479 = vpop.f32.mrb[0].mxu0
      %v1480 = vadd.f32 0.0, %v1479
      %v1481 = vpop.f32.mrb[0].mxu0
      %v1482 = vpop.f32.mrb[0].mxu0
      %v1483 = vadd.f32 0.0, %v1482
      %v1484 = vpop.f32.mrb[0].mxu0
      %1485 = vmatprep.mubr.bf16.mxu0 0
      %1486 = vmatmul.mubr.bf16.gmra.mrb[0].mxu0 %v1359
      %v1487 = vpop.f32.mrb[0].mxu0
      %v1488 = vadd.f32 0.0, %v1487
      %v1489 = vpop.f32.mrb[0].mxu0
      %v1490 = vpop.f32.mrb[0].mxu0
      %v1491 = vadd.f32 0.0, %v1490
      %v1492 = vpop.f32.mrb[0].mxu0
      %1493 = vmatprep.mubr.bf16.mxu0 0
      %1494 = vmatmul.mubr.bf16.gmra.mrb[0].mxu0 %v1360
      %v1495 = vpop.f32.mrb[0].mxu0
      %v1496 = vadd.f32 0.0, %v1495
      %v1497 = vpop.f32.mrb[0].mxu0
      %v1498 = vpop.f32.mrb[0].mxu0
      %v1499 = vadd.f32 0.0, %v1498
      %v1500 = vpop.f32.mrb[0].mxu0
      %1501 = vmatprep.mubr.bf16.mxu0 0
      %1502 = vmatmul.mubr.bf16.gmra.mrb[0].mxu0 %v1361
      %v1503 = vpop.f32.mrb[0].mxu0
      %v1504 = vadd.f32 0.0, %v1503
      %v1505 = vpop.f32.mrb[0].mxu0
      %v1506 = vpop.f32.mrb[0].mxu0
      %v1507 = vadd.f32 0.0, %v1506
      %v1508 = vpop.f32.mrb[0].mxu0
      %1509 = vmatprep.mubr.bf16.mxu0 0
      %1510 = vmatmul.mubr.bf16.gmra.mrb[0].mxu0 %v1362
      %v1511 = vpop.f32.mrb[0].mxu0
      %v1512 = vadd.f32 0.0, %v1511
      %v1513 = vpop.f32.mrb[0].mxu0
      %v1514 = vpop.f32.mrb[0].mxu0
      %v1515 = vadd.f32 0.0, %v1514
      %v1516 = vpop.f32.mrb[0].mxu0
      %1517 = vmatprep.mubr.bf16.mxu0 0
      %1518 = vmatmul.mubr.bf16.gmra.mrb[0].mxu0 %v1363
      %v1519 = vpop.f32.mrb[0].mxu0
      %v1520 = vadd.f32 0.0, %v1519
      %v1521 = vpop.f32.mrb[0].mxu0
      %v1522 = vpop.f32.mrb[0].mxu0
      %v1523 = vadd.f32 0.0, %v1522
      %v1524 = vpop.f32.mrb[0].mxu0
      %1525 = vmatprep.mubr.bf16.mxu0 0
      %1526 = vmatmul.mubr.bf16.gmra.mrb[0].mxu0 %v1364
      %v1527 = vpop.f32.mrb[0].mxu0
      %v1528 = vadd.f32 0.0, %v1527
      %v1529 = vpop.f32.mrb[0].mxu0
      %v1530 = vpop.f32.mrb[0].mxu0
      %v1531 = vadd.f32 0.0, %v1530
      %v1532 = vpop.f32.mrb[0].mxu0
      %1533 = vmatprep.mubr.bf16.mxu0 0
      %1534 = vmatmul.mubr.bf16.gmra.mrb[0].mxu0 %v1365
      %v1535 = vpop.f32.mrb[0].mxu0
      %v1536 = vadd.f32 0.0, %v1535
      %v1537 = vpop.f32.mrb[0].mxu0
      %v1538 = vpop.f32.mrb[0].mxu0
      %v1539 = vadd.f32 0.0, %v1538
      %v1540 = vpop.f32.mrb[0].mxu0
      %1541 = vmatprep.mubr.bf16.mxu0 0
      %1542 = vmatmul.mubr.bf16.gmra.mrb[0].mxu0 %v1366
      %v1543 = vpop.f32.mrb[0].mxu0
      %v1544 = vadd.f32 0.0, %v1543
      %v1545 = vpop.f32.mrb[0].mxu0
      %v1546 = vpop.f32.mrb[0].mxu0
      %v1547 = vadd.f32 0.0, %v1546
      %v1548 = vpop.f32.mrb[0].mxu0
      %1549 = vmatprep.mubr.bf16.mxu0 0
      %1550 = vmatmul.mubr.bf16.gmra.mrb[0].mxu0 %v1367
      %v1551 = vpop.f32.mrb[0].mxu0
      %v1552 = vadd.f32 0.0, %v1551
      %v1553 = vpop.f32.mrb[0].mxu0
      %v1554 = vpop.f32.mrb[0].mxu0
      %v1555 = vadd.f32 0.0, %v1554
      %v1556 = vpop.f32.mrb[0].mxu0
      %1557 = vmatprep.mubr.bf16.mxu0 0
      %1558 = vmatmul.mubr.bf16.gmra.mrb[0].mxu0 %v1368
      %v1559 = vpop.f32.mrb[0].mxu0
      %v1560 = vadd.f32 0.0, %v1559
      %v1561 = vpop.f32.mrb[0].mxu0
      %v1562 = vpop.f32.mrb[0].mxu0
      %v1563 = vadd.f32 0.0, %v1562
      %v1564 = vpop.f32.mrb[0].mxu0
      %1565 = vmatprep.mubr.bf16.mxu0 0
      %1566 = vmatmul.mubr.bf16.gmra.mrb[0].mxu0 %v1369
      %v1567 = vpop.f32.mrb[0].mxu0
      %v1568 = vadd.f32 0.0, %v1567
      %v1569 = vpop.f32.mrb[0].mxu0
      %v1570 = vpop.f32.mrb[0].mxu0
      %v1571 = vadd.f32 0.0, %v1570
      %v1572 = vpop.f32.mrb[0].mxu0
      %1573 = vmatprep.mubr.bf16.mxu0 0
      %1574 = vmatmul.mubr.bf16.gmra.mrb[0].mxu0 %v1370
      %v1575 = vpop.f32.mrb[0].mxu0
      %v1576 = vadd.f32 0.0, %v1575
      %v1577 = vpop.f32.mrb[0].mxu0
      %v1578 = vpop.f32.mrb[0].mxu0
      %v1579 = vadd.f32 0.0, %v1578
      %v1580 = vpop.f32.mrb[0].mxu0
      %1581 = vmatprep.mubr.bf16.mxu0 0
      %1582 = vmatmul.mubr.bf16.gmra.mrb[0].mxu0 %v1371
      %v1583 = vpop.f32.mrb[0].mxu0
      %v1584 = vadd.f32 0.0, %v1583
      %v1585 = vpop.f32.mrb[0].mxu0
      %v1586 = vpop.f32.mrb[0].mxu0
      %v1587 = vadd.f32 0.0, %v1586
      %v1588 = vpop.f32.mrb[0].mxu0
      %1589 = vmatprep.mubr.bf16.mxu0 0
      %1590 = vmatmul.mubr.bf16.gmra.mrb[0].mxu0 %v1372
      %v1591 = vpop.f32.mrb[0].mxu0
      %v1592 = vadd.f32 0.0, %v1591
      %v1593 = vpop.f32.mrb[0].mxu0
      %v1594 = vpop.f32.mrb[0].mxu0
      %v1595 = vadd.f32 0.0, %v1594
      %v1596 = vpop.f32.mrb[0].mxu0
      %1597 = vdwg.mxu0
      %v1630 = vunpack.c.l.b16 %v857
      %v1631 = vunpack.c.l.b16 %v858
      %v1632 = vunpack.c.l.b16 %v859
      %v1633 = vunpack.c.l.b16 %v860
      %v1634 = vunpack.c.l.b16 %v861
      %v1635 = vunpack.c.l.b16 %v862
      %v1636 = vunpack.c.l.b16 %v863
      %v1637 = vunpack.c.l.b16 %v864
      %v1638 = vunpack.c.l.b16 %v865
      %v1639 = vunpack.c.l.b16 %v866
      %v1640 = vunpack.c.l.b16 %v867
      %v1641 = vunpack.c.l.b16 %v868
      %v1642 = vunpack.c.l.b16 %v869
      %v1643 = vunpack.c.l.b16 %v870
      %v1644 = vunpack.c.l.b16 %v871
      %v1645 = vunpack.c.l.b16 %v872
      %v1646 = vunpack.c.l.b16 %v873
      %v1647 = vunpack.c.l.b16 %v874
      %v1648 = vunpack.c.l.b16 %v875
      %v1649 = vunpack.c.l.b16 %v876
      %v1650 = vunpack.c.l.b16 %v877
      %v1651 = vunpack.c.l.b16 %v878
      %v1652 = vunpack.c.l.b16 %v879
      %v1653 = vunpack.c.l.b16 %v880
      %v1654 = vunpack.c.l.b16 %v881
      %v1655 = vunpack.c.l.b16 %v882
      %v1656 = vunpack.c.l.b16 %v883
      %v1657 = vunpack.c.l.b16 %v884
      %v1658 = vunpack.c.l.b16 %v885
      %v1659 = vunpack.c.l.b16 %v886
      %v1660 = vunpack.c.l.b16 %v887
      %v1661 = vunpack.c.l.b16 %v888
      %v1662 = vpack.c.b16 %v1631, %v1630
      %v1663 = vpack.c.b16 %v1633, %v1632
      %v1664 = vpack.c.b16 %v1635, %v1634
      %v1665 = vpack.c.b16 %v1637, %v1636
      %v1666 = vpack.c.b16 %v1639, %v1638
      %v1667 = vpack.c.b16 %v1641, %v1640
      %v1668 = vpack.c.b16 %v1643, %v1642
      %v1669 = vpack.c.b16 %v1645, %v1644
      %v1670 = vpack.c.b16 %v1647, %v1646
      %v1671 = vpack.c.b16 %v1649, %v1648
      %v1672 = vpack.c.b16 %v1651, %v1650
      %v1673 = vpack.c.b16 %v1653, %v1652
      %v1674 = vpack.c.b16 %v1655, %v1654
      %v1675 = vpack.c.b16 %v1657, %v1656
      %v1676 = vpack.c.b16 %v1659, %v1658
      %v1677 = vpack.c.b16 %v1661, %v1660
      %v1710 = vunpack.c.l.b16 %v889
      %v1711 = vunpack.c.l.b16 %v890
      %v1712 = vunpack.c.l.b16 %v891
      %v1713 = vunpack.c.l.b16 %v892
      %v1714 = vunpack.c.l.b16 %v893
      %v1715 = vunpack.c.l.b16 %v894
      %v1716 = vunpack.c.l.b16 %v895
      %v1717 = vunpack.c.l.b16 %v896
      %v1718 = vunpack.c.l.b16 %v897
      %v1719 = vunpack.c.l.b16 %v898
      %v1720 = vunpack.c.l.b16 %v899
      %v1721 = vunpack.c.l.b16 %v900
      %v1722 = vunpack.c.l.b16 %v901
      %v1723 = vunpack.c.l.b16 %v902
      %v1724 = vunpack.c.l.b16 %v903
      %v1725 = vunpack.c.l.b16 %v904
      %v1726 = vpack.c.b16 %v1711, %v1710
      %v1727 = vpack.c.b16 %v1713, %v1712
      %v1728 = vpack.c.b16 %v1715, %v1714
      %v1729 = vpack.c.b16 %v1717, %v1716
      %v1730 = vpack.c.b16 %v1719, %v1718
      %v1731 = vpack.c.b16 %v1721, %v1720
      %v1732 = vpack.c.b16 %v1723, %v1722
      %v1733 = vpack.c.b16 %v1725, %v1724
      %1742 = vmatprep.subr.bf16.mxu0 0
      %1743 = vmatpush1.bf16.msra.mxu0 %v1726
      %1744 = vmatprep.subr.bf16.mxu0 0
      %1745 = vmatpush1.bf16.msra.mxu0 %v1727
      %1746 = vmatprep.subr.bf16.mxu0 0
      %1747 = vmatpush1.bf16.msra.mxu0 %v1728
      %1748 = vmatprep.subr.bf16.mxu0 0
      %1749 = vmatpush1.bf16.msra.mxu0 %v1729
      %1750 = vmatprep.subr.bf16.mxu0 0
      %1751 = vmatpush1.bf16.msra.mxu0 %v1730
      %1752 = vmatprep.subr.bf16.mxu0 0
      %1753 = vmatpush1.bf16.msra.mxu0 %v1731
      %1754 = vmatprep.subr.bf16.mxu0 0
      %1755 = vmatpush1.bf16.msra.mxu0 %v1732
      %1756 = vmatprep.subr.bf16.mxu0 0
      %1757 = vmatpush1.bf16.msra.mxu0 %v1733
      %1758 = vmatprep.subr.bf16.mxu0 0
      %1759 = vmatpush1.bf16.msra.mxu0 0
      %1760 = vmatprep.subr.bf16.mxu0 0
      %1761 = vmatpush1.bf16.msra.mxu0 0
      %1762 = vmatprep.subr.bf16.mxu0 0
      %1763 = vmatpush1.bf16.msra.mxu0 0
      %1764 = vmatprep.subr.bf16.mxu0 0
      %1765 = vmatpush1.bf16.msra.mxu0 0
      %1766 = vmatprep.subr.bf16.mxu0 0
      %1767 = vmatpush1.bf16.msra.mxu0 0
      %1768 = vmatprep.subr.bf16.mxu0 0
      %1769 = vmatpush1.bf16.msra.mxu0 0
      %1770 = vmatprep.subr.bf16.mxu0 0
      %1771 = vmatpush1.bf16.msra.mxu0 0
      %1772 = vmatprep.subr.bf16.mxu0 0
      %1773 = vmatpush1.bf16.msra.mxu0 0
      %1774 = vmatprep.mubr.bf16.mxu0 0
      %1775 = vmatmul.mubr.bf16.gmra.mrb[0].mxu0 %v1662
      %v1776 = vpop.f32.mrb[0].mxu0
      %v1777 = vadd.f32 %v1472, %v1776
      %v1778 = vpop.f32.mrb[0].mxu0
      %v1779 = vpop.f32.mrb[0].mxu0
      %v1780 = vadd.f32 %v1475, %v1779
      %v1781 = vpop.f32.mrb[0].mxu0
      %1782 = vmatprep.mubr.bf16.mxu0 0
      %1783 = vmatmul.mubr.bf16.gmra.mrb[0].mxu0 %v1663
      %v1784 = vpop.f32.mrb[0].mxu0
      %v1785 = vadd.f32 %v1480, %v1784
      %v1786 = vpop.f32.mrb[0].mxu0
      %v1787 = vpop.f32.mrb[0].mxu0
      %v1788 = vadd.f32 %v1483, %v1787
      %v1789 = vpop.f32.mrb[0].mxu0
      %1790 = vmatprep.mubr.bf16.mxu0 0
      %1791 = vmatmul.mubr.bf16.gmra.mrb[0].mxu0 %v1664
      %v1792 = vpop.f32.mrb[0].mxu0
      %v1793 = vadd.f32 %v1488, %v1792
      %v1794 = vpop.f32.mrb[0].mxu0
      %v1795 = vpop.f32.mrb[0].mxu0
      %v1796 = vadd.f32 %v1491, %v1795
      %v1797 = vpop.f32.mrb[0].mxu0
      %1798 = vmatprep.mubr.bf16.mxu0 0
      %1799 = vmatmul.mubr.bf16.gmra.mrb[0].mxu0 %v1665
      %v1800 = vpop.f32.mrb[0].mxu0
      %v1801 = vadd.f32 %v1496, %v1800
      %v1802 = vpop.f32.mrb[0].mxu0
      %v1803 = vpop.f32.mrb[0].mxu0
      %v1804 = vadd.f32 %v1499, %v1803
      %v1805 = vpop.f32.mrb[0].mxu0
      %1806 = vmatprep.mubr.bf16.mxu0 0
      %1807 = vmatmul.mubr.bf16.gmra.mrb[0].mxu0 %v1666
      %v1808 = vpop.f32.mrb[0].mxu0
      %v1809 = vadd.f32 %v1504, %v1808
      %v1810 = vpop.f32.mrb[0].mxu0
      %v1811 = vpop.f32.mrb[0].mxu0
      %v1812 = vadd.f32 %v1507, %v1811
      %v1813 = vpop.f32.mrb[0].mxu0
      %1814 = vmatprep.mubr.bf16.mxu0 0
      %1815 = vmatmul.mubr.bf16.gmra.mrb[0].mxu0 %v1667
      %v1816 = vpop.f32.mrb[0].mxu0
      %v1817 = vadd.f32 %v1512, %v1816
      %v1818 = vpop.f32.mrb[0].mxu0
      %v1819 = vpop.f32.mrb[0].mxu0
      %v1820 = vadd.f32 %v1515, %v1819
      %v1821 = vpop.f32.mrb[0].mxu0
      %1822 = vmatprep.mubr.bf16.mxu0 0
      %1823 = vmatmul.mubr.bf16.gmra.mrb[0].mxu0 %v1668
      %v1824 = vpop.f32.mrb[0].mxu0
      %v1825 = vadd.f32 %v1520, %v1824
      %v1826 = vpop.f32.mrb[0].mxu0
      %v1827 = vpop.f32.mrb[0].mxu0
      %v1828 = vadd.f32 %v1523, %v1827
      %v1829 = vpop.f32.mrb[0].mxu0
      %1830 = vmatprep.mubr.bf16.mxu0 0
      %1831 = vmatmul.mubr.bf16.gmra.mrb[0].mxu0 %v1669
      %v1832 = vpop.f32.mrb[0].mxu0
      %v1833 = vadd.f32 %v1528, %v1832
      %v1834 = vpop.f32.mrb[0].mxu0
      %v1835 = vpop.f32.mrb[0].mxu0
      %v1836 = vadd.f32 %v1531, %v1835
      %v1837 = vpop.f32.mrb[0].mxu0
      %1838 = vmatprep.mubr.bf16.mxu0 0
      %1839 = vmatmul.mubr.bf16.gmra.mrb[0].mxu0 %v1670
      %v1840 = vpop.f32.mrb[0].mxu0
      %v1841 = vadd.f32 %v1536, %v1840
      %v1842 = vpop.f32.mrb[0].mxu0
      %v1843 = vpop.f32.mrb[0].mxu0
      %v1844 = vadd.f32 %v1539, %v1843
      %v1845 = vpop.f32.mrb[0].mxu0
      %1846 = vmatprep.mubr.bf16.mxu0 0
      %1847 = vmatmul.mubr.bf16.gmra.mrb[0].mxu0 %v1671
      %v1848 = vpop.f32.mrb[0].mxu0
      %v1849 = vadd.f32 %v1544, %v1848
      %v1850 = vpop.f32.mrb[0].mxu0
      %v1851 = vpop.f32.mrb[0].mxu0
      %v1852 = vadd.f32 %v1547, %v1851
      %v1853 = vpop.f32.mrb[0].mxu0
      %1854 = vmatprep.mubr.bf16.mxu0 0
      %1855 = vmatmul.mubr.bf16.gmra.mrb[0].mxu0 %v1672
      %v1856 = vpop.f32.mrb[0].mxu0
      %v1857 = vadd.f32 %v1552, %v1856
      %v1858 = vpop.f32.mrb[0].mxu0
      %v1859 = vpop.f32.mrb[0].mxu0
      %v1860 = vadd.f32 %v1555, %v1859
      %v1861 = vpop.f32.mrb[0].mxu0
      %1862 = vmatprep.mubr.bf16.mxu0 0
      %1863 = vmatmul.mubr.bf16.gmra.mrb[0].mxu0 %v1673
      %v1864 = vpop.f32.mrb[0].mxu0
      %v1865 = vadd.f32 %v1560, %v1864
      %v1866 = vpop.f32.mrb[0].mxu0
      %v1867 = vpop.f32.mrb[0].mxu0
      %v1868 = vadd.f32 %v1563, %v1867
      %v1869 = vpop.f32.mrb[0].mxu0
      %1870 = vmatprep.mubr.bf16.mxu0 0
      %1871 = vmatmul.mubr.bf16.gmra.mrb[0].mxu0 %v1674
      %v1872 = vpop.f32.mrb[0].mxu0
      %v1873 = vadd.f32 %v1568, %v1872
      %v1874 = vpop.f32.mrb[0].mxu0
      %v1875 = vpop.f32.mrb[0].mxu0
      %v1876 = vadd.f32 %v1571, %v1875
      %v1877 = vpop.f32.mrb[0].mxu0
      %1878 = vmatprep.mubr.bf16.mxu0 0
      %1879 = vmatmul.mubr.bf16.gmra.mrb[0].mxu0 %v1675
      %v1880 = vpop.f32.mrb[0].mxu0
      %v1881 = vadd.f32 %v1576, %v1880
      %v1882 = vpop.f32.mrb[0].mxu0
      %v1883 = vpop.f32.mrb[0].mxu0
      %v1884 = vadd.f32 %v1579, %v1883
      %v1885 = vpop.f32.mrb[0].mxu0
      %1886 = vmatprep.mubr.bf16.mxu0 0
      %1887 = vmatmul.mubr.bf16.gmra.mrb[0].mxu0 %v1676
      %v1888 = vpop.f32.mrb[0].mxu0
      %v1889 = vadd.f32 %v1584, %v1888
      %v1890 = vpop.f32.mrb[0].mxu0
      %v1891 = vpop.f32.mrb[0].mxu0
      %v1892 = vadd.f32 %v1587, %v1891
      %v1893 = vpop.f32.mrb[0].mxu0
      %1894 = vmatprep.mubr.bf16.mxu0 0
      %1895 = vmatmul.mubr.bf16.gmra.mrb[0].mxu0 %v1677
      %v1896 = vpop.f32.mrb[0].mxu0
      %v1897 = vadd.f32 %v1592, %v1896
      %v1898 = vpop.f32.mrb[0].mxu0
      %v1899 = vpop.f32.mrb[0].mxu0
      %v1900 = vadd.f32 %v1595, %v1899
      %v1901 = vpop.f32.mrb[0].mxu0
      %1902 = vdwg.mxu0
      %v1903 = vld [vmem:[#allocation2] sm:$0xe]
      %v1904 = vld [vmem:[#allocation2 + $0xc] sm:$0xe]
      %v1905 = vld [vmem:[#allocation2 + $0x18] sm:$0xe]
      %v1906 = vld [vmem:[#allocation2 + $0x24] sm:$0xe]
      %v1907 = vld [vmem:[#allocation2 + $0x30] sm:$0xe]
      %v1908 = vld [vmem:[#allocation2 + $0x3c] sm:$0xe]
      %v1909 = vld [vmem:[#allocation2 + $0x48] sm:$0xe]
      %v1910 = vld [vmem:[#allocation2 + $0x54] sm:$0xe]
      %v1911 = vld [vmem:[#allocation2 + $0x60] sm:$0xe]
      %v1912 = vld [vmem:[#allocation2 + $0x6c] sm:$0xe]
      %v1913 = vld [vmem:[#allocation2 + $0x78] sm:$0xe]
      %v1914 = vld [vmem:[#allocation2 + $0x84] sm:$0xe]
      %v1915 = vld [vmem:[#allocation2 + $0x90] sm:$0xe]
      %v1916 = vld [vmem:[#allocation2 + $0x9c] sm:$0xe]
      %v1917 = vld [vmem:[#allocation2 + $0xa8] sm:$0xe]
      %v1918 = vld [vmem:[#allocation2 + $0xb4] sm:$0xe]
      %vm1951 = vcmask 1042432
      %vm1952 = vcmask 1046532
      %vm1953 = vmor %vm1951, %vm1952
      %v1954 = vrot.slane %v1903, 5
      %v1955 = vrot.slane %v1954, 4
      %v1956 = vrot.slane %v858, 5
      %v1957 = vsel %vm1953, %v1955, %v1956
      %v1958 = vrot.slane %v1956, 4
      %v1959 = vrot.slane %v905, 5
      %v1960 = vsel %vm1953, %v1958, %v1959
      %v1961 = vrot.slane %v1904, 5
      %v1962 = vrot.slane %v1961, 4
      %v1963 = vrot.slane %v860, 5
      %v1964 = vsel %vm1953, %v1962, %v1963
      %v1965 = vrot.slane %v1963, 4
      %v1966 = vrot.slane %v906, 5
      %v1967 = vsel %vm1953, %v1965, %v1966
      %v1968 = vrot.slane %v1905, 5
      %v1969 = vrot.slane %v1968, 4
      %v1970 = vrot.slane %v862, 5
      %v1971 = vsel %vm1953, %v1969, %v1970
      %v1972 = vrot.slane %v1970, 4
      %v1973 = vrot.slane %v907, 5
      %v1974 = vsel %vm1953, %v1972, %v1973
      %v1975 = vrot.slane %v1906, 5
      %v1976 = vrot.slane %v1975, 4
      %v1977 = vrot.slane %v864, 5
      %v1978 = vsel %vm1953, %v1976, %v1977
      %v1979 = vrot.slane %v1977, 4
      %v1980 = vrot.slane %v908, 5
      %v1981 = vsel %vm1953, %v1979, %v1980
      %v1982 = vrot.slane %v1907, 5
      %v1983 = vrot.slane %v1982, 4
      %v1984 = vrot.slane %v866, 5
      %v1985 = vsel %vm1953, %v1983, %v1984
      %v1986 = vrot.slane %v1984, 4
      %v1987 = vrot.slane %v909, 5
      %v1988 = vsel %vm1953, %v1986, %v1987
      %v1989 = vrot.slane %v1908, 5
      %v1990 = vrot.slane %v1989, 4
      %v1991 = vrot.slane %v868, 5
      %v1992 = vsel %vm1953, %v1990, %v1991
      %v1993 = vrot.slane %v1991, 4
      %v1994 = vrot.slane %v910, 5
      %v1995 = vsel %vm1953, %v1993, %v1994
      %v1996 = vrot.slane %v1909, 5
      %v1997 = vrot.slane %v1996, 4
      %v1998 = vrot.slane %v870, 5
      %v1999 = vsel %vm1953, %v1997, %v1998
      %v2000 = vrot.slane %v1998, 4
      %v2001 = vrot.slane %v911, 5
      %v2002 = vsel %vm1953, %v2000, %v2001
      %v2003 = vrot.slane %v1910, 5
      %v2004 = vrot.slane %v2003, 4
      %v2005 = vrot.slane %v872, 5
      %v2006 = vsel %vm1953, %v2004, %v2005
      %v2007 = vrot.slane %v2005, 4
      %v2008 = vrot.slane %v912, 5
      %v2009 = vsel %vm1953, %v2007, %v2008
      %v2010 = vrot.slane %v1911, 5
      %v2011 = vrot.slane %v2010, 4
      %v2012 = vrot.slane %v874, 5
      %v2013 = vsel %vm1953, %v2011, %v2012
      %v2014 = vrot.slane %v2012, 4
      %v2015 = vrot.slane %v913, 5
      %v2016 = vsel %vm1953, %v2014, %v2015
      %v2017 = vrot.slane %v1912, 5
      %v2018 = vrot.slane %v2017, 4
      %v2019 = vrot.slane %v876, 5
      %v2020 = vsel %vm1953, %v2018, %v2019
      %v2021 = vrot.slane %v2019, 4
      %v2022 = vrot.slane %v914, 5
      %v2023 = vsel %vm1953, %v2021, %v2022
      %v2024 = vrot.slane %v1913, 5
      %v2025 = vrot.slane %v2024, 4
      %v2026 = vrot.slane %v878, 5
      %v2027 = vsel %vm1953, %v2025, %v2026
      %v2028 = vrot.slane %v2026, 4
      %v2029 = vrot.slane %v915, 5
      %v2030 = vsel %vm1953, %v2028, %v2029
      %v2031 = vrot.slane %v1914, 5
      %v2032 = vrot.slane %v2031, 4
      %v2033 = vrot.slane %v880, 5
      %v2034 = vsel %vm1953, %v2032, %v2033
      %v2035 = vrot.slane %v2033, 4
      %v2036 = vrot.slane %v916, 5
      %v2037 = vsel %vm1953, %v2035, %v2036
      %v2038 = vrot.slane %v1915, 5
      %v2039 = vrot.slane %v2038, 4
      %v2040 = vrot.slane %v882, 5
      %v2041 = vsel %vm1953, %v2039, %v2040
      %v2042 = vrot.slane %v2040, 4
      %v2043 = vrot.slane %v917, 5
      %v2044 = vsel %vm1953, %v2042, %v2043
      %v2045 = vrot.slane %v1916, 5
      %v2046 = vrot.slane %v2045, 4
      %v2047 = vrot.slane %v884, 5
      %v2048 = vsel %vm1953, %v2046, %v2047
      %v2049 = vrot.slane %v2047, 4
      %v2050 = vrot.slane %v918, 5
      %v2051 = vsel %vm1953, %v2049, %v2050
      %v2052 = vrot.slane %v1917, 5
      %v2053 = vrot.slane %v2052, 4
      %v2054 = vrot.slane %v886, 5
      %v2055 = vsel %vm1953, %v2053, %v2054
      %v2056 = vrot.slane %v2054, 4
      %v2057 = vrot.slane %v919, 5
      %v2058 = vsel %vm1953, %v2056, %v2057
      %v2059 = vrot.slane %v1918, 5
      %v2060 = vrot.slane %v2059, 4
      %v2061 = vrot.slane %v888, 5
      %v2062 = vsel %vm1953, %v2060, %v2061
      %v2063 = vrot.slane %v2061, 4
      %v2064 = vrot.slane %v920, 5
      %v2065 = vsel %vm1953, %v2063, %v2064
      %s2066 = scalar_lea.vmem %s1, 128
      %v2067 = vld [vmem:[%s2066] sm:$0xf]
      %v2068 = vld [vmem:[%s2066 + $0x4] sm:$0xf]
      %v2069 = vld [vmem:[%s2066 + $0x8] sm:$0xf]
      %v2070 = vld [vmem:[%s2066 + $0xc] sm:$0xf]
      %v2071 = vld [vmem:[%s2066 + $0x10] sm:$0xf]
      %v2072 = vld [vmem:[%s2066 + $0x14] sm:$0xf]
      %v2073 = vld [vmem:[%s2066 + $0x18] sm:$0xf]
      %v2074 = vld [vmem:[%s2066 + $0x1c] sm:$0xf]
      %v2075 = vld [vmem:[%s2066 + $0x20] sm:$0xf]
      %v2076 = vld [vmem:[%s2066 + $0x24] sm:$0xf]
      %v2077 = vld [vmem:[%s2066 + $0x28] sm:$0xf]
      %v2078 = vld [vmem:[%s2066 + $0x2c] sm:$0xf]
      %v2079 = vld [vmem:[%s2066 + $0x30] sm:$0xf]
      %v2080 = vld [vmem:[%s2066 + $0x34] sm:$0xf]
      %v2081 = vld [vmem:[%s2066 + $0x38] sm:$0xf]
      %v2082 = vld [vmem:[%s2066 + $0x3c] sm:$0xf]
      %v2083 = vunpack.c.l.b16 %v1957
      %v2084 = vunpack.c.l.b16 %v1960
      %v2085 = vunpack.c.l.b16 %v1964
      %v2086 = vunpack.c.l.b16 %v1967
      %v2087 = vunpack.c.l.b16 %v1971
      %v2088 = vunpack.c.l.b16 %v1974
      %v2089 = vunpack.c.l.b16 %v1978
      %v2090 = vunpack.c.l.b16 %v1981
      %v2091 = vunpack.c.l.b16 %v1985
      %v2092 = vunpack.c.l.b16 %v1988
      %v2093 = vunpack.c.l.b16 %v1992
      %v2094 = vunpack.c.l.b16 %v1995
      %v2095 = vunpack.c.l.b16 %v1999
      %v2096 = vunpack.c.l.b16 %v2002
      %v2097 = vunpack.c.l.b16 %v2006
      %v2098 = vunpack.c.l.b16 %v2009
      %v2099 = vunpack.c.l.b16 %v2013
      %v2100 = vunpack.c.l.b16 %v2016
      %v2101 = vunpack.c.l.b16 %v2020
      %v2102 = vunpack.c.l.b16 %v2023
      %v2103 = vunpack.c.l.b16 %v2027
      %v2104 = vunpack.c.l.b16 %v2030
      %v2105 = vunpack.c.l.b16 %v2034
      %v2106 = vunpack.c.l.b16 %v2037
      %v2107 = vunpack.c.l.b16 %v2041
      %v2108 = vunpack.c.l.b16 %v2044
      %v2109 = vunpack.c.l.b16 %v2048
      %v2110 = vunpack.c.l.b16 %v2051
      %v2111 = vunpack.c.l.b16 %v2055
      %v2112 = vunpack.c.l.b16 %v2058
      %v2113 = vunpack.c.l.b16 %v2062
      %v2114 = vunpack.c.l.b16 %v2065
      %v2115 = vpack.c.b16 %v2084, %v2083
      %v2116 = vpack.c.b16 %v2086, %v2085
      %v2117 = vpack.c.b16 %v2088, %v2087
      %v2118 = vpack.c.b16 %v2090, %v2089
      %v2119 = vpack.c.b16 %v2092, %v2091
      %v2120 = vpack.c.b16 %v2094, %v2093
      %v2121 = vpack.c.b16 %v2096, %v2095
      %v2122 = vpack.c.b16 %v2098, %v2097
      %v2123 = vpack.c.b16 %v2100, %v2099
      %v2124 = vpack.c.b16 %v2102, %v2101
      %v2125 = vpack.c.b16 %v2104, %v2103
      %v2126 = vpack.c.b16 %v2106, %v2105
      %v2127 = vpack.c.b16 %v2108, %v2107
      %v2128 = vpack.c.b16 %v2110, %v2109
      %v2129 = vpack.c.b16 %v2112, %v2111
      %v2130 = vpack.c.b16 %v2114, %v2113
      %v2163 = vunpack.c.l.b16 %v2067
      %v2164 = vunpack.c.l.b16 %v2068
      %v2165 = vunpack.c.l.b16 %v2069
      %v2166 = vunpack.c.l.b16 %v2070
      %v2167 = vunpack.c.l.b16 %v2071
      %v2168 = vunpack.c.l.b16 %v2072
      %v2169 = vunpack.c.l.b16 %v2073
      %v2170 = vunpack.c.l.b16 %v2074
      %v2171 = vunpack.c.l.b16 %v2075
      %v2172 = vunpack.c.l.b16 %v2076
      %v2173 = vunpack.c.l.b16 %v2077
      %v2174 = vunpack.c.l.b16 %v2078
      %v2175 = vunpack.c.l.b16 %v2079
      %v2176 = vunpack.c.l.b16 %v2080
      %v2177 = vunpack.c.l.b16 %v2081
      %v2178 = vunpack.c.l.b16 %v2082
      %v2179 = vpack.c.b16 %v2164, %v2163
      %v2180 = vpack.c.b16 %v2166, %v2165
      %v2181 = vpack.c.b16 %v2168, %v2167
      %v2182 = vpack.c.b16 %v2170, %v2169
      %v2183 = vpack.c.b16 %v2172, %v2171
      %v2184 = vpack.c.b16 %v2174, %v2173
      %v2185 = vpack.c.b16 %v2176, %v2175
      %v2186 = vpack.c.b16 %v2178, %v2177
      %2195 = vmatprep.subr.bf16.mxu0 0
      %2196 = vmatpush1.bf16.msra.mxu0 %v2179
      %2197 = vmatprep.subr.bf16.mxu0 0
      %2198 = vmatpush1.bf16.msra.mxu0 %v2180
      %2199 = vmatprep.subr.bf16.mxu0 0
      %2200 = vmatpush1.bf16.msra.mxu0 %v2181
      %2201 = vmatprep.subr.bf16.mxu0 0
      %2202 = vmatpush1.bf16.msra.mxu0 %v2182
      %2203 = vmatprep.subr.bf16.mxu0 0
      %2204 = vmatpush1.bf16.msra.mxu0 %v2183
      %2205 = vmatprep.subr.bf16.mxu0 0
      %2206 = vmatpush1.bf16.msra.mxu0 %v2184
      %2207 = vmatprep.subr.bf16.mxu0 0
      %2208 = vmatpush1.bf16.msra.mxu0 %v2185
      %2209 = vmatprep.subr.bf16.mxu0 0
      %2210 = vmatpush1.bf16.msra.mxu0 %v2186
      %2211 = vmatprep.subr.bf16.mxu0 0
      %2212 = vmatpush1.bf16.msra.mxu0 0
      %2213 = vmatprep.subr.bf16.mxu0 0
      %2214 = vmatpush1.bf16.msra.mxu0 0
      %2215 = vmatprep.subr.bf16.mxu0 0
      %2216 = vmatpush1.bf16.msra.mxu0 0
      %2217 = vmatprep.subr.bf16.mxu0 0
      %2218 = vmatpush1.bf16.msra.mxu0 0
      %2219 = vmatprep.subr.bf16.mxu0 0
      %2220 = vmatpush1.bf16.msra.mxu0 0
      %2221 = vmatprep.subr.bf16.mxu0 0
      %2222 = vmatpush1.bf16.msra.mxu0 0
      %2223 = vmatprep.subr.bf16.mxu0 0
      %2224 = vmatpush1.bf16.msra.mxu0 0
      %2225 = vmatprep.subr.bf16.mxu0 0
      %2226 = vmatpush1.bf16.msra.mxu0 0
      %2227 = vmatprep.mubr.bf16.mxu0 0
      %2228 = vmatmul.mubr.bf16.gmra.mrb[0].mxu0 %v2115
      %v2229 = vpop.f32.mrb[0].mxu0
      %v2230 = vadd.f32 0.0, %v2229
      %v2231 = vpop.f32.mrb[0].mxu0
      %v2232 = vpop.f32.mrb[0].mxu0
      %v2233 = vadd.f32 0.0, %v2232
      %v2234 = vpop.f32.mrb[0].mxu0
      %2235 = vmatprep.mubr.bf16.mxu0 0
      %2236 = vmatmul.mubr.bf16.gmra.mrb[0].mxu0 %v2116
      %v2237 = vpop.f32.mrb[0].mxu0
      %v2238 = vadd.f32 0.0, %v2237
      %v2239 = vpop.f32.mrb[0].mxu0
      %v2240 = vpop.f32.mrb[0].mxu0
      %v2241 = vadd.f32 0.0, %v2240
      %v2242 = vpop.f32.mrb[0].mxu0
      %2243 = vmatprep.mubr.bf16.mxu0 0
      %2244 = vmatmul.mubr.bf16.gmra.mrb[0].mxu0 %v2117
      %v2245 = vpop.f32.mrb[0].mxu0
      %v2246 = vadd.f32 0.0, %v2245
      %v2247 = vpop.f32.mrb[0].mxu0
      %v2248 = vpop.f32.mrb[0].mxu0
      %v2249 = vadd.f32 0.0, %v2248
      %v2250 = vpop.f32.mrb[0].mxu0
      %2251 = vmatprep.mubr.bf16.mxu0 0
      %2252 = vmatmul.mubr.bf16.gmra.mrb[0].mxu0 %v2118
      %v2253 = vpop.f32.mrb[0].mxu0
      %v2254 = vadd.f32 0.0, %v2253
      %v2255 = vpop.f32.mrb[0].mxu0
      %v2256 = vpop.f32.mrb[0].mxu0
      %v2257 = vadd.f32 0.0, %v2256
      %v2258 = vpop.f32.mrb[0].mxu0
      %2259 = vmatprep.mubr.bf16.mxu0 0
      %2260 = vmatmul.mubr.bf16.gmra.mrb[0].mxu0 %v2119
      %v2261 = vpop.f32.mrb[0].mxu0
      %v2262 = vadd.f32 0.0, %v2261
      %v2263 = vpop.f32.mrb[0].mxu0
      %v2264 = vpop.f32.mrb[0].mxu0
      %v2265 = vadd.f32 0.0, %v2264
      %v2266 = vpop.f32.mrb[0].mxu0
      %2267 = vmatprep.mubr.bf16.mxu0 0
      %2268 = vmatmul.mubr.bf16.gmra.mrb[0].mxu0 %v2120
      %v2269 = vpop.f32.mrb[0].mxu0
      %v2270 = vadd.f32 0.0, %v2269
      %v2271 = vpop.f32.mrb[0].mxu0
      %v2272 = vpop.f32.mrb[0].mxu0
      %v2273 = vadd.f32 0.0, %v2272
      %v2274 = vpop.f32.mrb[0].mxu0
      %2275 = vmatprep.mubr.bf16.mxu0 0
      %2276 = vmatmul.mubr.bf16.gmra.mrb[0].mxu0 %v2121
      %v2277 = vpop.f32.mrb[0].mxu0
      %v2278 = vadd.f32 0.0, %v2277
      %v2279 = vpop.f32.mrb[0].mxu0
      %v2280 = vpop.f32.mrb[0].mxu0
      %v2281 = vadd.f32 0.0, %v2280
      %v2282 = vpop.f32.mrb[0].mxu0
      %2283 = vmatprep.mubr.bf16.mxu0 0
      %2284 = vmatmul.mubr.bf16.gmra.mrb[0].mxu0 %v2122
      %v2285 = vpop.f32.mrb[0].mxu0
      %v2286 = vadd.f32 0.0, %v2285
      %v2287 = vpop.f32.mrb[0].mxu0
      %v2288 = vpop.f32.mrb[0].mxu0
      %v2289 = vadd.f32 0.0, %v2288
      %v2290 = vpop.f32.mrb[0].mxu0
      %2291 = vmatprep.mubr.bf16.mxu0 0
      %2292 = vmatmul.mubr.bf16.gmra.mrb[0].mxu0 %v2123
      %v2293 = vpop.f32.mrb[0].mxu0
      %v2294 = vadd.f32 0.0, %v2293
      %v2295 = vpop.f32.mrb[0].mxu0
      %v2296 = vpop.f32.mrb[0].mxu0
      %v2297 = vadd.f32 0.0, %v2296
      %v2298 = vpop.f32.mrb[0].mxu0
      %2299 = vmatprep.mubr.bf16.mxu0 0
      %2300 = vmatmul.mubr.bf16.gmra.mrb[0].mxu0 %v2124
      %v2301 = vpop.f32.mrb[0].mxu0
      %v2302 = vadd.f32 0.0, %v2301
      %v2303 = vpop.f32.mrb[0].mxu0
      %v2304 = vpop.f32.mrb[0].mxu0
      %v2305 = vadd.f32 0.0, %v2304
      %v2306 = vpop.f32.mrb[0].mxu0
      %2307 = vmatprep.mubr.bf16.mxu0 0
      %2308 = vmatmul.mubr.bf16.gmra.mrb[0].mxu0 %v2125
      %v2309 = vpop.f32.mrb[0].mxu0
      %v2310 = vadd.f32 0.0, %v2309
      %v2311 = vpop.f32.mrb[0].mxu0
      %v2312 = vpop.f32.mrb[0].mxu0
      %v2313 = vadd.f32 0.0, %v2312
      %v2314 = vpop.f32.mrb[0].mxu0
      %2315 = vmatprep.mubr.bf16.mxu0 0
      %2316 = vmatmul.mubr.bf16.gmra.mrb[0].mxu0 %v2126
      %v2317 = vpop.f32.mrb[0].mxu0
      %v2318 = vadd.f32 0.0, %v2317
      %v2319 = vpop.f32.mrb[0].mxu0
      %v2320 = vpop.f32.mrb[0].mxu0
      %v2321 = vadd.f32 0.0, %v2320
      %v2322 = vpop.f32.mrb[0].mxu0
      %2323 = vmatprep.mubr.bf16.mxu0 0
      %2324 = vmatmul.mubr.bf16.gmra.mrb[0].mxu0 %v2127
      %v2325 = vpop.f32.mrb[0].mxu0
      %v2326 = vadd.f32 0.0, %v2325
      %v2327 = vpop.f32.mrb[0].mxu0
      %v2328 = vpop.f32.mrb[0].mxu0
      %v2329 = vadd.f32 0.0, %v2328
      %v2330 = vpop.f32.mrb[0].mxu0
      %2331 = vmatprep.mubr.bf16.mxu0 0
      %2332 = vmatmul.mubr.bf16.gmra.mrb[0].mxu0 %v2128
      %v2333 = vpop.f32.mrb[0].mxu0
      %v2334 = vadd.f32 0.0, %v2333
      %v2335 = vpop.f32.mrb[0].mxu0
      %v2336 = vpop.f32.mrb[0].mxu0
      %v2337 = vadd.f32 0.0, %v2336
      %v2338 = vpop.f32.mrb[0].mxu0
      %2339 = vmatprep.mubr.bf16.mxu0 0
      %2340 = vmatmul.mubr.bf16.gmra.mrb[0].mxu0 %v2129
      %v2341 = vpop.f32.mrb[0].mxu0
      %v2342 = vadd.f32 0.0, %v2341
      %v2343 = vpop.f32.mrb[0].mxu0
      %v2344 = vpop.f32.mrb[0].mxu0
      %v2345 = vadd.f32 0.0, %v2344
      %v2346 = vpop.f32.mrb[0].mxu0
      %2347 = vmatprep.mubr.bf16.mxu0 0
      %2348 = vmatmul.mubr.bf16.gmra.mrb[0].mxu0 %v2130
      %v2349 = vpop.f32.mrb[0].mxu0
      %v2350 = vadd.f32 0.0, %v2349
      %v2351 = vpop.f32.mrb[0].mxu0
      %v2352 = vpop.f32.mrb[0].mxu0
      %v2353 = vadd.f32 0.0, %v2352
      %v2354 = vpop.f32.mrb[0].mxu0
      %2355 = vdwg.mxu0
      %v2356 = vadd.f32 %v1777, %v2230
      %v2357 = vadd.f32 %v1780, %v2233
      %v2358 = vadd.f32 %v1785, %v2238
      %v2359 = vadd.f32 %v1788, %v2241
      %v2360 = vadd.f32 %v1793, %v2246
      %v2361 = vadd.f32 %v1796, %v2249
      %v2362 = vadd.f32 %v1801, %v2254
      %v2363 = vadd.f32 %v1804, %v2257
      %v2364 = vadd.f32 %v1809, %v2262
      %v2365 = vadd.f32 %v1812, %v2265
      %v2366 = vadd.f32 %v1817, %v2270
      %v2367 = vadd.f32 %v1820, %v2273
      %v2368 = vadd.f32 %v1825, %v2278
      %v2369 = vadd.f32 %v1828, %v2281
      %v2370 = vadd.f32 %v1833, %v2286
      %v2371 = vadd.f32 %v1836, %v2289
      %v2372 = vadd.f32 %v1841, %v2294
      %v2373 = vadd.f32 %v1844, %v2297
      %v2374 = vadd.f32 %v1849, %v2302
      %v2375 = vadd.f32 %v1852, %v2305
      %v2376 = vadd.f32 %v1857, %v2310
      %v2377 = vadd.f32 %v1860, %v2313
      %v2378 = vadd.f32 %v1865, %v2318
      %v2379 = vadd.f32 %v1868, %v2321
      %v2380 = vadd.f32 %v1873, %v2326
      %v2381 = vadd.f32 %v1876, %v2329
      %v2382 = vadd.f32 %v1881, %v2334
      %v2383 = vadd.f32 %v1884, %v2337
      %v2384 = vadd.f32 %v1889, %v2342
      %v2385 = vadd.f32 %v1892, %v2345
      %v2386 = vadd.f32 %v1897, %v2350
      %v2387 = vadd.f32 %v1900, %v2353
      %v2388 = vld [vmem:[%s287] sm:$0xf]
      %v2389 = vld [vmem:[%s287 + $0x4] sm:$0xf]
      %v2390 = vld [vmem:[%s287 + $0xc] sm:$0xf]
      %v2391 = vld [vmem:[%s287 + $0x10] sm:$0xf]
      %v2392 = vld [vmem:[%s287 + $0x18] sm:$0xf]
      %v2393 = vld [vmem:[%s287 + $0x1c] sm:$0xf]
      %v2394 = vld [vmem:[%s287 + $0x24] sm:$0xf]
      %v2395 = vld [vmem:[%s287 + $0x28] sm:$0xf]
      %v2396 = vld [vmem:[%s287 + $0x30] sm:$0xf]
      %v2397 = vld [vmem:[%s287 + $0x34] sm:$0xf]
      %v2398 = vld [vmem:[%s287 + $0x3c] sm:$0xf]
      %v2399 = vld [vmem:[%s287 + $0x40] sm:$0xf]
      %v2400 = vld [vmem:[%s287 + $0x48] sm:$0xf]
      %v2401 = vld [vmem:[%s287 + $0x4c] sm:$0xf]
      %v2402 = vld [vmem:[%s287 + $0x54] sm:$0xf]
      %v2403 = vld [vmem:[%s287 + $0x58] sm:$0xf]
      %v2404 = vld [vmem:[%s287 + $0x60] sm:$0xf]
      %v2405 = vld [vmem:[%s287 + $0x64] sm:$0xf]
      %v2406 = vld [vmem:[%s287 + $0x6c] sm:$0xf]
      %v2407 = vld [vmem:[%s287 + $0x70] sm:$0xf]
      %v2408 = vld [vmem:[%s287 + $0x78] sm:$0xf]
      %v2409 = vld [vmem:[%s287 + $0x7c] sm:$0xf]
      %v2410 = vld [vmem:[%s287 + $0x84] sm:$0xf]
      %v2411 = vld [vmem:[%s287 + $0x88] sm:$0xf]
      %v2412 = vld [vmem:[%s287 + $0x90] sm:$0xf]
      %v2413 = vld [vmem:[%s287 + $0x94] sm:$0xf]
      %v2414 = vld [vmem:[%s287 + $0x9c] sm:$0xf]
      %v2415 = vld [vmem:[%s287 + $0xa0] sm:$0xf]
      %v2416 = vld [vmem:[%s287 + $0xa8] sm:$0xf]
      %v2417 = vld [vmem:[%s287 + $0xac] sm:$0xf]
      %v2418 = vld [vmem:[%s287 + $0xb4] sm:$0xf]
      %v2419 = vld [vmem:[%s287 + $0xb8] sm:$0xf]
      %s2420 = scalar_lea.vmem %s1, 192
      %v2421 = vld [vmem:[%s2420] sm:$0xf]
      %v2422 = vld [vmem:[%s2420 + $0x4] sm:$0xf]
      %v2423 = vld [vmem:[%s2420 + $0x8] sm:$0xf]
      %v2424 = vld [vmem:[%s2420 + $0xc] sm:$0xf]
      %v2425 = vld [vmem:[%s2420 + $0x10] sm:$0xf]
      %v2426 = vld [vmem:[%s2420 + $0x14] sm:$0xf]
      %v2427 = vld [vmem:[%s2420 + $0x18] sm:$0xf]
      %v2428 = vld [vmem:[%s2420 + $0x1c] sm:$0xf]
      %v2429 = vld [vmem:[%s2420 + $0x20] sm:$0xf]
      %v2430 = vld [vmem:[%s2420 + $0x24] sm:$0xf]
      %v2431 = vld [vmem:[%s2420 + $0x28] sm:$0xf]
      %v2432 = vld [vmem:[%s2420 + $0x2c] sm:$0xf]
      %v2433 = vld [vmem:[%s2420 + $0x30] sm:$0xf]
      %v2434 = vld [vmem:[%s2420 + $0x34] sm:$0xf]
      %v2435 = vld [vmem:[%s2420 + $0x38] sm:$0xf]
      %v2436 = vld [vmem:[%s2420 + $0x3c] sm:$0xf]
      %v2469 = vunpack.c.l.b16 %v2388
      %v2470 = vunpack.c.l.b16 %v2389
      %v2471 = vunpack.c.l.b16 %v2390
      %v2472 = vunpack.c.l.b16 %v2391
      %v2473 = vunpack.c.l.b16 %v2392
      %v2474 = vunpack.c.l.b16 %v2393
      %v2475 = vunpack.c.l.b16 %v2394
      %v2476 = vunpack.c.l.b16 %v2395
      %v2477 = vunpack.c.l.b16 %v2396
      %v2478 = vunpack.c.l.b16 %v2397
      %v2479 = vunpack.c.l.b16 %v2398
      %v2480 = vunpack.c.l.b16 %v2399
      %v2481 = vunpack.c.l.b16 %v2400
      %v2482 = vunpack.c.l.b16 %v2401
      %v2483 = vunpack.c.l.b16 %v2402
      %v2484 = vunpack.c.l.b16 %v2403
      %v2485 = vunpack.c.l.b16 %v2404
      %v2486 = vunpack.c.l.b16 %v2405
      %v2487 = vunpack.c.l.b16 %v2406
      %v2488 = vunpack.c.l.b16 %v2407
      %v2489 = vunpack.c.l.b16 %v2408
      %v2490 = vunpack.c.l.b16 %v2409
      %v2491 = vunpack.c.l.b16 %v2410
      %v2492 = vunpack.c.l.b16 %v2411
      %v2493 = vunpack.c.l.b16 %v2412
      %v2494 = vunpack.c.l.b16 %v2413
      %v2495 = vunpack.c.l.b16 %v2414
      %v2496 = vunpack.c.l.b16 %v2415
      %v2497 = vunpack.c.l.b16 %v2416
      %v2498 = vunpack.c.l.b16 %v2417
      %v2499 = vunpack.c.l.b16 %v2418
      %v2500 = vunpack.c.l.b16 %v2419
      %v2501 = vpack.c.b16 %v2470, %v2469
      %v2502 = vpack.c.b16 %v2472, %v2471
      %v2503 = vpack.c.b16 %v2474, %v2473
      %v2504 = vpack.c.b16 %v2476, %v2475
      %v2505 = vpack.c.b16 %v2478, %v2477
      %v2506 = vpack.c.b16 %v2480, %v2479
      %v2507 = vpack.c.b16 %v2482, %v2481
      %v2508 = vpack.c.b16 %v2484, %v2483
      %v2509 = vpack.c.b16 %v2486, %v2485
      %v2510 = vpack.c.b16 %v2488, %v2487
      %v2511 = vpack.c.b16 %v2490, %v2489
      %v2512 = vpack.c.b16 %v2492, %v2491
      %v2513 = vpack.c.b16 %v2494, %v2493
      %v2514 = vpack.c.b16 %v2496, %v2495
      %v2515 = vpack.c.b16 %v2498, %v2497
      %v2516 = vpack.c.b16 %v2500, %v2499
      %v2549 = vunpack.c.l.b16 %v2421
      %v2550 = vunpack.c.l.b16 %v2422
      %v2551 = vunpack.c.l.b16 %v2423
      %v2552 = vunpack.c.l.b16 %v2424
      %v2553 = vunpack.c.l.b16 %v2425
      %v2554 = vunpack.c.l.b16 %v2426
      %v2555 = vunpack.c.l.b16 %v2427
      %v2556 = vunpack.c.l.b16 %v2428
      %v2557 = vunpack.c.l.b16 %v2429
      %v2558 = vunpack.c.l.b16 %v2430
      %v2559 = vunpack.c.l.b16 %v2431
      %v2560 = vunpack.c.l.b16 %v2432
      %v2561 = vunpack.c.l.b16 %v2433
      %v2562 = vunpack.c.l.b16 %v2434
      %v2563 = vunpack.c.l.b16 %v2435
      %v2564 = vunpack.c.l.b16 %v2436
      %v2565 = vpack.c.b16 %v2550, %v2549
      %v2566 = vpack.c.b16 %v2552, %v2551
      %v2567 = vpack.c.b16 %v2554, %v2553
      %v2568 = vpack.c.b16 %v2556, %v2555
      %v2569 = vpack.c.b16 %v2558, %v2557
      %v2570 = vpack.c.b16 %v2560, %v2559
      %v2571 = vpack.c.b16 %v2562, %v2561
      %v2572 = vpack.c.b16 %v2564, %v2563
      %2581 = vmatprep.subr.bf16.mxu0 0
      %2582 = vmatpush1.bf16.msra.mxu0 %v2565
      %2583 = vmatprep.subr.bf16.mxu0 0
      %2584 = vmatpush1.bf16.msra.mxu0 %v2566
      %2585 = vmatprep.subr.bf16.mxu0 0
      %2586 = vmatpush1.bf16.msra.mxu0 %v2567
      %2587 = vmatprep.subr.bf16.mxu0 0
      %2588 = vmatpush1.bf16.msra.mxu0 %v2568
      %2589 = vmatprep.subr.bf16.mxu0 0
      %2590 = vmatpush1.bf16.msra.mxu0 %v2569
      %2591 = vmatprep.subr.bf16.mxu0 0
      %2592 = vmatpush1.bf16.msra.mxu0 %v2570
      %2593 = vmatprep.subr.bf16.mxu0 0
      %2594 = vmatpush1.bf16.msra.mxu0 %v2571
      %2595 = vmatprep.subr.bf16.mxu0 0
      %2596 = vmatpush1.bf16.msra.mxu0 %v2572
      %2597 = vmatprep.subr.bf16.mxu0 0
      %2598 = vmatpush1.bf16.msra.mxu0 0
      %2599 = vmatprep.subr.bf16.mxu0 0
      %2600 = vmatpush1.bf16.msra.mxu0 0
      %2601 = vmatprep.subr.bf16.mxu0 0
      %2602 = vmatpush1.bf16.msra.mxu0 0
      %2603 = vmatprep.subr.bf16.mxu0 0
      %2604 = vmatpush1.bf16.msra.mxu0 0
      %2605 = vmatprep.subr.bf16.mxu0 0
      %2606 = vmatpush1.bf16.msra.mxu0 0
      %2607 = vmatprep.subr.bf16.mxu0 0
      %2608 = vmatpush1.bf16.msra.mxu0 0
      %2609 = vmatprep.subr.bf16.mxu0 0
      %2610 = vmatpush1.bf16.msra.mxu0 0
      %2611 = vmatprep.subr.bf16.mxu0 0
      %2612 = vmatpush1.bf16.msra.mxu0 0
      %2613 = vmatprep.mubr.bf16.mxu0 0
      %2614 = vmatmul.mubr.bf16.gmra.mrb[0].mxu0 %v2501
      %v2615 = vpop.f32.mrb[0].mxu0
      %v2616 = vadd.f32 0.0, %v2615
      %v2617 = vpop.f32.mrb[0].mxu0
      %v2618 = vpop.f32.mrb[0].mxu0
      %v2619 = vadd.f32 0.0, %v2618
      %v2620 = vpop.f32.mrb[0].mxu0
      %2621 = vmatprep.mubr.bf16.mxu0 0
      %2622 = vmatmul.mubr.bf16.gmra.mrb[0].mxu0 %v2502
      %v2623 = vpop.f32.mrb[0].mxu0
      %v2624 = vadd.f32 0.0, %v2623
      %v2625 = vpop.f32.mrb[0].mxu0
      %v2626 = vpop.f32.mrb[0].mxu0
      %v2627 = vadd.f32 0.0, %v2626
      %v2628 = vpop.f32.mrb[0].mxu0
      %2629 = vmatprep.mubr.bf16.mxu0 0
      %2630 = vmatmul.mubr.bf16.gmra.mrb[0].mxu0 %v2503
      %v2631 = vpop.f32.mrb[0].mxu0
      %v2632 = vadd.f32 0.0, %v2631
      %v2633 = vpop.f32.mrb[0].mxu0
      %v2634 = vpop.f32.mrb[0].mxu0
      %v2635 = vadd.f32 0.0, %v2634
      %v2636 = vpop.f32.mrb[0].mxu0
      %2637 = vmatprep.mubr.bf16.mxu0 0
      %2638 = vmatmul.mubr.bf16.gmra.mrb[0].mxu0 %v2504
      %v2639 = vpop.f32.mrb[0].mxu0
      %v2640 = vadd.f32 0.0, %v2639
      %v2641 = vpop.f32.mrb[0].mxu0
      %v2642 = vpop.f32.mrb[0].mxu0
      %v2643 = vadd.f32 0.0, %v2642
      %v2644 = vpop.f32.mrb[0].mxu0
      %2645 = vmatprep.mubr.bf16.mxu0 0
      %2646 = vmatmul.mubr.bf16.gmra.mrb[0].mxu0 %v2505
      %v2647 = vpop.f32.mrb[0].mxu0
      %v2648 = vadd.f32 0.0, %v2647
      %v2649 = vpop.f32.mrb[0].mxu0
      %v2650 = vpop.f32.mrb[0].mxu0
      %v2651 = vadd.f32 0.0, %v2650
      %v2652 = vpop.f32.mrb[0].mxu0
      %2653 = vmatprep.mubr.bf16.mxu0 0
      %2654 = vmatmul.mubr.bf16.gmra.mrb[0].mxu0 %v2506
      %v2655 = vpop.f32.mrb[0].mxu0
      %v2656 = vadd.f32 0.0, %v2655
      %v2657 = vpop.f32.mrb[0].mxu0
      %v2658 = vpop.f32.mrb[0].mxu0
      %v2659 = vadd.f32 0.0, %v2658
      %v2660 = vpop.f32.mrb[0].mxu0
      %2661 = vmatprep.mubr.bf16.mxu0 0
      %2662 = vmatmul.mubr.bf16.gmra.mrb[0].mxu0 %v2507
      %v2663 = vpop.f32.mrb[0].mxu0
      %v2664 = vadd.f32 0.0, %v2663
      %v2665 = vpop.f32.mrb[0].mxu0
      %v2666 = vpop.f32.mrb[0].mxu0
      %v2667 = vadd.f32 0.0, %v2666
      %v2668 = vpop.f32.mrb[0].mxu0
      %2669 = vmatprep.mubr.bf16.mxu0 0
      %2670 = vmatmul.mubr.bf16.gmra.mrb[0].mxu0 %v2508
      %v2671 = vpop.f32.mrb[0].mxu0
      %v2672 = vadd.f32 0.0, %v2671
      %v2673 = vpop.f32.mrb[0].mxu0
      %v2674 = vpop.f32.mrb[0].mxu0
      %v2675 = vadd.f32 0.0, %v2674
      %v2676 = vpop.f32.mrb[0].mxu0
      %2677 = vmatprep.mubr.bf16.mxu0 0
      %2678 = vmatmul.mubr.bf16.gmra.mrb[0].mxu0 %v2509
      %v2679 = vpop.f32.mrb[0].mxu0
      %v2680 = vadd.f32 0.0, %v2679
      %v2681 = vpop.f32.mrb[0].mxu0
      %v2682 = vpop.f32.mrb[0].mxu0
      %v2683 = vadd.f32 0.0, %v2682
      %v2684 = vpop.f32.mrb[0].mxu0
      %2685 = vmatprep.mubr.bf16.mxu0 0
      %2686 = vmatmul.mubr.bf16.gmra.mrb[0].mxu0 %v2510
      %v2687 = vpop.f32.mrb[0].mxu0
      %v2688 = vadd.f32 0.0, %v2687
      %v2689 = vpop.f32.mrb[0].mxu0
      %v2690 = vpop.f32.mrb[0].mxu0
      %v2691 = vadd.f32 0.0, %v2690
      %v2692 = vpop.f32.mrb[0].mxu0
      %2693 = vmatprep.mubr.bf16.mxu0 0
      %2694 = vmatmul.mubr.bf16.gmra.mrb[0].mxu0 %v2511
      %v2695 = vpop.f32.mrb[0].mxu0
      %v2696 = vadd.f32 0.0, %v2695
      %v2697 = vpop.f32.mrb[0].mxu0
      %v2698 = vpop.f32.mrb[0].mxu0
      %v2699 = vadd.f32 0.0, %v2698
      %v2700 = vpop.f32.mrb[0].mxu0
      %2701 = vmatprep.mubr.bf16.mxu0 0
      %2702 = vmatmul.mubr.bf16.gmra.mrb[0].mxu0 %v2512
      %v2703 = vpop.f32.mrb[0].mxu0
      %v2704 = vadd.f32 0.0, %v2703
      %v2705 = vpop.f32.mrb[0].mxu0
      %v2706 = vpop.f32.mrb[0].mxu0
      %v2707 = vadd.f32 0.0, %v2706
      %v2708 = vpop.f32.mrb[0].mxu0
      %2709 = vmatprep.mubr.bf16.mxu0 0
      %2710 = vmatmul.mubr.bf16.gmra.mrb[0].mxu0 %v2513
      %v2711 = vpop.f32.mrb[0].mxu0
      %v2712 = vadd.f32 0.0, %v2711
      %v2713 = vpop.f32.mrb[0].mxu0
      %v2714 = vpop.f32.mrb[0].mxu0
      %v2715 = vadd.f32 0.0, %v2714
      %v2716 = vpop.f32.mrb[0].mxu0
      %2717 = vmatprep.mubr.bf16.mxu0 0
      %2718 = vmatmul.mubr.bf16.gmra.mrb[0].mxu0 %v2514
      %v2719 = vpop.f32.mrb[0].mxu0
      %v2720 = vadd.f32 0.0, %v2719
      %v2721 = vpop.f32.mrb[0].mxu0
      %v2722 = vpop.f32.mrb[0].mxu0
      %v2723 = vadd.f32 0.0, %v2722
      %v2724 = vpop.f32.mrb[0].mxu0
      %2725 = vmatprep.mubr.bf16.mxu0 0
      %2726 = vmatmul.mubr.bf16.gmra.mrb[0].mxu0 %v2515
      %v2727 = vpop.f32.mrb[0].mxu0
      %v2728 = vadd.f32 0.0, %v2727
      %v2729 = vpop.f32.mrb[0].mxu0
      %v2730 = vpop.f32.mrb[0].mxu0
      %v2731 = vadd.f32 0.0, %v2730
      %v2732 = vpop.f32.mrb[0].mxu0
      %2733 = vmatprep.mubr.bf16.mxu0 0
      %2734 = vmatmul.mubr.bf16.gmra.mrb[0].mxu0 %v2516
      %v2735 = vpop.f32.mrb[0].mxu0
      %v2736 = vadd.f32 0.0, %v2735
      %v2737 = vpop.f32.mrb[0].mxu0
      %v2738 = vpop.f32.mrb[0].mxu0
      %v2739 = vadd.f32 0.0, %v2738
      %v2740 = vpop.f32.mrb[0].mxu0
      %2741 = vdwg.mxu0
      %v2742 = vadd.f32 %v2356, %v2616
      %v2743 = vadd.f32 %v2357, %v2619
      %v2744 = vadd.f32 %v2358, %v2624
      %v2745 = vadd.f32 %v2359, %v2627
      %v2746 = vadd.f32 %v2360, %v2632
      %v2747 = vadd.f32 %v2361, %v2635
      %v2748 = vadd.f32 %v2362, %v2640
      %v2749 = vadd.f32 %v2363, %v2643
      %v2750 = vadd.f32 %v2364, %v2648
      %v2751 = vadd.f32 %v2365, %v2651
      %v2752 = vadd.f32 %v2366, %v2656
      %v2753 = vadd.f32 %v2367, %v2659
      %v2754 = vadd.f32 %v2368, %v2664
      %v2755 = vadd.f32 %v2369, %v2667
      %v2756 = vadd.f32 %v2370, %v2672
      %v2757 = vadd.f32 %v2371, %v2675
      %v2758 = vadd.f32 %v2372, %v2680
      %v2759 = vadd.f32 %v2373, %v2683
      %v2760 = vadd.f32 %v2374, %v2688
      %v2761 = vadd.f32 %v2375, %v2691
      %v2762 = vadd.f32 %v2376, %v2696
      %v2763 = vadd.f32 %v2377, %v2699
      %v2764 = vadd.f32 %v2378, %v2704
      %v2765 = vadd.f32 %v2379, %v2707
      %v2766 = vadd.f32 %v2380, %v2712
      %v2767 = vadd.f32 %v2381, %v2715
      %v2768 = vadd.f32 %v2382, %v2720
      %v2769 = vadd.f32 %v2383, %v2723
      %v2770 = vadd.f32 %v2384, %v2728
      %v2771 = vadd.f32 %v2385, %v2731
      %v2772 = vadd.f32 %v2386, %v2736
      %v2773 = vadd.f32 %v2387, %v2739
      %v2774 = vld [vmem:[%s287] sm:$0xf]
      %v2775 = vld [vmem:[%s287 + $0x4] sm:$0xf]
      %v2776 = vld [vmem:[%s287 + $0x8] sm:$0x1]
      %v2777 = vld [vmem:[%s287 + $0xc] sm:$0xf]
      %v2778 = vld [vmem:[%s287 + $0x10] sm:$0xf]
      %v2779 = vld [vmem:[%s287 + $0x14] sm:$0x1]
      %v2780 = vld [vmem:[%s287 + $0x18] sm:$0xf]
      %v2781 = vld [vmem:[%s287 + $0x1c] sm:$0xf]
      %v2782 = vld [vmem:[%s287 + $0x20] sm:$0x1]
      %v2783 = vld [vmem:[%s287 + $0x24] sm:$0xf]
      %v2784 = vld [vmem:[%s287 + $0x28] sm:$0xf]
      %v2785 = vld [vmem:[%s287 + $0x2c] sm:$0x1]
      %v2786 = vld [vmem:[%s287 + $0x30] sm:$0xf]
      %v2787 = vld [vmem:[%s287 + $0x34] sm:$0xf]
      %v2788 = vld [vmem:[%s287 + $0x38] sm:$0x1]
      %v2789 = vld [vmem:[%s287 + $0x3c] sm:$0xf]
      %v2790 = vld [vmem:[%s287 + $0x40] sm:$0xf]
      %v2791 = vld [vmem:[%s287 + $0x44] sm:$0x1]
      %v2792 = vld [vmem:[%s287 + $0x48] sm:$0xf]
      %v2793 = vld [vmem:[%s287 + $0x4c] sm:$0xf]
      %v2794 = vld [vmem:[%s287 + $0x50] sm:$0x1]
      %v2795 = vld [vmem:[%s287 + $0x54] sm:$0xf]
      %v2796 = vld [vmem:[%s287 + $0x58] sm:$0xf]
      %v2797 = vld [vmem:[%s287 + $0x5c] sm:$0x1]
      %v2798 = vld [vmem:[%s287 + $0x60] sm:$0xf]
      %v2799 = vld [vmem:[%s287 + $0x64] sm:$0xf]
      %v2800 = vld [vmem:[%s287 + $0x68] sm:$0x1]
      %v2801 = vld [vmem:[%s287 + $0x6c] sm:$0xf]
      %v2802 = vld [vmem:[%s287 + $0x70] sm:$0xf]
      %v2803 = vld [vmem:[%s287 + $0x74] sm:$0x1]
      %v2804 = vld [vmem:[%s287 + $0x78] sm:$0xf]
      %v2805 = vld [vmem:[%s287 + $0x7c] sm:$0xf]
      %v2806 = vld [vmem:[%s287 + $0x80] sm:$0x1]
      %v2807 = vld [vmem:[%s287 + $0x84] sm:$0xf]
      %v2808 = vld [vmem:[%s287 + $0x88] sm:$0xf]
      %v2809 = vld [vmem:[%s287 + $0x8c] sm:$0x1]
      %v2810 = vld [vmem:[%s287 + $0x90] sm:$0xf]
      %v2811 = vld [vmem:[%s287 + $0x94] sm:$0xf]
      %v2812 = vld [vmem:[%s287 + $0x98] sm:$0x1]
      %v2813 = vld [vmem:[%s287 + $0x9c] sm:$0xf]
      %v2814 = vld [vmem:[%s287 + $0xa0] sm:$0xf]
      %v2815 = vld [vmem:[%s287 + $0xa4] sm:$0x1]
      %v2816 = vld [vmem:[%s287 + $0xa8] sm:$0xf]
      %v2817 = vld [vmem:[%s287 + $0xac] sm:$0xf]
      %v2818 = vld [vmem:[%s287 + $0xb0] sm:$0x1]
      %v2819 = vld [vmem:[%s287 + $0xb4] sm:$0xf]
      %v2820 = vld [vmem:[%s287 + $0xb8] sm:$0xf]
      %v2821 = vld [vmem:[%s287 + $0xbc] sm:$0x1]
      %v2823 = vshrl.u32 %v2774, 16
      %v2825 = vrot.slane %v2823, 4
      %v2826 = vshll.u32 %v2774, 16
      %v2828 = vrot.slane %v2826, 5
      %v2829 = vor.u32 %v2825, %v2828
      %v2830 = vrot.slane %v2829, 4
      %v2832 = vshll.u32 %v2775, 16
      %v2834 = vrot.slane %v2832, 5
      %v2835 = vsel %vm923, %v2830, %v2834
      %v2836 = vshrl.u32 %v2775, 16
      %v2838 = vrot.slane %v2836, 4
      %v2839 = vor.u32 %v2838, %v2834
      %v2840 = vrot.slane %v2839, 4
      %v2842 = vshll.u32 %v2776, 16
      %v2844 = vrot.slane %v2842, 5
      %v2845 = vsel %vm923, %v2840, %v2844
      %v2847 = vshrl.u32 %v2777, 16
      %v2849 = vrot.slane %v2847, 4
      %v2850 = vshll.u32 %v2777, 16
      %v2852 = vrot.slane %v2850, 5
      %v2853 = vor.u32 %v2849, %v2852
      %v2854 = vrot.slane %v2853, 4
      %v2856 = vshll.u32 %v2778, 16
      %v2858 = vrot.slane %v2856, 5
      %v2859 = vsel %vm923, %v2854, %v2858
      %v2860 = vshrl.u32 %v2778, 16
      %v2862 = vrot.slane %v2860, 4
      %v2863 = vor.u32 %v2862, %v2858
      %v2864 = vrot.slane %v2863, 4
      %v2866 = vshll.u32 %v2779, 16
      %v2868 = vrot.slane %v2866, 5
      %v2869 = vsel %vm923, %v2864, %v2868
      %v2871 = vshrl.u32 %v2780, 16
      %v2873 = vrot.slane %v2871, 4
      %v2874 = vshll.u32 %v2780, 16
      %v2876 = vrot.slane %v2874, 5
      %v2877 = vor.u32 %v2873, %v2876
      %v2878 = vrot.slane %v2877, 4
      %v2880 = vshll.u32 %v2781, 16
      %v2882 = vrot.slane %v2880, 5
      %v2883 = vsel %vm923, %v2878, %v2882
      %v2884 = vshrl.u32 %v2781, 16
      %v2886 = vrot.slane %v2884, 4
      %v2887 = vor.u32 %v2886, %v2882
      %v2888 = vrot.slane %v2887, 4
      %v2890 = vshll.u32 %v2782, 16
      %v2892 = vrot.slane %v2890, 5
      %v2893 = vsel %vm923, %v2888, %v2892
      %v2895 = vshrl.u32 %v2783, 16
      %v2897 = vrot.slane %v2895, 4
      %v2898 = vshll.u32 %v2783, 16
      %v2900 = vrot.slane %v2898, 5
      %v2901 = vor.u32 %v2897, %v2900
      %v2902 = vrot.slane %v2901, 4
      %v2904 = vshll.u32 %v2784, 16
      %v2906 = vrot.slane %v2904, 5
      %v2907 = vsel %vm923, %v2902, %v2906
      %v2908 = vshrl.u32 %v2784, 16
      %v2910 = vrot.slane %v2908, 4
      %v2911 = vor.u32 %v2910, %v2906
      %v2912 = vrot.slane %v2911, 4
      %v2914 = vshll.u32 %v2785, 16
      %v2916 = vrot.slane %v2914, 5
      %v2917 = vsel %vm923, %v2912, %v2916
      %v2919 = vshrl.u32 %v2786, 16
      %v2921 = vrot.slane %v2919, 4
      %v2922 = vshll.u32 %v2786, 16
      %v2924 = vrot.slane %v2922, 5
      %v2925 = vor.u32 %v2921, %v2924
      %v2926 = vrot.slane %v2925, 4
      %v2928 = vshll.u32 %v2787, 16
      %v2930 = vrot.slane %v2928, 5
      %v2931 = vsel %vm923, %v2926, %v2930
      %v2932 = vshrl.u32 %v2787, 16
      %v2934 = vrot.slane %v2932, 4
      %v2935 = vor.u32 %v2934, %v2930
      %v2936 = vrot.slane %v2935, 4
      %v2938 = vshll.u32 %v2788, 16
      %v2940 = vrot.slane %v2938, 5
      %v2941 = vsel %vm923, %v2936, %v2940
      %v2943 = vshrl.u32 %v2789, 16
      %v2945 = vrot.slane %v2943, 4
      %v2946 = vshll.u32 %v2789, 16
      %v2948 = vrot.slane %v2946, 5
      %v2949 = vor.u32 %v2945, %v2948
      %v2950 = vrot.slane %v2949, 4
      %v2952 = vshll.u32 %v2790, 16
      %v2954 = vrot.slane %v2952, 5
      %v2955 = vsel %vm923, %v2950, %v2954
      %v2956 = vshrl.u32 %v2790, 16
      %v2958 = vrot.slane %v2956, 4
      %v2959 = vor.u32 %v2958, %v2954
      %v2960 = vrot.slane %v2959, 4
      %v2962 = vshll.u32 %v2791, 16
      %v2964 = vrot.slane %v2962, 5
      %v2965 = vsel %vm923, %v2960, %v2964
      %v2967 = vshrl.u32 %v2792, 16
      %v2969 = vrot.slane %v2967, 4
      %v2970 = vshll.u32 %v2792, 16
      %v2972 = vrot.slane %v2970, 5
      %v2973 = vor.u32 %v2969, %v2972
      %v2974 = vrot.slane %v2973, 4
      %v2976 = vshll.u32 %v2793, 16
      %v2978 = vrot.slane %v2976, 5
      %v2979 = vsel %vm923, %v2974, %v2978
      %v2980 = vshrl.u32 %v2793, 16
      %v2982 = vrot.slane %v2980, 4
      %v2983 = vor.u32 %v2982, %v2978
      %v2984 = vrot.slane %v2983, 4
      %v2986 = vshll.u32 %v2794, 16
      %v2988 = vrot.slane %v2986, 5
      %v2989 = vsel %vm923, %v2984, %v2988
      %v2991 = vshrl.u32 %v2795, 16
      %v2993 = vrot.slane %v2991, 4
      %v2994 = vshll.u32 %v2795, 16
      %v2996 = vrot.slane %v2994, 5
      %v2997 = vor.u32 %v2993, %v2996
      %v2998 = vrot.slane %v2997, 4
      %v3000 = vshll.u32 %v2796, 16
      %v3002 = vrot.slane %v3000, 5
      %v3003 = vsel %vm923, %v2998, %v3002
      %v3004 = vshrl.u32 %v2796, 16
      %v3006 = vrot.slane %v3004, 4
      %v3007 = vor.u32 %v3006, %v3002
      %v3008 = vrot.slane %v3007, 4
      %v3010 = vshll.u32 %v2797, 16
      %v3012 = vrot.slane %v3010, 5
      %v3013 = vsel %vm923, %v3008, %v3012
      %v3015 = vshrl.u32 %v2798, 16
      %v3017 = vrot.slane %v3015, 4
      %v3018 = vshll.u32 %v2798, 16
      %v3020 = vrot.slane %v3018, 5
      %v3021 = vor.u32 %v3017, %v3020
      %v3022 = vrot.slane %v3021, 4
      %v3024 = vshll.u32 %v2799, 16
      %v3026 = vrot.slane %v3024, 5
      %v3027 = vsel %vm923, %v3022, %v3026
      %v3028 = vshrl.u32 %v2799, 16
      %v3030 = vrot.slane %v3028, 4
      %v3031 = vor.u32 %v3030, %v3026
      %v3032 = vrot.slane %v3031, 4
      %v3034 = vshll.u32 %v2800, 16
      %v3036 = vrot.slane %v3034, 5
      %v3037 = vsel %vm923, %v3032, %v3036
      %v3039 = vshrl.u32 %v2801, 16
      %v3041 = vrot.slane %v3039, 4
      %v3042 = vshll.u32 %v2801, 16
      %v3044 = vrot.slane %v3042, 5
      %v3045 = vor.u32 %v3041, %v3044
      %v3046 = vrot.slane %v3045, 4
      %v3048 = vshll.u32 %v2802, 16
      %v3050 = vrot.slane %v3048, 5
      %v3051 = vsel %vm923, %v3046, %v3050
      %v3052 = vshrl.u32 %v2802, 16
      %v3054 = vrot.slane %v3052, 4
      %v3055 = vor.u32 %v3054, %v3050
      %v3056 = vrot.slane %v3055, 4
      %v3058 = vshll.u32 %v2803, 16
      %v3060 = vrot.slane %v3058, 5
      %v3061 = vsel %vm923, %v3056, %v3060
      %v3063 = vshrl.u32 %v2804, 16
      %v3065 = vrot.slane %v3063, 4
      %v3066 = vshll.u32 %v2804, 16
      %v3068 = vrot.slane %v3066, 5
      %v3069 = vor.u32 %v3065, %v3068
      %v3070 = vrot.slane %v3069, 4
      %v3072 = vshll.u32 %v2805, 16
      %v3074 = vrot.slane %v3072, 5
      %v3075 = vsel %vm923, %v3070, %v3074
      %v3076 = vshrl.u32 %v2805, 16
      %v3078 = vrot.slane %v3076, 4
      %v3079 = vor.u32 %v3078, %v3074
      %v3080 = vrot.slane %v3079, 4
      %v3082 = vshll.u32 %v2806, 16
      %v3084 = vrot.slane %v3082, 5
      %v3085 = vsel %vm923, %v3080, %v3084
      %v3087 = vshrl.u32 %v2807, 16
      %v3089 = vrot.slane %v3087, 4
      %v3090 = vshll.u32 %v2807, 16
      %v3092 = vrot.slane %v3090, 5
      %v3093 = vor.u32 %v3089, %v3092
      %v3094 = vrot.slane %v3093, 4
      %v3096 = vshll.u32 %v2808, 16
      %v3098 = vrot.slane %v3096, 5
      %v3099 = vsel %vm923, %v3094, %v3098
      %v3100 = vshrl.u32 %v2808, 16
      %v3102 = vrot.slane %v3100, 4
      %v3103 = vor.u32 %v3102, %v3098
      %v3104 = vrot.slane %v3103, 4
      %v3106 = vshll.u32 %v2809, 16
      %v3108 = vrot.slane %v3106, 5
      %v3109 = vsel %vm923, %v3104, %v3108
      %v3111 = vshrl.u32 %v2810, 16
      %v3113 = vrot.slane %v3111, 4
      %v3114 = vshll.u32 %v2810, 16
      %v3116 = vrot.slane %v3114, 5
      %v3117 = vor.u32 %v3113, %v3116
      %v3118 = vrot.slane %v3117, 4
      %v3120 = vshll.u32 %v2811, 16
      %v3122 = vrot.slane %v3120, 5
      %v3123 = vsel %vm923, %v3118, %v3122
      %v3124 = vshrl.u32 %v2811, 16
      %v3126 = vrot.slane %v3124, 4
      %v3127 = vor.u32 %v3126, %v3122
      %v3128 = vrot.slane %v3127, 4
      %v3130 = vshll.u32 %v2812, 16
      %v3132 = vrot.slane %v3130, 5
      %v3133 = vsel %vm923, %v3128, %v3132
      %v3135 = vshrl.u32 %v2813, 16
      %v3137 = vrot.slane %v3135, 4
      %v3138 = vshll.u32 %v2813, 16
      %v3140 = vrot.slane %v3138, 5
      %v3141 = vor.u32 %v3137, %v3140
      %v3142 = vrot.slane %v3141, 4
      %v3144 = vshll.u32 %v2814, 16
      %v3146 = vrot.slane %v3144, 5
      %v3147 = vsel %vm923, %v3142, %v3146
      %v3148 = vshrl.u32 %v2814, 16
      %v3150 = vrot.slane %v3148, 4
      %v3151 = vor.u32 %v3150, %v3146
      %v3152 = vrot.slane %v3151, 4
      %v3154 = vshll.u32 %v2815, 16
      %v3156 = vrot.slane %v3154, 5
      %v3157 = vsel %vm923, %v3152, %v3156
      %v3159 = vshrl.u32 %v2816, 16
      %v3161 = vrot.slane %v3159, 4
      %v3162 = vshll.u32 %v2816, 16
      %v3164 = vrot.slane %v3162, 5
      %v3165 = vor.u32 %v3161, %v3164
      %v3166 = vrot.slane %v3165, 4
      %v3168 = vshll.u32 %v2817, 16
      %v3170 = vrot.slane %v3168, 5
      %v3171 = vsel %vm923, %v3166, %v3170
      %v3172 = vshrl.u32 %v2817, 16
      %v3174 = vrot.slane %v3172, 4
      %v3175 = vor.u32 %v3174, %v3170
      %v3176 = vrot.slane %v3175, 4
      %v3178 = vshll.u32 %v2818, 16
      %v3180 = vrot.slane %v3178, 5
      %v3181 = vsel %vm923, %v3176, %v3180
      %v3183 = vshrl.u32 %v2819, 16
      %v3185 = vrot.slane %v3183, 4
      %v3186 = vshll.u32 %v2819, 16
      %v3188 = vrot.slane %v3186, 5
      %v3189 = vor.u32 %v3185, %v3188
      %v3190 = vrot.slane %v3189, 4
      %v3192 = vshll.u32 %v2820, 16
      %v3194 = vrot.slane %v3192, 5
      %v3195 = vsel %vm923, %v3190, %v3194
      %v3196 = vshrl.u32 %v2820, 16
      %v3198 = vrot.slane %v3196, 4
      %v3199 = vor.u32 %v3198, %v3194
      %v3200 = vrot.slane %v3199, 4
      %v3202 = vshll.u32 %v2821, 16
      %v3204 = vrot.slane %v3202, 5
      %v3205 = vsel %vm923, %v3200, %v3204
      %s3206 = scalar_lea.vmem %s1, 256
      %v3207 = vld [vmem:[%s3206] sm:$0xf]
      %v3208 = vld [vmem:[%s3206 + $0x4] sm:$0xf]
      %v3209 = vld [vmem:[%s3206 + $0x8] sm:$0xf]
      %v3210 = vld [vmem:[%s3206 + $0xc] sm:$0xf]
      %v3211 = vld [vmem:[%s3206 + $0x10] sm:$0xf]
      %v3212 = vld [vmem:[%s3206 + $0x14] sm:$0xf]
      %v3213 = vld [vmem:[%s3206 + $0x18] sm:$0xf]
      %v3214 = vld [vmem:[%s3206 + $0x1c] sm:$0xf]
      %v3215 = vld [vmem:[%s3206 + $0x20] sm:$0xf]
      %v3216 = vld [vmem:[%s3206 + $0x24] sm:$0xf]
      %v3217 = vld [vmem:[%s3206 + $0x28] sm:$0xf]
      %v3218 = vld [vmem:[%s3206 + $0x2c] sm:$0xf]
      %v3219 = vld [vmem:[%s3206 + $0x30] sm:$0xf]
      %v3220 = vld [vmem:[%s3206 + $0x34] sm:$0xf]
      %v3221 = vld [vmem:[%s3206 + $0x38] sm:$0xf]
      %v3222 = vld [vmem:[%s3206 + $0x3c] sm:$0xf]
      %v3223 = vunpack.c.l.b16 %v2835
      %v3224 = vunpack.c.l.b16 %v2845
      %v3225 = vunpack.c.l.b16 %v2859
      %v3226 = vunpack.c.l.b16 %v2869
      %v3227 = vunpack.c.l.b16 %v2883
      %v3228 = vunpack.c.l.b16 %v2893
      %v3229 = vunpack.c.l.b16 %v2907
      %v3230 = vunpack.c.l.b16 %v2917
      %v3231 = vunpack.c.l.b16 %v2931
      %v3232 = vunpack.c.l.b16 %v2941
      %v3233 = vunpack.c.l.b16 %v2955
      %v3234 = vunpack.c.l.b16 %v2965
      %v3235 = vunpack.c.l.b16 %v2979
      %v3236 = vunpack.c.l.b16 %v2989
      %v3237 = vunpack.c.l.b16 %v3003
      %v3238 = vunpack.c.l.b16 %v3013
      %v3239 = vunpack.c.l.b16 %v3027
      %v3240 = vunpack.c.l.b16 %v3037
      %v3241 = vunpack.c.l.b16 %v3051
      %v3242 = vunpack.c.l.b16 %v3061
      %v3243 = vunpack.c.l.b16 %v3075
      %v3244 = vunpack.c.l.b16 %v3085
      %v3245 = vunpack.c.l.b16 %v3099
      %v3246 = vunpack.c.l.b16 %v3109
      %v3247 = vunpack.c.l.b16 %v3123
      %v3248 = vunpack.c.l.b16 %v3133
      %v3249 = vunpack.c.l.b16 %v3147
      %v3250 = vunpack.c.l.b16 %v3157
      %v3251 = vunpack.c.l.b16 %v3171
      %v3252 = vunpack.c.l.b16 %v3181
      %v3253 = vunpack.c.l.b16 %v3195
      %v3254 = vunpack.c.l.b16 %v3205
      %v3255 = vpack.c.b16 %v3224, %v3223
      %v3256 = vpack.c.b16 %v3226, %v3225
      %v3257 = vpack.c.b16 %v3228, %v3227
      %v3258 = vpack.c.b16 %v3230, %v3229
      %v3259 = vpack.c.b16 %v3232, %v3231
      %v3260 = vpack.c.b16 %v3234, %v3233
      %v3261 = vpack.c.b16 %v3236, %v3235
      %v3262 = vpack.c.b16 %v3238, %v3237
      %v3263 = vpack.c.b16 %v3240, %v3239
      %v3264 = vpack.c.b16 %v3242, %v3241
      %v3265 = vpack.c.b16 %v3244, %v3243
      %v3266 = vpack.c.b16 %v3246, %v3245
      %v3267 = vpack.c.b16 %v3248, %v3247
      %v3268 = vpack.c.b16 %v3250, %v3249
      %v3269 = vpack.c.b16 %v3252, %v3251
      %v3270 = vpack.c.b16 %v3254, %v3253
      %v3303 = vunpack.c.l.b16 %v3207
      %v3304 = vunpack.c.l.b16 %v3208
      %v3305 = vunpack.c.l.b16 %v3209
      %v3306 = vunpack.c.l.b16 %v3210
      %v3307 = vunpack.c.l.b16 %v3211
      %v3308 = vunpack.c.l.b16 %v3212
      %v3309 = vunpack.c.l.b16 %v3213
      %v3310 = vunpack.c.l.b16 %v3214
      %v3311 = vunpack.c.l.b16 %v3215
      %v3312 = vunpack.c.l.b16 %v3216
      %v3313 = vunpack.c.l.b16 %v3217
      %v3314 = vunpack.c.l.b16 %v3218
      %v3315 = vunpack.c.l.b16 %v3219
      %v3316 = vunpack.c.l.b16 %v3220
      %v3317 = vunpack.c.l.b16 %v3221
      %v3318 = vunpack.c.l.b16 %v3222
      %v3319 = vpack.c.b16 %v3304, %v3303
      %v3320 = vpack.c.b16 %v3306, %v3305
      %v3321 = vpack.c.b16 %v3308, %v3307
      %v3322 = vpack.c.b16 %v3310, %v3309
      %v3323 = vpack.c.b16 %v3312, %v3311
      %v3324 = vpack.c.b16 %v3314, %v3313
      %v3325 = vpack.c.b16 %v3316, %v3315
      %v3326 = vpack.c.b16 %v3318, %v3317
      %3335 = vmatprep.subr.bf16.mxu0 0
      %3336 = vmatpush1.bf16.msra.mxu0 %v3319
      %3337 = vmatprep.subr.bf16.mxu0 0
      %3338 = vmatpush1.bf16.msra.mxu0 %v3320
      %3339 = vmatprep.subr.bf16.mxu0 0
      %3340 = vmatpush1.bf16.msra.mxu0 %v3321
      %3341 = vmatprep.subr.bf16.mxu0 0
      %3342 = vmatpush1.bf16.msra.mxu0 %v3322
      %3343 = vmatprep.subr.bf16.mxu0 0
      %3344 = vmatpush1.bf16.msra.mxu0 %v3323
      %3345 = vmatprep.subr.bf16.mxu0 0
      %3346 = vmatpush1.bf16.msra.mxu0 %v3324
      %3347 = vmatprep.subr.bf16.mxu0 0
      %3348 = vmatpush1.bf16.msra.mxu0 %v3325
      %3349 = vmatprep.subr.bf16.mxu0 0
      %3350 = vmatpush1.bf16.msra.mxu0 %v3326
      %3351 = vmatprep.subr.bf16.mxu0 0
      %3352 = vmatpush1.bf16.msra.mxu0 0
      %3353 = vmatprep.subr.bf16.mxu0 0
      %3354 = vmatpush1.bf16.msra.mxu0 0
      %3355 = vmatprep.subr.bf16.mxu0 0
      %3356 = vmatpush1.bf16.msra.mxu0 0
      %3357 = vmatprep.subr.bf16.mxu0 0
      %3358 = vmatpush1.bf16.msra.mxu0 0
      %3359 = vmatprep.subr.bf16.mxu0 0
      %3360 = vmatpush1.bf16.msra.mxu0 0
      %3361 = vmatprep.subr.bf16.mxu0 0
      %3362 = vmatpush1.bf16.msra.mxu0 0
      %3363 = vmatprep.subr.bf16.mxu0 0
      %3364 = vmatpush1.bf16.msra.mxu0 0
      %3365 = vmatprep.subr.bf16.mxu0 0
      %3366 = vmatpush1.bf16.msra.mxu0 0
      %3367 = vmatprep.mubr.bf16.mxu0 0
      %3368 = vmatmul.mubr.bf16.gmra.mrb[0].mxu0 %v3255
      %v3369 = vpop.f32.mrb[0].mxu0
      %v3370 = vadd.f32 0.0, %v3369
      %v3371 = vpop.f32.mrb[0].mxu0
      %v3372 = vpop.f32.mrb[0].mxu0
      %v3373 = vadd.f32 0.0, %v3372
      %v3374 = vpop.f32.mrb[0].mxu0
      %3375 = vmatprep.mubr.bf16.mxu0 0
      %3376 = vmatmul.mubr.bf16.gmra.mrb[0].mxu0 %v3256
      %v3377 = vpop.f32.mrb[0].mxu0
      %v3378 = vadd.f32 0.0, %v3377
      %v3379 = vpop.f32.mrb[0].mxu0
      %v3380 = vpop.f32.mrb[0].mxu0
      %v3381 = vadd.f32 0.0, %v3380
      %v3382 = vpop.f32.mrb[0].mxu0
      %3383 = vmatprep.mubr.bf16.mxu0 0
      %3384 = vmatmul.mubr.bf16.gmra.mrb[0].mxu0 %v3257
      %v3385 = vpop.f32.mrb[0].mxu0
      %v3386 = vadd.f32 0.0, %v3385
      %v3387 = vpop.f32.mrb[0].mxu0
      %v3388 = vpop.f32.mrb[0].mxu0
      %v3389 = vadd.f32 0.0, %v3388
      %v3390 = vpop.f32.mrb[0].mxu0
      %3391 = vmatprep.mubr.bf16.mxu0 0
      %3392 = vmatmul.mubr.bf16.gmra.mrb[0].mxu0 %v3258
      %v3393 = vpop.f32.mrb[0].mxu0
      %v3394 = vadd.f32 0.0, %v3393
      %v3395 = vpop.f32.mrb[0].mxu0
      %v3396 = vpop.f32.mrb[0].mxu0
      %v3397 = vadd.f32 0.0, %v3396
      %v3398 = vpop.f32.mrb[0].mxu0
      %3399 = vmatprep.mubr.bf16.mxu0 0
      %3400 = vmatmul.mubr.bf16.gmra.mrb[0].mxu0 %v3259
      %v3401 = vpop.f32.mrb[0].mxu0
      %v3402 = vadd.f32 0.0, %v3401
      %v3403 = vpop.f32.mrb[0].mxu0
      %v3404 = vpop.f32.mrb[0].mxu0
      %v3405 = vadd.f32 0.0, %v3404
      %v3406 = vpop.f32.mrb[0].mxu0
      %3407 = vmatprep.mubr.bf16.mxu0 0
      %3408 = vmatmul.mubr.bf16.gmra.mrb[0].mxu0 %v3260
      %v3409 = vpop.f32.mrb[0].mxu0
      %v3410 = vadd.f32 0.0, %v3409
      %v3411 = vpop.f32.mrb[0].mxu0
      %v3412 = vpop.f32.mrb[0].mxu0
      %v3413 = vadd.f32 0.0, %v3412
      %v3414 = vpop.f32.mrb[0].mxu0
      %3415 = vmatprep.mubr.bf16.mxu0 0
      %3416 = vmatmul.mubr.bf16.gmra.mrb[0].mxu0 %v3261
      %v3417 = vpop.f32.mrb[0].mxu0
      %v3418 = vadd.f32 0.0, %v3417
      %v3419 = vpop.f32.mrb[0].mxu0
      %v3420 = vpop.f32.mrb[0].mxu0
      %v3421 = vadd.f32 0.0, %v3420
      %v3422 = vpop.f32.mrb[0].mxu0
      %3423 = vmatprep.mubr.bf16.mxu0 0
      %3424 = vmatmul.mubr.bf16.gmra.mrb[0].mxu0 %v3262
      %v3425 = vpop.f32.mrb[0].mxu0
      %v3426 = vadd.f32 0.0, %v3425
      %v3427 = vpop.f32.mrb[0].mxu0
      %v3428 = vpop.f32.mrb[0].mxu0
      %v3429 = vadd.f32 0.0, %v3428
      %v3430 = vpop.f32.mrb[0].mxu0
      %3431 = vmatprep.mubr.bf16.mxu0 0
      %3432 = vmatmul.mubr.bf16.gmra.mrb[0].mxu0 %v3263
      %v3433 = vpop.f32.mrb[0].mxu0
      %v3434 = vadd.f32 0.0, %v3433
      %v3435 = vpop.f32.mrb[0].mxu0
      %v3436 = vpop.f32.mrb[0].mxu0
      %v3437 = vadd.f32 0.0, %v3436
      %v3438 = vpop.f32.mrb[0].mxu0
      %3439 = vmatprep.mubr.bf16.mxu0 0
      %3440 = vmatmul.mubr.bf16.gmra.mrb[0].mxu0 %v3264
      %v3441 = vpop.f32.mrb[0].mxu0
      %v3442 = vadd.f32 0.0, %v3441
      %v3443 = vpop.f32.mrb[0].mxu0
      %v3444 = vpop.f32.mrb[0].mxu0
      %v3445 = vadd.f32 0.0, %v3444
      %v3446 = vpop.f32.mrb[0].mxu0
      %3447 = vmatprep.mubr.bf16.mxu0 0
      %3448 = vmatmul.mubr.bf16.gmra.mrb[0].mxu0 %v3265
      %v3449 = vpop.f32.mrb[0].mxu0
      %v3450 = vadd.f32 0.0, %v3449
      %v3451 = vpop.f32.mrb[0].mxu0
      %v3452 = vpop.f32.mrb[0].mxu0
      %v3453 = vadd.f32 0.0, %v3452
      %v3454 = vpop.f32.mrb[0].mxu0
      %3455 = vmatprep.mubr.bf16.mxu0 0
      %3456 = vmatmul.mubr.bf16.gmra.mrb[0].mxu0 %v3266
      %v3457 = vpop.f32.mrb[0].mxu0
      %v3458 = vadd.f32 0.0, %v3457
      %v3459 = vpop.f32.mrb[0].mxu0
      %v3460 = vpop.f32.mrb[0].mxu0
      %v3461 = vadd.f32 0.0, %v3460
      %v3462 = vpop.f32.mrb[0].mxu0
      %3463 = vmatprep.mubr.bf16.mxu0 0
      %3464 = vmatmul.mubr.bf16.gmra.mrb[0].mxu0 %v3267
      %v3465 = vpop.f32.mrb[0].mxu0
      %v3466 = vadd.f32 0.0, %v3465
      %v3467 = vpop.f32.mrb[0].mxu0
      %v3468 = vpop.f32.mrb[0].mxu0
      %v3469 = vadd.f32 0.0, %v3468
      %v3470 = vpop.f32.mrb[0].mxu0
      %3471 = vmatprep.mubr.bf16.mxu0 0
      %3472 = vmatmul.mubr.bf16.gmra.mrb[0].mxu0 %v3268
      %v3473 = vpop.f32.mrb[0].mxu0
      %v3474 = vadd.f32 0.0, %v3473
      %v3475 = vpop.f32.mrb[0].mxu0
      %v3476 = vpop.f32.mrb[0].mxu0
      %v3477 = vadd.f32 0.0, %v3476
      %v3478 = vpop.f32.mrb[0].mxu0
      %3479 = vmatprep.mubr.bf16.mxu0 0
      %3480 = vmatmul.mubr.bf16.gmra.mrb[0].mxu0 %v3269
      %v3481 = vpop.f32.mrb[0].mxu0
      %v3482 = vadd.f32 0.0, %v3481
      %v3483 = vpop.f32.mrb[0].mxu0
      %v3484 = vpop.f32.mrb[0].mxu0
      %v3485 = vadd.f32 0.0, %v3484
      %v3486 = vpop.f32.mrb[0].mxu0
      %3487 = vmatprep.mubr.bf16.mxu0 0
      %3488 = vmatmul.mubr.bf16.gmra.mrb[0].mxu0 %v3270
      %v3489 = vpop.f32.mrb[0].mxu0
      %v3490 = vadd.f32 0.0, %v3489
      %v3491 = vpop.f32.mrb[0].mxu0
      %v3492 = vpop.f32.mrb[0].mxu0
      %v3493 = vadd.f32 0.0, %v3492
      %v3494 = vpop.f32.mrb[0].mxu0
      %3495 = vdwg.mxu0
      %v3496 = vadd.f32 %v2742, %v3370
      %v3497 = vadd.f32 %v2743, %v3373
      %v3498 = vadd.f32 %v2744, %v3378
      %v3499 = vadd.f32 %v2745, %v3381
      %v3500 = vadd.f32 %v2746, %v3386
      %v3501 = vadd.f32 %v2747, %v3389
      %v3502 = vadd.f32 %v2748, %v3394
      %v3503 = vadd.f32 %v2749, %v3397
      %v3504 = vadd.f32 %v2750, %v3402
      %v3505 = vadd.f32 %v2751, %v3405
      %v3506 = vadd.f32 %v2752, %v3410
      %v3507 = vadd.f32 %v2753, %v3413
      %v3508 = vadd.f32 %v2754, %v3418
      %v3509 = vadd.f32 %v2755, %v3421
      %v3510 = vadd.f32 %v2756, %v3426
      %v3511 = vadd.f32 %v2757, %v3429
      %v3512 = vadd.f32 %v2758, %v3434
      %v3513 = vadd.f32 %v2759, %v3437
      %v3514 = vadd.f32 %v2760, %v3442
      %v3515 = vadd.f32 %v2761, %v3445
      %v3516 = vadd.f32 %v2762, %v3450
      %v3517 = vadd.f32 %v2763, %v3453
      %v3518 = vadd.f32 %v2764, %v3458
      %v3519 = vadd.f32 %v2765, %v3461
      %v3520 = vadd.f32 %v2766, %v3466
      %v3521 = vadd.f32 %v2767, %v3469
      %v3522 = vadd.f32 %v2768, %v3474
      %v3523 = vadd.f32 %v2769, %v3477
      %v3524 = vadd.f32 %v2770, %v3482
      %v3525 = vadd.f32 %v2771, %v3485
      %v3526 = vadd.f32 %v2772, %v3490
      %v3527 = vadd.f32 %v2773, %v3493
      %v3528 = vld [vmem:[%s287] sm:$0xe]
      %v3529 = vld [vmem:[%s287 + $0xc] sm:$0xe]
      %v3530 = vld [vmem:[%s287 + $0x18] sm:$0xe]
      %v3531 = vld [vmem:[%s287 + $0x24] sm:$0xe]
      %v3532 = vld [vmem:[%s287 + $0x30] sm:$0xe]
      %v3533 = vld [vmem:[%s287 + $0x3c] sm:$0xe]
      %v3534 = vld [vmem:[%s287 + $0x48] sm:$0xe]
      %v3535 = vld [vmem:[%s287 + $0x54] sm:$0xe]
      %v3536 = vld [vmem:[%s287 + $0x60] sm:$0xe]
      %v3537 = vld [vmem:[%s287 + $0x6c] sm:$0xe]
      %v3538 = vld [vmem:[%s287 + $0x78] sm:$0xe]
      %v3539 = vld [vmem:[%s287 + $0x84] sm:$0xe]
      %v3540 = vld [vmem:[%s287 + $0x90] sm:$0xe]
      %v3541 = vld [vmem:[%s287 + $0x9c] sm:$0xe]
      %v3542 = vld [vmem:[%s287 + $0xa8] sm:$0xe]
      %v3543 = vld [vmem:[%s287 + $0xb4] sm:$0xe]
      %v3592 = vrot.slane %v3528, 5
      %v3593 = vrot.slane %v3592, 4
      %v3594 = vrot.slane %v2775, 5
      %v3595 = vsel %vm1953, %v3593, %v3594
      %v3596 = vrot.slane %v3594, 4
      %v3597 = vrot.slane %v2776, 5
      %v3598 = vsel %vm1953, %v3596, %v3597
      %v3599 = vrot.slane %v3529, 5
      %v3600 = vrot.slane %v3599, 4
      %v3601 = vrot.slane %v2778, 5
      %v3602 = vsel %vm1953, %v3600, %v3601
      %v3603 = vrot.slane %v3601, 4
      %v3604 = vrot.slane %v2779, 5
      %v3605 = vsel %vm1953, %v3603, %v3604
      %v3606 = vrot.slane %v3530, 5
      %v3607 = vrot.slane %v3606, 4
      %v3608 = vrot.slane %v2781, 5
      %v3609 = vsel %vm1953, %v3607, %v3608
      %v3610 = vrot.slane %v3608, 4
      %v3611 = vrot.slane %v2782, 5
      %v3612 = vsel %vm1953, %v3610, %v3611
      %v3613 = vrot.slane %v3531, 5
      %v3614 = vrot.slane %v3613, 4
      %v3615 = vrot.slane %v2784, 5
      %v3616 = vsel %vm1953, %v3614, %v3615
      %v3617 = vrot.slane %v3615, 4
      %v3618 = vrot.slane %v2785, 5
      %v3619 = vsel %vm1953, %v3617, %v3618
      %v3620 = vrot.slane %v3532, 5
      %v3621 = vrot.slane %v3620, 4
      %v3622 = vrot.slane %v2787, 5
      %v3623 = vsel %vm1953, %v3621, %v3622
      %v3624 = vrot.slane %v3622, 4
      %v3625 = vrot.slane %v2788, 5
      %v3626 = vsel %vm1953, %v3624, %v3625
      %v3627 = vrot.slane %v3533, 5
      %v3628 = vrot.slane %v3627, 4
      %v3629 = vrot.slane %v2790, 5
      %v3630 = vsel %vm1953, %v3628, %v3629
      %v3631 = vrot.slane %v3629, 4
      %v3632 = vrot.slane %v2791, 5
      %v3633 = vsel %vm1953, %v3631, %v3632
      %v3634 = vrot.slane %v3534, 5
      %v3635 = vrot.slane %v3634, 4
      %v3636 = vrot.slane %v2793, 5
      %v3637 = vsel %vm1953, %v3635, %v3636
      %v3638 = vrot.slane %v3636, 4
      %v3639 = vrot.slane %v2794, 5
      %v3640 = vsel %vm1953, %v3638, %v3639
      %v3641 = vrot.slane %v3535, 5
      %v3642 = vrot.slane %v3641, 4
      %v3643 = vrot.slane %v2796, 5
      %v3644 = vsel %vm1953, %v3642, %v3643
      %v3645 = vrot.slane %v3643, 4
      %v3646 = vrot.slane %v2797, 5
      %v3647 = vsel %vm1953, %v3645, %v3646
      %v3648 = vrot.slane %v3536, 5
      %v3649 = vrot.slane %v3648, 4
      %v3650 = vrot.slane %v2799, 5
      %v3651 = vsel %vm1953, %v3649, %v3650
      %v3652 = vrot.slane %v3650, 4
      %v3653 = vrot.slane %v2800, 5
      %v3654 = vsel %vm1953, %v3652, %v3653
      %v3655 = vrot.slane %v3537, 5
      %v3656 = vrot.slane %v3655, 4
      %v3657 = vrot.slane %v2802, 5
      %v3658 = vsel %vm1953, %v3656, %v3657
      %v3659 = vrot.slane %v3657, 4
      %v3660 = vrot.slane %v2803, 5
      %v3661 = vsel %vm1953, %v3659, %v3660
      %v3662 = vrot.slane %v3538, 5
      %v3663 = vrot.slane %v3662, 4
      %v3664 = vrot.slane %v2805, 5
      %v3665 = vsel %vm1953, %v3663, %v3664
      %v3666 = vrot.slane %v3664, 4
      %v3667 = vrot.slane %v2806, 5
      %v3668 = vsel %vm1953, %v3666, %v3667
      %v3669 = vrot.slane %v3539, 5
      %v3670 = vrot.slane %v3669, 4
      %v3671 = vrot.slane %v2808, 5
      %v3672 = vsel %vm1953, %v3670, %v3671
      %v3673 = vrot.slane %v3671, 4
      %v3674 = vrot.slane %v2809, 5
      %v3675 = vsel %vm1953, %v3673, %v3674
      %v3676 = vrot.slane %v3540, 5
      %v3677 = vrot.slane %v3676, 4
      %v3678 = vrot.slane %v2811, 5
      %v3679 = vsel %vm1953, %v3677, %v3678
      %v3680 = vrot.slane %v3678, 4
      %v3681 = vrot.slane %v2812, 5
      %v3682 = vsel %vm1953, %v3680, %v3681
      %v3683 = vrot.slane %v3541, 5
      %v3684 = vrot.slane %v3683, 4
      %v3685 = vrot.slane %v2814, 5
      %v3686 = vsel %vm1953, %v3684, %v3685
      %v3687 = vrot.slane %v3685, 4
      %v3688 = vrot.slane %v2815, 5
      %v3689 = vsel %vm1953, %v3687, %v3688
      %v3690 = vrot.slane %v3542, 5
      %v3691 = vrot.slane %v3690, 4
      %v3692 = vrot.slane %v2817, 5
      %v3693 = vsel %vm1953, %v3691, %v3692
      %v3694 = vrot.slane %v3692, 4
      %v3695 = vrot.slane %v2818, 5
      %v3696 = vsel %vm1953, %v3694, %v3695
      %v3697 = vrot.slane %v3543, 5
      %v3698 = vrot.slane %v3697, 4
      %v3699 = vrot.slane %v2820, 5
      %v3700 = vsel %vm1953, %v3698, %v3699
      %v3701 = vrot.slane %v3699, 4
      %v3702 = vrot.slane %v2821, 5
      %v3703 = vsel %vm1953, %v3701, %v3702
      %s3704 = scalar_lea.vmem %s1, 320
      %v3705 = vld [vmem:[%s3704] sm:$0xf]
      %v3706 = vld [vmem:[%s3704 + $0x4] sm:$0xf]
      %v3707 = vld [vmem:[%s3704 + $0x8] sm:$0xf]
      %v3708 = vld [vmem:[%s3704 + $0xc] sm:$0xf]
      %v3709 = vld [vmem:[%s3704 + $0x10] sm:$0xf]
      %v3710 = vld [vmem:[%s3704 + $0x14] sm:$0xf]
      %v3711 = vld [vmem:[%s3704 + $0x18] sm:$0xf]
      %v3712 = vld [vmem:[%s3704 + $0x1c] sm:$0xf]
      %v3713 = vld [vmem:[%s3704 + $0x20] sm:$0xf]
      %v3714 = vld [vmem:[%s3704 + $0x24] sm:$0xf]
      %v3715 = vld [vmem:[%s3704 + $0x28] sm:$0xf]
      %v3716 = vld [vmem:[%s3704 + $0x2c] sm:$0xf]
      %v3717 = vld [vmem:[%s3704 + $0x30] sm:$0xf]
      %v3718 = vld [vmem:[%s3704 + $0x34] sm:$0xf]
      %v3719 = vld [vmem:[%s3704 + $0x38] sm:$0xf]
      %v3720 = vld [vmem:[%s3704 + $0x3c] sm:$0xf]
      %v3721 = vunpack.c.l.b16 %v3595
      %v3722 = vunpack.c.l.b16 %v3598
      %v3723 = vunpack.c.l.b16 %v3602
      %v3724 = vunpack.c.l.b16 %v3605
      %v3725 = vunpack.c.l.b16 %v3609
      %v3726 = vunpack.c.l.b16 %v3612
      %v3727 = vunpack.c.l.b16 %v3616
      %v3728 = vunpack.c.l.b16 %v3619
      %v3729 = vunpack.c.l.b16 %v3623
      %v3730 = vunpack.c.l.b16 %v3626
      %v3731 = vunpack.c.l.b16 %v3630
      %v3732 = vunpack.c.l.b16 %v3633
      %v3733 = vunpack.c.l.b16 %v3637
      %v3734 = vunpack.c.l.b16 %v3640
      %v3735 = vunpack.c.l.b16 %v3644
      %v3736 = vunpack.c.l.b16 %v3647
      %v3737 = vunpack.c.l.b16 %v3651
      %v3738 = vunpack.c.l.b16 %v3654
      %v3739 = vunpack.c.l.b16 %v3658
      %v3740 = vunpack.c.l.b16 %v3661
      %v3741 = vunpack.c.l.b16 %v3665
      %v3742 = vunpack.c.l.b16 %v3668
      %v3743 = vunpack.c.l.b16 %v3672
      %v3744 = vunpack.c.l.b16 %v3675
      %v3745 = vunpack.c.l.b16 %v3679
      %v3746 = vunpack.c.l.b16 %v3682
      %v3747 = vunpack.c.l.b16 %v3686
      %v3748 = vunpack.c.l.b16 %v3689
      %v3749 = vunpack.c.l.b16 %v3693
      %v3750 = vunpack.c.l.b16 %v3696
      %v3751 = vunpack.c.l.b16 %v3700
      %v3752 = vunpack.c.l.b16 %v3703
      %v3753 = vpack.c.b16 %v3722, %v3721
      %v3754 = vpack.c.b16 %v3724, %v3723
      %v3755 = vpack.c.b16 %v3726, %v3725
      %v3756 = vpack.c.b16 %v3728, %v3727
      %v3757 = vpack.c.b16 %v3730, %v3729
      %v3758 = vpack.c.b16 %v3732, %v3731
      %v3759 = vpack.c.b16 %v3734, %v3733
      %v3760 = vpack.c.b16 %v3736, %v3735
      %v3761 = vpack.c.b16 %v3738, %v3737
      %v3762 = vpack.c.b16 %v3740, %v3739
      %v3763 = vpack.c.b16 %v3742, %v3741
      %v3764 = vpack.c.b16 %v3744, %v3743
      %v3765 = vpack.c.b16 %v3746, %v3745
      %v3766 = vpack.c.b16 %v3748, %v3747
      %v3767 = vpack.c.b16 %v3750, %v3749
      %v3768 = vpack.c.b16 %v3752, %v3751
      %v3801 = vunpack.c.l.b16 %v3705
      %v3802 = vunpack.c.l.b16 %v3706
      %v3803 = vunpack.c.l.b16 %v3707
      %v3804 = vunpack.c.l.b16 %v3708
      %v3805 = vunpack.c.l.b16 %v3709
      %v3806 = vunpack.c.l.b16 %v3710
      %v3807 = vunpack.c.l.b16 %v3711
      %v3808 = vunpack.c.l.b16 %v3712
      %v3809 = vunpack.c.l.b16 %v3713
      %v3810 = vunpack.c.l.b16 %v3714
      %v3811 = vunpack.c.l.b16 %v3715
      %v3812 = vunpack.c.l.b16 %v3716
      %v3813 = vunpack.c.l.b16 %v3717
      %v3814 = vunpack.c.l.b16 %v3718
      %v3815 = vunpack.c.l.b16 %v3719
      %v3816 = vunpack.c.l.b16 %v3720
      %v3817 = vpack.c.b16 %v3802, %v3801
      %v3818 = vpack.c.b16 %v3804, %v3803
      %v3819 = vpack.c.b16 %v3806, %v3805
      %v3820 = vpack.c.b16 %v3808, %v3807
      %v3821 = vpack.c.b16 %v3810, %v3809
      %v3822 = vpack.c.b16 %v3812, %v3811
      %v3823 = vpack.c.b16 %v3814, %v3813
      %v3824 = vpack.c.b16 %v3816, %v3815
      %3833 = vmatprep.subr.bf16.mxu0 0
      %3834 = vmatpush1.bf16.msra.mxu0 %v3817
      %3835 = vmatprep.subr.bf16.mxu0 0
      %3836 = vmatpush1.bf16.msra.mxu0 %v3818
      %3837 = vmatprep.subr.bf16.mxu0 0
      %3838 = vmatpush1.bf16.msra.mxu0 %v3819
      %3839 = vmatprep.subr.bf16.mxu0 0
      %3840 = vmatpush1.bf16.msra.mxu0 %v3820
      %3841 = vmatprep.subr.bf16.mxu0 0
      %3842 = vmatpush1.bf16.msra.mxu0 %v3821
      %3843 = vmatprep.subr.bf16.mxu0 0
      %3844 = vmatpush1.bf16.msra.mxu0 %v3822
      %3845 = vmatprep.subr.bf16.mxu0 0
      %3846 = vmatpush1.bf16.msra.mxu0 %v3823
      %3847 = vmatprep.subr.bf16.mxu0 0
      %3848 = vmatpush1.bf16.msra.mxu0 %v3824
      %3849 = vmatprep.subr.bf16.mxu0 0
      %3850 = vmatpush1.bf16.msra.mxu0 0
      %3851 = vmatprep.subr.bf16.mxu0 0
      %3852 = vmatpush1.bf16.msra.mxu0 0
      %3853 = vmatprep.subr.bf16.mxu0 0
      %3854 = vmatpush1.bf16.msra.mxu0 0
      %3855 = vmatprep.subr.bf16.mxu0 0
      %3856 = vmatpush1.bf16.msra.mxu0 0
      %3857 = vmatprep.subr.bf16.mxu0 0
      %3858 = vmatpush1.bf16.msra.mxu0 0
      %3859 = vmatprep.subr.bf16.mxu0 0
      %3860 = vmatpush1.bf16.msra.mxu0 0
      %3861 = vmatprep.subr.bf16.mxu0 0
      %3862 = vmatpush1.bf16.msra.mxu0 0
      %3863 = vmatprep.subr.bf16.mxu0 0
      %3864 = vmatpush1.bf16.msra.mxu0 0
      %3865 = vmatprep.mubr.bf16.mxu0 0
      %3866 = vmatmul.mubr.bf16.gmra.mrb[0].mxu0 %v3753
      %v3867 = vpop.f32.mrb[0].mxu0
      %v3868 = vadd.f32 0.0, %v3867
      %v3869 = vpop.f32.mrb[0].mxu0
      %v3870 = vpop.f32.mrb[0].mxu0
      %v3871 = vadd.f32 0.0, %v3870
      %v3872 = vpop.f32.mrb[0].mxu0
      %3873 = vmatprep.mubr.bf16.mxu0 0
      %3874 = vmatmul.mubr.bf16.gmra.mrb[0].mxu0 %v3754
      %v3875 = vpop.f32.mrb[0].mxu0
      %v3876 = vadd.f32 0.0, %v3875
      %v3877 = vpop.f32.mrb[0].mxu0
      %v3878 = vpop.f32.mrb[0].mxu0
      %v3879 = vadd.f32 0.0, %v3878
      %v3880 = vpop.f32.mrb[0].mxu0
      %3881 = vmatprep.mubr.bf16.mxu0 0
      %3882 = vmatmul.mubr.bf16.gmra.mrb[0].mxu0 %v3755
      %v3883 = vpop.f32.mrb[0].mxu0
      %v3884 = vadd.f32 0.0, %v3883
      %v3885 = vpop.f32.mrb[0].mxu0
      %v3886 = vpop.f32.mrb[0].mxu0
      %v3887 = vadd.f32 0.0, %v3886
      %v3888 = vpop.f32.mrb[0].mxu0
      %3889 = vmatprep.mubr.bf16.mxu0 0
      %3890 = vmatmul.mubr.bf16.gmra.mrb[0].mxu0 %v3756
      %v3891 = vpop.f32.mrb[0].mxu0
      %v3892 = vadd.f32 0.0, %v3891
      %v3893 = vpop.f32.mrb[0].mxu0
      %v3894 = vpop.f32.mrb[0].mxu0
      %v3895 = vadd.f32 0.0, %v3894
      %v3896 = vpop.f32.mrb[0].mxu0
      %3897 = vmatprep.mubr.bf16.mxu0 0
      %3898 = vmatmul.mubr.bf16.gmra.mrb[0].mxu0 %v3757
      %v3899 = vpop.f32.mrb[0].mxu0
      %v3900 = vadd.f32 0.0, %v3899
      %v3901 = vpop.f32.mrb[0].mxu0
      %v3902 = vpop.f32.mrb[0].mxu0
      %v3903 = vadd.f32 0.0, %v3902
      %v3904 = vpop.f32.mrb[0].mxu0
      %3905 = vmatprep.mubr.bf16.mxu0 0
      %3906 = vmatmul.mubr.bf16.gmra.mrb[0].mxu0 %v3758
      %v3907 = vpop.f32.mrb[0].mxu0
      %v3908 = vadd.f32 0.0, %v3907
      %v3909 = vpop.f32.mrb[0].mxu0
      %v3910 = vpop.f32.mrb[0].mxu0
      %v3911 = vadd.f32 0.0, %v3910
      %v3912 = vpop.f32.mrb[0].mxu0
      %3913 = vmatprep.mubr.bf16.mxu0 0
      %3914 = vmatmul.mubr.bf16.gmra.mrb[0].mxu0 %v3759
      %v3915 = vpop.f32.mrb[0].mxu0
      %v3916 = vadd.f32 0.0, %v3915
      %v3917 = vpop.f32.mrb[0].mxu0
      %v3918 = vpop.f32.mrb[0].mxu0
      %v3919 = vadd.f32 0.0, %v3918
      %v3920 = vpop.f32.mrb[0].mxu0
      %3921 = vmatprep.mubr.bf16.mxu0 0
      %3922 = vmatmul.mubr.bf16.gmra.mrb[0].mxu0 %v3760
      %v3923 = vpop.f32.mrb[0].mxu0
      %v3924 = vadd.f32 0.0, %v3923
      %v3925 = vpop.f32.mrb[0].mxu0
      %v3926 = vpop.f32.mrb[0].mxu0
      %v3927 = vadd.f32 0.0, %v3926
      %v3928 = vpop.f32.mrb[0].mxu0
      %3929 = vmatprep.mubr.bf16.mxu0 0
      %3930 = vmatmul.mubr.bf16.gmra.mrb[0].mxu0 %v3761
      %v3931 = vpop.f32.mrb[0].mxu0
      %v3932 = vadd.f32 0.0, %v3931
      %v3933 = vpop.f32.mrb[0].mxu0
      %v3934 = vpop.f32.mrb[0].mxu0
      %v3935 = vadd.f32 0.0, %v3934
      %v3936 = vpop.f32.mrb[0].mxu0
      %3937 = vmatprep.mubr.bf16.mxu0 0
      %3938 = vmatmul.mubr.bf16.gmra.mrb[0].mxu0 %v3762
      %v3939 = vpop.f32.mrb[0].mxu0
      %v3940 = vadd.f32 0.0, %v3939
      %v3941 = vpop.f32.mrb[0].mxu0
      %v3942 = vpop.f32.mrb[0].mxu0
      %v3943 = vadd.f32 0.0, %v3942
      %v3944 = vpop.f32.mrb[0].mxu0
      %3945 = vmatprep.mubr.bf16.mxu0 0
      %3946 = vmatmul.mubr.bf16.gmra.mrb[0].mxu0 %v3763
      %v3947 = vpop.f32.mrb[0].mxu0
      %v3948 = vadd.f32 0.0, %v3947
      %v3949 = vpop.f32.mrb[0].mxu0
      %v3950 = vpop.f32.mrb[0].mxu0
      %v3951 = vadd.f32 0.0, %v3950
      %v3952 = vpop.f32.mrb[0].mxu0
      %3953 = vmatprep.mubr.bf16.mxu0 0
      %3954 = vmatmul.mubr.bf16.gmra.mrb[0].mxu0 %v3764
      %v3955 = vpop.f32.mrb[0].mxu0
      %v3956 = vadd.f32 0.0, %v3955
      %v3957 = vpop.f32.mrb[0].mxu0
      %v3958 = vpop.f32.mrb[0].mxu0
      %v3959 = vadd.f32 0.0, %v3958
      %v3960 = vpop.f32.mrb[0].mxu0
      %3961 = vmatprep.mubr.bf16.mxu0 0
      %3962 = vmatmul.mubr.bf16.gmra.mrb[0].mxu0 %v3765
      %v3963 = vpop.f32.mrb[0].mxu0
      %v3964 = vadd.f32 0.0, %v3963
      %v3965 = vpop.f32.mrb[0].mxu0
      %v3966 = vpop.f32.mrb[0].mxu0
      %v3967 = vadd.f32 0.0, %v3966
      %v3968 = vpop.f32.mrb[0].mxu0
      %3969 = vmatprep.mubr.bf16.mxu0 0
      %3970 = vmatmul.mubr.bf16.gmra.mrb[0].mxu0 %v3766
      %v3971 = vpop.f32.mrb[0].mxu0
      %v3972 = vadd.f32 0.0, %v3971
      %v3973 = vpop.f32.mrb[0].mxu0
      %v3974 = vpop.f32.mrb[0].mxu0
      %v3975 = vadd.f32 0.0, %v3974
      %v3976 = vpop.f32.mrb[0].mxu0
      %3977 = vmatprep.mubr.bf16.mxu0 0
      %3978 = vmatmul.mubr.bf16.gmra.mrb[0].mxu0 %v3767
      %v3979 = vpop.f32.mrb[0].mxu0
      %v3980 = vadd.f32 0.0, %v3979
      %v3981 = vpop.f32.mrb[0].mxu0
      %v3982 = vpop.f32.mrb[0].mxu0
      %v3983 = vadd.f32 0.0, %v3982
      %v3984 = vpop.f32.mrb[0].mxu0
      %3985 = vmatprep.mubr.bf16.mxu0 0
      %3986 = vmatmul.mubr.bf16.gmra.mrb[0].mxu0 %v3768
      %v3987 = vpop.f32.mrb[0].mxu0
      %v3988 = vadd.f32 0.0, %v3987
      %v3989 = vpop.f32.mrb[0].mxu0
      %v3990 = vpop.f32.mrb[0].mxu0
      %v3991 = vadd.f32 0.0, %v3990
      %v3992 = vpop.f32.mrb[0].mxu0
      %3993 = vdwg.mxu0
      %v3994 = vadd.f32 %v3496, %v3868
      %v3995 = vadd.f32 %v3497, %v3871
      %v3996 = vadd.f32 %v3498, %v3876
      %v3997 = vadd.f32 %v3499, %v3879
      %v3998 = vadd.f32 %v3500, %v3884
      %v3999 = vadd.f32 %v3501, %v3887
      %v4000 = vadd.f32 %v3502, %v3892
      %v4001 = vadd.f32 %v3503, %v3895
      %v4002 = vadd.f32 %v3504, %v3900
      %v4003 = vadd.f32 %v3505, %v3903
      %v4004 = vadd.f32 %v3506, %v3908
      %v4005 = vadd.f32 %v3507, %v3911
      %v4006 = vadd.f32 %v3508, %v3916
      %v4007 = vadd.f32 %v3509, %v3919
      %v4008 = vadd.f32 %v3510, %v3924
      %v4009 = vadd.f32 %v3511, %v3927
      %v4010 = vadd.f32 %v3512, %v3932
      %v4011 = vadd.f32 %v3513, %v3935
      %v4012 = vadd.f32 %v3514, %v3940
      %v4013 = vadd.f32 %v3515, %v3943
      %v4014 = vadd.f32 %v3516, %v3948
      %v4015 = vadd.f32 %v3517, %v3951
      %v4016 = vadd.f32 %v3518, %v3956
      %v4017 = vadd.f32 %v3519, %v3959
      %v4018 = vadd.f32 %v3520, %v3964
      %v4019 = vadd.f32 %v3521, %v3967
      %v4020 = vadd.f32 %v3522, %v3972
      %v4021 = vadd.f32 %v3523, %v3975
      %v4022 = vadd.f32 %v3524, %v3980
      %v4023 = vadd.f32 %v3525, %v3983
      %v4024 = vadd.f32 %v3526, %v3988
      %v4025 = vadd.f32 %v3527, %v3991
      %s4026 = scalar_lea.vmem [#allocation2], 24
      %v4027 = vld [vmem:[%s4026] sm:$0xf]
      %v4028 = vld [vmem:[%s4026 + $0x4] sm:$0xf]
      %v4029 = vld [vmem:[%s4026 + $0xc] sm:$0xf]
      %v4030 = vld [vmem:[%s4026 + $0x10] sm:$0xf]
      %v4031 = vld [vmem:[%s4026 + $0x18] sm:$0xf]
      %v4032 = vld [vmem:[%s4026 + $0x1c] sm:$0xf]
      %v4033 = vld [vmem:[%s4026 + $0x24] sm:$0xf]
      %v4034 = vld [vmem:[%s4026 + $0x28] sm:$0xf]
      %v4035 = vld [vmem:[%s4026 + $0x30] sm:$0xf]
      %v4036 = vld [vmem:[%s4026 + $0x34] sm:$0xf]
      %v4037 = vld [vmem:[%s4026 + $0x3c] sm:$0xf]
      %v4038 = vld [vmem:[%s4026 + $0x40] sm:$0xf]
      %v4039 = vld [vmem:[%s4026 + $0x48] sm:$0xf]
      %v4040 = vld [vmem:[%s4026 + $0x4c] sm:$0xf]
      %v4041 = vld [vmem:[%s4026 + $0x54] sm:$0xf]
      %v4042 = vld [vmem:[%s4026 + $0x58] sm:$0xf]
      %v4043 = vld [vmem:[%s4026 + $0x60] sm:$0xf]
      %v4044 = vld [vmem:[%s4026 + $0x64] sm:$0xf]
      %v4045 = vld [vmem:[%s4026 + $0x6c] sm:$0xf]
      %v4046 = vld [vmem:[%s4026 + $0x70] sm:$0xf]
      %v4047 = vld [vmem:[%s4026 + $0x78] sm:$0xf]
      %v4048 = vld [vmem:[%s4026 + $0x7c] sm:$0xf]
      %v4049 = vld [vmem:[%s4026 + $0x84] sm:$0xf]
      %v4050 = vld [vmem:[%s4026 + $0x88] sm:$0xf]
      %v4051 = vld [vmem:[%s4026 + $0x90] sm:$0xf]
      %v4052 = vld [vmem:[%s4026 + $0x94] sm:$0xf]
      %v4053 = vld [vmem:[%s4026 + $0x9c] sm:$0xf]
      %v4054 = vld [vmem:[%s4026 + $0xa0] sm:$0xf]
      %v4055 = vld [vmem:[%s4026 + $0xa8] sm:$0xf]
      %v4056 = vld [vmem:[%s4026 + $0xac] sm:$0xf]
      %v4057 = vld [vmem:[%s4026 + $0xb4] sm:$0xf]
      %v4058 = vld [vmem:[%s4026 + $0xb8] sm:$0xf]
      %s4059 = scalar_lea.vmem %s1, 384
      %v4060 = vld [vmem:[%s4059] sm:$0xf]
      %v4061 = vld [vmem:[%s4059 + $0x4] sm:$0xf]
      %v4062 = vld [vmem:[%s4059 + $0x8] sm:$0xf]
      %v4063 = vld [vmem:[%s4059 + $0xc] sm:$0xf]
      %v4064 = vld [vmem:[%s4059 + $0x10] sm:$0xf]
      %v4065 = vld [vmem:[%s4059 + $0x14] sm:$0xf]
      %v4066 = vld [vmem:[%s4059 + $0x18] sm:$0xf]
      %v4067 = vld [vmem:[%s4059 + $0x1c] sm:$0xf]
      %v4068 = vld [vmem:[%s4059 + $0x20] sm:$0xf]
      %v4069 = vld [vmem:[%s4059 + $0x24] sm:$0xf]
      %v4070 = vld [vmem:[%s4059 + $0x28] sm:$0xf]
      %v4071 = vld [vmem:[%s4059 + $0x2c] sm:$0xf]
      %v4072 = vld [vmem:[%s4059 + $0x30] sm:$0xf]
      %v4073 = vld [vmem:[%s4059 + $0x34] sm:$0xf]
      %v4074 = vld [vmem:[%s4059 + $0x38] sm:$0xf]
      %v4075 = vld [vmem:[%s4059 + $0x3c] sm:$0xf]
      %v4108 = vunpack.c.l.b16 %v4027
      %v4109 = vunpack.c.l.b16 %v4028
      %v4110 = vunpack.c.l.b16 %v4029
      %v4111 = vunpack.c.l.b16 %v4030
      %v4112 = vunpack.c.l.b16 %v4031
      %v4113 = vunpack.c.l.b16 %v4032
      %v4114 = vunpack.c.l.b16 %v4033
      %v4115 = vunpack.c.l.b16 %v4034
      %v4116 = vunpack.c.l.b16 %v4035
      %v4117 = vunpack.c.l.b16 %v4036
      %v4118 = vunpack.c.l.b16 %v4037
      %v4119 = vunpack.c.l.b16 %v4038
      %v4120 = vunpack.c.l.b16 %v4039
      %v4121 = vunpack.c.l.b16 %v4040
      %v4122 = vunpack.c.l.b16 %v4041
      %v4123 = vunpack.c.l.b16 %v4042
      %v4124 = vunpack.c.l.b16 %v4043
      %v4125 = vunpack.c.l.b16 %v4044
      %v4126 = vunpack.c.l.b16 %v4045
      %v4127 = vunpack.c.l.b16 %v4046
      %v4128 = vunpack.c.l.b16 %v4047
      %v4129 = vunpack.c.l.b16 %v4048
      %v4130 = vunpack.c.l.b16 %v4049
      %v4131 = vunpack.c.l.b16 %v4050
      %v4132 = vunpack.c.l.b16 %v4051
      %v4133 = vunpack.c.l.b16 %v4052
      %v4134 = vunpack.c.l.b16 %v4053
      %v4135 = vunpack.c.l.b16 %v4054
      %v4136 = vunpack.c.l.b16 %v4055
      %v4137 = vunpack.c.l.b16 %v4056
      %v4138 = vunpack.c.l.b16 %v4057
      %v4139 = vunpack.c.l.b16 %v4058
      %v4140 = vpack.c.b16 %v4109, %v4108
      %v4141 = vpack.c.b16 %v4111, %v4110
      %v4142 = vpack.c.b16 %v4113, %v4112
      %v4143 = vpack.c.b16 %v4115, %v4114
      %v4144 = vpack.c.b16 %v4117, %v4116
      %v4145 = vpack.c.b16 %v4119, %v4118
      %v4146 = vpack.c.b16 %v4121, %v4120
      %v4147 = vpack.c.b16 %v4123, %v4122
      %v4148 = vpack.c.b16 %v4125, %v4124
      %v4149 = vpack.c.b16 %v4127, %v4126
      %v4150 = vpack.c.b16 %v4129, %v4128
      %v4151 = vpack.c.b16 %v4131, %v4130
      %v4152 = vpack.c.b16 %v4133, %v4132
      %v4153 = vpack.c.b16 %v4135, %v4134
      %v4154 = vpack.c.b16 %v4137, %v4136
      %v4155 = vpack.c.b16 %v4139, %v4138
      %v4188 = vunpack.c.l.b16 %v4060
      %v4189 = vunpack.c.l.b16 %v4061
      %v4190 = vunpack.c.l.b16 %v4062
      %v4191 = vunpack.c.l.b16 %v4063
      %v4192 = vunpack.c.l.b16 %v4064
      %v4193 = vunpack.c.l.b16 %v4065
      %v4194 = vunpack.c.l.b16 %v4066
      %v4195 = vunpack.c.l.b16 %v4067
      %v4196 = vunpack.c.l.b16 %v4068
      %v4197 = vunpack.c.l.b16 %v4069
      %v4198 = vunpack.c.l.b16 %v4070
      %v4199 = vunpack.c.l.b16 %v4071
      %v4200 = vunpack.c.l.b16 %v4072
      %v4201 = vunpack.c.l.b16 %v4073
      %v4202 = vunpack.c.l.b16 %v4074
      %v4203 = vunpack.c.l.b16 %v4075
      %v4204 = vpack.c.b16 %v4189, %v4188
      %v4205 = vpack.c.b16 %v4191, %v4190
      %v4206 = vpack.c.b16 %v4193, %v4192
      %v4207 = vpack.c.b16 %v4195, %v4194
      %v4208 = vpack.c.b16 %v4197, %v4196
      %v4209 = vpack.c.b16 %v4199, %v4198
      %v4210 = vpack.c.b16 %v4201, %v4200
      %v4211 = vpack.c.b16 %v4203, %v4202
      %4220 = vmatprep.subr.bf16.mxu0 0
      %4221 = vmatpush1.bf16.msra.mxu0 %v4204
      %4222 = vmatprep.subr.bf16.mxu0 0
      %4223 = vmatpush1.bf16.msra.mxu0 %v4205
      %4224 = vmatprep.subr.bf16.mxu0 0
      %4225 = vmatpush1.bf16.msra.mxu0 %v4206
      %4226 = vmatprep.subr.bf16.mxu0 0
      %4227 = vmatpush1.bf16.msra.mxu0 %v4207
      %4228 = vmatprep.subr.bf16.mxu0 0
      %4229 = vmatpush1.bf16.msra.mxu0 %v4208
      %4230 = vmatprep.subr.bf16.mxu0 0
      %4231 = vmatpush1.bf16.msra.mxu0 %v4209
      %4232 = vmatprep.subr.bf16.mxu0 0
      %4233 = vmatpush1.bf16.msra.mxu0 %v4210
      %4234 = vmatprep.subr.bf16.mxu0 0
      %4235 = vmatpush1.bf16.msra.mxu0 %v4211
      %4236 = vmatprep.subr.bf16.mxu0 0
      %4237 = vmatpush1.bf16.msra.mxu0 0
      %4238 = vmatprep.subr.bf16.mxu0 0
      %4239 = vmatpush1.bf16.msra.mxu0 0
      %4240 = vmatprep.subr.bf16.mxu0 0
      %4241 = vmatpush1.bf16.msra.mxu0 0
      %4242 = vmatprep.subr.bf16.mxu0 0
      %4243 = vmatpush1.bf16.msra.mxu0 0
      %4244 = vmatprep.subr.bf16.mxu0 0
      %4245 = vmatpush1.bf16.msra.mxu0 0
      %4246 = vmatprep.subr.bf16.mxu0 0
      %4247 = vmatpush1.bf16.msra.mxu0 0
      %4248 = vmatprep.subr.bf16.mxu0 0
      %4249 = vmatpush1.bf16.msra.mxu0 0
      %4250 = vmatprep.subr.bf16.mxu0 0
      %4251 = vmatpush1.bf16.msra.mxu0 0
      %4252 = vmatprep.mubr.bf16.mxu0 0
      %4253 = vmatmul.mubr.bf16.gmra.mrb[0].mxu0 %v4140
      %v4254 = vpop.f32.mrb[0].mxu0
      %v4255 = vadd.f32 0.0, %v4254
      %v4256 = vpop.f32.mrb[0].mxu0
      %v4257 = vpop.f32.mrb[0].mxu0
      %v4258 = vadd.f32 0.0, %v4257
      %v4259 = vpop.f32.mrb[0].mxu0
      %4260 = vmatprep.mubr.bf16.mxu0 0
      %4261 = vmatmul.mubr.bf16.gmra.mrb[0].mxu0 %v4141
      %v4262 = vpop.f32.mrb[0].mxu0
      %v4263 = vadd.f32 0.0, %v4262
      %v4264 = vpop.f32.mrb[0].mxu0
      %v4265 = vpop.f32.mrb[0].mxu0
      %v4266 = vadd.f32 0.0, %v4265
      %v4267 = vpop.f32.mrb[0].mxu0
      %4268 = vmatprep.mubr.bf16.mxu0 0
      %4269 = vmatmul.mubr.bf16.gmra.mrb[0].mxu0 %v4142
      %v4270 = vpop.f32.mrb[0].mxu0
      %v4271 = vadd.f32 0.0, %v4270
      %v4272 = vpop.f32.mrb[0].mxu0
      %v4273 = vpop.f32.mrb[0].mxu0
      %v4274 = vadd.f32 0.0, %v4273
      %v4275 = vpop.f32.mrb[0].mxu0
      %4276 = vmatprep.mubr.bf16.mxu0 0
      %4277 = vmatmul.mubr.bf16.gmra.mrb[0].mxu0 %v4143
      %v4278 = vpop.f32.mrb[0].mxu0
      %v4279 = vadd.f32 0.0, %v4278
      %v4280 = vpop.f32.mrb[0].mxu0
      %v4281 = vpop.f32.mrb[0].mxu0
      %v4282 = vadd.f32 0.0, %v4281
      %v4283 = vpop.f32.mrb[0].mxu0
      %4284 = vmatprep.mubr.bf16.mxu0 0
      %4285 = vmatmul.mubr.bf16.gmra.mrb[0].mxu0 %v4144
      %v4286 = vpop.f32.mrb[0].mxu0
      %v4287 = vadd.f32 0.0, %v4286
      %v4288 = vpop.f32.mrb[0].mxu0
      %v4289 = vpop.f32.mrb[0].mxu0
      %v4290 = vadd.f32 0.0, %v4289
      %v4291 = vpop.f32.mrb[0].mxu0
      %4292 = vmatprep.mubr.bf16.mxu0 0
      %4293 = vmatmul.mubr.bf16.gmra.mrb[0].mxu0 %v4145
      %v4294 = vpop.f32.mrb[0].mxu0
      %v4295 = vadd.f32 0.0, %v4294
      %v4296 = vpop.f32.mrb[0].mxu0
      %v4297 = vpop.f32.mrb[0].mxu0
      %v4298 = vadd.f32 0.0, %v4297
      %v4299 = vpop.f32.mrb[0].mxu0
      %4300 = vmatprep.mubr.bf16.mxu0 0
      %4301 = vmatmul.mubr.bf16.gmra.mrb[0].mxu0 %v4146
      %v4302 = vpop.f32.mrb[0].mxu0
      %v4303 = vadd.f32 0.0, %v4302
      %v4304 = vpop.f32.mrb[0].mxu0
      %v4305 = vpop.f32.mrb[0].mxu0
      %v4306 = vadd.f32 0.0, %v4305
      %v4307 = vpop.f32.mrb[0].mxu0
      %4308 = vmatprep.mubr.bf16.mxu0 0
      %4309 = vmatmul.mubr.bf16.gmra.mrb[0].mxu0 %v4147
      %v4310 = vpop.f32.mrb[0].mxu0
      %v4311 = vadd.f32 0.0, %v4310
      %v4312 = vpop.f32.mrb[0].mxu0
      %v4313 = vpop.f32.mrb[0].mxu0
      %v4314 = vadd.f32 0.0, %v4313
      %v4315 = vpop.f32.mrb[0].mxu0
      %4316 = vmatprep.mubr.bf16.mxu0 0
      %4317 = vmatmul.mubr.bf16.gmra.mrb[0].mxu0 %v4148
      %v4318 = vpop.f32.mrb[0].mxu0
      %v4319 = vadd.f32 0.0, %v4318
      %v4320 = vpop.f32.mrb[0].mxu0
      %v4321 = vpop.f32.mrb[0].mxu0
      %v4322 = vadd.f32 0.0, %v4321
      %v4323 = vpop.f32.mrb[0].mxu0
      %4324 = vmatprep.mubr.bf16.mxu0 0
      %4325 = vmatmul.mubr.bf16.gmra.mrb[0].mxu0 %v4149
      %v4326 = vpop.f32.mrb[0].mxu0
      %v4327 = vadd.f32 0.0, %v4326
      %v4328 = vpop.f32.mrb[0].mxu0
      %v4329 = vpop.f32.mrb[0].mxu0
      %v4330 = vadd.f32 0.0, %v4329
      %v4331 = vpop.f32.mrb[0].mxu0
      %4332 = vmatprep.mubr.bf16.mxu0 0
      %4333 = vmatmul.mubr.bf16.gmra.mrb[0].mxu0 %v4150
      %v4334 = vpop.f32.mrb[0].mxu0
      %v4335 = vadd.f32 0.0, %v4334
      %v4336 = vpop.f32.mrb[0].mxu0
      %v4337 = vpop.f32.mrb[0].mxu0
      %v4338 = vadd.f32 0.0, %v4337
      %v4339 = vpop.f32.mrb[0].mxu0
      %4340 = vmatprep.mubr.bf16.mxu0 0
      %4341 = vmatmul.mubr.bf16.gmra.mrb[0].mxu0 %v4151
      %v4342 = vpop.f32.mrb[0].mxu0
      %v4343 = vadd.f32 0.0, %v4342
      %v4344 = vpop.f32.mrb[0].mxu0
      %v4345 = vpop.f32.mrb[0].mxu0
      %v4346 = vadd.f32 0.0, %v4345
      %v4347 = vpop.f32.mrb[0].mxu0
      %4348 = vmatprep.mubr.bf16.mxu0 0
      %4349 = vmatmul.mubr.bf16.gmra.mrb[0].mxu0 %v4152
      %v4350 = vpop.f32.mrb[0].mxu0
      %v4351 = vadd.f32 0.0, %v4350
      %v4352 = vpop.f32.mrb[0].mxu0
      %v4353 = vpop.f32.mrb[0].mxu0
      %v4354 = vadd.f32 0.0, %v4353
      %v4355 = vpop.f32.mrb[0].mxu0
      %4356 = vmatprep.mubr.bf16.mxu0 0
      %4357 = vmatmul.mubr.bf16.gmra.mrb[0].mxu0 %v4153
      %v4358 = vpop.f32.mrb[0].mxu0
      %v4359 = vadd.f32 0.0, %v4358
      %v4360 = vpop.f32.mrb[0].mxu0
      %v4361 = vpop.f32.mrb[0].mxu0
      %v4362 = vadd.f32 0.0, %v4361
      %v4363 = vpop.f32.mrb[0].mxu0
      %4364 = vmatprep.mubr.bf16.mxu0 0
      %4365 = vmatmul.mubr.bf16.gmra.mrb[0].mxu0 %v4154
      %v4366 = vpop.f32.mrb[0].mxu0
      %v4367 = vadd.f32 0.0, %v4366
      %v4368 = vpop.f32.mrb[0].mxu0
      %v4369 = vpop.f32.mrb[0].mxu0
      %v4370 = vadd.f32 0.0, %v4369
      %v4371 = vpop.f32.mrb[0].mxu0
      %4372 = vmatprep.mubr.bf16.mxu0 0
      %4373 = vmatmul.mubr.bf16.gmra.mrb[0].mxu0 %v4155
      %v4374 = vpop.f32.mrb[0].mxu0
      %v4375 = vadd.f32 0.0, %v4374
      %v4376 = vpop.f32.mrb[0].mxu0
      %v4377 = vpop.f32.mrb[0].mxu0
      %v4378 = vadd.f32 0.0, %v4377
      %v4379 = vpop.f32.mrb[0].mxu0
      %4380 = vdwg.mxu0
      %v4381 = vadd.f32 %v3994, %v4255
      %v4382 = vadd.f32 %v3995, %v4258
      %v4383 = vadd.f32 %v3996, %v4263
      %v4384 = vadd.f32 %v3997, %v4266
      %v4385 = vadd.f32 %v3998, %v4271
      %v4386 = vadd.f32 %v3999, %v4274
      %v4387 = vadd.f32 %v4000, %v4279
      %v4388 = vadd.f32 %v4001, %v4282
      %v4389 = vadd.f32 %v4002, %v4287
      %v4390 = vadd.f32 %v4003, %v4290
      %v4391 = vadd.f32 %v4004, %v4295
      %v4392 = vadd.f32 %v4005, %v4298
      %v4393 = vadd.f32 %v4006, %v4303
      %v4394 = vadd.f32 %v4007, %v4306
      %v4395 = vadd.f32 %v4008, %v4311
      %v4396 = vadd.f32 %v4009, %v4314
      %v4397 = vadd.f32 %v4010, %v4319
      %v4398 = vadd.f32 %v4011, %v4322
      %v4399 = vadd.f32 %v4012, %v4327
      %v4400 = vadd.f32 %v4013, %v4330
      %v4401 = vadd.f32 %v4014, %v4335
      %v4402 = vadd.f32 %v4015, %v4338
      %v4403 = vadd.f32 %v4016, %v4343
      %v4404 = vadd.f32 %v4017, %v4346
      %v4405 = vadd.f32 %v4018, %v4351
      %v4406 = vadd.f32 %v4019, %v4354
      %v4407 = vadd.f32 %v4020, %v4359
      %v4408 = vadd.f32 %v4021, %v4362
      %v4409 = vadd.f32 %v4022, %v4367
      %v4410 = vadd.f32 %v4023, %v4370
      %v4411 = vadd.f32 %v4024, %v4375
      %v4412 = vadd.f32 %v4025, %v4378
      %v4413 = vld [vmem:[%s4026] sm:$0xf]
      %v4414 = vld [vmem:[%s4026 + $0x4] sm:$0xf]
      %v4415 = vld [vmem:[%s4026 + $0x8] sm:$0x1]
      %v4416 = vld [vmem:[%s4026 + $0xc] sm:$0xf]
      %v4417 = vld [vmem:[%s4026 + $0x10] sm:$0xf]
      %v4418 = vld [vmem:[%s4026 + $0x14] sm:$0x1]
      %v4419 = vld [vmem:[%s4026 + $0x18] sm:$0xf]
      %v4420 = vld [vmem:[%s4026 + $0x1c] sm:$0xf]
      %v4421 = vld [vmem:[%s4026 + $0x20] sm:$0x1]
      %v4422 = vld [vmem:[%s4026 + $0x24] sm:$0xf]
      %v4423 = vld [vmem:[%s4026 + $0x28] sm:$0xf]
      %v4424 = vld [vmem:[%s4026 + $0x2c] sm:$0x1]
      %v4425 = vld [vmem:[%s4026 + $0x30] sm:$0xf]
      %v4426 = vld [vmem:[%s4026 + $0x34] sm:$0xf]
      %v4427 = vld [vmem:[%s4026 + $0x38] sm:$0x1]
      %v4428 = vld [vmem:[%s4026 + $0x3c] sm:$0xf]
      %v4429 = vld [vmem:[%s4026 + $0x40] sm:$0xf]
      %v4430 = vld [vmem:[%s4026 + $0x44] sm:$0x1]
      %v4431 = vld [vmem:[%s4026 + $0x48] sm:$0xf]
      %v4432 = vld [vmem:[%s4026 + $0x4c] sm:$0xf]
      %v4433 = vld [vmem:[%s4026 + $0x50] sm:$0x1]
      %v4434 = vld [vmem:[%s4026 + $0x54] sm:$0xf]
      %v4435 = vld [vmem:[%s4026 + $0x58] sm:$0xf]
      %v4436 = vld [vmem:[%s4026 + $0x5c] sm:$0x1]
      %v4437 = vld [vmem:[%s4026 + $0x60] sm:$0xf]
      %v4438 = vld [vmem:[%s4026 + $0x64] sm:$0xf]
      %v4439 = vld [vmem:[%s4026 + $0x68] sm:$0x1]
      %v4440 = vld [vmem:[%s4026 + $0x6c] sm:$0xf]
      %v4441 = vld [vmem:[%s4026 + $0x70] sm:$0xf]
      %v4442 = vld [vmem:[%s4026 + $0x74] sm:$0x1]
      %v4443 = vld [vmem:[%s4026 + $0x78] sm:$0xf]
      %v4444 = vld [vmem:[%s4026 + $0x7c] sm:$0xf]
      %v4445 = vld [vmem:[%s4026 + $0x80] sm:$0x1]
      %v4446 = vld [vmem:[%s4026 + $0x84] sm:$0xf]
      %v4447 = vld [vmem:[%s4026 + $0x88] sm:$0xf]
      %v4448 = vld [vmem:[%s4026 + $0x8c] sm:$0x1]
      %v4449 = vld [vmem:[%s4026 + $0x90] sm:$0xf]
      %v4450 = vld [vmem:[%s4026 + $0x94] sm:$0xf]
      %v4451 = vld [vmem:[%s4026 + $0x98] sm:$0x1]
      %v4452 = vld [vmem:[%s4026 + $0x9c] sm:$0xf]
      %v4453 = vld [vmem:[%s4026 + $0xa0] sm:$0xf]
      %v4454 = vld [vmem:[%s4026 + $0xa4] sm:$0x1]
      %v4455 = vld [vmem:[%s4026 + $0xa8] sm:$0xf]
      %v4456 = vld [vmem:[%s4026 + $0xac] sm:$0xf]
      %v4457 = vld [vmem:[%s4026 + $0xb0] sm:$0x1]
      %v4458 = vld [vmem:[%s4026 + $0xb4] sm:$0xf]
      %v4459 = vld [vmem:[%s4026 + $0xb8] sm:$0xf]
      %v4460 = vld [vmem:[%s4026 + $0xbc] sm:$0x1]
      %v4462 = vshrl.u32 %v4413, 16
      %v4464 = vrot.slane %v4462, 4
      %v4465 = vshll.u32 %v4413, 16
      %v4467 = vrot.slane %v4465, 5
      %v4468 = vor.u32 %v4464, %v4467
      %v4469 = vrot.slane %v4468, 4
      %v4471 = vshll.u32 %v4414, 16
      %v4473 = vrot.slane %v4471, 5
      %v4474 = vsel %vm923, %v4469, %v4473
      %v4475 = vshrl.u32 %v4414, 16
      %v4477 = vrot.slane %v4475, 4
      %v4478 = vor.u32 %v4477, %v4473
      %v4479 = vrot.slane %v4478, 4
      %v4481 = vshll.u32 %v4415, 16
      %v4483 = vrot.slane %v4481, 5
      %v4484 = vsel %vm923, %v4479, %v4483
      %v4486 = vshrl.u32 %v4416, 16
      %v4488 = vrot.slane %v4486, 4
      %v4489 = vshll.u32 %v4416, 16
      %v4491 = vrot.slane %v4489, 5
      %v4492 = vor.u32 %v4488, %v4491
      %v4493 = vrot.slane %v4492, 4
      %v4495 = vshll.u32 %v4417, 16
      %v4497 = vrot.slane %v4495, 5
      %v4498 = vsel %vm923, %v4493, %v4497
      %v4499 = vshrl.u32 %v4417, 16
      %v4501 = vrot.slane %v4499, 4
      %v4502 = vor.u32 %v4501, %v4497
      %v4503 = vrot.slane %v4502, 4
      %v4505 = vshll.u32 %v4418, 16
      %v4507 = vrot.slane %v4505, 5
      %v4508 = vsel %vm923, %v4503, %v4507
      %v4510 = vshrl.u32 %v4419, 16
      %v4512 = vrot.slane %v4510, 4
      %v4513 = vshll.u32 %v4419, 16
      %v4515 = vrot.slane %v4513, 5
      %v4516 = vor.u32 %v4512, %v4515
      %v4517 = vrot.slane %v4516, 4
      %v4519 = vshll.u32 %v4420, 16
      %v4521 = vrot.slane %v4519, 5
      %v4522 = vsel %vm923, %v4517, %v4521
      %v4523 = vshrl.u32 %v4420, 16
      %v4525 = vrot.slane %v4523, 4
      %v4526 = vor.u32 %v4525, %v4521
      %v4527 = vrot.slane %v4526, 4
      %v4529 = vshll.u32 %v4421, 16
      %v4531 = vrot.slane %v4529, 5
      %v4532 = vsel %vm923, %v4527, %v4531
      %v4534 = vshrl.u32 %v4422, 16
      %v4536 = vrot.slane %v4534, 4
      %v4537 = vshll.u32 %v4422, 16
      %v4539 = vrot.slane %v4537, 5
      %v4540 = vor.u32 %v4536, %v4539
      %v4541 = vrot.slane %v4540, 4
      %v4543 = vshll.u32 %v4423, 16
      %v4545 = vrot.slane %v4543, 5
      %v4546 = vsel %vm923, %v4541, %v4545
      %v4547 = vshrl.u32 %v4423, 16
      %v4549 = vrot.slane %v4547, 4
      %v4550 = vor.u32 %v4549, %v4545
      %v4551 = vrot.slane %v4550, 4
      %v4553 = vshll.u32 %v4424, 16
      %v4555 = vrot.slane %v4553, 5
      %v4556 = vsel %vm923, %v4551, %v4555
      %v4558 = vshrl.u32 %v4425, 16
      %v4560 = vrot.slane %v4558, 4
      %v4561 = vshll.u32 %v4425, 16
      %v4563 = vrot.slane %v4561, 5
      %v4564 = vor.u32 %v4560, %v4563
      %v4565 = vrot.slane %v4564, 4
      %v4567 = vshll.u32 %v4426, 16
      %v4569 = vrot.slane %v4567, 5
      %v4570 = vsel %vm923, %v4565, %v4569
      %v4571 = vshrl.u32 %v4426, 16
      %v4573 = vrot.slane %v4571, 4
      %v4574 = vor.u32 %v4573, %v4569
      %v4575 = vrot.slane %v4574, 4
      %v4577 = vshll.u32 %v4427, 16
      %v4579 = vrot.slane %v4577, 5
      %v4580 = vsel %vm923, %v4575, %v4579
      %v4582 = vshrl.u32 %v4428, 16
      %v4584 = vrot.slane %v4582, 4
      %v4585 = vshll.u32 %v4428, 16
      %v4587 = vrot.slane %v4585, 5
      %v4588 = vor.u32 %v4584, %v4587
      %v4589 = vrot.slane %v4588, 4
      %v4591 = vshll.u32 %v4429, 16
      %v4593 = vrot.slane %v4591, 5
      %v4594 = vsel %vm923, %v4589, %v4593
      %v4595 = vshrl.u32 %v4429, 16
      %v4597 = vrot.slane %v4595, 4
      %v4598 = vor.u32 %v4597, %v4593
      %v4599 = vrot.slane %v4598, 4
      %v4601 = vshll.u32 %v4430, 16
      %v4603 = vrot.slane %v4601, 5
      %v4604 = vsel %vm923, %v4599, %v4603
      %v4606 = vshrl.u32 %v4431, 16
      %v4608 = vrot.slane %v4606, 4
      %v4609 = vshll.u32 %v4431, 16
      %v4611 = vrot.slane %v4609, 5
      %v4612 = vor.u32 %v4608, %v4611
      %v4613 = vrot.slane %v4612, 4
      %v4615 = vshll.u32 %v4432, 16
      %v4617 = vrot.slane %v4615, 5
      %v4618 = vsel %vm923, %v4613, %v4617
      %v4619 = vshrl.u32 %v4432, 16
      %v4621 = vrot.slane %v4619, 4
      %v4622 = vor.u32 %v4621, %v4617
      %v4623 = vrot.slane %v4622, 4
      %v4625 = vshll.u32 %v4433, 16
      %v4627 = vrot.slane %v4625, 5
      %v4628 = vsel %vm923, %v4623, %v4627
      %v4630 = vshrl.u32 %v4434, 16
      %v4632 = vrot.slane %v4630, 4
      %v4633 = vshll.u32 %v4434, 16
      %v4635 = vrot.slane %v4633, 5
      %v4636 = vor.u32 %v4632, %v4635
      %v4637 = vrot.slane %v4636, 4
      %v4639 = vshll.u32 %v4435, 16
      %v4641 = vrot.slane %v4639, 5
      %v4642 = vsel %vm923, %v4637, %v4641
      %v4643 = vshrl.u32 %v4435, 16
      %v4645 = vrot.slane %v4643, 4
      %v4646 = vor.u32 %v4645, %v4641
      %v4647 = vrot.slane %v4646, 4
      %v4649 = vshll.u32 %v4436, 16
      %v4651 = vrot.slane %v4649, 5
      %v4652 = vsel %vm923, %v4647, %v4651
      %v4654 = vshrl.u32 %v4437, 16
      %v4656 = vrot.slane %v4654, 4
      %v4657 = vshll.u32 %v4437, 16
      %v4659 = vrot.slane %v4657, 5
      %v4660 = vor.u32 %v4656, %v4659
      %v4661 = vrot.slane %v4660, 4
      %v4663 = vshll.u32 %v4438, 16
      %v4665 = vrot.slane %v4663, 5
      %v4666 = vsel %vm923, %v4661, %v4665
      %v4667 = vshrl.u32 %v4438, 16
      %v4669 = vrot.slane %v4667, 4
      %v4670 = vor.u32 %v4669, %v4665
      %v4671 = vrot.slane %v4670, 4
      %v4673 = vshll.u32 %v4439, 16
      %v4675 = vrot.slane %v4673, 5
      %v4676 = vsel %vm923, %v4671, %v4675
      %v4678 = vshrl.u32 %v4440, 16
      %v4680 = vrot.slane %v4678, 4
      %v4681 = vshll.u32 %v4440, 16
      %v4683 = vrot.slane %v4681, 5
      %v4684 = vor.u32 %v4680, %v4683
      %v4685 = vrot.slane %v4684, 4
      %v4687 = vshll.u32 %v4441, 16
      %v4689 = vrot.slane %v4687, 5
      %v4690 = vsel %vm923, %v4685, %v4689
      %v4691 = vshrl.u32 %v4441, 16
      %v4693 = vrot.slane %v4691, 4
      %v4694 = vor.u32 %v4693, %v4689
      %v4695 = vrot.slane %v4694, 4
      %v4697 = vshll.u32 %v4442, 16
      %v4699 = vrot.slane %v4697, 5
      %v4700 = vsel %vm923, %v4695, %v4699
      %v4702 = vshrl.u32 %v4443, 16
      %v4704 = vrot.slane %v4702, 4
      %v4705 = vshll.u32 %v4443, 16
      %v4707 = vrot.slane %v4705, 5
      %v4708 = vor.u32 %v4704, %v4707
      %v4709 = vrot.slane %v4708, 4
      %v4711 = vshll.u32 %v4444, 16
      %v4713 = vrot.slane %v4711, 5
      %v4714 = vsel %vm923, %v4709, %v4713
      %v4715 = vshrl.u32 %v4444, 16
      %v4717 = vrot.slane %v4715, 4
      %v4718 = vor.u32 %v4717, %v4713
      %v4719 = vrot.slane %v4718, 4
      %v4721 = vshll.u32 %v4445, 16
      %v4723 = vrot.slane %v4721, 5
      %v4724 = vsel %vm923, %v4719, %v4723
      %v4726 = vshrl.u32 %v4446, 16
      %v4728 = vrot.slane %v4726, 4
      %v4729 = vshll.u32 %v4446, 16
      %v4731 = vrot.slane %v4729, 5
      %v4732 = vor.u32 %v4728, %v4731
      %v4733 = vrot.slane %v4732, 4
      %v4735 = vshll.u32 %v4447, 16
      %v4737 = vrot.slane %v4735, 5
      %v4738 = vsel %vm923, %v4733, %v4737
      %v4739 = vshrl.u32 %v4447, 16
      %v4741 = vrot.slane %v4739, 4
      %v4742 = vor.u32 %v4741, %v4737
      %v4743 = vrot.slane %v4742, 4
      %v4745 = vshll.u32 %v4448, 16
      %v4747 = vrot.slane %v4745, 5
      %v4748 = vsel %vm923, %v4743, %v4747
      %v4750 = vshrl.u32 %v4449, 16
      %v4752 = vrot.slane %v4750, 4
      %v4753 = vshll.u32 %v4449, 16
      %v4755 = vrot.slane %v4753, 5
      %v4756 = vor.u32 %v4752, %v4755
      %v4757 = vrot.slane %v4756, 4
      %v4759 = vshll.u32 %v4450, 16
      %v4761 = vrot.slane %v4759, 5
      %v4762 = vsel %vm923, %v4757, %v4761
      %v4763 = vshrl.u32 %v4450, 16
      %v4765 = vrot.slane %v4763, 4
      %v4766 = vor.u32 %v4765, %v4761
      %v4767 = vrot.slane %v4766, 4
      %v4769 = vshll.u32 %v4451, 16
      %v4771 = vrot.slane %v4769, 5
      %v4772 = vsel %vm923, %v4767, %v4771
      %v4774 = vshrl.u32 %v4452, 16
      %v4776 = vrot.slane %v4774, 4
      %v4777 = vshll.u32 %v4452, 16
      %v4779 = vrot.slane %v4777, 5
      %v4780 = vor.u32 %v4776, %v4779
      %v4781 = vrot.slane %v4780, 4
      %v4783 = vshll.u32 %v4453, 16
      %v4785 = vrot.slane %v4783, 5
      %v4786 = vsel %vm923, %v4781, %v4785
      %v4787 = vshrl.u32 %v4453, 16
      %v4789 = vrot.slane %v4787, 4
      %v4790 = vor.u32 %v4789, %v4785
      %v4791 = vrot.slane %v4790, 4
      %v4793 = vshll.u32 %v4454, 16
      %v4795 = vrot.slane %v4793, 5
      %v4796 = vsel %vm923, %v4791, %v4795
      %v4798 = vshrl.u32 %v4455, 16
      %v4800 = vrot.slane %v4798, 4
      %v4801 = vshll.u32 %v4455, 16
      %v4803 = vrot.slane %v4801, 5
      %v4804 = vor.u32 %v4800, %v4803
      %v4805 = vrot.slane %v4804, 4
      %v4807 = vshll.u32 %v4456, 16
      %v4809 = vrot.slane %v4807, 5
      %v4810 = vsel %vm923, %v4805, %v4809
      %v4811 = vshrl.u32 %v4456, 16
      %v4813 = vrot.slane %v4811, 4
      %v4814 = vor.u32 %v4813, %v4809
      %v4815 = vrot.slane %v4814, 4
      %v4817 = vshll.u32 %v4457, 16
      %v4819 = vrot.slane %v4817, 5
      %v4820 = vsel %vm923, %v4815, %v4819
      %v4822 = vshrl.u32 %v4458, 16
      %v4824 = vrot.slane %v4822, 4
      %v4825 = vshll.u32 %v4458, 16
      %v4827 = vrot.slane %v4825, 5
      %v4828 = vor.u32 %v4824, %v4827
      %v4829 = vrot.slane %v4828, 4
      %v4831 = vshll.u32 %v4459, 16
      %v4833 = vrot.slane %v4831, 5
      %v4834 = vsel %vm923, %v4829, %v4833
      %v4835 = vshrl.u32 %v4459, 16
      %v4837 = vrot.slane %v4835, 4
      %v4838 = vor.u32 %v4837, %v4833
      %v4839 = vrot.slane %v4838, 4
      %v4841 = vshll.u32 %v4460, 16
      %v4843 = vrot.slane %v4841, 5
      %v4844 = vsel %vm923, %v4839, %v4843
      %s4845 = scalar_lea.vmem %s1, 448
      %v4846 = vld [vmem:[%s4845] sm:$0xf]
      %v4847 = vld [vmem:[%s4845 + $0x4] sm:$0xf]
      %v4848 = vld [vmem:[%s4845 + $0x8] sm:$0xf]
      %v4849 = vld [vmem:[%s4845 + $0xc] sm:$0xf]
      %v4850 = vld [vmem:[%s4845 + $0x10] sm:$0xf]
      %v4851 = vld [vmem:[%s4845 + $0x14] sm:$0xf]
      %v4852 = vld [vmem:[%s4845 + $0x18] sm:$0xf]
      %v4853 = vld [vmem:[%s4845 + $0x1c] sm:$0xf]
      %v4854 = vld [vmem:[%s4845 + $0x20] sm:$0xf]
      %v4855 = vld [vmem:[%s4845 + $0x24] sm:$0xf]
      %v4856 = vld [vmem:[%s4845 + $0x28] sm:$0xf]
      %v4857 = vld [vmem:[%s4845 + $0x2c] sm:$0xf]
      %v4858 = vld [vmem:[%s4845 + $0x30] sm:$0xf]
      %v4859 = vld [vmem:[%s4845 + $0x34] sm:$0xf]
      %v4860 = vld [vmem:[%s4845 + $0x38] sm:$0xf]
      %v4861 = vld [vmem:[%s4845 + $0x3c] sm:$0xf]
      %v4862 = vunpack.c.l.b16 %v4474
      %v4863 = vunpack.c.l.b16 %v4484
      %v4864 = vunpack.c.l.b16 %v4498
      %v4865 = vunpack.c.l.b16 %v4508
      %v4866 = vunpack.c.l.b16 %v4522
      %v4867 = vunpack.c.l.b16 %v4532
      %v4868 = vunpack.c.l.b16 %v4546
      %v4869 = vunpack.c.l.b16 %v4556
      %v4870 = vunpack.c.l.b16 %v4570
      %v4871 = vunpack.c.l.b16 %v4580
      %v4872 = vunpack.c.l.b16 %v4594
      %v4873 = vunpack.c.l.b16 %v4604
      %v4874 = vunpack.c.l.b16 %v4618
      %v4875 = vunpack.c.l.b16 %v4628
      %v4876 = vunpack.c.l.b16 %v4642
      %v4877 = vunpack.c.l.b16 %v4652
      %v4878 = vunpack.c.l.b16 %v4666
      %v4879 = vunpack.c.l.b16 %v4676
      %v4880 = vunpack.c.l.b16 %v4690
      %v4881 = vunpack.c.l.b16 %v4700
      %v4882 = vunpack.c.l.b16 %v4714
      %v4883 = vunpack.c.l.b16 %v4724
      %v4884 = vunpack.c.l.b16 %v4738
      %v4885 = vunpack.c.l.b16 %v4748
      %v4886 = vunpack.c.l.b16 %v4762
      %v4887 = vunpack.c.l.b16 %v4772
      %v4888 = vunpack.c.l.b16 %v4786
      %v4889 = vunpack.c.l.b16 %v4796
      %v4890 = vunpack.c.l.b16 %v4810
      %v4891 = vunpack.c.l.b16 %v4820
      %v4892 = vunpack.c.l.b16 %v4834
      %v4893 = vunpack.c.l.b16 %v4844
      %v4894 = vpack.c.b16 %v4863, %v4862
      %v4895 = vpack.c.b16 %v4865, %v4864
      %v4896 = vpack.c.b16 %v4867, %v4866
      %v4897 = vpack.c.b16 %v4869, %v4868
      %v4898 = vpack.c.b16 %v4871, %v4870
      %v4899 = vpack.c.b16 %v4873, %v4872
      %v4900 = vpack.c.b16 %v4875, %v4874
      %v4901 = vpack.c.b16 %v4877, %v4876
      %v4902 = vpack.c.b16 %v4879, %v4878
      %v4903 = vpack.c.b16 %v4881, %v4880
      %v4904 = vpack.c.b16 %v4883, %v4882
      %v4905 = vpack.c.b16 %v4885, %v4884
      %v4906 = vpack.c.b16 %v4887, %v4886
      %v4907 = vpack.c.b16 %v4889, %v4888
      %v4908 = vpack.c.b16 %v4891, %v4890
      %v4909 = vpack.c.b16 %v4893, %v4892
      %v4942 = vunpack.c.l.b16 %v4846
      %v4943 = vunpack.c.l.b16 %v4847
      %v4944 = vunpack.c.l.b16 %v4848
      %v4945 = vunpack.c.l.b16 %v4849
      %v4946 = vunpack.c.l.b16 %v4850
      %v4947 = vunpack.c.l.b16 %v4851
      %v4948 = vunpack.c.l.b16 %v4852
      %v4949 = vunpack.c.l.b16 %v4853
      %v4950 = vunpack.c.l.b16 %v4854
      %v4951 = vunpack.c.l.b16 %v4855
      %v4952 = vunpack.c.l.b16 %v4856
      %v4953 = vunpack.c.l.b16 %v4857
      %v4954 = vunpack.c.l.b16 %v4858
      %v4955 = vunpack.c.l.b16 %v4859
      %v4956 = vunpack.c.l.b16 %v4860
      %v4957 = vunpack.c.l.b16 %v4861
      %v4958 = vpack.c.b16 %v4943, %v4942
      %v4959 = vpack.c.b16 %v4945, %v4944
      %v4960 = vpack.c.b16 %v4947, %v4946
      %v4961 = vpack.c.b16 %v4949, %v4948
      %v4962 = vpack.c.b16 %v4951, %v4950
      %v4963 = vpack.c.b16 %v4953, %v4952
      %v4964 = vpack.c.b16 %v4955, %v4954
      %v4965 = vpack.c.b16 %v4957, %v4956
      %4974 = vmatprep.subr.bf16.mxu0 0
      %4975 = vmatpush1.bf16.msra.mxu0 %v4958
      %4976 = vmatprep.subr.bf16.mxu0 0
      %4977 = vmatpush1.bf16.msra.mxu0 %v4959
      %4978 = vmatprep.subr.bf16.mxu0 0
      %4979 = vmatpush1.bf16.msra.mxu0 %v4960
      %4980 = vmatprep.subr.bf16.mxu0 0
      %4981 = vmatpush1.bf16.msra.mxu0 %v4961
      %4982 = vmatprep.subr.bf16.mxu0 0
      %4983 = vmatpush1.bf16.msra.mxu0 %v4962
      %4984 = vmatprep.subr.bf16.mxu0 0
      %4985 = vmatpush1.bf16.msra.mxu0 %v4963
      %4986 = vmatprep.subr.bf16.mxu0 0
      %4987 = vmatpush1.bf16.msra.mxu0 %v4964
      %4988 = vmatprep.subr.bf16.mxu0 0
      %4989 = vmatpush1.bf16.msra.mxu0 %v4965
      %4990 = vmatprep.subr.bf16.mxu0 0
      %4991 = vmatpush1.bf16.msra.mxu0 0
      %4992 = vmatprep.subr.bf16.mxu0 0
      %4993 = vmatpush1.bf16.msra.mxu0 0
      %4994 = vmatprep.subr.bf16.mxu0 0
      %4995 = vmatpush1.bf16.msra.mxu0 0
      %4996 = vmatprep.subr.bf16.mxu0 0
      %4997 = vmatpush1.bf16.msra.mxu0 0
      %4998 = vmatprep.subr.bf16.mxu0 0
      %4999 = vmatpush1.bf16.msra.mxu0 0
      %5000 = vmatprep.subr.bf16.mxu0 0
      %5001 = vmatpush1.bf16.msra.mxu0 0
      %5002 = vmatprep.subr.bf16.mxu0 0
      %5003 = vmatpush1.bf16.msra.mxu0 0
      %5004 = vmatprep.subr.bf16.mxu0 0
      %5005 = vmatpush1.bf16.msra.mxu0 0
      %5006 = vmatprep.mubr.bf16.mxu0 0
      %5007 = vmatmul.mubr.bf16.gmra.mrb[0].mxu0 %v4894
      %v5008 = vpop.f32.mrb[0].mxu0
      %v5009 = vadd.f32 0.0, %v5008
      %v5010 = vpop.f32.mrb[0].mxu0
      %v5011 = vpop.f32.mrb[0].mxu0
      %v5012 = vadd.f32 0.0, %v5011
      %v5013 = vpop.f32.mrb[0].mxu0
      %5014 = vmatprep.mubr.bf16.mxu0 0
      %5015 = vmatmul.mubr.bf16.gmra.mrb[0].mxu0 %v4895
      %v5016 = vpop.f32.mrb[0].mxu0
      %v5017 = vadd.f32 0.0, %v5016
      %v5018 = vpop.f32.mrb[0].mxu0
      %v5019 = vpop.f32.mrb[0].mxu0
      %v5020 = vadd.f32 0.0, %v5019
      %v5021 = vpop.f32.mrb[0].mxu0
      %5022 = vmatprep.mubr.bf16.mxu0 0
      %5023 = vmatmul.mubr.bf16.gmra.mrb[0].mxu0 %v4896
      %v5024 = vpop.f32.mrb[0].mxu0
      %v5025 = vadd.f32 0.0, %v5024
      %v5026 = vpop.f32.mrb[0].mxu0
      %v5027 = vpop.f32.mrb[0].mxu0
      %v5028 = vadd.f32 0.0, %v5027
      %v5029 = vpop.f32.mrb[0].mxu0
      %5030 = vmatprep.mubr.bf16.mxu0 0
      %5031 = vmatmul.mubr.bf16.gmra.mrb[0].mxu0 %v4897
      %v5032 = vpop.f32.mrb[0].mxu0
      %v5033 = vadd.f32 0.0, %v5032
      %v5034 = vpop.f32.mrb[0].mxu0
      %v5035 = vpop.f32.mrb[0].mxu0
      %v5036 = vadd.f32 0.0, %v5035
      %v5037 = vpop.f32.mrb[0].mxu0
      %5038 = vmatprep.mubr.bf16.mxu0 0
      %5039 = vmatmul.mubr.bf16.gmra.mrb[0].mxu0 %v4898
      %v5040 = vpop.f32.mrb[0].mxu0
      %v5041 = vadd.f32 0.0, %v5040
      %v5042 = vpop.f32.mrb[0].mxu0
      %v5043 = vpop.f32.mrb[0].mxu0
      %v5044 = vadd.f32 0.0, %v5043
      %v5045 = vpop.f32.mrb[0].mxu0
      %5046 = vmatprep.mubr.bf16.mxu0 0
      %5047 = vmatmul.mubr.bf16.gmra.mrb[0].mxu0 %v4899
      %v5048 = vpop.f32.mrb[0].mxu0
      %v5049 = vadd.f32 0.0, %v5048
      %v5050 = vpop.f32.mrb[0].mxu0
      %v5051 = vpop.f32.mrb[0].mxu0
      %v5052 = vadd.f32 0.0, %v5051
      %v5053 = vpop.f32.mrb[0].mxu0
      %5054 = vmatprep.mubr.bf16.mxu0 0
      %5055 = vmatmul.mubr.bf16.gmra.mrb[0].mxu0 %v4900
      %v5056 = vpop.f32.mrb[0].mxu0
      %v5057 = vadd.f32 0.0, %v5056
      %v5058 = vpop.f32.mrb[0].mxu0
      %v5059 = vpop.f32.mrb[0].mxu0
      %v5060 = vadd.f32 0.0, %v5059
      %v5061 = vpop.f32.mrb[0].mxu0
      %5062 = vmatprep.mubr.bf16.mxu0 0
      %5063 = vmatmul.mubr.bf16.gmra.mrb[0].mxu0 %v4901
      %v5064 = vpop.f32.mrb[0].mxu0
      %v5065 = vadd.f32 0.0, %v5064
      %v5066 = vpop.f32.mrb[0].mxu0
      %v5067 = vpop.f32.mrb[0].mxu0
      %v5068 = vadd.f32 0.0, %v5067
      %v5069 = vpop.f32.mrb[0].mxu0
      %5070 = vmatprep.mubr.bf16.mxu0 0
      %5071 = vmatmul.mubr.bf16.gmra.mrb[0].mxu0 %v4902
      %v5072 = vpop.f32.mrb[0].mxu0
      %v5073 = vadd.f32 0.0, %v5072
      %v5074 = vpop.f32.mrb[0].mxu0
      %v5075 = vpop.f32.mrb[0].mxu0
      %v5076 = vadd.f32 0.0, %v5075
      %v5077 = vpop.f32.mrb[0].mxu0
      %5078 = vmatprep.mubr.bf16.mxu0 0
      %5079 = vmatmul.mubr.bf16.gmra.mrb[0].mxu0 %v4903
      %v5080 = vpop.f32.mrb[0].mxu0
      %v5081 = vadd.f32 0.0, %v5080
      %v5082 = vpop.f32.mrb[0].mxu0
      %v5083 = vpop.f32.mrb[0].mxu0
      %v5084 = vadd.f32 0.0, %v5083
      %v5085 = vpop.f32.mrb[0].mxu0
      %5086 = vmatprep.mubr.bf16.mxu0 0
      %5087 = vmatmul.mubr.bf16.gmra.mrb[0].mxu0 %v4904
      %v5088 = vpop.f32.mrb[0].mxu0
      %v5089 = vadd.f32 0.0, %v5088
      %v5090 = vpop.f32.mrb[0].mxu0
      %v5091 = vpop.f32.mrb[0].mxu0
      %v5092 = vadd.f32 0.0, %v5091
      %v5093 = vpop.f32.mrb[0].mxu0
      %5094 = vmatprep.mubr.bf16.mxu0 0
      %5095 = vmatmul.mubr.bf16.gmra.mrb[0].mxu0 %v4905
      %v5096 = vpop.f32.mrb[0].mxu0
      %v5097 = vadd.f32 0.0, %v5096
      %v5098 = vpop.f32.mrb[0].mxu0
      %v5099 = vpop.f32.mrb[0].mxu0
      %v5100 = vadd.f32 0.0, %v5099
      %v5101 = vpop.f32.mrb[0].mxu0
      %5102 = vmatprep.mubr.bf16.mxu0 0
      %5103 = vmatmul.mubr.bf16.gmra.mrb[0].mxu0 %v4906
      %v5104 = vpop.f32.mrb[0].mxu0
      %v5105 = vadd.f32 0.0, %v5104
      %v5106 = vpop.f32.mrb[0].mxu0
      %v5107 = vpop.f32.mrb[0].mxu0
      %v5108 = vadd.f32 0.0, %v5107
      %v5109 = vpop.f32.mrb[0].mxu0
      %5110 = vmatprep.mubr.bf16.mxu0 0
      %5111 = vmatmul.mubr.bf16.gmra.mrb[0].mxu0 %v4907
      %v5112 = vpop.f32.mrb[0].mxu0
      %v5113 = vadd.f32 0.0, %v5112
      %v5114 = vpop.f32.mrb[0].mxu0
      %v5115 = vpop.f32.mrb[0].mxu0
      %v5116 = vadd.f32 0.0, %v5115
      %v5117 = vpop.f32.mrb[0].mxu0
      %5118 = vmatprep.mubr.bf16.mxu0 0
      %5119 = vmatmul.mubr.bf16.gmra.mrb[0].mxu0 %v4908
      %v5120 = vpop.f32.mrb[0].mxu0
      %v5121 = vadd.f32 0.0, %v5120
      %v5122 = vpop.f32.mrb[0].mxu0
      %v5123 = vpop.f32.mrb[0].mxu0
      %v5124 = vadd.f32 0.0, %v5123
      %v5125 = vpop.f32.mrb[0].mxu0
      %5126 = vmatprep.mubr.bf16.mxu0 0
      %5127 = vmatmul.mubr.bf16.gmra.mrb[0].mxu0 %v4909
      %v5128 = vpop.f32.mrb[0].mxu0
      %v5129 = vadd.f32 0.0, %v5128
      %v5130 = vpop.f32.mrb[0].mxu0
      %v5131 = vpop.f32.mrb[0].mxu0
      %v5132 = vadd.f32 0.0, %v5131
      %v5133 = vpop.f32.mrb[0].mxu0
      %5134 = vdwg.mxu0
      %v5135 = vadd.f32 %v4381, %v5009
      %v5136 = vadd.f32 %v4382, %v5012
      %v5137 = vadd.f32 %v4383, %v5017
      %v5138 = vadd.f32 %v4384, %v5020
      %v5139 = vadd.f32 %v4385, %v5025
      %v5140 = vadd.f32 %v4386, %v5028
      %v5141 = vadd.f32 %v4387, %v5033
      %v5142 = vadd.f32 %v4388, %v5036
      %v5143 = vadd.f32 %v4389, %v5041
      %v5144 = vadd.f32 %v4390, %v5044
      %v5145 = vadd.f32 %v4391, %v5049
      %v5146 = vadd.f32 %v4392, %v5052
      %v5147 = vadd.f32 %v4393, %v5057
      %v5148 = vadd.f32 %v4394, %v5060
      %v5149 = vadd.f32 %v4395, %v5065
      %v5150 = vadd.f32 %v4396, %v5068
      %v5151 = vadd.f32 %v4397, %v5073
      %v5152 = vadd.f32 %v4398, %v5076
      %v5153 = vadd.f32 %v4399, %v5081
      %v5154 = vadd.f32 %v4400, %v5084
      %v5155 = vadd.f32 %v4401, %v5089
      %v5156 = vadd.f32 %v4402, %v5092
      %v5157 = vadd.f32 %v4403, %v5097
      %v5158 = vadd.f32 %v4404, %v5100
      %v5159 = vadd.f32 %v4405, %v5105
      %v5160 = vadd.f32 %v4406, %v5108
      %v5161 = vadd.f32 %v4407, %v5113
      %v5162 = vadd.f32 %v4408, %v5116
      %v5163 = vadd.f32 %v4409, %v5121
      %v5164 = vadd.f32 %v4410, %v5124
      %v5165 = vadd.f32 %v4411, %v5129
      %v5166 = vadd.f32 %v4412, %v5132
      %v5167 = vld [vmem:[%s4026] sm:$0xe]
      %v5168 = vld [vmem:[%s4026 + $0xc] sm:$0xe]
      %v5169 = vld [vmem:[%s4026 + $0x18] sm:$0xe]
      %v5170 = vld [vmem:[%s4026 + $0x24] sm:$0xe]
      %v5171 = vld [vmem:[%s4026 + $0x30] sm:$0xe]
      %v5172 = vld [vmem:[%s4026 + $0x3c] sm:$0xe]
      %v5173 = vld [vmem:[%s4026 + $0x48] sm:$0xe]
      %v5174 = vld [vmem:[%s4026 + $0x54] sm:$0xe]
      %v5175 = vld [vmem:[%s4026 + $0x60] sm:$0xe]
      %v5176 = vld [vmem:[%s4026 + $0x6c] sm:$0xe]
      %v5177 = vld [vmem:[%s4026 + $0x78] sm:$0xe]
      %v5178 = vld [vmem:[%s4026 + $0x84] sm:$0xe]
      %v5179 = vld [vmem:[%s4026 + $0x90] sm:$0xe]
      %v5180 = vld [vmem:[%s4026 + $0x9c] sm:$0xe]
      %v5181 = vld [vmem:[%s4026 + $0xa8] sm:$0xe]
      %v5182 = vld [vmem:[%s4026 + $0xb4] sm:$0xe]
      %v5231 = vrot.slane %v5167, 5
      %v5232 = vrot.slane %v5231, 4
      %v5233 = vrot.slane %v4414, 5
      %v5234 = vsel %vm1953, %v5232, %v5233
      %v5235 = vrot.slane %v5233, 4
      %v5236 = vrot.slane %v4415, 5
      %v5237 = vsel %vm1953, %v5235, %v5236
      %v5238 = vrot.slane %v5168, 5
      %v5239 = vrot.slane %v5238, 4
      %v5240 = vrot.slane %v4417, 5
      %v5241 = vsel %vm1953, %v5239, %v5240
      %v5242 = vrot.slane %v5240, 4
      %v5243 = vrot.slane %v4418, 5
      %v5244 = vsel %vm1953, %v5242, %v5243
      %v5245 = vrot.slane %v5169, 5
      %v5246 = vrot.slane %v5245, 4
      %v5247 = vrot.slane %v4420, 5
      %v5248 = vsel %vm1953, %v5246, %v5247
      %v5249 = vrot.slane %v5247, 4
      %v5250 = vrot.slane %v4421, 5
      %v5251 = vsel %vm1953, %v5249, %v5250
      %v5252 = vrot.slane %v5170, 5
      %v5253 = vrot.slane %v5252, 4
      %v5254 = vrot.slane %v4423, 5
      %v5255 = vsel %vm1953, %v5253, %v5254
      %v5256 = vrot.slane %v5254, 4
      %v5257 = vrot.slane %v4424, 5
      %v5258 = vsel %vm1953, %v5256, %v5257
      %v5259 = vrot.slane %v5171, 5
      %v5260 = vrot.slane %v5259, 4
      %v5261 = vrot.slane %v4426, 5
      %v5262 = vsel %vm1953, %v5260, %v5261
      %v5263 = vrot.slane %v5261, 4
      %v5264 = vrot.slane %v4427, 5
      %v5265 = vsel %vm1953, %v5263, %v5264
      %v5266 = vrot.slane %v5172, 5
      %v5267 = vrot.slane %v5266, 4
      %v5268 = vrot.slane %v4429, 5
      %v5269 = vsel %vm1953, %v5267, %v5268
      %v5270 = vrot.slane %v5268, 4
      %v5271 = vrot.slane %v4430, 5
      %v5272 = vsel %vm1953, %v5270, %v5271
      %v5273 = vrot.slane %v5173, 5
      %v5274 = vrot.slane %v5273, 4
      %v5275 = vrot.slane %v4432, 5
      %v5276 = vsel %vm1953, %v5274, %v5275
      %v5277 = vrot.slane %v5275, 4
      %v5278 = vrot.slane %v4433, 5
      %v5279 = vsel %vm1953, %v5277, %v5278
      %v5280 = vrot.slane %v5174, 5
      %v5281 = vrot.slane %v5280, 4
      %v5282 = vrot.slane %v4435, 5
      %v5283 = vsel %vm1953, %v5281, %v5282
      %v5284 = vrot.slane %v5282, 4
      %v5285 = vrot.slane %v4436, 5
      %v5286 = vsel %vm1953, %v5284, %v5285
      %v5287 = vrot.slane %v5175, 5
      %v5288 = vrot.slane %v5287, 4
      %v5289 = vrot.slane %v4438, 5
      %v5290 = vsel %vm1953, %v5288, %v5289
      %v5291 = vrot.slane %v5289, 4
      %v5292 = vrot.slane %v4439, 5
      %v5293 = vsel %vm1953, %v5291, %v5292
      %v5294 = vrot.slane %v5176, 5
      %v5295 = vrot.slane %v5294, 4
      %v5296 = vrot.slane %v4441, 5
      %v5297 = vsel %vm1953, %v5295, %v5296
      %v5298 = vrot.slane %v5296, 4
      %v5299 = vrot.slane %v4442, 5
      %v5300 = vsel %vm1953, %v5298, %v5299
      %v5301 = vrot.slane %v5177, 5
      %v5302 = vrot.slane %v5301, 4
      %v5303 = vrot.slane %v4444, 5
      %v5304 = vsel %vm1953, %v5302, %v5303
      %v5305 = vrot.slane %v5303, 4
      %v5306 = vrot.slane %v4445, 5
      %v5307 = vsel %vm1953, %v5305, %v5306
      %v5308 = vrot.slane %v5178, 5
      %v5309 = vrot.slane %v5308, 4
      %v5310 = vrot.slane %v4447, 5
      %v5311 = vsel %vm1953, %v5309, %v5310
      %v5312 = vrot.slane %v5310, 4
      %v5313 = vrot.slane %v4448, 5
      %v5314 = vsel %vm1953, %v5312, %v5313
      %v5315 = vrot.slane %v5179, 5
      %v5316 = vrot.slane %v5315, 4
      %v5317 = vrot.slane %v4450, 5
      %v5318 = vsel %vm1953, %v5316, %v5317
      %v5319 = vrot.slane %v5317, 4
      %v5320 = vrot.slane %v4451, 5
      %v5321 = vsel %vm1953, %v5319, %v5320
      %v5322 = vrot.slane %v5180, 5
      %v5323 = vrot.slane %v5322, 4
      %v5324 = vrot.slane %v4453, 5
      %v5325 = vsel %vm1953, %v5323, %v5324
      %v5326 = vrot.slane %v5324, 4
      %v5327 = vrot.slane %v4454, 5
      %v5328 = vsel %vm1953, %v5326, %v5327
      %v5329 = vrot.slane %v5181, 5
      %v5330 = vrot.slane %v5329, 4
      %v5331 = vrot.slane %v4456, 5
      %v5332 = vsel %vm1953, %v5330, %v5331
      %v5333 = vrot.slane %v5331, 4
      %v5334 = vrot.slane %v4457, 5
      %v5335 = vsel %vm1953, %v5333, %v5334
      %v5336 = vrot.slane %v5182, 5
      %v5337 = vrot.slane %v5336, 4
      %v5338 = vrot.slane %v4459, 5
      %v5339 = vsel %vm1953, %v5337, %v5338
      %v5340 = vrot.slane %v5338, 4
      %v5341 = vrot.slane %v4460, 5
      %v5342 = vsel %vm1953, %v5340, %v5341
      %s5343 = scalar_lea.vmem %s1, 512
      %v5344 = vld [vmem:[%s5343] sm:$0xf]
      %v5345 = vld [vmem:[%s5343 + $0x4] sm:$0xf]
      %v5346 = vld [vmem:[%s5343 + $0x8] sm:$0xf]
      %v5347 = vld [vmem:[%s5343 + $0xc] sm:$0xf]
      %v5348 = vld [vmem:[%s5343 + $0x10] sm:$0xf]
      %v5349 = vld [vmem:[%s5343 + $0x14] sm:$0xf]
      %v5350 = vld [vmem:[%s5343 + $0x18] sm:$0xf]
      %v5351 = vld [vmem:[%s5343 + $0x1c] sm:$0xf]
      %v5352 = vld [vmem:[%s5343 + $0x20] sm:$0xf]
      %v5353 = vld [vmem:[%s5343 + $0x24] sm:$0xf]
      %v5354 = vld [vmem:[%s5343 + $0x28] sm:$0xf]
      %v5355 = vld [vmem:[%s5343 + $0x2c] sm:$0xf]
      %v5356 = vld [vmem:[%s5343 + $0x30] sm:$0xf]
      %v5357 = vld [vmem:[%s5343 + $0x34] sm:$0xf]
      %v5358 = vld [vmem:[%s5343 + $0x38] sm:$0xf]
      %v5359 = vld [vmem:[%s5343 + $0x3c] sm:$0xf]
      %v5360 = vunpack.c.l.b16 %v5234
      %v5361 = vunpack.c.l.b16 %v5237
      %v5362 = vunpack.c.l.b16 %v5241
      %v5363 = vunpack.c.l.b16 %v5244
      %v5364 = vunpack.c.l.b16 %v5248
      %v5365 = vunpack.c.l.b16 %v5251
      %v5366 = vunpack.c.l.b16 %v5255
      %v5367 = vunpack.c.l.b16 %v5258
      %v5368 = vunpack.c.l.b16 %v5262
      %v5369 = vunpack.c.l.b16 %v5265
      %v5370 = vunpack.c.l.b16 %v5269
      %v5371 = vunpack.c.l.b16 %v5272
      %v5372 = vunpack.c.l.b16 %v5276
      %v5373 = vunpack.c.l.b16 %v5279
      %v5374 = vunpack.c.l.b16 %v5283
      %v5375 = vunpack.c.l.b16 %v5286
      %v5376 = vunpack.c.l.b16 %v5290
      %v5377 = vunpack.c.l.b16 %v5293
      %v5378 = vunpack.c.l.b16 %v5297
      %v5379 = vunpack.c.l.b16 %v5300
      %v5380 = vunpack.c.l.b16 %v5304
      %v5381 = vunpack.c.l.b16 %v5307
      %v5382 = vunpack.c.l.b16 %v5311
      %v5383 = vunpack.c.l.b16 %v5314
      %v5384 = vunpack.c.l.b16 %v5318
      %v5385 = vunpack.c.l.b16 %v5321
      %v5386 = vunpack.c.l.b16 %v5325
      %v5387 = vunpack.c.l.b16 %v5328
      %v5388 = vunpack.c.l.b16 %v5332
      %v5389 = vunpack.c.l.b16 %v5335
      %v5390 = vunpack.c.l.b16 %v5339
      %v5391 = vunpack.c.l.b16 %v5342
      %v5392 = vpack.c.b16 %v5361, %v5360
      %v5393 = vpack.c.b16 %v5363, %v5362
      %v5394 = vpack.c.b16 %v5365, %v5364
      %v5395 = vpack.c.b16 %v5367, %v5366
      %v5396 = vpack.c.b16 %v5369, %v5368
      %v5397 = vpack.c.b16 %v5371, %v5370
      %v5398 = vpack.c.b16 %v5373, %v5372
      %v5399 = vpack.c.b16 %v5375, %v5374
      %v5400 = vpack.c.b16 %v5377, %v5376
      %v5401 = vpack.c.b16 %v5379, %v5378
      %v5402 = vpack.c.b16 %v5381, %v5380
      %v5403 = vpack.c.b16 %v5383, %v5382
      %v5404 = vpack.c.b16 %v5385, %v5384
      %v5405 = vpack.c.b16 %v5387, %v5386
      %v5406 = vpack.c.b16 %v5389, %v5388
      %v5407 = vpack.c.b16 %v5391, %v5390
      %v5440 = vunpack.c.l.b16 %v5344
      %v5441 = vunpack.c.l.b16 %v5345
      %v5442 = vunpack.c.l.b16 %v5346
      %v5443 = vunpack.c.l.b16 %v5347
      %v5444 = vunpack.c.l.b16 %v5348
      %v5445 = vunpack.c.l.b16 %v5349
      %v5446 = vunpack.c.l.b16 %v5350
      %v5447 = vunpack.c.l.b16 %v5351
      %v5448 = vunpack.c.l.b16 %v5352
      %v5449 = vunpack.c.l.b16 %v5353
      %v5450 = vunpack.c.l.b16 %v5354
      %v5451 = vunpack.c.l.b16 %v5355
      %v5452 = vunpack.c.l.b16 %v5356
      %v5453 = vunpack.c.l.b16 %v5357
      %v5454 = vunpack.c.l.b16 %v5358
      %v5455 = vunpack.c.l.b16 %v5359
      %v5456 = vpack.c.b16 %v5441, %v5440
      %v5457 = vpack.c.b16 %v5443, %v5442
      %v5458 = vpack.c.b16 %v5445, %v5444
      %v5459 = vpack.c.b16 %v5447, %v5446
      %v5460 = vpack.c.b16 %v5449, %v5448
      %v5461 = vpack.c.b16 %v5451, %v5450
      %v5462 = vpack.c.b16 %v5453, %v5452
      %v5463 = vpack.c.b16 %v5455, %v5454
      %5472 = vmatprep.subr.bf16.mxu0 0
      %5473 = vmatpush1.bf16.msra.mxu0 %v5456
      %5474 = vmatprep.subr.bf16.mxu0 0
      %5475 = vmatpush1.bf16.msra.mxu0 %v5457
      %5476 = vmatprep.subr.bf16.mxu0 0
      %5477 = vmatpush1.bf16.msra.mxu0 %v5458
      %5478 = vmatprep.subr.bf16.mxu0 0
      %5479 = vmatpush1.bf16.msra.mxu0 %v5459
      %5480 = vmatprep.subr.bf16.mxu0 0
      %5481 = vmatpush1.bf16.msra.mxu0 %v5460
      %5482 = vmatprep.subr.bf16.mxu0 0
      %5483 = vmatpush1.bf16.msra.mxu0 %v5461
      %5484 = vmatprep.subr.bf16.mxu0 0
      %5485 = vmatpush1.bf16.msra.mxu0 %v5462
      %5486 = vmatprep.subr.bf16.mxu0 0
      %5487 = vmatpush1.bf16.msra.mxu0 %v5463
      %5488 = vmatprep.subr.bf16.mxu0 0
      %5489 = vmatpush1.bf16.msra.mxu0 0
      %5490 = vmatprep.subr.bf16.mxu0 0
      %5491 = vmatpush1.bf16.msra.mxu0 0
      %5492 = vmatprep.subr.bf16.mxu0 0
      %5493 = vmatpush1.bf16.msra.mxu0 0
      %5494 = vmatprep.subr.bf16.mxu0 0
      %5495 = vmatpush1.bf16.msra.mxu0 0
      %5496 = vmatprep.subr.bf16.mxu0 0
      %5497 = vmatpush1.bf16.msra.mxu0 0
      %5498 = vmatprep.subr.bf16.mxu0 0
      %5499 = vmatpush1.bf16.msra.mxu0 0
      %5500 = vmatprep.subr.bf16.mxu0 0
      %5501 = vmatpush1.bf16.msra.mxu0 0
      %5502 = vmatprep.subr.bf16.mxu0 0
      %5503 = vmatpush1.bf16.msra.mxu0 0
      %5504 = vmatprep.mubr.bf16.mxu0 0
      %5505 = vmatmul.mubr.bf16.gmra.mrb[0].mxu0 %v5392
      %v5506 = vpop.f32.mrb[0].mxu0
      %v5507 = vadd.f32 0.0, %v5506
      %v5508 = vpop.f32.mrb[0].mxu0
      %v5509 = vpop.f32.mrb[0].mxu0
      %v5510 = vadd.f32 0.0, %v5509
      %v5511 = vpop.f32.mrb[0].mxu0
      %5512 = vmatprep.mubr.bf16.mxu0 0
      %5513 = vmatmul.mubr.bf16.gmra.mrb[0].mxu0 %v5393
      %v5514 = vpop.f32.mrb[0].mxu0
      %v5515 = vadd.f32 0.0, %v5514
      %v5516 = vpop.f32.mrb[0].mxu0
      %v5517 = vpop.f32.mrb[0].mxu0
      %v5518 = vadd.f32 0.0, %v5517
      %v5519 = vpop.f32.mrb[0].mxu0
      %5520 = vmatprep.mubr.bf16.mxu0 0
      %5521 = vmatmul.mubr.bf16.gmra.mrb[0].mxu0 %v5394
      %v5522 = vpop.f32.mrb[0].mxu0
      %v5523 = vadd.f32 0.0, %v5522
      %v5524 = vpop.f32.mrb[0].mxu0
      %v5525 = vpop.f32.mrb[0].mxu0
      %v5526 = vadd.f32 0.0, %v5525
      %v5527 = vpop.f32.mrb[0].mxu0
      %5528 = vmatprep.mubr.bf16.mxu0 0
      %5529 = vmatmul.mubr.bf16.gmra.mrb[0].mxu0 %v5395
      %v5530 = vpop.f32.mrb[0].mxu0
      %v5531 = vadd.f32 0.0, %v5530
      %v5532 = vpop.f32.mrb[0].mxu0
      %v5533 = vpop.f32.mrb[0].mxu0
      %v5534 = vadd.f32 0.0, %v5533
      %v5535 = vpop.f32.mrb[0].mxu0
      %5536 = vmatprep.mubr.bf16.mxu0 0
      %5537 = vmatmul.mubr.bf16.gmra.mrb[0].mxu0 %v5396
      %v5538 = vpop.f32.mrb[0].mxu0
      %v5539 = vadd.f32 0.0, %v5538
      %v5540 = vpop.f32.mrb[0].mxu0
      %v5541 = vpop.f32.mrb[0].mxu0
      %v5542 = vadd.f32 0.0, %v5541
      %v5543 = vpop.f32.mrb[0].mxu0
      %5544 = vmatprep.mubr.bf16.mxu0 0
      %5545 = vmatmul.mubr.bf16.gmra.mrb[0].mxu0 %v5397
      %v5546 = vpop.f32.mrb[0].mxu0
      %v5547 = vadd.f32 0.0, %v5546
      %v5548 = vpop.f32.mrb[0].mxu0
      %v5549 = vpop.f32.mrb[0].mxu0
      %v5550 = vadd.f32 0.0, %v5549
      %v5551 = vpop.f32.mrb[0].mxu0
      %5552 = vmatprep.mubr.bf16.mxu0 0
      %5553 = vmatmul.mubr.bf16.gmra.mrb[0].mxu0 %v5398
      %v5554 = vpop.f32.mrb[0].mxu0
      %v5555 = vadd.f32 0.0, %v5554
      %v5556 = vpop.f32.mrb[0].mxu0
      %v5557 = vpop.f32.mrb[0].mxu0
      %v5558 = vadd.f32 0.0, %v5557
      %v5559 = vpop.f32.mrb[0].mxu0
      %5560 = vmatprep.mubr.bf16.mxu0 0
      %5561 = vmatmul.mubr.bf16.gmra.mrb[0].mxu0 %v5399
      %v5562 = vpop.f32.mrb[0].mxu0
      %v5563 = vadd.f32 0.0, %v5562
      %v5564 = vpop.f32.mrb[0].mxu0
      %v5565 = vpop.f32.mrb[0].mxu0
      %v5566 = vadd.f32 0.0, %v5565
      %v5567 = vpop.f32.mrb[0].mxu0
      %5568 = vmatprep.mubr.bf16.mxu0 0
      %5569 = vmatmul.mubr.bf16.gmra.mrb[0].mxu0 %v5400
      %v5570 = vpop.f32.mrb[0].mxu0
      %v5571 = vadd.f32 0.0, %v5570
      %v5572 = vpop.f32.mrb[0].mxu0
      %v5573 = vpop.f32.mrb[0].mxu0
      %v5574 = vadd.f32 0.0, %v5573
      %v5575 = vpop.f32.mrb[0].mxu0
      %5576 = vmatprep.mubr.bf16.mxu0 0
      %5577 = vmatmul.mubr.bf16.gmra.mrb[0].mxu0 %v5401
      %v5578 = vpop.f32.mrb[0].mxu0
      %v5579 = vadd.f32 0.0, %v5578
      %v5580 = vpop.f32.mrb[0].mxu0
      %v5581 = vpop.f32.mrb[0].mxu0
      %v5582 = vadd.f32 0.0, %v5581
      %v5583 = vpop.f32.mrb[0].mxu0
      %5584 = vmatprep.mubr.bf16.mxu0 0
      %5585 = vmatmul.mubr.bf16.gmra.mrb[0].mxu0 %v5402
      %v5586 = vpop.f32.mrb[0].mxu0
      %v5587 = vadd.f32 0.0, %v5586
      %v5588 = vpop.f32.mrb[0].mxu0
      %v5589 = vpop.f32.mrb[0].mxu0
      %v5590 = vadd.f32 0.0, %v5589
      %v5591 = vpop.f32.mrb[0].mxu0
      %5592 = vmatprep.mubr.bf16.mxu0 0
      %5593 = vmatmul.mubr.bf16.gmra.mrb[0].mxu0 %v5403
      %v5594 = vpop.f32.mrb[0].mxu0
      %v5595 = vadd.f32 0.0, %v5594
      %v5596 = vpop.f32.mrb[0].mxu0
      %v5597 = vpop.f32.mrb[0].mxu0
      %v5598 = vadd.f32 0.0, %v5597
      %v5599 = vpop.f32.mrb[0].mxu0
      %5600 = vmatprep.mubr.bf16.mxu0 0
      %5601 = vmatmul.mubr.bf16.gmra.mrb[0].mxu0 %v5404
      %v5602 = vpop.f32.mrb[0].mxu0
      %v5603 = vadd.f32 0.0, %v5602
      %v5604 = vpop.f32.mrb[0].mxu0
      %v5605 = vpop.f32.mrb[0].mxu0
      %v5606 = vadd.f32 0.0, %v5605
      %v5607 = vpop.f32.mrb[0].mxu0
      %5608 = vmatprep.mubr.bf16.mxu0 0
      %5609 = vmatmul.mubr.bf16.gmra.mrb[0].mxu0 %v5405
      %v5610 = vpop.f32.mrb[0].mxu0
      %v5611 = vadd.f32 0.0, %v5610
      %v5612 = vpop.f32.mrb[0].mxu0
      %v5613 = vpop.f32.mrb[0].mxu0
      %v5614 = vadd.f32 0.0, %v5613
      %v5615 = vpop.f32.mrb[0].mxu0
      %5616 = vmatprep.mubr.bf16.mxu0 0
      %5617 = vmatmul.mubr.bf16.gmra.mrb[0].mxu0 %v5406
      %v5618 = vpop.f32.mrb[0].mxu0
      %v5619 = vadd.f32 0.0, %v5618
      %v5620 = vpop.f32.mrb[0].mxu0
      %v5621 = vpop.f32.mrb[0].mxu0
      %v5622 = vadd.f32 0.0, %v5621
      %v5623 = vpop.f32.mrb[0].mxu0
      %5624 = vmatprep.mubr.bf16.mxu0 0
      %5625 = vmatmul.mubr.bf16.gmra.mrb[0].mxu0 %v5407
      %v5626 = vpop.f32.mrb[0].mxu0
      %v5627 = vadd.f32 0.0, %v5626
      %v5628 = vpop.f32.mrb[0].mxu0
      %v5629 = vpop.f32.mrb[0].mxu0
      %v5630 = vadd.f32 0.0, %v5629
      %v5631 = vpop.f32.mrb[0].mxu0
      %5632 = vdwg.mxu0
      %v5633 = vadd.f32 %v5135, %v5507
      %v5634 = vadd.f32 %v5136, %v5510
      %v5635 = vadd.f32 %v5137, %v5515
      %v5636 = vadd.f32 %v5138, %v5518
      %v5637 = vadd.f32 %v5139, %v5523
      %v5638 = vadd.f32 %v5140, %v5526
      %v5639 = vadd.f32 %v5141, %v5531
      %v5640 = vadd.f32 %v5142, %v5534
      %v5641 = vadd.f32 %v5143, %v5539
      %v5642 = vadd.f32 %v5144, %v5542
      %v5643 = vadd.f32 %v5145, %v5547
      %v5644 = vadd.f32 %v5146, %v5550
      %v5645 = vadd.f32 %v5147, %v5555
      %v5646 = vadd.f32 %v5148, %v5558
      %v5647 = vadd.f32 %v5149, %v5563
      %v5648 = vadd.f32 %v5150, %v5566
      %v5649 = vadd.f32 %v5151, %v5571
      %v5650 = vadd.f32 %v5152, %v5574
      %v5651 = vadd.f32 %v5153, %v5579
      %v5652 = vadd.f32 %v5154, %v5582
      %v5653 = vadd.f32 %v5155, %v5587
      %v5654 = vadd.f32 %v5156, %v5590
      %v5655 = vadd.f32 %v5157, %v5595
      %v5656 = vadd.f32 %v5158, %v5598
      %v5657 = vadd.f32 %v5159, %v5603
      %v5658 = vadd.f32 %v5160, %v5606
      %v5659 = vadd.f32 %v5161, %v5611
      %v5660 = vadd.f32 %v5162, %v5614
      %v5661 = vadd.f32 %v5163, %v5619
      %v5662 = vadd.f32 %v5164, %v5622
      %v5663 = vadd.f32 %v5165, %v5627
      %v5664 = vadd.f32 %v5166, %v5630
      %v5665 = vld [vmem:[%s2] sm:$0x1]
      %v5667 = vlaneseq
      %v5668 = vshrl.u32 %v5667, 7
      %v5669 = vsub.s32 0, %v5668
      %v5670 = vrot.slane %v5665, %v5669
      %v5672 = vmul.f32 %v5633, %v5670
      %v5673 = vmul.f32 %v5634, %v5670
      %v5674 = vmul.f32 %v5635, %v5670
      %v5675 = vmul.f32 %v5636, %v5670
      %v5676 = vmul.f32 %v5637, %v5670
      %v5677 = vmul.f32 %v5638, %v5670
      %v5678 = vmul.f32 %v5639, %v5670
      %v5679 = vmul.f32 %v5640, %v5670
      %v5680 = vmul.f32 %v5641, %v5670
      %v5681 = vmul.f32 %v5642, %v5670
      %v5682 = vmul.f32 %v5643, %v5670
      %v5683 = vmul.f32 %v5644, %v5670
      %v5684 = vmul.f32 %v5645, %v5670
      %v5685 = vmul.f32 %v5646, %v5670
      %v5686 = vmul.f32 %v5647, %v5670
      %v5687 = vmul.f32 %v5648, %v5670
      %v5688 = vmul.f32 %v5649, %v5670
      %v5689 = vmul.f32 %v5650, %v5670
      %v5690 = vmul.f32 %v5651, %v5670
      %v5691 = vmul.f32 %v5652, %v5670
      %v5692 = vmul.f32 %v5653, %v5670
      %v5693 = vmul.f32 %v5654, %v5670
      %v5694 = vmul.f32 %v5655, %v5670
      %v5695 = vmul.f32 %v5656, %v5670
      %v5696 = vmul.f32 %v5657, %v5670
      %v5697 = vmul.f32 %v5658, %v5670
      %v5698 = vmul.f32 %v5659, %v5670
      %v5699 = vmul.f32 %v5660, %v5670
      %v5700 = vmul.f32 %v5661, %v5670
      %v5701 = vmul.f32 %v5662, %v5670
      %v5702 = vmul.f32 %v5663, %v5670
      %v5703 = vmul.f32 %v5664, %v5670
      %v5704 = vld [vmem:[%s3] sm:$0x1]
      %v5706 = vlaneseq
      %v5707 = vshrl.u32 %v5706, 7
      %v5708 = vsub.s32 0, %v5707
      %v5709 = vrot.slane %v5704, %v5708
      %v5711 = vadd.f32 %v5672, %v5709
      %v5712 = vadd.f32 %v5673, %v5709
      %v5713 = vadd.f32 %v5674, %v5709
      %v5714 = vadd.f32 %v5675, %v5709
      %v5715 = vadd.f32 %v5676, %v5709
      %v5716 = vadd.f32 %v5677, %v5709
      %v5717 = vadd.f32 %v5678, %v5709
      %v5718 = vadd.f32 %v5679, %v5709
      %v5719 = vadd.f32 %v5680, %v5709
      %v5720 = vadd.f32 %v5681, %v5709
      %v5721 = vadd.f32 %v5682, %v5709
      %v5722 = vadd.f32 %v5683, %v5709
      %v5723 = vadd.f32 %v5684, %v5709
      %v5724 = vadd.f32 %v5685, %v5709
      %v5725 = vadd.f32 %v5686, %v5709
      %v5726 = vadd.f32 %v5687, %v5709
      %v5727 = vadd.f32 %v5688, %v5709
      %v5728 = vadd.f32 %v5689, %v5709
      %v5729 = vadd.f32 %v5690, %v5709
      %v5730 = vadd.f32 %v5691, %v5709
      %v5731 = vadd.f32 %v5692, %v5709
      %v5732 = vadd.f32 %v5693, %v5709
      %v5733 = vadd.f32 %v5694, %v5709
      %v5734 = vadd.f32 %v5695, %v5709
      %v5735 = vadd.f32 %v5696, %v5709
      %v5736 = vadd.f32 %v5697, %v5709
      %v5737 = vadd.f32 %v5698, %v5709
      %v5738 = vadd.f32 %v5699, %v5709
      %v5739 = vadd.f32 %v5700, %v5709
      %v5740 = vadd.f32 %v5701, %v5709
      %v5741 = vadd.f32 %v5702, %v5709
      %v5742 = vadd.f32 %v5703, %v5709
      %v5743 = vmax.f32 %v5711, 0.0
      %v5744 = vmax.f32 %v5712, 0.0
      %v5745 = vmax.f32 %v5713, 0.0
      %v5746 = vmax.f32 %v5714, 0.0
      %v5747 = vmax.f32 %v5715, 0.0
      %v5748 = vmax.f32 %v5716, 0.0
      %v5749 = vmax.f32 %v5717, 0.0
      %v5750 = vmax.f32 %v5718, 0.0
      %v5751 = vmax.f32 %v5719, 0.0
      %v5752 = vmax.f32 %v5720, 0.0
      %v5753 = vmax.f32 %v5721, 0.0
      %v5754 = vmax.f32 %v5722, 0.0
      %v5755 = vmax.f32 %v5723, 0.0
      %v5756 = vmax.f32 %v5724, 0.0
      %v5757 = vmax.f32 %v5725, 0.0
      %v5758 = vmax.f32 %v5726, 0.0
      %v5759 = vmax.f32 %v5727, 0.0
      %v5760 = vmax.f32 %v5728, 0.0
      %v5761 = vmax.f32 %v5729, 0.0
      %v5762 = vmax.f32 %v5730, 0.0
      %v5763 = vmax.f32 %v5731, 0.0
      %v5764 = vmax.f32 %v5732, 0.0
      %v5765 = vmax.f32 %v5733, 0.0
      %v5766 = vmax.f32 %v5734, 0.0
      %v5767 = vmax.f32 %v5735, 0.0
      %v5768 = vmax.f32 %v5736, 0.0
      %v5769 = vmax.f32 %v5737, 0.0
      %v5770 = vmax.f32 %v5738, 0.0
      %v5771 = vmax.f32 %v5739, 0.0
      %v5772 = vmax.f32 %v5740, 0.0
      %v5773 = vmax.f32 %v5741, 0.0
      %v5774 = vmax.f32 %v5742, 0.0
      %v5775 = vpack.c.bf16 %v5744, %v5743
      %v5776 = vpack.c.bf16 %v5746, %v5745
      %v5777 = vpack.c.bf16 %v5748, %v5747
      %v5778 = vpack.c.bf16 %v5750, %v5749
      %v5779 = vpack.c.bf16 %v5752, %v5751
      %v5780 = vpack.c.bf16 %v5754, %v5753
      %v5781 = vpack.c.bf16 %v5756, %v5755
      %v5782 = vpack.c.bf16 %v5758, %v5757
      %v5783 = vpack.c.bf16 %v5760, %v5759
      %v5784 = vpack.c.bf16 %v5762, %v5761
      %v5785 = vpack.c.bf16 %v5764, %v5763
      %v5786 = vpack.c.bf16 %v5766, %v5765
      %v5787 = vpack.c.bf16 %v5768, %v5767
      %v5788 = vpack.c.bf16 %v5770, %v5769
      %v5789 = vpack.c.bf16 %v5772, %v5771
      %v5790 = vpack.c.bf16 %v5774, %v5773
      %v5807 = vunpack.c.l.b16 %v5775
      %v5808 = vunpack.c.h.b16 %v5775
      %v5809 = vunpack.c.l.b16 %v5776
      %v5810 = vunpack.c.h.b16 %v5776
      %v5811 = vunpack.c.l.b16 %v5777
      %v5812 = vunpack.c.h.b16 %v5777
      %v5813 = vunpack.c.l.b16 %v5778
      %v5814 = vunpack.c.h.b16 %v5778
      %v5815 = vunpack.c.l.b16 %v5779
      %v5816 = vunpack.c.h.b16 %v5779
      %v5817 = vunpack.c.l.b16 %v5780
      %v5818 = vunpack.c.h.b16 %v5780
      %v5819 = vunpack.c.l.b16 %v5781
      %v5820 = vunpack.c.h.b16 %v5781
      %v5821 = vunpack.c.l.b16 %v5782
      %v5822 = vunpack.c.h.b16 %v5782
      %v5823 = vunpack.c.l.b16 %v5783
      %v5824 = vunpack.c.h.b16 %v5783
      %v5825 = vunpack.c.l.b16 %v5784
      %v5826 = vunpack.c.h.b16 %v5784
      %v5827 = vunpack.c.l.b16 %v5785
      %v5828 = vunpack.c.h.b16 %v5785
      %v5829 = vunpack.c.l.b16 %v5786
      %v5830 = vunpack.c.h.b16 %v5786
      %v5831 = vunpack.c.l.b16 %v5787
      %v5832 = vunpack.c.h.b16 %v5787
      %v5833 = vunpack.c.l.b16 %v5788
      %v5834 = vunpack.c.h.b16 %v5788
      %v5835 = vunpack.c.l.b16 %v5789
      %v5836 = vunpack.c.h.b16 %v5789
      %v5837 = vunpack.c.l.b16 %v5790
      %v5838 = vunpack.c.h.b16 %v5790
      %v5839 = vpack.c.b16 %v5807, %v5807
      %v5840 = vpack.c.b16 %v5808, %v5808
      %v5841 = vpack.c.b16 %v5809, %v5809
      %v5842 = vpack.c.b16 %v5810, %v5810
      %v5843 = vpack.c.b16 %v5811, %v5811
      %v5844 = vpack.c.b16 %v5812, %v5812
      %v5845 = vpack.c.b16 %v5813, %v5813
      %v5846 = vpack.c.b16 %v5814, %v5814
      %v5847 = vpack.c.b16 %v5815, %v5815
      %v5848 = vpack.c.b16 %v5816, %v5816
      %v5849 = vpack.c.b16 %v5817, %v5817
      %v5850 = vpack.c.b16 %v5818, %v5818
      %v5851 = vpack.c.b16 %v5819, %v5819
      %v5852 = vpack.c.b16 %v5820, %v5820
      %v5853 = vpack.c.b16 %v5821, %v5821
      %v5854 = vpack.c.b16 %v5822, %v5822
      %v5855 = vpack.c.b16 %v5823, %v5823
      %v5856 = vpack.c.b16 %v5824, %v5824
      %v5857 = vpack.c.b16 %v5825, %v5825
      %v5858 = vpack.c.b16 %v5826, %v5826
      %v5859 = vpack.c.b16 %v5827, %v5827
      %v5860 = vpack.c.b16 %v5828, %v5828
      %v5861 = vpack.c.b16 %v5829, %v5829
      %v5862 = vpack.c.b16 %v5830, %v5830
      %v5863 = vpack.c.b16 %v5831, %v5831
      %v5864 = vpack.c.b16 %v5832, %v5832
      %v5865 = vpack.c.b16 %v5833, %v5833
      %v5866 = vpack.c.b16 %v5834, %v5834
      %v5867 = vpack.c.b16 %v5835, %v5835
      %v5868 = vpack.c.b16 %v5836, %v5836
      %v5869 = vpack.c.b16 %v5837, %v5837
      %v5870 = vpack.c.b16 %v5838, %v5838
      %v5872 = vshrl.u32 %v5839, 16
      %v5874 = vrot.slane %v5872, 7
      %v5875 = vshll.u32 %v5839, 16
      %v5877 = vor.u32 %v5874, %v5875
      %v5878 = vrot.slane %v5874, 4
      %v5880 = vshrl.u32 %v5840, 16
      %v5882 = vrot.slane %v5880, 7
      %v5883 = vshll.u32 %v5840, 16
      %v5885 = vor.u32 %v5882, %v5883
      %v5886 = vsel %vm422, %v5878, %v5885
      %v5887 = vrot.slane %v5882, 4
      %v5889 = vshrl.u32 %v5841, 16
      %v5891 = vrot.slane %v5889, 7
      %v5892 = vshll.u32 %v5841, 16
      %v5894 = vor.u32 %v5891, %v5892
      %v5895 = vrot.slane %v5891, 4
      %v5897 = vshrl.u32 %v5842, 16
      %v5899 = vrot.slane %v5897, 7
      %v5900 = vshll.u32 %v5842, 16
      %v5902 = vor.u32 %v5899, %v5900
      %v5903 = vsel %vm422, %v5895, %v5902
      %v5904 = vrot.slane %v5899, 4
      %v5906 = vshrl.u32 %v5843, 16
      %v5908 = vrot.slane %v5906, 7
      %v5909 = vshll.u32 %v5843, 16
      %v5911 = vor.u32 %v5908, %v5909
      %v5912 = vrot.slane %v5908, 4
      %v5914 = vshrl.u32 %v5844, 16
      %v5916 = vrot.slane %v5914, 7
      %v5917 = vshll.u32 %v5844, 16
      %v5919 = vor.u32 %v5916, %v5917
      %v5920 = vsel %vm422, %v5912, %v5919
      %v5921 = vrot.slane %v5916, 4
      %v5923 = vshrl.u32 %v5845, 16
      %v5925 = vrot.slane %v5923, 7
      %v5926 = vshll.u32 %v5845, 16
      %v5928 = vor.u32 %v5925, %v5926
      %v5929 = vrot.slane %v5925, 4
      %v5931 = vshrl.u32 %v5846, 16
      %v5933 = vrot.slane %v5931, 7
      %v5934 = vshll.u32 %v5846, 16
      %v5936 = vor.u32 %v5933, %v5934
      %v5937 = vsel %vm422, %v5929, %v5936
      %v5938 = vrot.slane %v5933, 4
      %v5940 = vshrl.u32 %v5847, 16
      %v5942 = vrot.slane %v5940, 7
      %v5943 = vshll.u32 %v5847, 16
      %v5945 = vor.u32 %v5942, %v5943
      %v5946 = vrot.slane %v5942, 4
      %v5948 = vshrl.u32 %v5848, 16
      %v5950 = vrot.slane %v5948, 7
      %v5951 = vshll.u32 %v5848, 16
      %v5953 = vor.u32 %v5950, %v5951
      %v5954 = vsel %vm422, %v5946, %v5953
      %v5955 = vrot.slane %v5950, 4
      %v5957 = vshrl.u32 %v5849, 16
      %v5959 = vrot.slane %v5957, 7
      %v5960 = vshll.u32 %v5849, 16
      %v5962 = vor.u32 %v5959, %v5960
      %v5963 = vrot.slane %v5959, 4
      %v5965 = vshrl.u32 %v5850, 16
      %v5967 = vrot.slane %v5965, 7
      %v5968 = vshll.u32 %v5850, 16
      %v5970 = vor.u32 %v5967, %v5968
      %v5971 = vsel %vm422, %v5963, %v5970
      %v5972 = vrot.slane %v5967, 4
      %v5974 = vshrl.u32 %v5851, 16
      %v5976 = vrot.slane %v5974, 7
      %v5977 = vshll.u32 %v5851, 16
      %v5979 = vor.u32 %v5976, %v5977
      %v5980 = vrot.slane %v5976, 4
      %v5982 = vshrl.u32 %v5852, 16
      %v5984 = vrot.slane %v5982, 7
      %v5985 = vshll.u32 %v5852, 16
      %v5987 = vor.u32 %v5984, %v5985
      %v5988 = vsel %vm422, %v5980, %v5987
      %v5989 = vrot.slane %v5984, 4
      %v5991 = vshrl.u32 %v5853, 16
      %v5993 = vrot.slane %v5991, 7
      %v5994 = vshll.u32 %v5853, 16
      %v5996 = vor.u32 %v5993, %v5994
      %v5997 = vrot.slane %v5993, 4
      %v5999 = vshrl.u32 %v5854, 16
      %v6001 = vrot.slane %v5999, 7
      %v6002 = vshll.u32 %v5854, 16
      %v6004 = vor.u32 %v6001, %v6002
      %v6005 = vsel %vm422, %v5997, %v6004
      %v6006 = vrot.slane %v6001, 4
      %v6008 = vshrl.u32 %v5855, 16
      %v6010 = vrot.slane %v6008, 7
      %v6011 = vshll.u32 %v5855, 16
      %v6013 = vor.u32 %v6010, %v6011
      %v6014 = vrot.slane %v6010, 4
      %v6016 = vshrl.u32 %v5856, 16
      %v6018 = vrot.slane %v6016, 7
      %v6019 = vshll.u32 %v5856, 16
      %v6021 = vor.u32 %v6018, %v6019
      %v6022 = vsel %vm422, %v6014, %v6021
      %v6023 = vrot.slane %v6018, 4
      %v6025 = vshrl.u32 %v5857, 16
      %v6027 = vrot.slane %v6025, 7
      %v6028 = vshll.u32 %v5857, 16
      %v6030 = vor.u32 %v6027, %v6028
      %v6031 = vrot.slane %v6027, 4
      %v6033 = vshrl.u32 %v5858, 16
      %v6035 = vrot.slane %v6033, 7
      %v6036 = vshll.u32 %v5858, 16
      %v6038 = vor.u32 %v6035, %v6036
      %v6039 = vsel %vm422, %v6031, %v6038
      %v6040 = vrot.slane %v6035, 4
      %v6042 = vshrl.u32 %v5859, 16
      %v6044 = vrot.slane %v6042, 7
      %v6045 = vshll.u32 %v5859, 16
      %v6047 = vor.u32 %v6044, %v6045
      %v6048 = vrot.slane %v6044, 4
      %v6050 = vshrl.u32 %v5860, 16
      %v6052 = vrot.slane %v6050, 7
      %v6053 = vshll.u32 %v5860, 16
      %v6055 = vor.u32 %v6052, %v6053
      %v6056 = vsel %vm422, %v6048, %v6055
      %v6057 = vrot.slane %v6052, 4
      %v6059 = vshrl.u32 %v5861, 16
      %v6061 = vrot.slane %v6059, 7
      %v6062 = vshll.u32 %v5861, 16
      %v6064 = vor.u32 %v6061, %v6062
      %v6065 = vrot.slane %v6061, 4
      %v6067 = vshrl.u32 %v5862, 16
      %v6069 = vrot.slane %v6067, 7
      %v6070 = vshll.u32 %v5862, 16
      %v6072 = vor.u32 %v6069, %v6070
      %v6073 = vsel %vm422, %v6065, %v6072
      %v6074 = vrot.slane %v6069, 4
      %v6076 = vshrl.u32 %v5863, 16
      %v6078 = vrot.slane %v6076, 7
      %v6079 = vshll.u32 %v5863, 16
      %v6081 = vor.u32 %v6078, %v6079
      %v6082 = vrot.slane %v6078, 4
      %v6084 = vshrl.u32 %v5864, 16
      %v6086 = vrot.slane %v6084, 7
      %v6087 = vshll.u32 %v5864, 16
      %v6089 = vor.u32 %v6086, %v6087
      %v6090 = vsel %vm422, %v6082, %v6089
      %v6091 = vrot.slane %v6086, 4
      %v6093 = vshrl.u32 %v5865, 16
      %v6095 = vrot.slane %v6093, 7
      %v6096 = vshll.u32 %v5865, 16
      %v6098 = vor.u32 %v6095, %v6096
      %v6099 = vrot.slane %v6095, 4
      %v6101 = vshrl.u32 %v5866, 16
      %v6103 = vrot.slane %v6101, 7
      %v6104 = vshll.u32 %v5866, 16
      %v6106 = vor.u32 %v6103, %v6104
      %v6107 = vsel %vm422, %v6099, %v6106
      %v6108 = vrot.slane %v6103, 4
      %v6110 = vshrl.u32 %v5867, 16
      %v6112 = vrot.slane %v6110, 7
      %v6113 = vshll.u32 %v5867, 16
      %v6115 = vor.u32 %v6112, %v6113
      %v6116 = vrot.slane %v6112, 4
      %v6118 = vshrl.u32 %v5868, 16
      %v6120 = vrot.slane %v6118, 7
      %v6121 = vshll.u32 %v5868, 16
      %v6123 = vor.u32 %v6120, %v6121
      %v6124 = vsel %vm422, %v6116, %v6123
      %v6125 = vrot.slane %v6120, 4
      %v6127 = vshrl.u32 %v5869, 16
      %v6129 = vrot.slane %v6127, 7
      %v6130 = vshll.u32 %v5869, 16
      %v6132 = vor.u32 %v6129, %v6130
      %v6133 = vrot.slane %v6129, 4
      %v6135 = vshrl.u32 %v5870, 16
      %v6137 = vrot.slane %v6135, 7
      %v6138 = vshll.u32 %v5870, 16
      %v6140 = vor.u32 %v6137, %v6138
      %v6141 = vsel %vm422, %v6133, %v6140
      %v6142 = vrot.slane %v6137, 4
      %v6191 = vsel %vm744, %v5877, %v2774
      %6192 = vst [vmem:[%s287] sm:$0xf] %v6191
      %6193 = vst [vmem:[%s287 + $0x4] sm:$0xf] %v5886
      %v6194 = vld [vmem:[%s287 + $0x8] sm:$0x1]
      %v6195 = vsel %vm290, %v5887, %v6194
      %6196 = vst [vmem:[%s287 + $0x8] sm:$0x1] %v6195
      %v6197 = vld [vmem:[%s287 + $0xc] sm:$0xf]
      %v6198 = vsel %vm744, %v5894, %v6197
      %6199 = vst [vmem:[%s287 + $0xc] sm:$0xf] %v6198
      %6200 = vst [vmem:[%s287 + $0x10] sm:$0xf] %v5903
      %v6201 = vld [vmem:[%s287 + $0x14] sm:$0x1]
      %v6202 = vsel %vm290, %v5904, %v6201
      %6203 = vst [vmem:[%s287 + $0x14] sm:$0x1] %v6202
      %v6204 = vld [vmem:[%s287 + $0x18] sm:$0xf]
      %v6205 = vsel %vm744, %v5911, %v6204
      %6206 = vst [vmem:[%s287 + $0x18] sm:$0xf] %v6205
      %6207 = vst [vmem:[%s287 + $0x1c] sm:$0xf] %v5920
      %v6208 = vld [vmem:[%s287 + $0x20] sm:$0x1]
      %v6209 = vsel %vm290, %v5921, %v6208
      %6210 = vst [vmem:[%s287 + $0x20] sm:$0x1] %v6209
      %v6211 = vld [vmem:[%s287 + $0x24] sm:$0xf]
      %v6212 = vsel %vm744, %v5928, %v6211
      %6213 = vst [vmem:[%s287 + $0x24] sm:$0xf] %v6212
      %6214 = vst [vmem:[%s287 + $0x28] sm:$0xf] %v5937
      %v6215 = vld [vmem:[%s287 + $0x2c] sm:$0x1]
      %v6216 = vsel %vm290, %v5938, %v6215
      %6217 = vst [vmem:[%s287 + $0x2c] sm:$0x1] %v6216
      %v6218 = vld [vmem:[%s287 + $0x30] sm:$0xf]
      %v6219 = vsel %vm744, %v5945, %v6218
      %6220 = vst [vmem:[%s287 + $0x30] sm:$0xf] %v6219
      %6221 = vst [vmem:[%s287 + $0x34] sm:$0xf] %v5954
      %v6222 = vld [vmem:[%s287 + $0x38] sm:$0x1]
      %v6223 = vsel %vm290, %v5955, %v6222
      %6224 = vst [vmem:[%s287 + $0x38] sm:$0x1] %v6223
      %v6225 = vld [vmem:[%s287 + $0x3c] sm:$0xf]
      %v6226 = vsel %vm744, %v5962, %v6225
      %6227 = vst [vmem:[%s287 + $0x3c] sm:$0xf] %v6226
      %6228 = vst [vmem:[%s287 + $0x40] sm:$0xf] %v5971
      %v6229 = vld [vmem:[%s287 + $0x44] sm:$0x1]
      %v6230 = vsel %vm290, %v5972, %v6229
      %6231 = vst [vmem:[%s287 + $0x44] sm:$0x1] %v6230
      %v6232 = vld [vmem:[%s287 + $0x48] sm:$0xf]
      %v6233 = vsel %vm744, %v5979, %v6232
      %6234 = vst [vmem:[%s287 + $0x48] sm:$0xf] %v6233
      %6235 = vst [vmem:[%s287 + $0x4c] sm:$0xf] %v5988
      %v6236 = vld [vmem:[%s287 + $0x50] sm:$0x1]
      %v6237 = vsel %vm290, %v5989, %v6236
      %6238 = vst [vmem:[%s287 + $0x50] sm:$0x1] %v6237
      %v6239 = vld [vmem:[%s287 + $0x54] sm:$0xf]
      %v6240 = vsel %vm744, %v5996, %v6239
      %6241 = vst [vmem:[%s287 + $0x54] sm:$0xf] %v6240
      %6242 = vst [vmem:[%s287 + $0x58] sm:$0xf] %v6005
      %v6243 = vld [vmem:[%s287 + $0x5c] sm:$0x1]
      %v6244 = vsel %vm290, %v6006, %v6243
      %6245 = vst [vmem:[%s287 + $0x5c] sm:$0x1] %v6244
      %v6246 = vld [vmem:[%s287 + $0x60] sm:$0xf]
      %v6247 = vsel %vm744, %v6013, %v6246
      %6248 = vst [vmem:[%s287 + $0x60] sm:$0xf] %v6247
      %6249 = vst [vmem:[%s287 + $0x64] sm:$0xf] %v6022
      %v6250 = vld [vmem:[%s287 + $0x68] sm:$0x1]
      %v6251 = vsel %vm290, %v6023, %v6250
      %6252 = vst [vmem:[%s287 + $0x68] sm:$0x1] %v6251
      %v6253 = vld [vmem:[%s287 + $0x6c] sm:$0xf]
      %v6254 = vsel %vm744, %v6030, %v6253
      %6255 = vst [vmem:[%s287 + $0x6c] sm:$0xf] %v6254
      %6256 = vst [vmem:[%s287 + $0x70] sm:$0xf] %v6039
      %v6257 = vld [vmem:[%s287 + $0x74] sm:$0x1]
      %v6258 = vsel %vm290, %v6040, %v6257
      %6259 = vst [vmem:[%s287 + $0x74] sm:$0x1] %v6258
      %v6260 = vld [vmem:[%s287 + $0x78] sm:$0xf]
      %v6261 = vsel %vm744, %v6047, %v6260
      %6262 = vst [vmem:[%s287 + $0x78] sm:$0xf] %v6261
      %6263 = vst [vmem:[%s287 + $0x7c] sm:$0xf] %v6056
      %v6264 = vld [vmem:[%s287 + $0x80] sm:$0x1]
      %v6265 = vsel %vm290, %v6057, %v6264
      %6266 = vst [vmem:[%s287 + $0x80] sm:$0x1] %v6265
      %v6267 = vld [vmem:[%s287 + $0x84] sm:$0xf]
      %v6268 = vsel %vm744, %v6064, %v6267
      %6269 = vst [vmem:[%s287 + $0x84] sm:$0xf] %v6268
      %6270 = vst [vmem:[%s287 + $0x88] sm:$0xf] %v6073
      %v6271 = vld [vmem:[%s287 + $0x8c] sm:$0x1]
      %v6272 = vsel %vm290, %v6074, %v6271
      %6273 = vst [vmem:[%s287 + $0x8c] sm:$0x1] %v6272
      %v6274 = vld [vmem:[%s287 + $0x90] sm:$0xf]
      %v6275 = vsel %vm744, %v6081, %v6274
      %6276 = vst [vmem:[%s287 + $0x90] sm:$0xf] %v6275
      %6277 = vst [vmem:[%s287 + $0x94] sm:$0xf] %v6090
      %v6278 = vld [vmem:[%s287 + $0x98] sm:$0x1]
      %v6279 = vsel %vm290, %v6091, %v6278
      %6280 = vst [vmem:[%s287 + $0x98] sm:$0x1] %v6279
      %v6281 = vld [vmem:[%s287 + $0x9c] sm:$0xf]
      %v6282 = vsel %vm744, %v6098, %v6281
      %6283 = vst [vmem:[%s287 + $0x9c] sm:$0xf] %v6282
      %6284 = vst [vmem:[%s287 + $0xa0] sm:$0xf] %v6107
      %v6285 = vld [vmem:[%s287 + $0xa4] sm:$0x1]
      %v6286 = vsel %vm290, %v6108, %v6285
      %6287 = vst [vmem:[%s287 + $0xa4] sm:$0x1] %v6286
      %v6288 = vld [vmem:[%s287 + $0xa8] sm:$0xf]
      %v6289 = vsel %vm744, %v6115, %v6288
      %6290 = vst [vmem:[%s287 + $0xa8] sm:$0xf] %v6289
      %6291 = vst [vmem:[%s287 + $0xac] sm:$0xf] %v6124
      %v6292 = vld [vmem:[%s287 + $0xb0] sm:$0x1]
      %v6293 = vsel %vm290, %v6125, %v6292
      %6294 = vst [vmem:[%s287 + $0xb0] sm:$0x1] %v6293
      %v6295 = vld [vmem:[%s287 + $0xb4] sm:$0xf]
      %v6296 = vsel %vm744, %v6132, %v6295
      %6297 = vst [vmem:[%s287 + $0xb4] sm:$0xf] %v6296
      %6298 = vst [vmem:[%s287 + $0xb8] sm:$0xf] %v6141
      %v6299 = vld [vmem:[%s287 + $0xbc] sm:$0x1]
      %v6300 = vsel %vm290, %v6142, %v6299
      %6301 = vst [vmem:[%s287 + $0xbc] sm:$0x1] %v6300
      %v6302 = vld [vmem:[#allocation2] sm:$0xf]
      %v6303 = vld [vmem:[#allocation2 + $0x4] sm:$0xf]
      %v6304 = vld [vmem:[#allocation2 + $0xc] sm:$0xf]
      %v6305 = vld [vmem:[#allocation2 + $0x10] sm:$0xf]
      %v6306 = vld [vmem:[#allocation2 + $0x18] sm:$0xf]
      %v6307 = vld [vmem:[#allocation2 + $0x1c] sm:$0xf]
      %v6308 = vld [vmem:[#allocation2 + $0x24] sm:$0xf]
      %v6309 = vld [vmem:[#allocation2 + $0x28] sm:$0xf]
      %v6310 = vld [vmem:[#allocation2 + $0x30] sm:$0xf]
      %v6311 = vld [vmem:[#allocation2 + $0x34] sm:$0xf]
      %v6312 = vld [vmem:[#allocation2 + $0x3c] sm:$0xf]
      %v6313 = vld [vmem:[#allocation2 + $0x40] sm:$0xf]
      %v6314 = vld [vmem:[#allocation2 + $0x48] sm:$0xf]
      %v6315 = vld [vmem:[#allocation2 + $0x4c] sm:$0xf]
      %v6316 = vld [vmem:[#allocation2 + $0x54] sm:$0xf]
      %v6317 = vld [vmem:[#allocation2 + $0x58] sm:$0xf]
      %v6318 = vld [vmem:[#allocation2 + $0x60] sm:$0xf]
      %v6319 = vld [vmem:[#allocation2 + $0x64] sm:$0xf]
      %v6320 = vld [vmem:[#allocation2 + $0x6c] sm:$0xf]
      %v6321 = vld [vmem:[#allocation2 + $0x70] sm:$0xf]
      %v6322 = vld [vmem:[#allocation2 + $0x78] sm:$0xf]
      %v6323 = vld [vmem:[#allocation2 + $0x7c] sm:$0xf]
      %v6324 = vld [vmem:[#allocation2 + $0x84] sm:$0xf]
      %v6325 = vld [vmem:[#allocation2 + $0x88] sm:$0xf]
      %v6326 = vld [vmem:[#allocation2 + $0x90] sm:$0xf]
      %v6327 = vld [vmem:[#allocation2 + $0x94] sm:$0xf]
      %v6328 = vld [vmem:[#allocation2 + $0x9c] sm:$0xf]
      %v6329 = vld [vmem:[#allocation2 + $0xa0] sm:$0xf]
      %v6330 = vld [vmem:[#allocation2 + $0xa8] sm:$0xf]
      %v6331 = vld [vmem:[#allocation2 + $0xac] sm:$0xf]
      %v6332 = vld [vmem:[#allocation2 + $0xb4] sm:$0xf]
      %v6333 = vld [vmem:[#allocation2 + $0xb8] sm:$0xf]
      %v6334 = vld [vmem:[%s4] sm:$0xf]
      %v6335 = vld [vmem:[%s4 + $0x4] sm:$0xf]
      %v6336 = vld [vmem:[%s4 + $0x8] sm:$0xf]
      %v6337 = vld [vmem:[%s4 + $0xc] sm:$0xf]
      %v6338 = vld [vmem:[%s4 + $0x10] sm:$0xf]
      %v6339 = vld [vmem:[%s4 + $0x14] sm:$0xf]
      %v6340 = vld [vmem:[%s4 + $0x18] sm:$0xf]
      %v6341 = vld [vmem:[%s4 + $0x1c] sm:$0xf]
      %v6342 = vld [vmem:[%s4 + $0x20] sm:$0xf]
      %v6343 = vld [vmem:[%s4 + $0x24] sm:$0xf]
      %v6344 = vld [vmem:[%s4 + $0x28] sm:$0xf]
      %v6345 = vld [vmem:[%s4 + $0x2c] sm:$0xf]
      %v6346 = vld [vmem:[%s4 + $0x30] sm:$0xf]
      %v6347 = vld [vmem:[%s4 + $0x34] sm:$0xf]
      %v6348 = vld [vmem:[%s4 + $0x38] sm:$0xf]
      %v6349 = vld [vmem:[%s4 + $0x3c] sm:$0xf]
      %v6350 = vld [vmem:[#allocation2 + $0x8] sm:$0x1]
      %v6351 = vld [vmem:[#allocation2 + $0x14] sm:$0x1]
      %v6352 = vld [vmem:[#allocation2 + $0x20] sm:$0x1]
      %v6353 = vld [vmem:[#allocation2 + $0x2c] sm:$0x1]
      %v6354 = vld [vmem:[#allocation2 + $0x38] sm:$0x1]
      %v6355 = vld [vmem:[#allocation2 + $0x44] sm:$0x1]
      %v6356 = vld [vmem:[#allocation2 + $0x50] sm:$0x1]
      %v6357 = vld [vmem:[#allocation2 + $0x5c] sm:$0x1]
      %v6358 = vld [vmem:[#allocation2 + $0x68] sm:$0x1]
      %v6359 = vld [vmem:[#allocation2 + $0x74] sm:$0x1]
      %v6360 = vld [vmem:[#allocation2 + $0x80] sm:$0x1]
      %v6361 = vld [vmem:[#allocation2 + $0x8c] sm:$0x1]
      %v6362 = vld [vmem:[#allocation2 + $0x98] sm:$0x1]
      %v6363 = vld [vmem:[#allocation2 + $0xa4] sm:$0x1]
      %v6364 = vld [vmem:[#allocation2 + $0xb0] sm:$0x1]
      %v6365 = vld [vmem:[#allocation2 + $0xbc] sm:$0x1]
      %v6367 = vshrl.u32 %v6302, 16
      %v6369 = vrot.slane %v6367, 4
      %v6370 = vshll.u32 %v6302, 16
      %v6372 = vrot.slane %v6370, 5
      %v6373 = vor.u32 %v6369, %v6372
      %v6374 = vrot.slane %v6373, 4
      %v6376 = vshll.u32 %v6303, 16
      %v6378 = vrot.slane %v6376, 5
      %v6379 = vsel %vm923, %v6374, %v6378
      %v6380 = vshrl.u32 %v6303, 16
      %v6382 = vrot.slane %v6380, 4
      %v6383 = vor.u32 %v6382, %v6378
      %v6384 = vrot.slane %v6383, 4
      %v6386 = vshll.u32 %v6350, 16
      %v6388 = vrot.slane %v6386, 5
      %v6389 = vsel %vm923, %v6384, %v6388
      %v6391 = vshrl.u32 %v6304, 16
      %v6393 = vrot.slane %v6391, 4
      %v6394 = vshll.u32 %v6304, 16
      %v6396 = vrot.slane %v6394, 5
      %v6397 = vor.u32 %v6393, %v6396
      %v6398 = vrot.slane %v6397, 4
      %v6400 = vshll.u32 %v6305, 16
      %v6402 = vrot.slane %v6400, 5
      %v6403 = vsel %vm923, %v6398, %v6402
      %v6404 = vshrl.u32 %v6305, 16
      %v6406 = vrot.slane %v6404, 4
      %v6407 = vor.u32 %v6406, %v6402
      %v6408 = vrot.slane %v6407, 4
      %v6410 = vshll.u32 %v6351, 16
      %v6412 = vrot.slane %v6410, 5
      %v6413 = vsel %vm923, %v6408, %v6412
      %v6415 = vshrl.u32 %v6306, 16
      %v6417 = vrot.slane %v6415, 4
      %v6418 = vshll.u32 %v6306, 16
      %v6420 = vrot.slane %v6418, 5
      %v6421 = vor.u32 %v6417, %v6420
      %v6422 = vrot.slane %v6421, 4
      %v6424 = vshll.u32 %v6307, 16
      %v6426 = vrot.slane %v6424, 5
      %v6427 = vsel %vm923, %v6422, %v6426
      %v6428 = vshrl.u32 %v6307, 16
      %v6430 = vrot.slane %v6428, 4
      %v6431 = vor.u32 %v6430, %v6426
      %v6432 = vrot.slane %v6431, 4
      %v6434 = vshll.u32 %v6352, 16
      %v6436 = vrot.slane %v6434, 5
      %v6437 = vsel %vm923, %v6432, %v6436
      %v6439 = vshrl.u32 %v6308, 16
      %v6441 = vrot.slane %v6439, 4
      %v6442 = vshll.u32 %v6308, 16
      %v6444 = vrot.slane %v6442, 5
      %v6445 = vor.u32 %v6441, %v6444
      %v6446 = vrot.slane %v6445, 4
      %v6448 = vshll.u32 %v6309, 16
      %v6450 = vrot.slane %v6448, 5
      %v6451 = vsel %vm923, %v6446, %v6450
      %v6452 = vshrl.u32 %v6309, 16
      %v6454 = vrot.slane %v6452, 4
      %v6455 = vor.u32 %v6454, %v6450
      %v6456 = vrot.slane %v6455, 4
      %v6458 = vshll.u32 %v6353, 16
      %v6460 = vrot.slane %v6458, 5
      %v6461 = vsel %vm923, %v6456, %v6460
      %v6463 = vshrl.u32 %v6310, 16
      %v6465 = vrot.slane %v6463, 4
      %v6466 = vshll.u32 %v6310, 16
      %v6468 = vrot.slane %v6466, 5
      %v6469 = vor.u32 %v6465, %v6468
      %v6470 = vrot.slane %v6469, 4
      %v6472 = vshll.u32 %v6311, 16
      %v6474 = vrot.slane %v6472, 5
      %v6475 = vsel %vm923, %v6470, %v6474
      %v6476 = vshrl.u32 %v6311, 16
      %v6478 = vrot.slane %v6476, 4
      %v6479 = vor.u32 %v6478, %v6474
      %v6480 = vrot.slane %v6479, 4
      %v6482 = vshll.u32 %v6354, 16
      %v6484 = vrot.slane %v6482, 5
      %v6485 = vsel %vm923, %v6480, %v6484
      %v6487 = vshrl.u32 %v6312, 16
      %v6489 = vrot.slane %v6487, 4
      %v6490 = vshll.u32 %v6312, 16
      %v6492 = vrot.slane %v6490, 5
      %v6493 = vor.u32 %v6489, %v6492
      %v6494 = vrot.slane %v6493, 4
      %v6496 = vshll.u32 %v6313, 16
      %v6498 = vrot.slane %v6496, 5
      %v6499 = vsel %vm923, %v6494, %v6498
      %v6500 = vshrl.u32 %v6313, 16
      %v6502 = vrot.slane %v6500, 4
      %v6503 = vor.u32 %v6502, %v6498
      %v6504 = vrot.slane %v6503, 4
      %v6506 = vshll.u32 %v6355, 16
      %v6508 = vrot.slane %v6506, 5
      %v6509 = vsel %vm923, %v6504, %v6508
      %v6511 = vshrl.u32 %v6314, 16
      %v6513 = vrot.slane %v6511, 4
      %v6514 = vshll.u32 %v6314, 16
      %v6516 = vrot.slane %v6514, 5
      %v6517 = vor.u32 %v6513, %v6516
      %v6518 = vrot.slane %v6517, 4
      %v6520 = vshll.u32 %v6315, 16
      %v6522 = vrot.slane %v6520, 5
      %v6523 = vsel %vm923, %v6518, %v6522
      %v6524 = vshrl.u32 %v6315, 16
      %v6526 = vrot.slane %v6524, 4
      %v6527 = vor.u32 %v6526, %v6522
      %v6528 = vrot.slane %v6527, 4
      %v6530 = vshll.u32 %v6356, 16
      %v6532 = vrot.slane %v6530, 5
      %v6533 = vsel %vm923, %v6528, %v6532
      %v6535 = vshrl.u32 %v6316, 16
      %v6537 = vrot.slane %v6535, 4
      %v6538 = vshll.u32 %v6316, 16
      %v6540 = vrot.slane %v6538, 5
      %v6541 = vor.u32 %v6537, %v6540
      %v6542 = vrot.slane %v6541, 4
      %v6544 = vshll.u32 %v6317, 16
      %v6546 = vrot.slane %v6544, 5
      %v6547 = vsel %vm923, %v6542, %v6546
      %v6548 = vshrl.u32 %v6317, 16
      %v6550 = vrot.slane %v6548, 4
      %v6551 = vor.u32 %v6550, %v6546
      %v6552 = vrot.slane %v6551, 4
      %v6554 = vshll.u32 %v6357, 16
      %v6556 = vrot.slane %v6554, 5
      %v6557 = vsel %vm923, %v6552, %v6556
      %v6559 = vshrl.u32 %v6318, 16
      %v6561 = vrot.slane %v6559, 4
      %v6562 = vshll.u32 %v6318, 16
      %v6564 = vrot.slane %v6562, 5
      %v6565 = vor.u32 %v6561, %v6564
      %v6566 = vrot.slane %v6565, 4
      %v6568 = vshll.u32 %v6319, 16
      %v6570 = vrot.slane %v6568, 5
      %v6571 = vsel %vm923, %v6566, %v6570
      %v6572 = vshrl.u32 %v6319, 16
      %v6574 = vrot.slane %v6572, 4
      %v6575 = vor.u32 %v6574, %v6570
      %v6576 = vrot.slane %v6575, 4
      %v6578 = vshll.u32 %v6358, 16
      %v6580 = vrot.slane %v6578, 5
      %v6581 = vsel %vm923, %v6576, %v6580
      %v6583 = vshrl.u32 %v6320, 16
      %v6585 = vrot.slane %v6583, 4
      %v6586 = vshll.u32 %v6320, 16
      %v6588 = vrot.slane %v6586, 5
      %v6589 = vor.u32 %v6585, %v6588
      %v6590 = vrot.slane %v6589, 4
      %v6592 = vshll.u32 %v6321, 16
      %v6594 = vrot.slane %v6592, 5
      %v6595 = vsel %vm923, %v6590, %v6594
      %v6596 = vshrl.u32 %v6321, 16
      %v6598 = vrot.slane %v6596, 4
      %v6599 = vor.u32 %v6598, %v6594
      %v6600 = vrot.slane %v6599, 4
      %v6602 = vshll.u32 %v6359, 16
      %v6604 = vrot.slane %v6602, 5
      %v6605 = vsel %vm923, %v6600, %v6604
      %v6607 = vshrl.u32 %v6322, 16
      %v6609 = vrot.slane %v6607, 4
      %v6610 = vshll.u32 %v6322, 16
      %v6612 = vrot.slane %v6610, 5
      %v6613 = vor.u32 %v6609, %v6612
      %v6614 = vrot.slane %v6613, 4
      %v6616 = vshll.u32 %v6323, 16
      %v6618 = vrot.slane %v6616, 5
      %v6619 = vsel %vm923, %v6614, %v6618
      %v6620 = vshrl.u32 %v6323, 16
      %v6622 = vrot.slane %v6620, 4
      %v6623 = vor.u32 %v6622, %v6618
      %v6624 = vrot.slane %v6623, 4
      %v6626 = vshll.u32 %v6360, 16
      %v6628 = vrot.slane %v6626, 5
      %v6629 = vsel %vm923, %v6624, %v6628
      %v6631 = vshrl.u32 %v6324, 16
      %v6633 = vrot.slane %v6631, 4
      %v6634 = vshll.u32 %v6324, 16
      %v6636 = vrot.slane %v6634, 5
      %v6637 = vor.u32 %v6633, %v6636
      %v6638 = vrot.slane %v6637, 4
      %v6640 = vshll.u32 %v6325, 16
      %v6642 = vrot.slane %v6640, 5
      %v6643 = vsel %vm923, %v6638, %v6642
      %v6644 = vshrl.u32 %v6325, 16
      %v6646 = vrot.slane %v6644, 4
      %v6647 = vor.u32 %v6646, %v6642
      %v6648 = vrot.slane %v6647, 4
      %v6650 = vshll.u32 %v6361, 16
      %v6652 = vrot.slane %v6650, 5
      %v6653 = vsel %vm923, %v6648, %v6652
      %v6655 = vshrl.u32 %v6326, 16
      %v6657 = vrot.slane %v6655, 4
      %v6658 = vshll.u32 %v6326, 16
      %v6660 = vrot.slane %v6658, 5
      %v6661 = vor.u32 %v6657, %v6660
      %v6662 = vrot.slane %v6661, 4
      %v6664 = vshll.u32 %v6327, 16
      %v6666 = vrot.slane %v6664, 5
      %v6667 = vsel %vm923, %v6662, %v6666
      %v6668 = vshrl.u32 %v6327, 16
      %v6670 = vrot.slane %v6668, 4
      %v6671 = vor.u32 %v6670, %v6666
      %v6672 = vrot.slane %v6671, 4
      %v6674 = vshll.u32 %v6362, 16
      %v6676 = vrot.slane %v6674, 5
      %v6677 = vsel %vm923, %v6672, %v6676
      %v6679 = vshrl.u32 %v6328, 16
      %v6681 = vrot.slane %v6679, 4
      %v6682 = vshll.u32 %v6328, 16
      %v6684 = vrot.slane %v6682, 5
      %v6685 = vor.u32 %v6681, %v6684
      %v6686 = vrot.slane %v6685, 4
      %v6688 = vshll.u32 %v6329, 16
      %v6690 = vrot.slane %v6688, 5
      %v6691 = vsel %vm923, %v6686, %v6690
      %v6692 = vshrl.u32 %v6329, 16
      %v6694 = vrot.slane %v6692, 4
      %v6695 = vor.u32 %v6694, %v6690
      %v6696 = vrot.slane %v6695, 4
      %v6698 = vshll.u32 %v6363, 16
      %v6700 = vrot.slane %v6698, 5
      %v6701 = vsel %vm923, %v6696, %v6700
      %v6703 = vshrl.u32 %v6330, 16
      %v6705 = vrot.slane %v6703, 4
      %v6706 = vshll.u32 %v6330, 16
      %v6708 = vrot.slane %v6706, 5
      %v6709 = vor.u32 %v6705, %v6708
      %v6710 = vrot.slane %v6709, 4
      %v6712 = vshll.u32 %v6331, 16
      %v6714 = vrot.slane %v6712, 5
      %v6715 = vsel %vm923, %v6710, %v6714
      %v6716 = vshrl.u32 %v6331, 16
      %v6718 = vrot.slane %v6716, 4
      %v6719 = vor.u32 %v6718, %v6714
      %v6720 = vrot.slane %v6719, 4
      %v6722 = vshll.u32 %v6364, 16
      %v6724 = vrot.slane %v6722, 5
      %v6725 = vsel %vm923, %v6720, %v6724
      %v6727 = vshrl.u32 %v6332, 16
      %v6729 = vrot.slane %v6727, 4
      %v6730 = vshll.u32 %v6332, 16
      %v6732 = vrot.slane %v6730, 5
      %v6733 = vor.u32 %v6729, %v6732
      %v6734 = vrot.slane %v6733, 4
      %v6736 = vshll.u32 %v6333, 16
      %v6738 = vrot.slane %v6736, 5
      %v6739 = vsel %vm923, %v6734, %v6738
      %v6740 = vshrl.u32 %v6333, 16
      %v6742 = vrot.slane %v6740, 4
      %v6743 = vor.u32 %v6742, %v6738
      %v6744 = vrot.slane %v6743, 4
      %v6746 = vshll.u32 %v6365, 16
      %v6748 = vrot.slane %v6746, 5
      %v6749 = vsel %vm923, %v6744, %v6748
      %s6750 = scalar_lea.vmem %s4, 64
      %v6751 = vld [vmem:[%s6750] sm:$0xf]
      %v6752 = vld [vmem:[%s6750 + $0x4] sm:$0xf]
      %v6753 = vld [vmem:[%s6750 + $0x8] sm:$0xf]
      %v6754 = vld [vmem:[%s6750 + $0xc] sm:$0xf]
      %v6755 = vld [vmem:[%s6750 + $0x10] sm:$0xf]
      %v6756 = vld [vmem:[%s6750 + $0x14] sm:$0xf]
      %v6757 = vld [vmem:[%s6750 + $0x18] sm:$0xf]
      %v6758 = vld [vmem:[%s6750 + $0x1c] sm:$0xf]
      %v6759 = vld [vmem:[%s6750 + $0x20] sm:$0xf]
      %v6760 = vld [vmem:[%s6750 + $0x24] sm:$0xf]
      %v6761 = vld [vmem:[%s6750 + $0x28] sm:$0xf]
      %v6762 = vld [vmem:[%s6750 + $0x2c] sm:$0xf]
      %v6763 = vld [vmem:[%s6750 + $0x30] sm:$0xf]
      %v6764 = vld [vmem:[%s6750 + $0x34] sm:$0xf]
      %v6765 = vld [vmem:[%s6750 + $0x38] sm:$0xf]
      %v6766 = vld [vmem:[%s6750 + $0x3c] sm:$0xf]
      %v6767 = vunpack.c.l.b16 %v6379
      %v6768 = vunpack.c.l.b16 %v6389
      %v6769 = vunpack.c.l.b16 %v6403
      %v6770 = vunpack.c.l.b16 %v6413
      %v6771 = vunpack.c.l.b16 %v6427
      %v6772 = vunpack.c.l.b16 %v6437
      %v6773 = vunpack.c.l.b16 %v6451
      %v6774 = vunpack.c.l.b16 %v6461
      %v6775 = vunpack.c.l.b16 %v6475
      %v6776 = vunpack.c.l.b16 %v6485
      %v6777 = vunpack.c.l.b16 %v6499
      %v6778 = vunpack.c.l.b16 %v6509
      %v6779 = vunpack.c.l.b16 %v6523
      %v6780 = vunpack.c.l.b16 %v6533
      %v6781 = vunpack.c.l.b16 %v6547
      %v6782 = vunpack.c.l.b16 %v6557
      %v6783 = vunpack.c.l.b16 %v6571
      %v6784 = vunpack.c.l.b16 %v6581
      %v6785 = vunpack.c.l.b16 %v6595
      %v6786 = vunpack.c.l.b16 %v6605
      %v6787 = vunpack.c.l.b16 %v6619
      %v6788 = vunpack.c.l.b16 %v6629
      %v6789 = vunpack.c.l.b16 %v6643
      %v6790 = vunpack.c.l.b16 %v6653
      %v6791 = vunpack.c.l.b16 %v6667
      %v6792 = vunpack.c.l.b16 %v6677
      %v6793 = vunpack.c.l.b16 %v6691
      %v6794 = vunpack.c.l.b16 %v6701
      %v6795 = vunpack.c.l.b16 %v6715
      %v6796 = vunpack.c.l.b16 %v6725
      %v6797 = vunpack.c.l.b16 %v6739
      %v6798 = vunpack.c.l.b16 %v6749
      %v6799 = vpack.c.b16 %v6768, %v6767
      %v6800 = vpack.c.b16 %v6770, %v6769
      %v6801 = vpack.c.b16 %v6772, %v6771
      %v6802 = vpack.c.b16 %v6774, %v6773
      %v6803 = vpack.c.b16 %v6776, %v6775
      %v6804 = vpack.c.b16 %v6778, %v6777
      %v6805 = vpack.c.b16 %v6780, %v6779
      %v6806 = vpack.c.b16 %v6782, %v6781
      %v6807 = vpack.c.b16 %v6784, %v6783
      %v6808 = vpack.c.b16 %v6786, %v6785
      %v6809 = vpack.c.b16 %v6788, %v6787
      %v6810 = vpack.c.b16 %v6790, %v6789
      %v6811 = vpack.c.b16 %v6792, %v6791
      %v6812 = vpack.c.b16 %v6794, %v6793
      %v6813 = vpack.c.b16 %v6796, %v6795
      %v6814 = vpack.c.b16 %v6798, %v6797
      %v6847 = vunpack.c.l.b16 %v6751
      %v6848 = vunpack.c.l.b16 %v6752
      %v6849 = vunpack.c.l.b16 %v6753
      %v6850 = vunpack.c.l.b16 %v6754
      %v6851 = vunpack.c.l.b16 %v6755
      %v6852 = vunpack.c.l.b16 %v6756
      %v6853 = vunpack.c.l.b16 %v6757
      %v6854 = vunpack.c.l.b16 %v6758
      %v6855 = vunpack.c.l.b16 %v6759
      %v6856 = vunpack.c.l.b16 %v6760
      %v6857 = vunpack.c.l.b16 %v6761
      %v6858 = vunpack.c.l.b16 %v6762
      %v6859 = vunpack.c.l.b16 %v6763
      %v6860 = vunpack.c.l.b16 %v6764
      %v6861 = vunpack.c.l.b16 %v6765
      %v6862 = vunpack.c.l.b16 %v6766
      %v6863 = vpack.c.b16 %v6848, %v6847
      %v6864 = vpack.c.b16 %v6850, %v6849
      %v6865 = vpack.c.b16 %v6852, %v6851
      %v6866 = vpack.c.b16 %v6854, %v6853
      %v6867 = vpack.c.b16 %v6856, %v6855
      %v6868 = vpack.c.b16 %v6858, %v6857
      %v6869 = vpack.c.b16 %v6860, %v6859
      %v6870 = vpack.c.b16 %v6862, %v6861
      %6879 = vmatprep.subr.bf16.mxu0 0
      %6880 = vmatpush1.bf16.msra.mxu0 %v6863
      %6881 = vmatprep.subr.bf16.mxu0 0
      %6882 = vmatpush1.bf16.msra.mxu0 %v6864
      %6883 = vmatprep.subr.bf16.mxu0 0
      %6884 = vmatpush1.bf16.msra.mxu0 %v6865
      %6885 = vmatprep.subr.bf16.mxu0 0
      %6886 = vmatpush1.bf16.msra.mxu0 %v6866
      %6887 = vmatprep.subr.bf16.mxu0 0
      %6888 = vmatpush1.bf16.msra.mxu0 %v6867
      %6889 = vmatprep.subr.bf16.mxu0 0
      %6890 = vmatpush1.bf16.msra.mxu0 %v6868
      %6891 = vmatprep.subr.bf16.mxu0 0
      %6892 = vmatpush1.bf16.msra.mxu0 %v6869
      %6893 = vmatprep.subr.bf16.mxu0 0
      %6894 = vmatpush1.bf16.msra.mxu0 %v6870
      %6895 = vmatprep.subr.bf16.mxu0 0
      %6896 = vmatpush1.bf16.msra.mxu0 0
      %6897 = vmatprep.subr.bf16.mxu0 0
      %6898 = vmatpush1.bf16.msra.mxu0 0
      %6899 = vmatprep.subr.bf16.mxu0 0
      %6900 = vmatpush1.bf16.msra.mxu0 0
      %6901 = vmatprep.subr.bf16.mxu0 0
      %6902 = vmatpush1.bf16.msra.mxu0 0
      %6903 = vmatprep.subr.bf16.mxu0 0
      %6904 = vmatpush1.bf16.msra.mxu0 0
      %6905 = vmatprep.subr.bf16.mxu0 0
      %6906 = vmatpush1.bf16.msra.mxu0 0
      %6907 = vmatprep.subr.bf16.mxu0 0
      %6908 = vmatpush1.bf16.msra.mxu0 0
      %6909 = vmatprep.subr.bf16.mxu0 0
      %6910 = vmatpush1.bf16.msra.mxu0 0
      %6911 = vmatprep.mubr.bf16.mxu0 0
      %6912 = vmatmul.mubr.bf16.gmra.mrb[0].mxu0 %v6799
      %v6913 = vpop.f32.mrb[0].mxu0
      %v6914 = vadd.f32 0.0, %v6913
      %v6915 = vpop.f32.mrb[0].mxu0
      %v6916 = vpop.f32.mrb[0].mxu0
      %v6917 = vadd.f32 0.0, %v6916
      %v6918 = vpop.f32.mrb[0].mxu0
      %6919 = vmatprep.mubr.bf16.mxu0 0
      %6920 = vmatmul.mubr.bf16.gmra.mrb[0].mxu0 %v6800
      %v6921 = vpop.f32.mrb[0].mxu0
      %v6922 = vadd.f32 0.0, %v6921
      %v6923 = vpop.f32.mrb[0].mxu0
      %v6924 = vpop.f32.mrb[0].mxu0
      %v6925 = vadd.f32 0.0, %v6924
      %v6926 = vpop.f32.mrb[0].mxu0
      %6927 = vmatprep.mubr.bf16.mxu0 0
      %6928 = vmatmul.mubr.bf16.gmra.mrb[0].mxu0 %v6801
      %v6929 = vpop.f32.mrb[0].mxu0
      %v6930 = vadd.f32 0.0, %v6929
      %v6931 = vpop.f32.mrb[0].mxu0
      %v6932 = vpop.f32.mrb[0].mxu0
      %v6933 = vadd.f32 0.0, %v6932
      %v6934 = vpop.f32.mrb[0].mxu0
      %6935 = vmatprep.mubr.bf16.mxu0 0
      %6936 = vmatmul.mubr.bf16.gmra.mrb[0].mxu0 %v6802
      %v6937 = vpop.f32.mrb[0].mxu0
      %v6938 = vadd.f32 0.0, %v6937
      %v6939 = vpop.f32.mrb[0].mxu0
      %v6940 = vpop.f32.mrb[0].mxu0
      %v6941 = vadd.f32 0.0, %v6940
      %v6942 = vpop.f32.mrb[0].mxu0
      %6943 = vmatprep.mubr.bf16.mxu0 0
      %6944 = vmatmul.mubr.bf16.gmra.mrb[0].mxu0 %v6803
      %v6945 = vpop.f32.mrb[0].mxu0
      %v6946 = vadd.f32 0.0, %v6945
      %v6947 = vpop.f32.mrb[0].mxu0
      %v6948 = vpop.f32.mrb[0].mxu0
      %v6949 = vadd.f32 0.0, %v6948
      %v6950 = vpop.f32.mrb[0].mxu0
      %6951 = vmatprep.mubr.bf16.mxu0 0
      %6952 = vmatmul.mubr.bf16.gmra.mrb[0].mxu0 %v6804
      %v6953 = vpop.f32.mrb[0].mxu0
      %v6954 = vadd.f32 0.0, %v6953
      %v6955 = vpop.f32.mrb[0].mxu0
      %v6956 = vpop.f32.mrb[0].mxu0
      %v6957 = vadd.f32 0.0, %v6956
      %v6958 = vpop.f32.mrb[0].mxu0
      %6959 = vmatprep.mubr.bf16.mxu0 0
      %6960 = vmatmul.mubr.bf16.gmra.mrb[0].mxu0 %v6805
      %v6961 = vpop.f32.mrb[0].mxu0
      %v6962 = vadd.f32 0.0, %v6961
      %v6963 = vpop.f32.mrb[0].mxu0
      %v6964 = vpop.f32.mrb[0].mxu0
      %v6965 = vadd.f32 0.0, %v6964
      %v6966 = vpop.f32.mrb[0].mxu0
      %6967 = vmatprep.mubr.bf16.mxu0 0
      %6968 = vmatmul.mubr.bf16.gmra.mrb[0].mxu0 %v6806
      %v6969 = vpop.f32.mrb[0].mxu0
      %v6970 = vadd.f32 0.0, %v6969
      %v6971 = vpop.f32.mrb[0].mxu0
      %v6972 = vpop.f32.mrb[0].mxu0
      %v6973 = vadd.f32 0.0, %v6972
      %v6974 = vpop.f32.mrb[0].mxu0
      %6975 = vmatprep.mubr.bf16.mxu0 0
      %6976 = vmatmul.mubr.bf16.gmra.mrb[0].mxu0 %v6807
      %v6977 = vpop.f32.mrb[0].mxu0
      %v6978 = vadd.f32 0.0, %v6977
      %v6979 = vpop.f32.mrb[0].mxu0
      %v6980 = vpop.f32.mrb[0].mxu0
      %v6981 = vadd.f32 0.0, %v6980
      %v6982 = vpop.f32.mrb[0].mxu0
      %6983 = vmatprep.mubr.bf16.mxu0 0
      %6984 = vmatmul.mubr.bf16.gmra.mrb[0].mxu0 %v6808
      %v6985 = vpop.f32.mrb[0].mxu0
      %v6986 = vadd.f32 0.0, %v6985
      %v6987 = vpop.f32.mrb[0].mxu0
      %v6988 = vpop.f32.mrb[0].mxu0
      %v6989 = vadd.f32 0.0, %v6988
      %v6990 = vpop.f32.mrb[0].mxu0
      %6991 = vmatprep.mubr.bf16.mxu0 0
      %6992 = vmatmul.mubr.bf16.gmra.mrb[0].mxu0 %v6809
      %v6993 = vpop.f32.mrb[0].mxu0
      %v6994 = vadd.f32 0.0, %v6993
      %v6995 = vpop.f32.mrb[0].mxu0
      %v6996 = vpop.f32.mrb[0].mxu0
      %v6997 = vadd.f32 0.0, %v6996
      %v6998 = vpop.f32.mrb[0].mxu0
      %6999 = vmatprep.mubr.bf16.mxu0 0
      %7000 = vmatmul.mubr.bf16.gmra.mrb[0].mxu0 %v6810
      %v7001 = vpop.f32.mrb[0].mxu0
      %v7002 = vadd.f32 0.0, %v7001
      %v7003 = vpop.f32.mrb[0].mxu0
      %v7004 = vpop.f32.mrb[0].mxu0
      %v7005 = vadd.f32 0.0, %v7004
      %v7006 = vpop.f32.mrb[0].mxu0
      %7007 = vmatprep.mubr.bf16.mxu0 0
      %7008 = vmatmul.mubr.bf16.gmra.mrb[0].mxu0 %v6811
      %v7009 = vpop.f32.mrb[0].mxu0
      %v7010 = vadd.f32 0.0, %v7009
      %v7011 = vpop.f32.mrb[0].mxu0
      %v7012 = vpop.f32.mrb[0].mxu0
      %v7013 = vadd.f32 0.0, %v7012
      %v7014 = vpop.f32.mrb[0].mxu0
      %7015 = vmatprep.mubr.bf16.mxu0 0
      %7016 = vmatmul.mubr.bf16.gmra.mrb[0].mxu0 %v6812
      %v7017 = vpop.f32.mrb[0].mxu0
      %v7018 = vadd.f32 0.0, %v7017
      %v7019 = vpop.f32.mrb[0].mxu0
      %v7020 = vpop.f32.mrb[0].mxu0
      %v7021 = vadd.f32 0.0, %v7020
      %v7022 = vpop.f32.mrb[0].mxu0
      %7023 = vmatprep.mubr.bf16.mxu0 0
      %7024 = vmatmul.mubr.bf16.gmra.mrb[0].mxu0 %v6813
      %v7025 = vpop.f32.mrb[0].mxu0
      %v7026 = vadd.f32 0.0, %v7025
      %v7027 = vpop.f32.mrb[0].mxu0
      %v7028 = vpop.f32.mrb[0].mxu0
      %v7029 = vadd.f32 0.0, %v7028
      %v7030 = vpop.f32.mrb[0].mxu0
      %7031 = vmatprep.mubr.bf16.mxu0 0
      %7032 = vmatmul.mubr.bf16.gmra.mrb[0].mxu0 %v6814
      %v7033 = vpop.f32.mrb[0].mxu0
      %v7034 = vadd.f32 0.0, %v7033
      %v7035 = vpop.f32.mrb[0].mxu0
      %v7036 = vpop.f32.mrb[0].mxu0
      %v7037 = vadd.f32 0.0, %v7036
      %v7038 = vpop.f32.mrb[0].mxu0
      %7039 = vdwg.mxu0
      %v7072 = vunpack.c.l.b16 %v6302
      %v7073 = vunpack.c.l.b16 %v6303
      %v7074 = vunpack.c.l.b16 %v6304
      %v7075 = vunpack.c.l.b16 %v6305
      %v7076 = vunpack.c.l.b16 %v6306
      %v7077 = vunpack.c.l.b16 %v6307
      %v7078 = vunpack.c.l.b16 %v6308
      %v7079 = vunpack.c.l.b16 %v6309
      %v7080 = vunpack.c.l.b16 %v6310
      %v7081 = vunpack.c.l.b16 %v6311
      %v7082 = vunpack.c.l.b16 %v6312
      %v7083 = vunpack.c.l.b16 %v6313
      %v7084 = vunpack.c.l.b16 %v6314
      %v7085 = vunpack.c.l.b16 %v6315
      %v7086 = vunpack.c.l.b16 %v6316
      %v7087 = vunpack.c.l.b16 %v6317
      %v7088 = vunpack.c.l.b16 %v6318
      %v7089 = vunpack.c.l.b16 %v6319
      %v7090 = vunpack.c.l.b16 %v6320
      %v7091 = vunpack.c.l.b16 %v6321
      %v7092 = vunpack.c.l.b16 %v6322
      %v7093 = vunpack.c.l.b16 %v6323
      %v7094 = vunpack.c.l.b16 %v6324
      %v7095 = vunpack.c.l.b16 %v6325
      %v7096 = vunpack.c.l.b16 %v6326
      %v7097 = vunpack.c.l.b16 %v6327
      %v7098 = vunpack.c.l.b16 %v6328
      %v7099 = vunpack.c.l.b16 %v6329
      %v7100 = vunpack.c.l.b16 %v6330
      %v7101 = vunpack.c.l.b16 %v6331
      %v7102 = vunpack.c.l.b16 %v6332
      %v7103 = vunpack.c.l.b16 %v6333
      %v7104 = vpack.c.b16 %v7073, %v7072
      %v7105 = vpack.c.b16 %v7075, %v7074
      %v7106 = vpack.c.b16 %v7077, %v7076
      %v7107 = vpack.c.b16 %v7079, %v7078
      %v7108 = vpack.c.b16 %v7081, %v7080
      %v7109 = vpack.c.b16 %v7083, %v7082
      %v7110 = vpack.c.b16 %v7085, %v7084
      %v7111 = vpack.c.b16 %v7087, %v7086
      %v7112 = vpack.c.b16 %v7089, %v7088
      %v7113 = vpack.c.b16 %v7091, %v7090
      %v7114 = vpack.c.b16 %v7093, %v7092
      %v7115 = vpack.c.b16 %v7095, %v7094
      %v7116 = vpack.c.b16 %v7097, %v7096
      %v7117 = vpack.c.b16 %v7099, %v7098
      %v7118 = vpack.c.b16 %v7101, %v7100
      %v7119 = vpack.c.b16 %v7103, %v7102
      %v7152 = vunpack.c.l.b16 %v6334
      %v7153 = vunpack.c.l.b16 %v6335
      %v7154 = vunpack.c.l.b16 %v6336
      %v7155 = vunpack.c.l.b16 %v6337
      %v7156 = vunpack.c.l.b16 %v6338
      %v7157 = vunpack.c.l.b16 %v6339
      %v7158 = vunpack.c.l.b16 %v6340
      %v7159 = vunpack.c.l.b16 %v6341
      %v7160 = vunpack.c.l.b16 %v6342
      %v7161 = vunpack.c.l.b16 %v6343
      %v7162 = vunpack.c.l.b16 %v6344
      %v7163 = vunpack.c.l.b16 %v6345
      %v7164 = vunpack.c.l.b16 %v6346
      %v7165 = vunpack.c.l.b16 %v6347
      %v7166 = vunpack.c.l.b16 %v6348
      %v7167 = vunpack.c.l.b16 %v6349
      %v7168 = vpack.c.b16 %v7153, %v7152
      %v7169 = vpack.c.b16 %v7155, %v7154
      %v7170 = vpack.c.b16 %v7157, %v7156
      %v7171 = vpack.c.b16 %v7159, %v7158
      %v7172 = vpack.c.b16 %v7161, %v7160
      %v7173 = vpack.c.b16 %v7163, %v7162
      %v7174 = vpack.c.b16 %v7165, %v7164
      %v7175 = vpack.c.b16 %v7167, %v7166
      %7184 = vmatprep.subr.bf16.mxu0 0
      %7185 = vmatpush1.bf16.msra.mxu0 %v7168
      %7186 = vmatprep.subr.bf16.mxu0 0
      %7187 = vmatpush1.bf16.msra.mxu0 %v7169
      %7188 = vmatprep.subr.bf16.mxu0 0
      %7189 = vmatpush1.bf16.msra.mxu0 %v7170
      %7190 = vmatprep.subr.bf16.mxu0 0
      %7191 = vmatpush1.bf16.msra.mxu0 %v7171
      %7192 = vmatprep.subr.bf16.mxu0 0
      %7193 = vmatpush1.bf16.msra.mxu0 %v7172
      %7194 = vmatprep.subr.bf16.mxu0 0
      %7195 = vmatpush1.bf16.msra.mxu0 %v7173
      %7196 = vmatprep.subr.bf16.mxu0 0
      %7197 = vmatpush1.bf16.msra.mxu0 %v7174
      %7198 = vmatprep.subr.bf16.mxu0 0
      %7199 = vmatpush1.bf16.msra.mxu0 %v7175
      %7200 = vmatprep.subr.bf16.mxu0 0
      %7201 = vmatpush1.bf16.msra.mxu0 0
      %7202 = vmatprep.subr.bf16.mxu0 0
      %7203 = vmatpush1.bf16.msra.mxu0 0
      %7204 = vmatprep.subr.bf16.mxu0 0
      %7205 = vmatpush1.bf16.msra.mxu0 0
      %7206 = vmatprep.subr.bf16.mxu0 0
      %7207 = vmatpush1.bf16.msra.mxu0 0
      %7208 = vmatprep.subr.bf16.mxu0 0
      %7209 = vmatpush1.bf16.msra.mxu0 0
      %7210 = vmatprep.subr.bf16.mxu0 0
      %7211 = vmatpush1.bf16.msra.mxu0 0
      %7212 = vmatprep.subr.bf16.mxu0 0
      %7213 = vmatpush1.bf16.msra.mxu0 0
      %7214 = vmatprep.subr.bf16.mxu0 0
      %7215 = vmatpush1.bf16.msra.mxu0 0
      %7216 = vmatprep.mubr.bf16.mxu0 0
      %7217 = vmatmul.mubr.bf16.gmra.mrb[0].mxu0 %v7104
      %v7218 = vpop.f32.mrb[0].mxu0
      %v7219 = vadd.f32 %v6914, %v7218
      %v7220 = vpop.f32.mrb[0].mxu0
      %v7221 = vpop.f32.mrb[0].mxu0
      %v7222 = vadd.f32 %v6917, %v7221
      %v7223 = vpop.f32.mrb[0].mxu0
      %7224 = vmatprep.mubr.bf16.mxu0 0
      %7225 = vmatmul.mubr.bf16.gmra.mrb[0].mxu0 %v7105
      %v7226 = vpop.f32.mrb[0].mxu0
      %v7227 = vadd.f32 %v6922, %v7226
      %v7228 = vpop.f32.mrb[0].mxu0
      %v7229 = vpop.f32.mrb[0].mxu0
      %v7230 = vadd.f32 %v6925, %v7229
      %v7231 = vpop.f32.mrb[0].mxu0
      %7232 = vmatprep.mubr.bf16.mxu0 0
      %7233 = vmatmul.mubr.bf16.gmra.mrb[0].mxu0 %v7106
      %v7234 = vpop.f32.mrb[0].mxu0
      %v7235 = vadd.f32 %v6930, %v7234
      %v7236 = vpop.f32.mrb[0].mxu0
      %v7237 = vpop.f32.mrb[0].mxu0
      %v7238 = vadd.f32 %v6933, %v7237
      %v7239 = vpop.f32.mrb[0].mxu0
      %7240 = vmatprep.mubr.bf16.mxu0 0
      %7241 = vmatmul.mubr.bf16.gmra.mrb[0].mxu0 %v7107
      %v7242 = vpop.f32.mrb[0].mxu0
      %v7243 = vadd.f32 %v6938, %v7242
      %v7244 = vpop.f32.mrb[0].mxu0
      %v7245 = vpop.f32.mrb[0].mxu0
      %v7246 = vadd.f32 %v6941, %v7245
      %v7247 = vpop.f32.mrb[0].mxu0
      %7248 = vmatprep.mubr.bf16.mxu0 0
      %7249 = vmatmul.mubr.bf16.gmra.mrb[0].mxu0 %v7108
      %v7250 = vpop.f32.mrb[0].mxu0
      %v7251 = vadd.f32 %v6946, %v7250
      %v7252 = vpop.f32.mrb[0].mxu0
      %v7253 = vpop.f32.mrb[0].mxu0
      %v7254 = vadd.f32 %v6949, %v7253
      %v7255 = vpop.f32.mrb[0].mxu0
      %7256 = vmatprep.mubr.bf16.mxu0 0
      %7257 = vmatmul.mubr.bf16.gmra.mrb[0].mxu0 %v7109
      %v7258 = vpop.f32.mrb[0].mxu0
      %v7259 = vadd.f32 %v6954, %v7258
      %v7260 = vpop.f32.mrb[0].mxu0
      %v7261 = vpop.f32.mrb[0].mxu0
      %v7262 = vadd.f32 %v6957, %v7261
      %v7263 = vpop.f32.mrb[0].mxu0
      %7264 = vmatprep.mubr.bf16.mxu0 0
      %7265 = vmatmul.mubr.bf16.gmra.mrb[0].mxu0 %v7110
      %v7266 = vpop.f32.mrb[0].mxu0
      %v7267 = vadd.f32 %v6962, %v7266
      %v7268 = vpop.f32.mrb[0].mxu0
      %v7269 = vpop.f32.mrb[0].mxu0
      %v7270 = vadd.f32 %v6965, %v7269
      %v7271 = vpop.f32.mrb[0].mxu0
      %7272 = vmatprep.mubr.bf16.mxu0 0
      %7273 = vmatmul.mubr.bf16.gmra.mrb[0].mxu0 %v7111
      %v7274 = vpop.f32.mrb[0].mxu0
      %v7275 = vadd.f32 %v6970, %v7274
      %v7276 = vpop.f32.mrb[0].mxu0
      %v7277 = vpop.f32.mrb[0].mxu0
      %v7278 = vadd.f32 %v6973, %v7277
      %v7279 = vpop.f32.mrb[0].mxu0
      %7280 = vmatprep.mubr.bf16.mxu0 0
      %7281 = vmatmul.mubr.bf16.gmra.mrb[0].mxu0 %v7112
      %v7282 = vpop.f32.mrb[0].mxu0
      %v7283 = vadd.f32 %v6978, %v7282
      %v7284 = vpop.f32.mrb[0].mxu0
      %v7285 = vpop.f32.mrb[0].mxu0
      %v7286 = vadd.f32 %v6981, %v7285
      %v7287 = vpop.f32.mrb[0].mxu0
      %7288 = vmatprep.mubr.bf16.mxu0 0
      %7289 = vmatmul.mubr.bf16.gmra.mrb[0].mxu0 %v7113
      %v7290 = vpop.f32.mrb[0].mxu0
      %v7291 = vadd.f32 %v6986, %v7290
      %v7292 = vpop.f32.mrb[0].mxu0
      %v7293 = vpop.f32.mrb[0].mxu0
      %v7294 = vadd.f32 %v6989, %v7293
      %v7295 = vpop.f32.mrb[0].mxu0
      %7296 = vmatprep.mubr.bf16.mxu0 0
      %7297 = vmatmul.mubr.bf16.gmra.mrb[0].mxu0 %v7114
      %v7298 = vpop.f32.mrb[0].mxu0
      %v7299 = vadd.f32 %v6994, %v7298
      %v7300 = vpop.f32.mrb[0].mxu0
      %v7301 = vpop.f32.mrb[0].mxu0
      %v7302 = vadd.f32 %v6997, %v7301
      %v7303 = vpop.f32.mrb[0].mxu0
      %7304 = vmatprep.mubr.bf16.mxu0 0
      %7305 = vmatmul.mubr.bf16.gmra.mrb[0].mxu0 %v7115
      %v7306 = vpop.f32.mrb[0].mxu0
      %v7307 = vadd.f32 %v7002, %v7306
      %v7308 = vpop.f32.mrb[0].mxu0
      %v7309 = vpop.f32.mrb[0].mxu0
      %v7310 = vadd.f32 %v7005, %v7309
      %v7311 = vpop.f32.mrb[0].mxu0
      %7312 = vmatprep.mubr.bf16.mxu0 0
      %7313 = vmatmul.mubr.bf16.gmra.mrb[0].mxu0 %v7116
      %v7314 = vpop.f32.mrb[0].mxu0
      %v7315 = vadd.f32 %v7010, %v7314
      %v7316 = vpop.f32.mrb[0].mxu0
      %v7317 = vpop.f32.mrb[0].mxu0
      %v7318 = vadd.f32 %v7013, %v7317
      %v7319 = vpop.f32.mrb[0].mxu0
      %7320 = vmatprep.mubr.bf16.mxu0 0
      %7321 = vmatmul.mubr.bf16.gmra.mrb[0].mxu0 %v7117
      %v7322 = vpop.f32.mrb[0].mxu0
      %v7323 = vadd.f32 %v7018, %v7322
      %v7324 = vpop.f32.mrb[0].mxu0
      %v7325 = vpop.f32.mrb[0].mxu0
      %v7326 = vadd.f32 %v7021, %v7325
      %v7327 = vpop.f32.mrb[0].mxu0
      %7328 = vmatprep.mubr.bf16.mxu0 0
      %7329 = vmatmul.mubr.bf16.gmra.mrb[0].mxu0 %v7118
      %v7330 = vpop.f32.mrb[0].mxu0
      %v7331 = vadd.f32 %v7026, %v7330
      %v7332 = vpop.f32.mrb[0].mxu0
      %v7333 = vpop.f32.mrb[0].mxu0
      %v7334 = vadd.f32 %v7029, %v7333
      %v7335 = vpop.f32.mrb[0].mxu0
      %7336 = vmatprep.mubr.bf16.mxu0 0
      %7337 = vmatmul.mubr.bf16.gmra.mrb[0].mxu0 %v7119
      %v7338 = vpop.f32.mrb[0].mxu0
      %v7339 = vadd.f32 %v7034, %v7338
      %v7340 = vpop.f32.mrb[0].mxu0
      %v7341 = vpop.f32.mrb[0].mxu0
      %v7342 = vadd.f32 %v7037, %v7341
      %v7343 = vpop.f32.mrb[0].mxu0
      %7344 = vdwg.mxu0
      %v7345 = vld [vmem:[#allocation2] sm:$0xe]
      %v7346 = vld [vmem:[#allocation2 + $0xc] sm:$0xe]
      %v7347 = vld [vmem:[#allocation2 + $0x18] sm:$0xe]
      %v7348 = vld [vmem:[#allocation2 + $0x24] sm:$0xe]
      %v7349 = vld [vmem:[#allocation2 + $0x30] sm:$0xe]
      %v7350 = vld [vmem:[#allocation2 + $0x3c] sm:$0xe]
      %v7351 = vld [vmem:[#allocation2 + $0x48] sm:$0xe]
      %v7352 = vld [vmem:[#allocation2 + $0x54] sm:$0xe]
      %v7353 = vld [vmem:[#allocation2 + $0x60] sm:$0xe]
      %v7354 = vld [vmem:[#allocation2 + $0x6c] sm:$0xe]
      %v7355 = vld [vmem:[#allocation2 + $0x78] sm:$0xe]
      %v7356 = vld [vmem:[#allocation2 + $0x84] sm:$0xe]
      %v7357 = vld [vmem:[#allocation2 + $0x90] sm:$0xe]
      %v7358 = vld [vmem:[#allocation2 + $0x9c] sm:$0xe]
      %v7359 = vld [vmem:[#allocation2 + $0xa8] sm:$0xe]
      %v7360 = vld [vmem:[#allocation2 + $0xb4] sm:$0xe]
      %v7393 = vrot.slane %v7345, 5
      %v7394 = vrot.slane %v7393, 4
      %v7395 = vrot.slane %v6303, 5
      %v7396 = vsel %vm1953, %v7394, %v7395
      %v7397 = vrot.slane %v7395, 4
      %v7398 = vrot.slane %v6350, 5
      %v7399 = vsel %vm1953, %v7397, %v7398
      %v7400 = vrot.slane %v7346, 5
      %v7401 = vrot.slane %v7400, 4
      %v7402 = vrot.slane %v6305, 5
      %v7403 = vsel %vm1953, %v7401, %v7402
      %v7404 = vrot.slane %v7402, 4
      %v7405 = vrot.slane %v6351, 5
      %v7406 = vsel %vm1953, %v7404, %v7405
      %v7407 = vrot.slane %v7347, 5
      %v7408 = vrot.slane %v7407, 4
      %v7409 = vrot.slane %v6307, 5
      %v7410 = vsel %vm1953, %v7408, %v7409
      %v7411 = vrot.slane %v7409, 4
      %v7412 = vrot.slane %v6352, 5
      %v7413 = vsel %vm1953, %v7411, %v7412
      %v7414 = vrot.slane %v7348, 5
      %v7415 = vrot.slane %v7414, 4
      %v7416 = vrot.slane %v6309, 5
      %v7417 = vsel %vm1953, %v7415, %v7416
      %v7418 = vrot.slane %v7416, 4
      %v7419 = vrot.slane %v6353, 5
      %v7420 = vsel %vm1953, %v7418, %v7419
      %v7421 = vrot.slane %v7349, 5
      %v7422 = vrot.slane %v7421, 4
      %v7423 = vrot.slane %v6311, 5
      %v7424 = vsel %vm1953, %v7422, %v7423
      %v7425 = vrot.slane %v7423, 4
      %v7426 = vrot.slane %v6354, 5
      %v7427 = vsel %vm1953, %v7425, %v7426
      %v7428 = vrot.slane %v7350, 5
      %v7429 = vrot.slane %v7428, 4
      %v7430 = vrot.slane %v6313, 5
      %v7431 = vsel %vm1953, %v7429, %v7430
      %v7432 = vrot.slane %v7430, 4
      %v7433 = vrot.slane %v6355, 5
      %v7434 = vsel %vm1953, %v7432, %v7433
      %v7435 = vrot.slane %v7351, 5
      %v7436 = vrot.slane %v7435, 4
      %v7437 = vrot.slane %v6315, 5
      %v7438 = vsel %vm1953, %v7436, %v7437
      %v7439 = vrot.slane %v7437, 4
      %v7440 = vrot.slane %v6356, 5
      %v7441 = vsel %vm1953, %v7439, %v7440
      %v7442 = vrot.slane %v7352, 5
      %v7443 = vrot.slane %v7442, 4
      %v7444 = vrot.slane %v6317, 5
      %v7445 = vsel %vm1953, %v7443, %v7444
      %v7446 = vrot.slane %v7444, 4
      %v7447 = vrot.slane %v6357, 5
      %v7448 = vsel %vm1953, %v7446, %v7447
      %v7449 = vrot.slane %v7353, 5
      %v7450 = vrot.slane %v7449, 4
      %v7451 = vrot.slane %v6319, 5
      %v7452 = vsel %vm1953, %v7450, %v7451
      %v7453 = vrot.slane %v7451, 4
      %v7454 = vrot.slane %v6358, 5
      %v7455 = vsel %vm1953, %v7453, %v7454
      %v7456 = vrot.slane %v7354, 5
      %v7457 = vrot.slane %v7456, 4
      %v7458 = vrot.slane %v6321, 5
      %v7459 = vsel %vm1953, %v7457, %v7458
      %v7460 = vrot.slane %v7458, 4
      %v7461 = vrot.slane %v6359, 5
      %v7462 = vsel %vm1953, %v7460, %v7461
      %v7463 = vrot.slane %v7355, 5
      %v7464 = vrot.slane %v7463, 4
      %v7465 = vrot.slane %v6323, 5
      %v7466 = vsel %vm1953, %v7464, %v7465
      %v7467 = vrot.slane %v7465, 4
      %v7468 = vrot.slane %v6360, 5
      %v7469 = vsel %vm1953, %v7467, %v7468
      %v7470 = vrot.slane %v7356, 5
      %v7471 = vrot.slane %v7470, 4
      %v7472 = vrot.slane %v6325, 5
      %v7473 = vsel %vm1953, %v7471, %v7472
      %v7474 = vrot.slane %v7472, 4
      %v7475 = vrot.slane %v6361, 5
      %v7476 = vsel %vm1953, %v7474, %v7475
      %v7477 = vrot.slane %v7357, 5
      %v7478 = vrot.slane %v7477, 4
      %v7479 = vrot.slane %v6327, 5
      %v7480 = vsel %vm1953, %v7478, %v7479
      %v7481 = vrot.slane %v7479, 4
      %v7482 = vrot.slane %v6362, 5
      %v7483 = vsel %vm1953, %v7481, %v7482
      %v7484 = vrot.slane %v7358, 5
      %v7485 = vrot.slane %v7484, 4
      %v7486 = vrot.slane %v6329, 5
      %v7487 = vsel %vm1953, %v7485, %v7486
      %v7488 = vrot.slane %v7486, 4
      %v7489 = vrot.slane %v6363, 5
      %v7490 = vsel %vm1953, %v7488, %v7489
      %v7491 = vrot.slane %v7359, 5
      %v7492 = vrot.slane %v7491, 4
      %v7493 = vrot.slane %v6331, 5
      %v7494 = vsel %vm1953, %v7492, %v7493
      %v7495 = vrot.slane %v7493, 4
      %v7496 = vrot.slane %v6364, 5
      %v7497 = vsel %vm1953, %v7495, %v7496
      %v7498 = vrot.slane %v7360, 5
      %v7499 = vrot.slane %v7498, 4
      %v7500 = vrot.slane %v6333, 5
      %v7501 = vsel %vm1953, %v7499, %v7500
      %v7502 = vrot.slane %v7500, 4
      %v7503 = vrot.slane %v6365, 5
      %v7504 = vsel %vm1953, %v7502, %v7503
      %s7505 = scalar_lea.vmem %s4, 128
      %v7506 = vld [vmem:[%s7505] sm:$0xf]
      %v7507 = vld [vmem:[%s7505 + $0x4] sm:$0xf]
      %v7508 = vld [vmem:[%s7505 + $0x8] sm:$0xf]
      %v7509 = vld [vmem:[%s7505 + $0xc] sm:$0xf]
      %v7510 = vld [vmem:[%s7505 + $0x10] sm:$0xf]
      %v7511 = vld [vmem:[%s7505 + $0x14] sm:$0xf]
      %v7512 = vld [vmem:[%s7505 + $0x18] sm:$0xf]
      %v7513 = vld [vmem:[%s7505 + $0x1c] sm:$0xf]
      %v7514 = vld [vmem:[%s7505 + $0x20] sm:$0xf]
      %v7515 = vld [vmem:[%s7505 + $0x24] sm:$0xf]
      %v7516 = vld [vmem:[%s7505 + $0x28] sm:$0xf]
      %v7517 = vld [vmem:[%s7505 + $0x2c] sm:$0xf]
      %v7518 = vld [vmem:[%s7505 + $0x30] sm:$0xf]
      %v7519 = vld [vmem:[%s7505 + $0x34] sm:$0xf]
      %v7520 = vld [vmem:[%s7505 + $0x38] sm:$0xf]
      %v7521 = vld [vmem:[%s7505 + $0x3c] sm:$0xf]
      %v7522 = vunpack.c.l.b16 %v7396
      %v7523 = vunpack.c.l.b16 %v7399
      %v7524 = vunpack.c.l.b16 %v7403
      %v7525 = vunpack.c.l.b16 %v7406
      %v7526 = vunpack.c.l.b16 %v7410
      %v7527 = vunpack.c.l.b16 %v7413
      %v7528 = vunpack.c.l.b16 %v7417
      %v7529 = vunpack.c.l.b16 %v7420
      %v7530 = vunpack.c.l.b16 %v7424
      %v7531 = vunpack.c.l.b16 %v7427
      %v7532 = vunpack.c.l.b16 %v7431
      %v7533 = vunpack.c.l.b16 %v7434
      %v7534 = vunpack.c.l.b16 %v7438
      %v7535 = vunpack.c.l.b16 %v7441
      %v7536 = vunpack.c.l.b16 %v7445
      %v7537 = vunpack.c.l.b16 %v7448
      %v7538 = vunpack.c.l.b16 %v7452
      %v7539 = vunpack.c.l.b16 %v7455
      %v7540 = vunpack.c.l.b16 %v7459
      %v7541 = vunpack.c.l.b16 %v7462
      %v7542 = vunpack.c.l.b16 %v7466
      %v7543 = vunpack.c.l.b16 %v7469
      %v7544 = vunpack.c.l.b16 %v7473
      %v7545 = vunpack.c.l.b16 %v7476
      %v7546 = vunpack.c.l.b16 %v7480
      %v7547 = vunpack.c.l.b16 %v7483
      %v7548 = vunpack.c.l.b16 %v7487
      %v7549 = vunpack.c.l.b16 %v7490
      %v7550 = vunpack.c.l.b16 %v7494
      %v7551 = vunpack.c.l.b16 %v7497
      %v7552 = vunpack.c.l.b16 %v7501
      %v7553 = vunpack.c.l.b16 %v7504
      %v7554 = vpack.c.b16 %v7523, %v7522
      %v7555 = vpack.c.b16 %v7525, %v7524
      %v7556 = vpack.c.b16 %v7527, %v7526
      %v7557 = vpack.c.b16 %v7529, %v7528
      %v7558 = vpack.c.b16 %v7531, %v7530
      %v7559 = vpack.c.b16 %v7533, %v7532
      %v7560 = vpack.c.b16 %v7535, %v7534
      %v7561 = vpack.c.b16 %v7537, %v7536
      %v7562 = vpack.c.b16 %v7539, %v7538
      %v7563 = vpack.c.b16 %v7541, %v7540
      %v7564 = vpack.c.b16 %v7543, %v7542
      %v7565 = vpack.c.b16 %v7545, %v7544
      %v7566 = vpack.c.b16 %v7547, %v7546
      %v7567 = vpack.c.b16 %v7549, %v7548
      %v7568 = vpack.c.b16 %v7551, %v7550
      %v7569 = vpack.c.b16 %v7553, %v7552
      %v7602 = vunpack.c.l.b16 %v7506
      %v7603 = vunpack.c.l.b16 %v7507
      %v7604 = vunpack.c.l.b16 %v7508
      %v7605 = vunpack.c.l.b16 %v7509
      %v7606 = vunpack.c.l.b16 %v7510
      %v7607 = vunpack.c.l.b16 %v7511
      %v7608 = vunpack.c.l.b16 %v7512
      %v7609 = vunpack.c.l.b16 %v7513
      %v7610 = vunpack.c.l.b16 %v7514
      %v7611 = vunpack.c.l.b16 %v7515
      %v7612 = vunpack.c.l.b16 %v7516
      %v7613 = vunpack.c.l.b16 %v7517
      %v7614 = vunpack.c.l.b16 %v7518
      %v7615 = vunpack.c.l.b16 %v7519
      %v7616 = vunpack.c.l.b16 %v7520
      %v7617 = vunpack.c.l.b16 %v7521
      %v7618 = vpack.c.b16 %v7603, %v7602
      %v7619 = vpack.c.b16 %v7605, %v7604
      %v7620 = vpack.c.b16 %v7607, %v7606
      %v7621 = vpack.c.b16 %v7609, %v7608
      %v7622 = vpack.c.b16 %v7611, %v7610
      %v7623 = vpack.c.b16 %v7613, %v7612
      %v7624 = vpack.c.b16 %v7615, %v7614
      %v7625 = vpack.c.b16 %v7617, %v7616
      %7634 = vmatprep.subr.bf16.mxu0 0
      %7635 = vmatpush1.bf16.msra.mxu0 %v7618
      %7636 = vmatprep.subr.bf16.mxu0 0
      %7637 = vmatpush1.bf16.msra.mxu0 %v7619
      %7638 = vmatprep.subr.bf16.mxu0 0
      %7639 = vmatpush1.bf16.msra.mxu0 %v7620
      %7640 = vmatprep.subr.bf16.mxu0 0
      %7641 = vmatpush1.bf16.msra.mxu0 %v7621
      %7642 = vmatprep.subr.bf16.mxu0 0
      %7643 = vmatpush1.bf16.msra.mxu0 %v7622
      %7644 = vmatprep.subr.bf16.mxu0 0
      %7645 = vmatpush1.bf16.msra.mxu0 %v7623
      %7646 = vmatprep.subr.bf16.mxu0 0
      %7647 = vmatpush1.bf16.msra.mxu0 %v7624
      %7648 = vmatprep.subr.bf16.mxu0 0
      %7649 = vmatpush1.bf16.msra.mxu0 %v7625
      %7650 = vmatprep.subr.bf16.mxu0 0
      %7651 = vmatpush1.bf16.msra.mxu0 0
      %7652 = vmatprep.subr.bf16.mxu0 0
      %7653 = vmatpush1.bf16.msra.mxu0 0
      %7654 = vmatprep.subr.bf16.mxu0 0
      %7655 = vmatpush1.bf16.msra.mxu0 0
      %7656 = vmatprep.subr.bf16.mxu0 0
      %7657 = vmatpush1.bf16.msra.mxu0 0
      %7658 = vmatprep.subr.bf16.mxu0 0
      %7659 = vmatpush1.bf16.msra.mxu0 0
      %7660 = vmatprep.subr.bf16.mxu0 0
      %7661 = vmatpush1.bf16.msra.mxu0 0
      %7662 = vmatprep.subr.bf16.mxu0 0
      %7663 = vmatpush1.bf16.msra.mxu0 0
      %7664 = vmatprep.subr.bf16.mxu0 0
      %7665 = vmatpush1.bf16.msra.mxu0 0
      %7666 = vmatprep.mubr.bf16.mxu0 0
      %7667 = vmatmul.mubr.bf16.gmra.mrb[0].mxu0 %v7554
      %v7668 = vpop.f32.mrb[0].mxu0
      %v7669 = vadd.f32 0.0, %v7668
      %v7670 = vpop.f32.mrb[0].mxu0
      %v7671 = vpop.f32.mrb[0].mxu0
      %v7672 = vadd.f32 0.0, %v7671
      %v7673 = vpop.f32.mrb[0].mxu0
      %7674 = vmatprep.mubr.bf16.mxu0 0
      %7675 = vmatmul.mubr.bf16.gmra.mrb[0].mxu0 %v7555
      %v7676 = vpop.f32.mrb[0].mxu0
      %v7677 = vadd.f32 0.0, %v7676
      %v7678 = vpop.f32.mrb[0].mxu0
      %v7679 = vpop.f32.mrb[0].mxu0
      %v7680 = vadd.f32 0.0, %v7679
      %v7681 = vpop.f32.mrb[0].mxu0
      %7682 = vmatprep.mubr.bf16.mxu0 0
      %7683 = vmatmul.mubr.bf16.gmra.mrb[0].mxu0 %v7556
      %v7684 = vpop.f32.mrb[0].mxu0
      %v7685 = vadd.f32 0.0, %v7684
      %v7686 = vpop.f32.mrb[0].mxu0
      %v7687 = vpop.f32.mrb[0].mxu0
      %v7688 = vadd.f32 0.0, %v7687
      %v7689 = vpop.f32.mrb[0].mxu0
      %7690 = vmatprep.mubr.bf16.mxu0 0
      %7691 = vmatmul.mubr.bf16.gmra.mrb[0].mxu0 %v7557
      %v7692 = vpop.f32.mrb[0].mxu0
      %v7693 = vadd.f32 0.0, %v7692
      %v7694 = vpop.f32.mrb[0].mxu0
      %v7695 = vpop.f32.mrb[0].mxu0
      %v7696 = vadd.f32 0.0, %v7695
      %v7697 = vpop.f32.mrb[0].mxu0
      %7698 = vmatprep.mubr.bf16.mxu0 0
      %7699 = vmatmul.mubr.bf16.gmra.mrb[0].mxu0 %v7558
      %v7700 = vpop.f32.mrb[0].mxu0
      %v7701 = vadd.f32 0.0, %v7700
      %v7702 = vpop.f32.mrb[0].mxu0
      %v7703 = vpop.f32.mrb[0].mxu0
      %v7704 = vadd.f32 0.0, %v7703
      %v7705 = vpop.f32.mrb[0].mxu0
      %7706 = vmatprep.mubr.bf16.mxu0 0
      %7707 = vmatmul.mubr.bf16.gmra.mrb[0].mxu0 %v7559
      %v7708 = vpop.f32.mrb[0].mxu0
      %v7709 = vadd.f32 0.0, %v7708
      %v7710 = vpop.f32.mrb[0].mxu0
      %v7711 = vpop.f32.mrb[0].mxu0
      %v7712 = vadd.f32 0.0, %v7711
      %v7713 = vpop.f32.mrb[0].mxu0
      %7714 = vmatprep.mubr.bf16.mxu0 0
      %7715 = vmatmul.mubr.bf16.gmra.mrb[0].mxu0 %v7560
      %v7716 = vpop.f32.mrb[0].mxu0
      %v7717 = vadd.f32 0.0, %v7716
      %v7718 = vpop.f32.mrb[0].mxu0
      %v7719 = vpop.f32.mrb[0].mxu0
      %v7720 = vadd.f32 0.0, %v7719
      %v7721 = vpop.f32.mrb[0].mxu0
      %7722 = vmatprep.mubr.bf16.mxu0 0
      %7723 = vmatmul.mubr.bf16.gmra.mrb[0].mxu0 %v7561
      %v7724 = vpop.f32.mrb[0].mxu0
      %v7725 = vadd.f32 0.0, %v7724
      %v7726 = vpop.f32.mrb[0].mxu0
      %v7727 = vpop.f32.mrb[0].mxu0
      %v7728 = vadd.f32 0.0, %v7727
      %v7729 = vpop.f32.mrb[0].mxu0
      %7730 = vmatprep.mubr.bf16.mxu0 0
      %7731 = vmatmul.mubr.bf16.gmra.mrb[0].mxu0 %v7562
      %v7732 = vpop.f32.mrb[0].mxu0
      %v7733 = vadd.f32 0.0, %v7732
      %v7734 = vpop.f32.mrb[0].mxu0
      %v7735 = vpop.f32.mrb[0].mxu0
      %v7736 = vadd.f32 0.0, %v7735
      %v7737 = vpop.f32.mrb[0].mxu0
      %7738 = vmatprep.mubr.bf16.mxu0 0
      %7739 = vmatmul.mubr.bf16.gmra.mrb[0].mxu0 %v7563
      %v7740 = vpop.f32.mrb[0].mxu0
      %v7741 = vadd.f32 0.0, %v7740
      %v7742 = vpop.f32.mrb[0].mxu0
      %v7743 = vpop.f32.mrb[0].mxu0
      %v7744 = vadd.f32 0.0, %v7743
      %v7745 = vpop.f32.mrb[0].mxu0
      %7746 = vmatprep.mubr.bf16.mxu0 0
      %7747 = vmatmul.mubr.bf16.gmra.mrb[0].mxu0 %v7564
      %v7748 = vpop.f32.mrb[0].mxu0
      %v7749 = vadd.f32 0.0, %v7748
      %v7750 = vpop.f32.mrb[0].mxu0
      %v7751 = vpop.f32.mrb[0].mxu0
      %v7752 = vadd.f32 0.0, %v7751
      %v7753 = vpop.f32.mrb[0].mxu0
      %7754 = vmatprep.mubr.bf16.mxu0 0
      %7755 = vmatmul.mubr.bf16.gmra.mrb[0].mxu0 %v7565
      %v7756 = vpop.f32.mrb[0].mxu0
      %v7757 = vadd.f32 0.0, %v7756
      %v7758 = vpop.f32.mrb[0].mxu0
      %v7759 = vpop.f32.mrb[0].mxu0
      %v7760 = vadd.f32 0.0, %v7759
      %v7761 = vpop.f32.mrb[0].mxu0
      %7762 = vmatprep.mubr.bf16.mxu0 0
      %7763 = vmatmul.mubr.bf16.gmra.mrb[0].mxu0 %v7566
      %v7764 = vpop.f32.mrb[0].mxu0
      %v7765 = vadd.f32 0.0, %v7764
      %v7766 = vpop.f32.mrb[0].mxu0
      %v7767 = vpop.f32.mrb[0].mxu0
      %v7768 = vadd.f32 0.0, %v7767
      %v7769 = vpop.f32.mrb[0].mxu0
      %7770 = vmatprep.mubr.bf16.mxu0 0
      %7771 = vmatmul.mubr.bf16.gmra.mrb[0].mxu0 %v7567
      %v7772 = vpop.f32.mrb[0].mxu0
      %v7773 = vadd.f32 0.0, %v7772
      %v7774 = vpop.f32.mrb[0].mxu0
      %v7775 = vpop.f32.mrb[0].mxu0
      %v7776 = vadd.f32 0.0, %v7775
      %v7777 = vpop.f32.mrb[0].mxu0
      %7778 = vmatprep.mubr.bf16.mxu0 0
      %7779 = vmatmul.mubr.bf16.gmra.mrb[0].mxu0 %v7568
      %v7780 = vpop.f32.mrb[0].mxu0
      %v7781 = vadd.f32 0.0, %v7780
      %v7782 = vpop.f32.mrb[0].mxu0
      %v7783 = vpop.f32.mrb[0].mxu0
      %v7784 = vadd.f32 0.0, %v7783
      %v7785 = vpop.f32.mrb[0].mxu0
      %7786 = vmatprep.mubr.bf16.mxu0 0
      %7787 = vmatmul.mubr.bf16.gmra.mrb[0].mxu0 %v7569
      %v7788 = vpop.f32.mrb[0].mxu0
      %v7789 = vadd.f32 0.0, %v7788
      %v7790 = vpop.f32.mrb[0].mxu0
      %v7791 = vpop.f32.mrb[0].mxu0
      %v7792 = vadd.f32 0.0, %v7791
      %v7793 = vpop.f32.mrb[0].mxu0
      %7794 = vdwg.mxu0
      %v7795 = vadd.f32 %v7219, %v7669
      %v7796 = vadd.f32 %v7222, %v7672
      %v7797 = vadd.f32 %v7227, %v7677
      %v7798 = vadd.f32 %v7230, %v7680
      %v7799 = vadd.f32 %v7235, %v7685
      %v7800 = vadd.f32 %v7238, %v7688
      %v7801 = vadd.f32 %v7243, %v7693
      %v7802 = vadd.f32 %v7246, %v7696
      %v7803 = vadd.f32 %v7251, %v7701
      %v7804 = vadd.f32 %v7254, %v7704
      %v7805 = vadd.f32 %v7259, %v7709
      %v7806 = vadd.f32 %v7262, %v7712
      %v7807 = vadd.f32 %v7267, %v7717
      %v7808 = vadd.f32 %v7270, %v7720
      %v7809 = vadd.f32 %v7275, %v7725
      %v7810 = vadd.f32 %v7278, %v7728
      %v7811 = vadd.f32 %v7283, %v7733
      %v7812 = vadd.f32 %v7286, %v7736
      %v7813 = vadd.f32 %v7291, %v7741
      %v7814 = vadd.f32 %v7294, %v7744
      %v7815 = vadd.f32 %v7299, %v7749
      %v7816 = vadd.f32 %v7302, %v7752
      %v7817 = vadd.f32 %v7307, %v7757
      %v7818 = vadd.f32 %v7310, %v7760
      %v7819 = vadd.f32 %v7315, %v7765
      %v7820 = vadd.f32 %v7318, %v7768
      %v7821 = vadd.f32 %v7323, %v7773
      %v7822 = vadd.f32 %v7326, %v7776
      %v7823 = vadd.f32 %v7331, %v7781
      %v7824 = vadd.f32 %v7334, %v7784
      %v7825 = vadd.f32 %v7339, %v7789
      %v7826 = vadd.f32 %v7342, %v7792
      %v7827 = vld [vmem:[%s287] sm:$0xf]
      %v7828 = vld [vmem:[%s287 + $0x4] sm:$0xf]
      %v7829 = vld [vmem:[%s287 + $0xc] sm:$0xf]
      %v7830 = vld [vmem:[%s287 + $0x10] sm:$0xf]
      %v7831 = vld [vmem:[%s287 + $0x18] sm:$0xf]
      %v7832 = vld [vmem:[%s287 + $0x1c] sm:$0xf]
      %v7833 = vld [vmem:[%s287 + $0x24] sm:$0xf]
      %v7834 = vld [vmem:[%s287 + $0x28] sm:$0xf]
      %v7835 = vld [vmem:[%s287 + $0x30] sm:$0xf]
      %v7836 = vld [vmem:[%s287 + $0x34] sm:$0xf]
      %v7837 = vld [vmem:[%s287 + $0x3c] sm:$0xf]
      %v7838 = vld [vmem:[%s287 + $0x40] sm:$0xf]
      %v7839 = vld [vmem:[%s287 + $0x48] sm:$0xf]
      %v7840 = vld [vmem:[%s287 + $0x4c] sm:$0xf]
      %v7841 = vld [vmem:[%s287 + $0x54] sm:$0xf]
      %v7842 = vld [vmem:[%s287 + $0x58] sm:$0xf]
      %v7843 = vld [vmem:[%s287 + $0x60] sm:$0xf]
      %v7844 = vld [vmem:[%s287 + $0x64] sm:$0xf]
      %v7845 = vld [vmem:[%s287 + $0x6c] sm:$0xf]
      %v7846 = vld [vmem:[%s287 + $0x70] sm:$0xf]
      %v7847 = vld [vmem:[%s287 + $0x78] sm:$0xf]
      %v7848 = vld [vmem:[%s287 + $0x7c] sm:$0xf]
      %v7849 = vld [vmem:[%s287 + $0x84] sm:$0xf]
      %v7850 = vld [vmem:[%s287 + $0x88] sm:$0xf]
      %v7851 = vld [vmem:[%s287 + $0x90] sm:$0xf]
      %v7852 = vld [vmem:[%s287 + $0x94] sm:$0xf]
      %v7853 = vld [vmem:[%s287 + $0x9c] sm:$0xf]
      %v7854 = vld [vmem:[%s287 + $0xa0] sm:$0xf]
      %v7855 = vld [vmem:[%s287 + $0xa8] sm:$0xf]
      %v7856 = vld [vmem:[%s287 + $0xac] sm:$0xf]
      %v7857 = vld [vmem:[%s287 + $0xb4] sm:$0xf]
      %v7858 = vld [vmem:[%s287 + $0xb8] sm:$0xf]
      %s7859 = scalar_lea.vmem %s4, 192
      %v7860 = vld [vmem:[%s7859] sm:$0xf]
      %v7861 = vld [vmem:[%s7859 + $0x4] sm:$0xf]
      %v7862 = vld [vmem:[%s7859 + $0x8] sm:$0xf]
      %v7863 = vld [vmem:[%s7859 + $0xc] sm:$0xf]
      %v7864 = vld [vmem:[%s7859 + $0x10] sm:$0xf]
      %v7865 = vld [vmem:[%s7859 + $0x14] sm:$0xf]
      %v7866 = vld [vmem:[%s7859 + $0x18] sm:$0xf]
      %v7867 = vld [vmem:[%s7859 + $0x1c] sm:$0xf]
      %v7868 = vld [vmem:[%s7859 + $0x20] sm:$0xf]
      %v7869 = vld [vmem:[%s7859 + $0x24] sm:$0xf]
      %v7870 = vld [vmem:[%s7859 + $0x28] sm:$0xf]
      %v7871 = vld [vmem:[%s7859 + $0x2c] sm:$0xf]
      %v7872 = vld [vmem:[%s7859 + $0x30] sm:$0xf]
      %v7873 = vld [vmem:[%s7859 + $0x34] sm:$0xf]
      %v7874 = vld [vmem:[%s7859 + $0x38] sm:$0xf]
      %v7875 = vld [vmem:[%s7859 + $0x3c] sm:$0xf]
      %v7908 = vunpack.c.l.b16 %v7827
      %v7909 = vunpack.c.l.b16 %v7828
      %v7910 = vunpack.c.l.b16 %v7829
      %v7911 = vunpack.c.l.b16 %v7830
      %v7912 = vunpack.c.l.b16 %v7831
      %v7913 = vunpack.c.l.b16 %v7832
      %v7914 = vunpack.c.l.b16 %v7833
      %v7915 = vunpack.c.l.b16 %v7834
      %v7916 = vunpack.c.l.b16 %v7835
      %v7917 = vunpack.c.l.b16 %v7836
      %v7918 = vunpack.c.l.b16 %v7837
      %v7919 = vunpack.c.l.b16 %v7838
      %v7920 = vunpack.c.l.b16 %v7839
      %v7921 = vunpack.c.l.b16 %v7840
      %v7922 = vunpack.c.l.b16 %v7841
      %v7923 = vunpack.c.l.b16 %v7842
      %v7924 = vunpack.c.l.b16 %v7843
      %v7925 = vunpack.c.l.b16 %v7844
      %v7926 = vunpack.c.l.b16 %v7845
      %v7927 = vunpack.c.l.b16 %v7846
      %v7928 = vunpack.c.l.b16 %v7847
      %v7929 = vunpack.c.l.b16 %v7848
      %v7930 = vunpack.c.l.b16 %v7849
      %v7931 = vunpack.c.l.b16 %v7850
      %v7932 = vunpack.c.l.b16 %v7851
      %v7933 = vunpack.c.l.b16 %v7852
      %v7934 = vunpack.c.l.b16 %v7853
      %v7935 = vunpack.c.l.b16 %v7854
      %v7936 = vunpack.c.l.b16 %v7855
      %v7937 = vunpack.c.l.b16 %v7856
      %v7938 = vunpack.c.l.b16 %v7857
      %v7939 = vunpack.c.l.b16 %v7858
      %v7940 = vpack.c.b16 %v7909, %v7908
      %v7941 = vpack.c.b16 %v7911, %v7910
      %v7942 = vpack.c.b16 %v7913, %v7912
      %v7943 = vpack.c.b16 %v7915, %v7914
      %v7944 = vpack.c.b16 %v7917, %v7916
      %v7945 = vpack.c.b16 %v7919, %v7918
      %v7946 = vpack.c.b16 %v7921, %v7920
      %v7947 = vpack.c.b16 %v7923, %v7922
      %v7948 = vpack.c.b16 %v7925, %v7924
      %v7949 = vpack.c.b16 %v7927, %v7926
      %v7950 = vpack.c.b16 %v7929, %v7928
      %v7951 = vpack.c.b16 %v7931, %v7930
      %v7952 = vpack.c.b16 %v7933, %v7932
      %v7953 = vpack.c.b16 %v7935, %v7934
      %v7954 = vpack.c.b16 %v7937, %v7936
      %v7955 = vpack.c.b16 %v7939, %v7938
      %v7988 = vunpack.c.l.b16 %v7860
      %v7989 = vunpack.c.l.b16 %v7861
      %v7990 = vunpack.c.l.b16 %v7862
      %v7991 = vunpack.c.l.b16 %v7863
      %v7992 = vunpack.c.l.b16 %v7864
      %v7993 = vunpack.c.l.b16 %v7865
      %v7994 = vunpack.c.l.b16 %v7866
      %v7995 = vunpack.c.l.b16 %v7867
      %v7996 = vunpack.c.l.b16 %v7868
      %v7997 = vunpack.c.l.b16 %v7869
      %v7998 = vunpack.c.l.b16 %v7870
      %v7999 = vunpack.c.l.b16 %v7871
      %v8000 = vunpack.c.l.b16 %v7872
      %v8001 = vunpack.c.l.b16 %v7873
      %v8002 = vunpack.c.l.b16 %v7874
      %v8003 = vunpack.c.l.b16 %v7875
      %v8004 = vpack.c.b16 %v7989, %v7988
      %v8005 = vpack.c.b16 %v7991, %v7990
      %v8006 = vpack.c.b16 %v7993, %v7992
      %v8007 = vpack.c.b16 %v7995, %v7994
      %v8008 = vpack.c.b16 %v7997, %v7996
      %v8009 = vpack.c.b16 %v7999, %v7998
      %v8010 = vpack.c.b16 %v8001, %v8000
      %v8011 = vpack.c.b16 %v8003, %v8002
      %8020 = vmatprep.subr.bf16.mxu0 0
      %8021 = vmatpush1.bf16.msra.mxu0 %v8004
      %8022 = vmatprep.subr.bf16.mxu0 0
      %8023 = vmatpush1.bf16.msra.mxu0 %v8005
      %8024 = vmatprep.subr.bf16.mxu0 0
      %8025 = vmatpush1.bf16.msra.mxu0 %v8006
      %8026 = vmatprep.subr.bf16.mxu0 0
      %8027 = vmatpush1.bf16.msra.mxu0 %v8007
      %8028 = vmatprep.subr.bf16.mxu0 0
      %8029 = vmatpush1.bf16.msra.mxu0 %v8008
      %8030 = vmatprep.subr.bf16.mxu0 0
      %8031 = vmatpush1.bf16.msra.mxu0 %v8009
      %8032 = vmatprep.subr.bf16.mxu0 0
      %8033 = vmatpush1.bf16.msra.mxu0 %v8010
      %8034 = vmatprep.subr.bf16.mxu0 0
      %8035 = vmatpush1.bf16.msra.mxu0 %v8011
      %8036 = vmatprep.subr.bf16.mxu0 0
      %8037 = vmatpush1.bf16.msra.mxu0 0
      %8038 = vmatprep.subr.bf16.mxu0 0
      %8039 = vmatpush1.bf16.msra.mxu0 0
      %8040 = vmatprep.subr.bf16.mxu0 0
      %8041 = vmatpush1.bf16.msra.mxu0 0
      %8042 = vmatprep.subr.bf16.mxu0 0
      %8043 = vmatpush1.bf16.msra.mxu0 0
      %8044 = vmatprep.subr.bf16.mxu0 0
      %8045 = vmatpush1.bf16.msra.mxu0 0
      %8046 = vmatprep.subr.bf16.mxu0 0
      %8047 = vmatpush1.bf16.msra.mxu0 0
      %8048 = vmatprep.subr.bf16.mxu0 0
      %8049 = vmatpush1.bf16.msra.mxu0 0
      %8050 = vmatprep.subr.bf16.mxu0 0
      %8051 = vmatpush1.bf16.msra.mxu0 0
      %8052 = vmatprep.mubr.bf16.mxu0 0
      %8053 = vmatmul.mubr.bf16.gmra.mrb[0].mxu0 %v7940
      %v8054 = vpop.f32.mrb[0].mxu0
      %v8055 = vadd.f32 0.0, %v8054
      %v8056 = vpop.f32.mrb[0].mxu0
      %v8057 = vpop.f32.mrb[0].mxu0
      %v8058 = vadd.f32 0.0, %v8057
      %v8059 = vpop.f32.mrb[0].mxu0
      %8060 = vmatprep.mubr.bf16.mxu0 0
      %8061 = vmatmul.mubr.bf16.gmra.mrb[0].mxu0 %v7941
      %v8062 = vpop.f32.mrb[0].mxu0
      %v8063 = vadd.f32 0.0, %v8062
      %v8064 = vpop.f32.mrb[0].mxu0
      %v8065 = vpop.f32.mrb[0].mxu0
      %v8066 = vadd.f32 0.0, %v8065
      %v8067 = vpop.f32.mrb[0].mxu0
      %8068 = vmatprep.mubr.bf16.mxu0 0
      %8069 = vmatmul.mubr.bf16.gmra.mrb[0].mxu0 %v7942
      %v8070 = vpop.f32.mrb[0].mxu0
      %v8071 = vadd.f32 0.0, %v8070
      %v8072 = vpop.f32.mrb[0].mxu0
      %v8073 = vpop.f32.mrb[0].mxu0
      %v8074 = vadd.f32 0.0, %v8073
      %v8075 = vpop.f32.mrb[0].mxu0
      %8076 = vmatprep.mubr.bf16.mxu0 0
      %8077 = vmatmul.mubr.bf16.gmra.mrb[0].mxu0 %v7943
      %v8078 = vpop.f32.mrb[0].mxu0
      %v8079 = vadd.f32 0.0, %v8078
      %v8080 = vpop.f32.mrb[0].mxu0
      %v8081 = vpop.f32.mrb[0].mxu0
      %v8082 = vadd.f32 0.0, %v8081
      %v8083 = vpop.f32.mrb[0].mxu0
      %8084 = vmatprep.mubr.bf16.mxu0 0
      %8085 = vmatmul.mubr.bf16.gmra.mrb[0].mxu0 %v7944
      %v8086 = vpop.f32.mrb[0].mxu0
      %v8087 = vadd.f32 0.0, %v8086
      %v8088 = vpop.f32.mrb[0].mxu0
      %v8089 = vpop.f32.mrb[0].mxu0
      %v8090 = vadd.f32 0.0, %v8089
      %v8091 = vpop.f32.mrb[0].mxu0
      %8092 = vmatprep.mubr.bf16.mxu0 0
      %8093 = vmatmul.mubr.bf16.gmra.mrb[0].mxu0 %v7945
      %v8094 = vpop.f32.mrb[0].mxu0
      %v8095 = vadd.f32 0.0, %v8094
      %v8096 = vpop.f32.mrb[0].mxu0
      %v8097 = vpop.f32.mrb[0].mxu0
      %v8098 = vadd.f32 0.0, %v8097
      %v8099 = vpop.f32.mrb[0].mxu0
      %8100 = vmatprep.mubr.bf16.mxu0 0
      %8101 = vmatmul.mubr.bf16.gmra.mrb[0].mxu0 %v7946
      %v8102 = vpop.f32.mrb[0].mxu0
      %v8103 = vadd.f32 0.0, %v8102
      %v8104 = vpop.f32.mrb[0].mxu0
      %v8105 = vpop.f32.mrb[0].mxu0
      %v8106 = vadd.f32 0.0, %v8105
      %v8107 = vpop.f32.mrb[0].mxu0
      %8108 = vmatprep.mubr.bf16.mxu0 0
      %8109 = vmatmul.mubr.bf16.gmra.mrb[0].mxu0 %v7947
      %v8110 = vpop.f32.mrb[0].mxu0
      %v8111 = vadd.f32 0.0, %v8110
      %v8112 = vpop.f32.mrb[0].mxu0
      %v8113 = vpop.f32.mrb[0].mxu0
      %v8114 = vadd.f32 0.0, %v8113
      %v8115 = vpop.f32.mrb[0].mxu0
      %8116 = vmatprep.mubr.bf16.mxu0 0
      %8117 = vmatmul.mubr.bf16.gmra.mrb[0].mxu0 %v7948
      %v8118 = vpop.f32.mrb[0].mxu0
      %v8119 = vadd.f32 0.0, %v8118
      %v8120 = vpop.f32.mrb[0].mxu0
      %v8121 = vpop.f32.mrb[0].mxu0
      %v8122 = vadd.f32 0.0, %v8121
      %v8123 = vpop.f32.mrb[0].mxu0
      %8124 = vmatprep.mubr.bf16.mxu0 0
      %8125 = vmatmul.mubr.bf16.gmra.mrb[0].mxu0 %v7949
      %v8126 = vpop.f32.mrb[0].mxu0
      %v8127 = vadd.f32 0.0, %v8126
      %v8128 = vpop.f32.mrb[0].mxu0
      %v8129 = vpop.f32.mrb[0].mxu0
      %v8130 = vadd.f32 0.0, %v8129
      %v8131 = vpop.f32.mrb[0].mxu0
      %8132 = vmatprep.mubr.bf16.mxu0 0
      %8133 = vmatmul.mubr.bf16.gmra.mrb[0].mxu0 %v7950
      %v8134 = vpop.f32.mrb[0].mxu0
      %v8135 = vadd.f32 0.0, %v8134
      %v8136 = vpop.f32.mrb[0].mxu0
      %v8137 = vpop.f32.mrb[0].mxu0
      %v8138 = vadd.f32 0.0, %v8137
      %v8139 = vpop.f32.mrb[0].mxu0
      %8140 = vmatprep.mubr.bf16.mxu0 0
      %8141 = vmatmul.mubr.bf16.gmra.mrb[0].mxu0 %v7951
      %v8142 = vpop.f32.mrb[0].mxu0
      %v8143 = vadd.f32 0.0, %v8142
      %v8144 = vpop.f32.mrb[0].mxu0
      %v8145 = vpop.f32.mrb[0].mxu0
      %v8146 = vadd.f32 0.0, %v8145
      %v8147 = vpop.f32.mrb[0].mxu0
      %8148 = vmatprep.mubr.bf16.mxu0 0
      %8149 = vmatmul.mubr.bf16.gmra.mrb[0].mxu0 %v7952
      %v8150 = vpop.f32.mrb[0].mxu0
      %v8151 = vadd.f32 0.0, %v8150
      %v8152 = vpop.f32.mrb[0].mxu0
      %v8153 = vpop.f32.mrb[0].mxu0
      %v8154 = vadd.f32 0.0, %v8153
      %v8155 = vpop.f32.mrb[0].mxu0
      %8156 = vmatprep.mubr.bf16.mxu0 0
      %8157 = vmatmul.mubr.bf16.gmra.mrb[0].mxu0 %v7953
      %v8158 = vpop.f32.mrb[0].mxu0
      %v8159 = vadd.f32 0.0, %v8158
      %v8160 = vpop.f32.mrb[0].mxu0
      %v8161 = vpop.f32.mrb[0].mxu0
      %v8162 = vadd.f32 0.0, %v8161
      %v8163 = vpop.f32.mrb[0].mxu0
      %8164 = vmatprep.mubr.bf16.mxu0 0
      %8165 = vmatmul.mubr.bf16.gmra.mrb[0].mxu0 %v7954
      %v8166 = vpop.f32.mrb[0].mxu0
      %v8167 = vadd.f32 0.0, %v8166
      %v8168 = vpop.f32.mrb[0].mxu0
      %v8169 = vpop.f32.mrb[0].mxu0
      %v8170 = vadd.f32 0.0, %v8169
      %v8171 = vpop.f32.mrb[0].mxu0
      %8172 = vmatprep.mubr.bf16.mxu0 0
      %8173 = vmatmul.mubr.bf16.gmra.mrb[0].mxu0 %v7955
      %v8174 = vpop.f32.mrb[0].mxu0
      %v8175 = vadd.f32 0.0, %v8174
      %v8176 = vpop.f32.mrb[0].mxu0
      %v8177 = vpop.f32.mrb[0].mxu0
      %v8178 = vadd.f32 0.0, %v8177
      %v8179 = vpop.f32.mrb[0].mxu0
      %8180 = vdwg.mxu0
      %v8181 = vadd.f32 %v7795, %v8055
      %v8182 = vadd.f32 %v7796, %v8058
      %v8183 = vadd.f32 %v7797, %v8063
      %v8184 = vadd.f32 %v7798, %v8066
      %v8185 = vadd.f32 %v7799, %v8071
      %v8186 = vadd.f32 %v7800, %v8074
      %v8187 = vadd.f32 %v7801, %v8079
      %v8188 = vadd.f32 %v7802, %v8082
      %v8189 = vadd.f32 %v7803, %v8087
      %v8190 = vadd.f32 %v7804, %v8090
      %v8191 = vadd.f32 %v7805, %v8095
      %v8192 = vadd.f32 %v7806, %v8098
      %v8193 = vadd.f32 %v7807, %v8103
      %v8194 = vadd.f32 %v7808, %v8106
      %v8195 = vadd.f32 %v7809, %v8111
      %v8196 = vadd.f32 %v7810, %v8114
      %v8197 = vadd.f32 %v7811, %v8119
      %v8198 = vadd.f32 %v7812, %v8122
      %v8199 = vadd.f32 %v7813, %v8127
      %v8200 = vadd.f32 %v7814, %v8130
      %v8201 = vadd.f32 %v7815, %v8135
      %v8202 = vadd.f32 %v7816, %v8138
      %v8203 = vadd.f32 %v7817, %v8143
      %v8204 = vadd.f32 %v7818, %v8146
      %v8205 = vadd.f32 %v7819, %v8151
      %v8206 = vadd.f32 %v7820, %v8154
      %v8207 = vadd.f32 %v7821, %v8159
      %v8208 = vadd.f32 %v7822, %v8162
      %v8209 = vadd.f32 %v7823, %v8167
      %v8210 = vadd.f32 %v7824, %v8170
      %v8211 = vadd.f32 %v7825, %v8175
      %v8212 = vadd.f32 %v7826, %v8178
      %v8213 = vld [vmem:[%s287] sm:$0xf]
      %v8214 = vld [vmem:[%s287 + $0x4] sm:$0xf]
      %v8215 = vld [vmem:[%s287 + $0x8] sm:$0x1]
      %v8216 = vld [vmem:[%s287 + $0xc] sm:$0xf]
      %v8217 = vld [vmem:[%s287 + $0x10] sm:$0xf]
      %v8218 = vld [vmem:[%s287 + $0x14] sm:$0x1]
      %v8219 = vld [vmem:[%s287 + $0x18] sm:$0xf]
      %v8220 = vld [vmem:[%s287 + $0x1c] sm:$0xf]
      %v8221 = vld [vmem:[%s287 + $0x20] sm:$0x1]
      %v8222 = vld [vmem:[%s287 + $0x24] sm:$0xf]
      %v8223 = vld [vmem:[%s287 + $0x28] sm:$0xf]
      %v8224 = vld [vmem:[%s287 + $0x2c] sm:$0x1]
      %v8225 = vld [vmem:[%s287 + $0x30] sm:$0xf]
      %v8226 = vld [vmem:[%s287 + $0x34] sm:$0xf]
      %v8227 = vld [vmem:[%s287 + $0x38] sm:$0x1]
      %v8228 = vld [vmem:[%s287 + $0x3c] sm:$0xf]
      %v8229 = vld [vmem:[%s287 + $0x40] sm:$0xf]
      %v8230 = vld [vmem:[%s287 + $0x44] sm:$0x1]
      %v8231 = vld [vmem:[%s287 + $0x48] sm:$0xf]
      %v8232 = vld [vmem:[%s287 + $0x4c] sm:$0xf]
      %v8233 = vld [vmem:[%s287 + $0x50] sm:$0x1]
      %v8234 = vld [vmem:[%s287 + $0x54] sm:$0xf]
      %v8235 = vld [vmem:[%s287 + $0x58] sm:$0xf]
      %v8236 = vld [vmem:[%s287 + $0x5c] sm:$0x1]
      %v8237 = vld [vmem:[%s287 + $0x60] sm:$0xf]
      %v8238 = vld [vmem:[%s287 + $0x64] sm:$0xf]
      %v8239 = vld [vmem:[%s287 + $0x68] sm:$0x1]
      %v8240 = vld [vmem:[%s287 + $0x6c] sm:$0xf]
      %v8241 = vld [vmem:[%s287 + $0x70] sm:$0xf]
      %v8242 = vld [vmem:[%s287 + $0x74] sm:$0x1]
      %v8243 = vld [vmem:[%s287 + $0x78] sm:$0xf]
      %v8244 = vld [vmem:[%s287 + $0x7c] sm:$0xf]
      %v8245 = vld [vmem:[%s287 + $0x80] sm:$0x1]
      %v8246 = vld [vmem:[%s287 + $0x84] sm:$0xf]
      %v8247 = vld [vmem:[%s287 + $0x88] sm:$0xf]
      %v8248 = vld [vmem:[%s287 + $0x8c] sm:$0x1]
      %v8249 = vld [vmem:[%s287 + $0x90] sm:$0xf]
      %v8250 = vld [vmem:[%s287 + $0x94] sm:$0xf]
      %v8251 = vld [vmem:[%s287 + $0x98] sm:$0x1]
      %v8252 = vld [vmem:[%s287 + $0x9c] sm:$0xf]
      %v8253 = vld [vmem:[%s287 + $0xa0] sm:$0xf]
      %v8254 = vld [vmem:[%s287 + $0xa4] sm:$0x1]
      %v8255 = vld [vmem:[%s287 + $0xa8] sm:$0xf]
      %v8256 = vld [vmem:[%s287 + $0xac] sm:$0xf]
      %v8257 = vld [vmem:[%s287 + $0xb0] sm:$0x1]
      %v8258 = vld [vmem:[%s287 + $0xb4] sm:$0xf]
      %v8259 = vld [vmem:[%s287 + $0xb8] sm:$0xf]
      %v8260 = vld [vmem:[%s287 + $0xbc] sm:$0x1]
      %v8262 = vshrl.u32 %v8213, 16
      %v8264 = vrot.slane %v8262, 4
      %v8265 = vshll.u32 %v8213, 16
      %v8267 = vrot.slane %v8265, 5
      %v8268 = vor.u32 %v8264, %v8267
      %v8269 = vrot.slane %v8268, 4
      %v8271 = vshll.u32 %v8214, 16
      %v8273 = vrot.slane %v8271, 5
      %v8274 = vsel %vm923, %v8269, %v8273
      %v8275 = vshrl.u32 %v8214, 16
      %v8277 = vrot.slane %v8275, 4
      %v8278 = vor.u32 %v8277, %v8273
      %v8279 = vrot.slane %v8278, 4
      %v8281 = vshll.u32 %v8215, 16
      %v8283 = vrot.slane %v8281, 5
      %v8284 = vsel %vm923, %v8279, %v8283
      %v8286 = vshrl.u32 %v8216, 16
      %v8288 = vrot.slane %v8286, 4
      %v8289 = vshll.u32 %v8216, 16
      %v8291 = vrot.slane %v8289, 5
      %v8292 = vor.u32 %v8288, %v8291
      %v8293 = vrot.slane %v8292, 4
      %v8295 = vshll.u32 %v8217, 16
      %v8297 = vrot.slane %v8295, 5
      %v8298 = vsel %vm923, %v8293, %v8297
      %v8299 = vshrl.u32 %v8217, 16
      %v8301 = vrot.slane %v8299, 4
      %v8302 = vor.u32 %v8301, %v8297
      %v8303 = vrot.slane %v8302, 4
      %v8305 = vshll.u32 %v8218, 16
      %v8307 = vrot.slane %v8305, 5
      %v8308 = vsel %vm923, %v8303, %v8307
      %v8310 = vshrl.u32 %v8219, 16
      %v8312 = vrot.slane %v8310, 4
      %v8313 = vshll.u32 %v8219, 16
      %v8315 = vrot.slane %v8313, 5
      %v8316 = vor.u32 %v8312, %v8315
      %v8317 = vrot.slane %v8316, 4
      %v8319 = vshll.u32 %v8220, 16
      %v8321 = vrot.slane %v8319, 5
      %v8322 = vsel %vm923, %v8317, %v8321
      %v8323 = vshrl.u32 %v8220, 16
      %v8325 = vrot.slane %v8323, 4
      %v8326 = vor.u32 %v8325, %v8321
      %v8327 = vrot.slane %v8326, 4
      %v8329 = vshll.u32 %v8221, 16
      %v8331 = vrot.slane %v8329, 5
      %v8332 = vsel %vm923, %v8327, %v8331
      %v8334 = vshrl.u32 %v8222, 16
      %v8336 = vrot.slane %v8334, 4
      %v8337 = vshll.u32 %v8222, 16
      %v8339 = vrot.slane %v8337, 5
      %v8340 = vor.u32 %v8336, %v8339
      %v8341 = vrot.slane %v8340, 4
      %v8343 = vshll.u32 %v8223, 16
      %v8345 = vrot.slane %v8343, 5
      %v8346 = vsel %vm923, %v8341, %v8345
      %v8347 = vshrl.u32 %v8223, 16
      %v8349 = vrot.slane %v8347, 4
      %v8350 = vor.u32 %v8349, %v8345
      %v8351 = vrot.slane %v8350, 4
      %v8353 = vshll.u32 %v8224, 16
      %v8355 = vrot.slane %v8353, 5
      %v8356 = vsel %vm923, %v8351, %v8355
      %v8358 = vshrl.u32 %v8225, 16
      %v8360 = vrot.slane %v8358, 4
      %v8361 = vshll.u32 %v8225, 16
      %v8363 = vrot.slane %v8361, 5
      %v8364 = vor.u32 %v8360, %v8363
      %v8365 = vrot.slane %v8364, 4
      %v8367 = vshll.u32 %v8226, 16
      %v8369 = vrot.slane %v8367, 5
      %v8370 = vsel %vm923, %v8365, %v8369
      %v8371 = vshrl.u32 %v8226, 16
      %v8373 = vrot.slane %v8371, 4
      %v8374 = vor.u32 %v8373, %v8369
      %v8375 = vrot.slane %v8374, 4
      %v8377 = vshll.u32 %v8227, 16
      %v8379 = vrot.slane %v8377, 5
      %v8380 = vsel %vm923, %v8375, %v8379
      %v8382 = vshrl.u32 %v8228, 16
      %v8384 = vrot.slane %v8382, 4
      %v8385 = vshll.u32 %v8228, 16
      %v8387 = vrot.slane %v8385, 5
      %v8388 = vor.u32 %v8384, %v8387
      %v8389 = vrot.slane %v8388, 4
      %v8391 = vshll.u32 %v8229, 16
      %v8393 = vrot.slane %v8391, 5
      %v8394 = vsel %vm923, %v8389, %v8393
      %v8395 = vshrl.u32 %v8229, 16
      %v8397 = vrot.slane %v8395, 4
      %v8398 = vor.u32 %v8397, %v8393
      %v8399 = vrot.slane %v8398, 4
      %v8401 = vshll.u32 %v8230, 16
      %v8403 = vrot.slane %v8401, 5
      %v8404 = vsel %vm923, %v8399, %v8403
      %v8406 = vshrl.u32 %v8231, 16
      %v8408 = vrot.slane %v8406, 4
      %v8409 = vshll.u32 %v8231, 16
      %v8411 = vrot.slane %v8409, 5
      %v8412 = vor.u32 %v8408, %v8411
      %v8413 = vrot.slane %v8412, 4
      %v8415 = vshll.u32 %v8232, 16
      %v8417 = vrot.slane %v8415, 5
      %v8418 = vsel %vm923, %v8413, %v8417
      %v8419 = vshrl.u32 %v8232, 16
      %v8421 = vrot.slane %v8419, 4
      %v8422 = vor.u32 %v8421, %v8417
      %v8423 = vrot.slane %v8422, 4
      %v8425 = vshll.u32 %v8233, 16
      %v8427 = vrot.slane %v8425, 5
      %v8428 = vsel %vm923, %v8423, %v8427
      %v8430 = vshrl.u32 %v8234, 16
      %v8432 = vrot.slane %v8430, 4
      %v8433 = vshll.u32 %v8234, 16
      %v8435 = vrot.slane %v8433, 5
      %v8436 = vor.u32 %v8432, %v8435
      %v8437 = vrot.slane %v8436, 4
      %v8439 = vshll.u32 %v8235, 16
      %v8441 = vrot.slane %v8439, 5
      %v8442 = vsel %vm923, %v8437, %v8441
      %v8443 = vshrl.u32 %v8235, 16
      %v8445 = vrot.slane %v8443, 4
      %v8446 = vor.u32 %v8445, %v8441
      %v8447 = vrot.slane %v8446, 4
      %v8449 = vshll.u32 %v8236, 16
      %v8451 = vrot.slane %v8449, 5
      %v8452 = vsel %vm923, %v8447, %v8451
      %v8454 = vshrl.u32 %v8237, 16
      %v8456 = vrot.slane %v8454, 4
      %v8457 = vshll.u32 %v8237, 16
      %v8459 = vrot.slane %v8457, 5
      %v8460 = vor.u32 %v8456, %v8459
      %v8461 = vrot.slane %v8460, 4
      %v8463 = vshll.u32 %v8238, 16
      %v8465 = vrot.slane %v8463, 5
      %v8466 = vsel %vm923, %v8461, %v8465
      %v8467 = vshrl.u32 %v8238, 16
      %v8469 = vrot.slane %v8467, 4
      %v8470 = vor.u32 %v8469, %v8465
      %v8471 = vrot.slane %v8470, 4
      %v8473 = vshll.u32 %v8239, 16
      %v8475 = vrot.slane %v8473, 5
      %v8476 = vsel %vm923, %v8471, %v8475
      %v8478 = vshrl.u32 %v8240, 16
      %v8480 = vrot.slane %v8478, 4
      %v8481 = vshll.u32 %v8240, 16
      %v8483 = vrot.slane %v8481, 5
      %v8484 = vor.u32 %v8480, %v8483
      %v8485 = vrot.slane %v8484, 4
      %v8487 = vshll.u32 %v8241, 16
      %v8489 = vrot.slane %v8487, 5
      %v8490 = vsel %vm923, %v8485, %v8489
      %v8491 = vshrl.u32 %v8241, 16
      %v8493 = vrot.slane %v8491, 4
      %v8494 = vor.u32 %v8493, %v8489
      %v8495 = vrot.slane %v8494, 4
      %v8497 = vshll.u32 %v8242, 16
      %v8499 = vrot.slane %v8497, 5
      %v8500 = vsel %vm923, %v8495, %v8499
      %v8502 = vshrl.u32 %v8243, 16
      %v8504 = vrot.slane %v8502, 4
      %v8505 = vshll.u32 %v8243, 16
      %v8507 = vrot.slane %v8505, 5
      %v8508 = vor.u32 %v8504, %v8507
      %v8509 = vrot.slane %v8508, 4
      %v8511 = vshll.u32 %v8244, 16
      %v8513 = vrot.slane %v8511, 5
      %v8514 = vsel %vm923, %v8509, %v8513
      %v8515 = vshrl.u32 %v8244, 16
      %v8517 = vrot.slane %v8515, 4
      %v8518 = vor.u32 %v8517, %v8513
      %v8519 = vrot.slane %v8518, 4
      %v8521 = vshll.u32 %v8245, 16
      %v8523 = vrot.slane %v8521, 5
      %v8524 = vsel %vm923, %v8519, %v8523
      %v8526 = vshrl.u32 %v8246, 16
      %v8528 = vrot.slane %v8526, 4
      %v8529 = vshll.u32 %v8246, 16
      %v8531 = vrot.slane %v8529, 5
      %v8532 = vor.u32 %v8528, %v8531
      %v8533 = vrot.slane %v8532, 4
      %v8535 = vshll.u32 %v8247, 16
      %v8537 = vrot.slane %v8535, 5
      %v8538 = vsel %vm923, %v8533, %v8537
      %v8539 = vshrl.u32 %v8247, 16
      %v8541 = vrot.slane %v8539, 4
      %v8542 = vor.u32 %v8541, %v8537
      %v8543 = vrot.slane %v8542, 4
      %v8545 = vshll.u32 %v8248, 16
      %v8547 = vrot.slane %v8545, 5
      %v8548 = vsel %vm923, %v8543, %v8547
      %v8550 = vshrl.u32 %v8249, 16
      %v8552 = vrot.slane %v8550, 4
      %v8553 = vshll.u32 %v8249, 16
      %v8555 = vrot.slane %v8553, 5
      %v8556 = vor.u32 %v8552, %v8555
      %v8557 = vrot.slane %v8556, 4
      %v8559 = vshll.u32 %v8250, 16
      %v8561 = vrot.slane %v8559, 5
      %v8562 = vsel %vm923, %v8557, %v8561
      %v8563 = vshrl.u32 %v8250, 16
      %v8565 = vrot.slane %v8563, 4
      %v8566 = vor.u32 %v8565, %v8561
      %v8567 = vrot.slane %v8566, 4
      %v8569 = vshll.u32 %v8251, 16
      %v8571 = vrot.slane %v8569, 5
      %v8572 = vsel %vm923, %v8567, %v8571
      %v8574 = vshrl.u32 %v8252, 16
      %v8576 = vrot.slane %v8574, 4
      %v8577 = vshll.u32 %v8252, 16
      %v8579 = vrot.slane %v8577, 5
      %v8580 = vor.u32 %v8576, %v8579
      %v8581 = vrot.slane %v8580, 4
      %v8583 = vshll.u32 %v8253, 16
      %v8585 = vrot.slane %v8583, 5
      %v8586 = vsel %vm923, %v8581, %v8585
      %v8587 = vshrl.u32 %v8253, 16
      %v8589 = vrot.slane %v8587, 4
      %v8590 = vor.u32 %v8589, %v8585
      %v8591 = vrot.slane %v8590, 4
      %v8593 = vshll.u32 %v8254, 16
      %v8595 = vrot.slane %v8593, 5
      %v8596 = vsel %vm923, %v8591, %v8595
      %v8598 = vshrl.u32 %v8255, 16
      %v8600 = vrot.slane %v8598, 4
      %v8601 = vshll.u32 %v8255, 16
      %v8603 = vrot.slane %v8601, 5
      %v8604 = vor.u32 %v8600, %v8603
      %v8605 = vrot.slane %v8604, 4
      %v8607 = vshll.u32 %v8256, 16
      %v8609 = vrot.slane %v8607, 5
      %v8610 = vsel %vm923, %v8605, %v8609
      %v8611 = vshrl.u32 %v8256, 16
      %v8613 = vrot.slane %v8611, 4
      %v8614 = vor.u32 %v8613, %v8609
      %v8615 = vrot.slane %v8614, 4
      %v8617 = vshll.u32 %v8257, 16
      %v8619 = vrot.slane %v8617, 5
      %v8620 = vsel %vm923, %v8615, %v8619
      %v8622 = vshrl.u32 %v8258, 16
      %v8624 = vrot.slane %v8622, 4
      %v8625 = vshll.u32 %v8258, 16
      %v8627 = vrot.slane %v8625, 5
      %v8628 = vor.u32 %v8624, %v8627
      %v8629 = vrot.slane %v8628, 4
      %v8631 = vshll.u32 %v8259, 16
      %v8633 = vrot.slane %v8631, 5
      %v8634 = vsel %vm923, %v8629, %v8633
      %v8635 = vshrl.u32 %v8259, 16
      %v8637 = vrot.slane %v8635, 4
      %v8638 = vor.u32 %v8637, %v8633
      %v8639 = vrot.slane %v8638, 4
      %v8641 = vshll.u32 %v8260, 16
      %v8643 = vrot.slane %v8641, 5
      %v8644 = vsel %vm923, %v8639, %v8643
      %s8645 = scalar_lea.vmem %s4, 256
      %v8646 = vld [vmem:[%s8645] sm:$0xf]
      %v8647 = vld [vmem:[%s8645 + $0x4] sm:$0xf]
      %v8648 = vld [vmem:[%s8645 + $0x8] sm:$0xf]
      %v8649 = vld [vmem:[%s8645 + $0xc] sm:$0xf]
      %v8650 = vld [vmem:[%s8645 + $0x10] sm:$0xf]
      %v8651 = vld [vmem:[%s8645 + $0x14] sm:$0xf]
      %v8652 = vld [vmem:[%s8645 + $0x18] sm:$0xf]
      %v8653 = vld [vmem:[%s8645 + $0x1c] sm:$0xf]
      %v8654 = vld [vmem:[%s8645 + $0x20] sm:$0xf]
      %v8655 = vld [vmem:[%s8645 + $0x24] sm:$0xf]
      %v8656 = vld [vmem:[%s8645 + $0x28] sm:$0xf]
      %v8657 = vld [vmem:[%s8645 + $0x2c] sm:$0xf]
      %v8658 = vld [vmem:[%s8645 + $0x30] sm:$0xf]
      %v8659 = vld [vmem:[%s8645 + $0x34] sm:$0xf]
      %v8660 = vld [vmem:[%s8645 + $0x38] sm:$0xf]
      %v8661 = vld [vmem:[%s8645 + $0x3c] sm:$0xf]
      %v8662 = vunpack.c.l.b16 %v8274
      %v8663 = vunpack.c.l.b16 %v8284
      %v8664 = vunpack.c.l.b16 %v8298
      %v8665 = vunpack.c.l.b16 %v8308
      %v8666 = vunpack.c.l.b16 %v8322
      %v8667 = vunpack.c.l.b16 %v8332
      %v8668 = vunpack.c.l.b16 %v8346
      %v8669 = vunpack.c.l.b16 %v8356
      %v8670 = vunpack.c.l.b16 %v8370
      %v8671 = vunpack.c.l.b16 %v8380
      %v8672 = vunpack.c.l.b16 %v8394
      %v8673 = vunpack.c.l.b16 %v8404
      %v8674 = vunpack.c.l.b16 %v8418
      %v8675 = vunpack.c.l.b16 %v8428
      %v8676 = vunpack.c.l.b16 %v8442
      %v8677 = vunpack.c.l.b16 %v8452
      %v8678 = vunpack.c.l.b16 %v8466
      %v8679 = vunpack.c.l.b16 %v8476
      %v8680 = vunpack.c.l.b16 %v8490
      %v8681 = vunpack.c.l.b16 %v8500
      %v8682 = vunpack.c.l.b16 %v8514
      %v8683 = vunpack.c.l.b16 %v8524
      %v8684 = vunpack.c.l.b16 %v8538
      %v8685 = vunpack.c.l.b16 %v8548
      %v8686 = vunpack.c.l.b16 %v8562
      %v8687 = vunpack.c.l.b16 %v8572
      %v8688 = vunpack.c.l.b16 %v8586
      %v8689 = vunpack.c.l.b16 %v8596
      %v8690 = vunpack.c.l.b16 %v8610
      %v8691 = vunpack.c.l.b16 %v8620
      %v8692 = vunpack.c.l.b16 %v8634
      %v8693 = vunpack.c.l.b16 %v8644
      %v8694 = vpack.c.b16 %v8663, %v8662
      %v8695 = vpack.c.b16 %v8665, %v8664
      %v8696 = vpack.c.b16 %v8667, %v8666
      %v8697 = vpack.c.b16 %v8669, %v8668
      %v8698 = vpack.c.b16 %v8671, %v8670
      %v8699 = vpack.c.b16 %v8673, %v8672
      %v8700 = vpack.c.b16 %v8675, %v8674
      %v8701 = vpack.c.b16 %v8677, %v8676
      %v8702 = vpack.c.b16 %v8679, %v8678
      %v8703 = vpack.c.b16 %v8681, %v8680
      %v8704 = vpack.c.b16 %v8683, %v8682
      %v8705 = vpack.c.b16 %v8685, %v8684
      %v8706 = vpack.c.b16 %v8687, %v8686
      %v8707 = vpack.c.b16 %v8689, %v8688
      %v8708 = vpack.c.b16 %v8691, %v8690
      %v8709 = vpack.c.b16 %v8693, %v8692
      %v8742 = vunpack.c.l.b16 %v8646
      %v8743 = vunpack.c.l.b16 %v8647
      %v8744 = vunpack.c.l.b16 %v8648
      %v8745 = vunpack.c.l.b16 %v8649
      %v8746 = vunpack.c.l.b16 %v8650
      %v8747 = vunpack.c.l.b16 %v8651
      %v8748 = vunpack.c.l.b16 %v8652
      %v8749 = vunpack.c.l.b16 %v8653
      %v8750 = vunpack.c.l.b16 %v8654
      %v8751 = vunpack.c.l.b16 %v8655
      %v8752 = vunpack.c.l.b16 %v8656
      %v8753 = vunpack.c.l.b16 %v8657
      %v8754 = vunpack.c.l.b16 %v8658
      %v8755 = vunpack.c.l.b16 %v8659
      %v8756 = vunpack.c.l.b16 %v8660
      %v8757 = vunpack.c.l.b16 %v8661
      %v8758 = vpack.c.b16 %v8743, %v8742
      %v8759 = vpack.c.b16 %v8745, %v8744
      %v8760 = vpack.c.b16 %v8747, %v8746
      %v8761 = vpack.c.b16 %v8749, %v8748
      %v8762 = vpack.c.b16 %v8751, %v8750
      %v8763 = vpack.c.b16 %v8753, %v8752
      %v8764 = vpack.c.b16 %v8755, %v8754
      %v8765 = vpack.c.b16 %v8757, %v8756
      %8774 = vmatprep.subr.bf16.mxu0 0
      %8775 = vmatpush1.bf16.msra.mxu0 %v8758
      %8776 = vmatprep.subr.bf16.mxu0 0
      %8777 = vmatpush1.bf16.msra.mxu0 %v8759
      %8778 = vmatprep.subr.bf16.mxu0 0
      %8779 = vmatpush1.bf16.msra.mxu0 %v8760
      %8780 = vmatprep.subr.bf16.mxu0 0
      %8781 = vmatpush1.bf16.msra.mxu0 %v8761
      %8782 = vmatprep.subr.bf16.mxu0 0
      %8783 = vmatpush1.bf16.msra.mxu0 %v8762
      %8784 = vmatprep.subr.bf16.mxu0 0
      %8785 = vmatpush1.bf16.msra.mxu0 %v8763
      %8786 = vmatprep.subr.bf16.mxu0 0
      %8787 = vmatpush1.bf16.msra.mxu0 %v8764
      %8788 = vmatprep.subr.bf16.mxu0 0
      %8789 = vmatpush1.bf16.msra.mxu0 %v8765
      %8790 = vmatprep.subr.bf16.mxu0 0
      %8791 = vmatpush1.bf16.msra.mxu0 0
      %8792 = vmatprep.subr.bf16.mxu0 0
      %8793 = vmatpush1.bf16.msra.mxu0 0
      %8794 = vmatprep.subr.bf16.mxu0 0
      %8795 = vmatpush1.bf16.msra.mxu0 0
      %8796 = vmatprep.subr.bf16.mxu0 0
      %8797 = vmatpush1.bf16.msra.mxu0 0
      %8798 = vmatprep.subr.bf16.mxu0 0
      %8799 = vmatpush1.bf16.msra.mxu0 0
      %8800 = vmatprep.subr.bf16.mxu0 0
      %8801 = vmatpush1.bf16.msra.mxu0 0
      %8802 = vmatprep.subr.bf16.mxu0 0
      %8803 = vmatpush1.bf16.msra.mxu0 0
      %8804 = vmatprep.subr.bf16.mxu0 0
      %8805 = vmatpush1.bf16.msra.mxu0 0
      %8806 = vmatprep.mubr.bf16.mxu0 0
      %8807 = vmatmul.mubr.bf16.gmra.mrb[0].mxu0 %v8694
      %v8808 = vpop.f32.mrb[0].mxu0
      %v8809 = vadd.f32 0.0, %v8808
      %v8810 = vpop.f32.mrb[0].mxu0
      %v8811 = vpop.f32.mrb[0].mxu0
      %v8812 = vadd.f32 0.0, %v8811
      %v8813 = vpop.f32.mrb[0].mxu0
      %8814 = vmatprep.mubr.bf16.mxu0 0
      %8815 = vmatmul.mubr.bf16.gmra.mrb[0].mxu0 %v8695
      %v8816 = vpop.f32.mrb[0].mxu0
      %v8817 = vadd.f32 0.0, %v8816
      %v8818 = vpop.f32.mrb[0].mxu0
      %v8819 = vpop.f32.mrb[0].mxu0
      %v8820 = vadd.f32 0.0, %v8819
      %v8821 = vpop.f32.mrb[0].mxu0
      %8822 = vmatprep.mubr.bf16.mxu0 0
      %8823 = vmatmul.mubr.bf16.gmra.mrb[0].mxu0 %v8696
      %v8824 = vpop.f32.mrb[0].mxu0
      %v8825 = vadd.f32 0.0, %v8824
      %v8826 = vpop.f32.mrb[0].mxu0
      %v8827 = vpop.f32.mrb[0].mxu0
      %v8828 = vadd.f32 0.0, %v8827
      %v8829 = vpop.f32.mrb[0].mxu0
      %8830 = vmatprep.mubr.bf16.mxu0 0
      %8831 = vmatmul.mubr.bf16.gmra.mrb[0].mxu0 %v8697
      %v8832 = vpop.f32.mrb[0].mxu0
      %v8833 = vadd.f32 0.0, %v8832
      %v8834 = vpop.f32.mrb[0].mxu0
      %v8835 = vpop.f32.mrb[0].mxu0
      %v8836 = vadd.f32 0.0, %v8835
      %v8837 = vpop.f32.mrb[0].mxu0
      %8838 = vmatprep.mubr.bf16.mxu0 0
      %8839 = vmatmul.mubr.bf16.gmra.mrb[0].mxu0 %v8698
      %v8840 = vpop.f32.mrb[0].mxu0
      %v8841 = vadd.f32 0.0, %v8840
      %v8842 = vpop.f32.mrb[0].mxu0
      %v8843 = vpop.f32.mrb[0].mxu0
      %v8844 = vadd.f32 0.0, %v8843
      %v8845 = vpop.f32.mrb[0].mxu0
      %8846 = vmatprep.mubr.bf16.mxu0 0
      %8847 = vmatmul.mubr.bf16.gmra.mrb[0].mxu0 %v8699
      %v8848 = vpop.f32.mrb[0].mxu0
      %v8849 = vadd.f32 0.0, %v8848
      %v8850 = vpop.f32.mrb[0].mxu0
      %v8851 = vpop.f32.mrb[0].mxu0
      %v8852 = vadd.f32 0.0, %v8851
      %v8853 = vpop.f32.mrb[0].mxu0
      %8854 = vmatprep.mubr.bf16.mxu0 0
      %8855 = vmatmul.mubr.bf16.gmra.mrb[0].mxu0 %v8700
      %v8856 = vpop.f32.mrb[0].mxu0
      %v8857 = vadd.f32 0.0, %v8856
      %v8858 = vpop.f32.mrb[0].mxu0
      %v8859 = vpop.f32.mrb[0].mxu0
      %v8860 = vadd.f32 0.0, %v8859
      %v8861 = vpop.f32.mrb[0].mxu0
      %8862 = vmatprep.mubr.bf16.mxu0 0
      %8863 = vmatmul.mubr.bf16.gmra.mrb[0].mxu0 %v8701
      %v8864 = vpop.f32.mrb[0].mxu0
      %v8865 = vadd.f32 0.0, %v8864
      %v8866 = vpop.f32.mrb[0].mxu0
      %v8867 = vpop.f32.mrb[0].mxu0
      %v8868 = vadd.f32 0.0, %v8867
      %v8869 = vpop.f32.mrb[0].mxu0
      %8870 = vmatprep.mubr.bf16.mxu0 0
      %8871 = vmatmul.mubr.bf16.gmra.mrb[0].mxu0 %v8702
      %v8872 = vpop.f32.mrb[0].mxu0
      %v8873 = vadd.f32 0.0, %v8872
      %v8874 = vpop.f32.mrb[0].mxu0
      %v8875 = vpop.f32.mrb[0].mxu0
      %v8876 = vadd.f32 0.0, %v8875
      %v8877 = vpop.f32.mrb[0].mxu0
      %8878 = vmatprep.mubr.bf16.mxu0 0
      %8879 = vmatmul.mubr.bf16.gmra.mrb[0].mxu0 %v8703
      %v8880 = vpop.f32.mrb[0].mxu0
      %v8881 = vadd.f32 0.0, %v8880
      %v8882 = vpop.f32.mrb[0].mxu0
      %v8883 = vpop.f32.mrb[0].mxu0
      %v8884 = vadd.f32 0.0, %v8883
      %v8885 = vpop.f32.mrb[0].mxu0
      %8886 = vmatprep.mubr.bf16.mxu0 0
      %8887 = vmatmul.mubr.bf16.gmra.mrb[0].mxu0 %v8704
      %v8888 = vpop.f32.mrb[0].mxu0
      %v8889 = vadd.f32 0.0, %v8888
      %v8890 = vpop.f32.mrb[0].mxu0
      %v8891 = vpop.f32.mrb[0].mxu0
      %v8892 = vadd.f32 0.0, %v8891
      %v8893 = vpop.f32.mrb[0].mxu0
      %8894 = vmatprep.mubr.bf16.mxu0 0
      %8895 = vmatmul.mubr.bf16.gmra.mrb[0].mxu0 %v8705
      %v8896 = vpop.f32.mrb[0].mxu0
      %v8897 = vadd.f32 0.0, %v8896
      %v8898 = vpop.f32.mrb[0].mxu0
      %v8899 = vpop.f32.mrb[0].mxu0
      %v8900 = vadd.f32 0.0, %v8899
      %v8901 = vpop.f32.mrb[0].mxu0
      %8902 = vmatprep.mubr.bf16.mxu0 0
      %8903 = vmatmul.mubr.bf16.gmra.mrb[0].mxu0 %v8706
      %v8904 = vpop.f32.mrb[0].mxu0
      %v8905 = vadd.f32 0.0, %v8904
      %v8906 = vpop.f32.mrb[0].mxu0
      %v8907 = vpop.f32.mrb[0].mxu0
      %v8908 = vadd.f32 0.0, %v8907
      %v8909 = vpop.f32.mrb[0].mxu0
      %8910 = vmatprep.mubr.bf16.mxu0 0
      %8911 = vmatmul.mubr.bf16.gmra.mrb[0].mxu0 %v8707
      %v8912 = vpop.f32.mrb[0].mxu0
      %v8913 = vadd.f32 0.0, %v8912
      %v8914 = vpop.f32.mrb[0].mxu0
      %v8915 = vpop.f32.mrb[0].mxu0
      %v8916 = vadd.f32 0.0, %v8915
      %v8917 = vpop.f32.mrb[0].mxu0
      %8918 = vmatprep.mubr.bf16.mxu0 0
      %8919 = vmatmul.mubr.bf16.gmra.mrb[0].mxu0 %v8708
      %v8920 = vpop.f32.mrb[0].mxu0
      %v8921 = vadd.f32 0.0, %v8920
      %v8922 = vpop.f32.mrb[0].mxu0
      %v8923 = vpop.f32.mrb[0].mxu0
      %v8924 = vadd.f32 0.0, %v8923
      %v8925 = vpop.f32.mrb[0].mxu0
      %8926 = vmatprep.mubr.bf16.mxu0 0
      %8927 = vmatmul.mubr.bf16.gmra.mrb[0].mxu0 %v8709
      %v8928 = vpop.f32.mrb[0].mxu0
      %v8929 = vadd.f32 0.0, %v8928
      %v8930 = vpop.f32.mrb[0].mxu0
      %v8931 = vpop.f32.mrb[0].mxu0
      %v8932 = vadd.f32 0.0, %v8931
      %v8933 = vpop.f32.mrb[0].mxu0
      %8934 = vdwg.mxu0
      %v8935 = vadd.f32 %v8181, %v8809
      %v8936 = vadd.f32 %v8182, %v8812
      %v8937 = vadd.f32 %v8183, %v8817
      %v8938 = vadd.f32 %v8184, %v8820
      %v8939 = vadd.f32 %v8185, %v8825
      %v8940 = vadd.f32 %v8186, %v8828
      %v8941 = vadd.f32 %v8187, %v8833
      %v8942 = vadd.f32 %v8188, %v8836
      %v8943 = vadd.f32 %v8189, %v8841
      %v8944 = vadd.f32 %v8190, %v8844
      %v8945 = vadd.f32 %v8191, %v8849
      %v8946 = vadd.f32 %v8192, %v8852
      %v8947 = vadd.f32 %v8193, %v8857
      %v8948 = vadd.f32 %v8194, %v8860
      %v8949 = vadd.f32 %v8195, %v8865
      %v8950 = vadd.f32 %v8196, %v8868
      %v8951 = vadd.f32 %v8197, %v8873
      %v8952 = vadd.f32 %v8198, %v8876
      %v8953 = vadd.f32 %v8199, %v8881
      %v8954 = vadd.f32 %v8200, %v8884
      %v8955 = vadd.f32 %v8201, %v8889
      %v8956 = vadd.f32 %v8202, %v8892
      %v8957 = vadd.f32 %v8203, %v8897
      %v8958 = vadd.f32 %v8204, %v8900
      %v8959 = vadd.f32 %v8205, %v8905
      %v8960 = vadd.f32 %v8206, %v8908
      %v8961 = vadd.f32 %v8207, %v8913
      %v8962 = vadd.f32 %v8208, %v8916
      %v8963 = vadd.f32 %v8209, %v8921
      %v8964 = vadd.f32 %v8210, %v8924
      %v8965 = vadd.f32 %v8211, %v8929
      %v8966 = vadd.f32 %v8212, %v8932
      %v8967 = vld [vmem:[%s287] sm:$0xe]
      %v8968 = vld [vmem:[%s287 + $0xc] sm:$0xe]
      %v8969 = vld [vmem:[%s287 + $0x18] sm:$0xe]
      %v8970 = vld [vmem:[%s287 + $0x24] sm:$0xe]
      %v8971 = vld [vmem:[%s287 + $0x30] sm:$0xe]
      %v8972 = vld [vmem:[%s287 + $0x3c] sm:$0xe]
      %v8973 = vld [vmem:[%s287 + $0x48] sm:$0xe]
      %v8974 = vld [vmem:[%s287 + $0x54] sm:$0xe]
      %v8975 = vld [vmem:[%s287 + $0x60] sm:$0xe]
      %v8976 = vld [vmem:[%s287 + $0x6c] sm:$0xe]
      %v8977 = vld [vmem:[%s287 + $0x78] sm:$0xe]
      %v8978 = vld [vmem:[%s287 + $0x84] sm:$0xe]
      %v8979 = vld [vmem:[%s287 + $0x90] sm:$0xe]
      %v8980 = vld [vmem:[%s287 + $0x9c] sm:$0xe]
      %v8981 = vld [vmem:[%s287 + $0xa8] sm:$0xe]
      %v8982 = vld [vmem:[%s287 + $0xb4] sm:$0xe]
      %v9031 = vrot.slane %v8967, 5
      %v9032 = vrot.slane %v9031, 4
      %v9033 = vrot.slane %v8214, 5
      %v9034 = vsel %vm1953, %v9032, %v9033
      %v9035 = vrot.slane %v9033, 4
      %v9036 = vrot.slane %v8215, 5
      %v9037 = vsel %vm1953, %v9035, %v9036
      %v9038 = vrot.slane %v8968, 5
      %v9039 = vrot.slane %v9038, 4
      %v9040 = vrot.slane %v8217, 5
      %v9041 = vsel %vm1953, %v9039, %v9040
      %v9042 = vrot.slane %v9040, 4
      %v9043 = vrot.slane %v8218, 5
      %v9044 = vsel %vm1953, %v9042, %v9043
      %v9045 = vrot.slane %v8969, 5
      %v9046 = vrot.slane %v9045, 4
      %v9047 = vrot.slane %v8220, 5
      %v9048 = vsel %vm1953, %v9046, %v9047
      %v9049 = vrot.slane %v9047, 4
      %v9050 = vrot.slane %v8221, 5
      %v9051 = vsel %vm1953, %v9049, %v9050
      %v9052 = vrot.slane %v8970, 5
      %v9053 = vrot.slane %v9052, 4
      %v9054 = vrot.slane %v8223, 5
      %v9055 = vsel %vm1953, %v9053, %v9054
      %v9056 = vrot.slane %v9054, 4
      %v9057 = vrot.slane %v8224, 5
      %v9058 = vsel %vm1953, %v9056, %v9057
      %v9059 = vrot.slane %v8971, 5
      %v9060 = vrot.slane %v9059, 4
      %v9061 = vrot.slane %v8226, 5
      %v9062 = vsel %vm1953, %v9060, %v9061
      %v9063 = vrot.slane %v9061, 4
      %v9064 = vrot.slane %v8227, 5
      %v9065 = vsel %vm1953, %v9063, %v9064
      %v9066 = vrot.slane %v8972, 5
      %v9067 = vrot.slane %v9066, 4
      %v9068 = vrot.slane %v8229, 5
      %v9069 = vsel %vm1953, %v9067, %v9068
      %v9070 = vrot.slane %v9068, 4
      %v9071 = vrot.slane %v8230, 5
      %v9072 = vsel %vm1953, %v9070, %v9071
      %v9073 = vrot.slane %v8973, 5
      %v9074 = vrot.slane %v9073, 4
      %v9075 = vrot.slane %v8232, 5
      %v9076 = vsel %vm1953, %v9074, %v9075
      %v9077 = vrot.slane %v9075, 4
      %v9078 = vrot.slane %v8233, 5
      %v9079 = vsel %vm1953, %v9077, %v9078
      %v9080 = vrot.slane %v8974, 5
      %v9081 = vrot.slane %v9080, 4
      %v9082 = vrot.slane %v8235, 5
      %v9083 = vsel %vm1953, %v9081, %v9082
      %v9084 = vrot.slane %v9082, 4
      %v9085 = vrot.slane %v8236, 5
      %v9086 = vsel %vm1953, %v9084, %v9085
      %v9087 = vrot.slane %v8975, 5
      %v9088 = vrot.slane %v9087, 4
      %v9089 = vrot.slane %v8238, 5
      %v9090 = vsel %vm1953, %v9088, %v9089
      %v9091 = vrot.slane %v9089, 4
      %v9092 = vrot.slane %v8239, 5
      %v9093 = vsel %vm1953, %v9091, %v9092
      %v9094 = vrot.slane %v8976, 5
      %v9095 = vrot.slane %v9094, 4
      %v9096 = vrot.slane %v8241, 5
      %v9097 = vsel %vm1953, %v9095, %v9096
      %v9098 = vrot.slane %v9096, 4
      %v9099 = vrot.slane %v8242, 5
      %v9100 = vsel %vm1953, %v9098, %v9099
      %v9101 = vrot.slane %v8977, 5
      %v9102 = vrot.slane %v9101, 4
      %v9103 = vrot.slane %v8244, 5
      %v9104 = vsel %vm1953, %v9102, %v9103
      %v9105 = vrot.slane %v9103, 4
      %v9106 = vrot.slane %v8245, 5
      %v9107 = vsel %vm1953, %v9105, %v9106
      %v9108 = vrot.slane %v8978, 5
      %v9109 = vrot.slane %v9108, 4
      %v9110 = vrot.slane %v8247, 5
      %v9111 = vsel %vm1953, %v9109, %v9110
      %v9112 = vrot.slane %v9110, 4
      %v9113 = vrot.slane %v8248, 5
      %v9114 = vsel %vm1953, %v9112, %v9113
      %v9115 = vrot.slane %v8979, 5
      %v9116 = vrot.slane %v9115, 4
      %v9117 = vrot.slane %v8250, 5
      %v9118 = vsel %vm1953, %v9116, %v9117
      %v9119 = vrot.slane %v9117, 4
      %v9120 = vrot.slane %v8251, 5
      %v9121 = vsel %vm1953, %v9119, %v9120
      %v9122 = vrot.slane %v8980, 5
      %v9123 = vrot.slane %v9122, 4
      %v9124 = vrot.slane %v8253, 5
      %v9125 = vsel %vm1953, %v9123, %v9124
      %v9126 = vrot.slane %v9124, 4
      %v9127 = vrot.slane %v8254, 5
      %v9128 = vsel %vm1953, %v9126, %v9127
      %v9129 = vrot.slane %v8981, 5
      %v9130 = vrot.slane %v9129, 4
      %v9131 = vrot.slane %v8256, 5
      %v9132 = vsel %vm1953, %v9130, %v9131
      %v9133 = vrot.slane %v9131, 4
      %v9134 = vrot.slane %v8257, 5
      %v9135 = vsel %vm1953, %v9133, %v9134
      %v9136 = vrot.slane %v8982, 5
      %v9137 = vrot.slane %v9136, 4
      %v9138 = vrot.slane %v8259, 5
      %v9139 = vsel %vm1953, %v9137, %v9138
      %v9140 = vrot.slane %v9138, 4
      %v9141 = vrot.slane %v8260, 5
      %v9142 = vsel %vm1953, %v9140, %v9141
      %s9143 = scalar_lea.vmem %s4, 320
      %v9144 = vld [vmem:[%s9143] sm:$0xf]
      %v9145 = vld [vmem:[%s9143 + $0x4] sm:$0xf]
      %v9146 = vld [vmem:[%s9143 + $0x8] sm:$0xf]
      %v9147 = vld [vmem:[%s9143 + $0xc] sm:$0xf]
      %v9148 = vld [vmem:[%s9143 + $0x10] sm:$0xf]
      %v9149 = vld [vmem:[%s9143 + $0x14] sm:$0xf]
      %v9150 = vld [vmem:[%s9143 + $0x18] sm:$0xf]
      %v9151 = vld [vmem:[%s9143 + $0x1c] sm:$0xf]
      %v9152 = vld [vmem:[%s9143 + $0x20] sm:$0xf]
      %v9153 = vld [vmem:[%s9143 + $0x24] sm:$0xf]
      %v9154 = vld [vmem:[%s9143 + $0x28] sm:$0xf]
      %v9155 = vld [vmem:[%s9143 + $0x2c] sm:$0xf]
      %v9156 = vld [vmem:[%s9143 + $0x30] sm:$0xf]
      %v9157 = vld [vmem:[%s9143 + $0x34] sm:$0xf]
      %v9158 = vld [vmem:[%s9143 + $0x38] sm:$0xf]
      %v9159 = vld [vmem:[%s9143 + $0x3c] sm:$0xf]
      %v9160 = vunpack.c.l.b16 %v9034
      %v9161 = vunpack.c.l.b16 %v9037
      %v9162 = vunpack.c.l.b16 %v9041
      %v9163 = vunpack.c.l.b16 %v9044
      %v9164 = vunpack.c.l.b16 %v9048
      %v9165 = vunpack.c.l.b16 %v9051
      %v9166 = vunpack.c.l.b16 %v9055
      %v9167 = vunpack.c.l.b16 %v9058
      %v9168 = vunpack.c.l.b16 %v9062
      %v9169 = vunpack.c.l.b16 %v9065
      %v9170 = vunpack.c.l.b16 %v9069
      %v9171 = vunpack.c.l.b16 %v9072
      %v9172 = vunpack.c.l.b16 %v9076
      %v9173 = vunpack.c.l.b16 %v9079
      %v9174 = vunpack.c.l.b16 %v9083
      %v9175 = vunpack.c.l.b16 %v9086
      %v9176 = vunpack.c.l.b16 %v9090
      %v9177 = vunpack.c.l.b16 %v9093
      %v9178 = vunpack.c.l.b16 %v9097
      %v9179 = vunpack.c.l.b16 %v9100
      %v9180 = vunpack.c.l.b16 %v9104
      %v9181 = vunpack.c.l.b16 %v9107
      %v9182 = vunpack.c.l.b16 %v9111
      %v9183 = vunpack.c.l.b16 %v9114
      %v9184 = vunpack.c.l.b16 %v9118
      %v9185 = vunpack.c.l.b16 %v9121
      %v9186 = vunpack.c.l.b16 %v9125
      %v9187 = vunpack.c.l.b16 %v9128
      %v9188 = vunpack.c.l.b16 %v9132
      %v9189 = vunpack.c.l.b16 %v9135
      %v9190 = vunpack.c.l.b16 %v9139
      %v9191 = vunpack.c.l.b16 %v9142
      %v9192 = vpack.c.b16 %v9161, %v9160
      %v9193 = vpack.c.b16 %v9163, %v9162
      %v9194 = vpack.c.b16 %v9165, %v9164
      %v9195 = vpack.c.b16 %v9167, %v9166
      %v9196 = vpack.c.b16 %v9169, %v9168
      %v9197 = vpack.c.b16 %v9171, %v9170
      %v9198 = vpack.c.b16 %v9173, %v9172
      %v9199 = vpack.c.b16 %v9175, %v9174
      %v9200 = vpack.c.b16 %v9177, %v9176
      %v9201 = vpack.c.b16 %v9179, %v9178
      %v9202 = vpack.c.b16 %v9181, %v9180
      %v9203 = vpack.c.b16 %v9183, %v9182
      %v9204 = vpack.c.b16 %v9185, %v9184
      %v9205 = vpack.c.b16 %v9187, %v9186
      %v9206 = vpack.c.b16 %v9189, %v9188
      %v9207 = vpack.c.b16 %v9191, %v9190
      %v9240 = vunpack.c.l.b16 %v9144
      %v9241 = vunpack.c.l.b16 %v9145
      %v9242 = vunpack.c.l.b16 %v9146
      %v9243 = vunpack.c.l.b16 %v9147
      %v9244 = vunpack.c.l.b16 %v9148
      %v9245 = vunpack.c.l.b16 %v9149
      %v9246 = vunpack.c.l.b16 %v9150
      %v9247 = vunpack.c.l.b16 %v9151
      %v9248 = vunpack.c.l.b16 %v9152
      %v9249 = vunpack.c.l.b16 %v9153
      %v9250 = vunpack.c.l.b16 %v9154
      %v9251 = vunpack.c.l.b16 %v9155
      %v9252 = vunpack.c.l.b16 %v9156
      %v9253 = vunpack.c.l.b16 %v9157
      %v9254 = vunpack.c.l.b16 %v9158
      %v9255 = vunpack.c.l.b16 %v9159
      %v9256 = vpack.c.b16 %v9241, %v9240
      %v9257 = vpack.c.b16 %v9243, %v9242
      %v9258 = vpack.c.b16 %v9245, %v9244
      %v9259 = vpack.c.b16 %v9247, %v9246
      %v9260 = vpack.c.b16 %v9249, %v9248
      %v9261 = vpack.c.b16 %v9251, %v9250
      %v9262 = vpack.c.b16 %v9253, %v9252
      %v9263 = vpack.c.b16 %v9255, %v9254
      %9272 = vmatprep.subr.bf16.mxu0 0
      %9273 = vmatpush1.bf16.msra.mxu0 %v9256
      %9274 = vmatprep.subr.bf16.mxu0 0
      %9275 = vmatpush1.bf16.msra.mxu0 %v9257
      %9276 = vmatprep.subr.bf16.mxu0 0
      %9277 = vmatpush1.bf16.msra.mxu0 %v9258
      %9278 = vmatprep.subr.bf16.mxu0 0
      %9279 = vmatpush1.bf16.msra.mxu0 %v9259
      %9280 = vmatprep.subr.bf16.mxu0 0
      %9281 = vmatpush1.bf16.msra.mxu0 %v9260
      %9282 = vmatprep.subr.bf16.mxu0 0
      %9283 = vmatpush1.bf16.msra.mxu0 %v9261
      %9284 = vmatprep.subr.bf16.mxu0 0
      %9285 = vmatpush1.bf16.msra.mxu0 %v9262
      %9286 = vmatprep.subr.bf16.mxu0 0
      %9287 = vmatpush1.bf16.msra.mxu0 %v9263
      %9288 = vmatprep.subr.bf16.mxu0 0
      %9289 = vmatpush1.bf16.msra.mxu0 0
      %9290 = vmatprep.subr.bf16.mxu0 0
      %9291 = vmatpush1.bf16.msra.mxu0 0
      %9292 = vmatprep.subr.bf16.mxu0 0
      %9293 = vmatpush1.bf16.msra.mxu0 0
      %9294 = vmatprep.subr.bf16.mxu0 0
      %9295 = vmatpush1.bf16.msra.mxu0 0
      %9296 = vmatprep.subr.bf16.mxu0 0
      %9297 = vmatpush1.bf16.msra.mxu0 0
      %9298 = vmatprep.subr.bf16.mxu0 0
      %9299 = vmatpush1.bf16.msra.mxu0 0
      %9300 = vmatprep.subr.bf16.mxu0 0
      %9301 = vmatpush1.bf16.msra.mxu0 0
      %9302 = vmatprep.subr.bf16.mxu0 0
      %9303 = vmatpush1.bf16.msra.mxu0 0
      %9304 = vmatprep.mubr.bf16.mxu0 0
      %9305 = vmatmul.mubr.bf16.gmra.mrb[0].mxu0 %v9192
      %v9306 = vpop.f32.mrb[0].mxu0
      %v9307 = vadd.f32 0.0, %v9306
      %v9308 = vpop.f32.mrb[0].mxu0
      %v9309 = vpop.f32.mrb[0].mxu0
      %v9310 = vadd.f32 0.0, %v9309
      %v9311 = vpop.f32.mrb[0].mxu0
      %9312 = vmatprep.mubr.bf16.mxu0 0
      %9313 = vmatmul.mubr.bf16.gmra.mrb[0].mxu0 %v9193
      %v9314 = vpop.f32.mrb[0].mxu0
      %v9315 = vadd.f32 0.0, %v9314
      %v9316 = vpop.f32.mrb[0].mxu0
      %v9317 = vpop.f32.mrb[0].mxu0
      %v9318 = vadd.f32 0.0, %v9317
      %v9319 = vpop.f32.mrb[0].mxu0
      %9320 = vmatprep.mubr.bf16.mxu0 0
      %9321 = vmatmul.mubr.bf16.gmra.mrb[0].mxu0 %v9194
      %v9322 = vpop.f32.mrb[0].mxu0
      %v9323 = vadd.f32 0.0, %v9322
      %v9324 = vpop.f32.mrb[0].mxu0
      %v9325 = vpop.f32.mrb[0].mxu0
      %v9326 = vadd.f32 0.0, %v9325
      %v9327 = vpop.f32.mrb[0].mxu0
      %9328 = vmatprep.mubr.bf16.mxu0 0
      %9329 = vmatmul.mubr.bf16.gmra.mrb[0].mxu0 %v9195
      %v9330 = vpop.f32.mrb[0].mxu0
      %v9331 = vadd.f32 0.0, %v9330
      %v9332 = vpop.f32.mrb[0].mxu0
      %v9333 = vpop.f32.mrb[0].mxu0
      %v9334 = vadd.f32 0.0, %v9333
      %v9335 = vpop.f32.mrb[0].mxu0
      %9336 = vmatprep.mubr.bf16.mxu0 0
      %9337 = vmatmul.mubr.bf16.gmra.mrb[0].mxu0 %v9196
      %v9338 = vpop.f32.mrb[0].mxu0
      %v9339 = vadd.f32 0.0, %v9338
      %v9340 = vpop.f32.mrb[0].mxu0
      %v9341 = vpop.f32.mrb[0].mxu0
      %v9342 = vadd.f32 0.0, %v9341
      %v9343 = vpop.f32.mrb[0].mxu0
      %9344 = vmatprep.mubr.bf16.mxu0 0
      %9345 = vmatmul.mubr.bf16.gmra.mrb[0].mxu0 %v9197
      %v9346 = vpop.f32.mrb[0].mxu0
      %v9347 = vadd.f32 0.0, %v9346
      %v9348 = vpop.f32.mrb[0].mxu0
      %v9349 = vpop.f32.mrb[0].mxu0
      %v9350 = vadd.f32 0.0, %v9349
      %v9351 = vpop.f32.mrb[0].mxu0
      %9352 = vmatprep.mubr.bf16.mxu0 0
      %9353 = vmatmul.mubr.bf16.gmra.mrb[0].mxu0 %v9198
      %v9354 = vpop.f32.mrb[0].mxu0
      %v9355 = vadd.f32 0.0, %v9354
      %v9356 = vpop.f32.mrb[0].mxu0
      %v9357 = vpop.f32.mrb[0].mxu0
      %v9358 = vadd.f32 0.0, %v9357
      %v9359 = vpop.f32.mrb[0].mxu0
      %9360 = vmatprep.mubr.bf16.mxu0 0
      %9361 = vmatmul.mubr.bf16.gmra.mrb[0].mxu0 %v9199
      %v9362 = vpop.f32.mrb[0].mxu0
      %v9363 = vadd.f32 0.0, %v9362
      %v9364 = vpop.f32.mrb[0].mxu0
      %v9365 = vpop.f32.mrb[0].mxu0
      %v9366 = vadd.f32 0.0, %v9365
      %v9367 = vpop.f32.mrb[0].mxu0
      %9368 = vmatprep.mubr.bf16.mxu0 0
      %9369 = vmatmul.mubr.bf16.gmra.mrb[0].mxu0 %v9200
      %v9370 = vpop.f32.mrb[0].mxu0
      %v9371 = vadd.f32 0.0, %v9370
      %v9372 = vpop.f32.mrb[0].mxu0
      %v9373 = vpop.f32.mrb[0].mxu0
      %v9374 = vadd.f32 0.0, %v9373
      %v9375 = vpop.f32.mrb[0].mxu0
      %9376 = vmatprep.mubr.bf16.mxu0 0
      %9377 = vmatmul.mubr.bf16.gmra.mrb[0].mxu0 %v9201
      %v9378 = vpop.f32.mrb[0].mxu0
      %v9379 = vadd.f32 0.0, %v9378
      %v9380 = vpop.f32.mrb[0].mxu0
      %v9381 = vpop.f32.mrb[0].mxu0
      %v9382 = vadd.f32 0.0, %v9381
      %v9383 = vpop.f32.mrb[0].mxu0
      %9384 = vmatprep.mubr.bf16.mxu0 0
      %9385 = vmatmul.mubr.bf16.gmra.mrb[0].mxu0 %v9202
      %v9386 = vpop.f32.mrb[0].mxu0
      %v9387 = vadd.f32 0.0, %v9386
      %v9388 = vpop.f32.mrb[0].mxu0
      %v9389 = vpop.f32.mrb[0].mxu0
      %v9390 = vadd.f32 0.0, %v9389
      %v9391 = vpop.f32.mrb[0].mxu0
      %9392 = vmatprep.mubr.bf16.mxu0 0
      %9393 = vmatmul.mubr.bf16.gmra.mrb[0].mxu0 %v9203
      %v9394 = vpop.f32.mrb[0].mxu0
      %v9395 = vadd.f32 0.0, %v9394
      %v9396 = vpop.f32.mrb[0].mxu0
      %v9397 = vpop.f32.mrb[0].mxu0
      %v9398 = vadd.f32 0.0, %v9397
      %v9399 = vpop.f32.mrb[0].mxu0
      %9400 = vmatprep.mubr.bf16.mxu0 0
      %9401 = vmatmul.mubr.bf16.gmra.mrb[0].mxu0 %v9204
      %v9402 = vpop.f32.mrb[0].mxu0
      %v9403 = vadd.f32 0.0, %v9402
      %v9404 = vpop.f32.mrb[0].mxu0
      %v9405 = vpop.f32.mrb[0].mxu0
      %v9406 = vadd.f32 0.0, %v9405
      %v9407 = vpop.f32.mrb[0].mxu0
      %9408 = vmatprep.mubr.bf16.mxu0 0
      %9409 = vmatmul.mubr.bf16.gmra.mrb[0].mxu0 %v9205
      %v9410 = vpop.f32.mrb[0].mxu0
      %v9411 = vadd.f32 0.0, %v9410
      %v9412 = vpop.f32.mrb[0].mxu0
      %v9413 = vpop.f32.mrb[0].mxu0
      %v9414 = vadd.f32 0.0, %v9413
      %v9415 = vpop.f32.mrb[0].mxu0
      %9416 = vmatprep.mubr.bf16.mxu0 0
      %9417 = vmatmul.mubr.bf16.gmra.mrb[0].mxu0 %v9206
      %v9418 = vpop.f32.mrb[0].mxu0
      %v9419 = vadd.f32 0.0, %v9418
      %v9420 = vpop.f32.mrb[0].mxu0
      %v9421 = vpop.f32.mrb[0].mxu0
      %v9422 = vadd.f32 0.0, %v9421
      %v9423 = vpop.f32.mrb[0].mxu0
      %9424 = vmatprep.mubr.bf16.mxu0 0
      %9425 = vmatmul.mubr.bf16.gmra.mrb[0].mxu0 %v9207
      %v9426 = vpop.f32.mrb[0].mxu0
      %v9427 = vadd.f32 0.0, %v9426
      %v9428 = vpop.f32.mrb[0].mxu0
      %v9429 = vpop.f32.mrb[0].mxu0
      %v9430 = vadd.f32 0.0, %v9429
      %v9431 = vpop.f32.mrb[0].mxu0
      %9432 = vdwg.mxu0
      %v9433 = vadd.f32 %v8935, %v9307
      %v9434 = vadd.f32 %v8936, %v9310
      %v9435 = vadd.f32 %v8937, %v9315
      %v9436 = vadd.f32 %v8938, %v9318
      %v9437 = vadd.f32 %v8939, %v9323
      %v9438 = vadd.f32 %v8940, %v9326
      %v9439 = vadd.f32 %v8941, %v9331
      %v9440 = vadd.f32 %v8942, %v9334
      %v9441 = vadd.f32 %v8943, %v9339
      %v9442 = vadd.f32 %v8944, %v9342
      %v9443 = vadd.f32 %v8945, %v9347
      %v9444 = vadd.f32 %v8946, %v9350
      %v9445 = vadd.f32 %v8947, %v9355
      %v9446 = vadd.f32 %v8948, %v9358
      %v9447 = vadd.f32 %v8949, %v9363
      %v9448 = vadd.f32 %v8950, %v9366
      %v9449 = vadd.f32 %v8951, %v9371
      %v9450 = vadd.f32 %v8952, %v9374
      %v9451 = vadd.f32 %v8953, %v9379
      %v9452 = vadd.f32 %v8954, %v9382
      %v9453 = vadd.f32 %v8955, %v9387
      %v9454 = vadd.f32 %v8956, %v9390
      %v9455 = vadd.f32 %v8957, %v9395
      %v9456 = vadd.f32 %v8958, %v9398
      %v9457 = vadd.f32 %v8959, %v9403
      %v9458 = vadd.f32 %v8960, %v9406
      %v9459 = vadd.f32 %v8961, %v9411
      %v9460 = vadd.f32 %v8962, %v9414
      %v9461 = vadd.f32 %v8963, %v9419
      %v9462 = vadd.f32 %v8964, %v9422
      %v9463 = vadd.f32 %v8965, %v9427
      %v9464 = vadd.f32 %v8966, %v9430
      %v9465 = vld [vmem:[%s4026] sm:$0xf]
      %v9466 = vld [vmem:[%s4026 + $0x4] sm:$0xf]
      %v9467 = vld [vmem:[%s4026 + $0xc] sm:$0xf]
      %v9468 = vld [vmem:[%s4026 + $0x10] sm:$0xf]
      %v9469 = vld [vmem:[%s4026 + $0x18] sm:$0xf]
      %v9470 = vld [vmem:[%s4026 + $0x1c] sm:$0xf]
      %v9471 = vld [vmem:[%s4026 + $0x24] sm:$0xf]
      %v9472 = vld [vmem:[%s4026 + $0x28] sm:$0xf]
      %v9473 = vld [vmem:[%s4026 + $0x30] sm:$0xf]
      %v9474 = vld [vmem:[%s4026 + $0x34] sm:$0xf]
      %v9475 = vld [vmem:[%s4026 + $0x3c] sm:$0xf]
      %v9476 = vld [vmem:[%s4026 + $0x40] sm:$0xf]
      %v9477 = vld [vmem:[%s4026 + $0x48] sm:$0xf]
      %v9478 = vld [vmem:[%s4026 + $0x4c] sm:$0xf]
      %v9479 = vld [vmem:[%s4026 + $0x54] sm:$0xf]
      %v9480 = vld [vmem:[%s4026 + $0x58] sm:$0xf]
      %v9481 = vld [vmem:[%s4026 + $0x60] sm:$0xf]
      %v9482 = vld [vmem:[%s4026 + $0x64] sm:$0xf]
      %v9483 = vld [vmem:[%s4026 + $0x6c] sm:$0xf]
      %v9484 = vld [vmem:[%s4026 + $0x70] sm:$0xf]
      %v9485 = vld [vmem:[%s4026 + $0x78] sm:$0xf]
      %v9486 = vld [vmem:[%s4026 + $0x7c] sm:$0xf]
      %v9487 = vld [vmem:[%s4026 + $0x84] sm:$0xf]
      %v9488 = vld [vmem:[%s4026 + $0x88] sm:$0xf]
      %v9489 = vld [vmem:[%s4026 + $0x90] sm:$0xf]
      %v9490 = vld [vmem:[%s4026 + $0x94] sm:$0xf]
      %v9491 = vld [vmem:[%s4026 + $0x9c] sm:$0xf]
      %v9492 = vld [vmem:[%s4026 + $0xa0] sm:$0xf]
      %v9493 = vld [vmem:[%s4026 + $0xa8] sm:$0xf]
      %v9494 = vld [vmem:[%s4026 + $0xac] sm:$0xf]
      %v9495 = vld [vmem:[%s4026 + $0xb4] sm:$0xf]
      %v9496 = vld [vmem:[%s4026 + $0xb8] sm:$0xf]
      %s9497 = scalar_lea.vmem %s4, 384
      %v9498 = vld [vmem:[%s9497] sm:$0xf]
      %v9499 = vld [vmem:[%s9497 + $0x4] sm:$0xf]
      %v9500 = vld [vmem:[%s9497 + $0x8] sm:$0xf]
      %v9501 = vld [vmem:[%s9497 + $0xc] sm:$0xf]
      %v9502 = vld [vmem:[%s9497 + $0x10] sm:$0xf]
      %v9503 = vld [vmem:[%s9497 + $0x14] sm:$0xf]
      %v9504 = vld [vmem:[%s9497 + $0x18] sm:$0xf]
      %v9505 = vld [vmem:[%s9497 + $0x1c] sm:$0xf]
      %v9506 = vld [vmem:[%s9497 + $0x20] sm:$0xf]
      %v9507 = vld [vmem:[%s9497 + $0x24] sm:$0xf]
      %v9508 = vld [vmem:[%s9497 + $0x28] sm:$0xf]
      %v9509 = vld [vmem:[%s9497 + $0x2c] sm:$0xf]
      %v9510 = vld [vmem:[%s9497 + $0x30] sm:$0xf]
      %v9511 = vld [vmem:[%s9497 + $0x34] sm:$0xf]
      %v9512 = vld [vmem:[%s9497 + $0x38] sm:$0xf]
      %v9513 = vld [vmem:[%s9497 + $0x3c] sm:$0xf]
      %v9546 = vunpack.c.l.b16 %v9465
      %v9547 = vunpack.c.l.b16 %v9466
      %v9548 = vunpack.c.l.b16 %v9467
      %v9549 = vunpack.c.l.b16 %v9468
      %v9550 = vunpack.c.l.b16 %v9469
      %v9551 = vunpack.c.l.b16 %v9470
      %v9552 = vunpack.c.l.b16 %v9471
      %v9553 = vunpack.c.l.b16 %v9472
      %v9554 = vunpack.c.l.b16 %v9473
      %v9555 = vunpack.c.l.b16 %v9474
      %v9556 = vunpack.c.l.b16 %v9475
      %v9557 = vunpack.c.l.b16 %v9476
      %v9558 = vunpack.c.l.b16 %v9477
      %v9559 = vunpack.c.l.b16 %v9478
      %v9560 = vunpack.c.l.b16 %v9479
      %v9561 = vunpack.c.l.b16 %v9480
      %v9562 = vunpack.c.l.b16 %v9481
      %v9563 = vunpack.c.l.b16 %v9482
      %v9564 = vunpack.c.l.b16 %v9483
      %v9565 = vunpack.c.l.b16 %v9484
      %v9566 = vunpack.c.l.b16 %v9485
      %v9567 = vunpack.c.l.b16 %v9486
      %v9568 = vunpack.c.l.b16 %v9487
      %v9569 = vunpack.c.l.b16 %v9488
      %v9570 = vunpack.c.l.b16 %v9489
      %v9571 = vunpack.c.l.b16 %v9490
      %v9572 = vunpack.c.l.b16 %v9491
      %v9573 = vunpack.c.l.b16 %v9492
      %v9574 = vunpack.c.l.b16 %v9493
      %v9575 = vunpack.c.l.b16 %v9494
      %v9576 = vunpack.c.l.b16 %v9495
      %v9577 = vunpack.c.l.b16 %v9496
      %v9578 = vpack.c.b16 %v9547, %v9546
      %v9579 = vpack.c.b16 %v9549, %v9548
      %v9580 = vpack.c.b16 %v9551, %v9550
      %v9581 = vpack.c.b16 %v9553, %v9552
      %v9582 = vpack.c.b16 %v9555, %v9554
      %v9583 = vpack.c.b16 %v9557, %v9556
      %v9584 = vpack.c.b16 %v9559, %v9558
      %v9585 = vpack.c.b16 %v9561, %v9560
      %v9586 = vpack.c.b16 %v9563, %v9562
      %v9587 = vpack.c.b16 %v9565, %v9564
      %v9588 = vpack.c.b16 %v9567, %v9566
      %v9589 = vpack.c.b16 %v9569, %v9568
      %v9590 = vpack.c.b16 %v9571, %v9570
      %v9591 = vpack.c.b16 %v9573, %v9572
      %v9592 = vpack.c.b16 %v9575, %v9574
      %v9593 = vpack.c.b16 %v9577, %v9576
      %v9626 = vunpack.c.l.b16 %v9498
      %v9627 = vunpack.c.l.b16 %v9499
      %v9628 = vunpack.c.l.b16 %v9500
      %v9629 = vunpack.c.l.b16 %v9501
      %v9630 = vunpack.c.l.b16 %v9502
      %v9631 = vunpack.c.l.b16 %v9503
      %v9632 = vunpack.c.l.b16 %v9504
      %v9633 = vunpack.c.l.b16 %v9505
      %v9634 = vunpack.c.l.b16 %v9506
      %v9635 = vunpack.c.l.b16 %v9507
      %v9636 = vunpack.c.l.b16 %v9508
      %v9637 = vunpack.c.l.b16 %v9509
      %v9638 = vunpack.c.l.b16 %v9510
      %v9639 = vunpack.c.l.b16 %v9511
      %v9640 = vunpack.c.l.b16 %v9512
      %v9641 = vunpack.c.l.b16 %v9513
      %v9642 = vpack.c.b16 %v9627, %v9626
      %v9643 = vpack.c.b16 %v9629, %v9628
      %v9644 = vpack.c.b16 %v9631, %v9630
      %v9645 = vpack.c.b16 %v9633, %v9632
      %v9646 = vpack.c.b16 %v9635, %v9634
      %v9647 = vpack.c.b16 %v9637, %v9636
      %v9648 = vpack.c.b16 %v9639, %v9638
      %v9649 = vpack.c.b16 %v9641, %v9640
      %9658 = vmatprep.subr.bf16.mxu0 0
      %9659 = vmatpush1.bf16.msra.mxu0 %v9642
      %9660 = vmatprep.subr.bf16.mxu0 0
      %9661 = vmatpush1.bf16.msra.mxu0 %v9643
      %9662 = vmatprep.subr.bf16.mxu0 0
      %9663 = vmatpush1.bf16.msra.mxu0 %v9644
      %9664 = vmatprep.subr.bf16.mxu0 0
      %9665 = vmatpush1.bf16.msra.mxu0 %v9645
      %9666 = vmatprep.subr.bf16.mxu0 0
      %9667 = vmatpush1.bf16.msra.mxu0 %v9646
      %9668 = vmatprep.subr.bf16.mxu0 0
      %9669 = vmatpush1.bf16.msra.mxu0 %v9647
      %9670 = vmatprep.subr.bf16.mxu0 0
      %9671 = vmatpush1.bf16.msra.mxu0 %v9648
      %9672 = vmatprep.subr.bf16.mxu0 0
      %9673 = vmatpush1.bf16.msra.mxu0 %v9649
      %9674 = vmatprep.subr.bf16.mxu0 0
      %9675 = vmatpush1.bf16.msra.mxu0 0
      %9676 = vmatprep.subr.bf16.mxu0 0
      %9677 = vmatpush1.bf16.msra.mxu0 0
      %9678 = vmatprep.subr.bf16.mxu0 0
      %9679 = vmatpush1.bf16.msra.mxu0 0
      %9680 = vmatprep.subr.bf16.mxu0 0
      %9681 = vmatpush1.bf16.msra.mxu0 0
      %9682 = vmatprep.subr.bf16.mxu0 0
      %9683 = vmatpush1.bf16.msra.mxu0 0
      %9684 = vmatprep.subr.bf16.mxu0 0
      %9685 = vmatpush1.bf16.msra.mxu0 0
      %9686 = vmatprep.subr.bf16.mxu0 0
      %9687 = vmatpush1.bf16.msra.mxu0 0
      %9688 = vmatprep.subr.bf16.mxu0 0
      %9689 = vmatpush1.bf16.msra.mxu0 0
      %9690 = vmatprep.mubr.bf16.mxu0 0
      %9691 = vmatmul.mubr.bf16.gmra.mrb[0].mxu0 %v9578
      %v9692 = vpop.f32.mrb[0].mxu0
      %v9693 = vadd.f32 0.0, %v9692
      %v9694 = vpop.f32.mrb[0].mxu0
      %v9695 = vpop.f32.mrb[0].mxu0
      %v9696 = vadd.f32 0.0, %v9695
      %v9697 = vpop.f32.mrb[0].mxu0
      %9698 = vmatprep.mubr.bf16.mxu0 0
      %9699 = vmatmul.mubr.bf16.gmra.mrb[0].mxu0 %v9579
      %v9700 = vpop.f32.mrb[0].mxu0
      %v9701 = vadd.f32 0.0, %v9700
      %v9702 = vpop.f32.mrb[0].mxu0
      %v9703 = vpop.f32.mrb[0].mxu0
      %v9704 = vadd.f32 0.0, %v9703
      %v9705 = vpop.f32.mrb[0].mxu0
      %9706 = vmatprep.mubr.bf16.mxu0 0
      %9707 = vmatmul.mubr.bf16.gmra.mrb[0].mxu0 %v9580
      %v9708 = vpop.f32.mrb[0].mxu0
      %v9709 = vadd.f32 0.0, %v9708
      %v9710 = vpop.f32.mrb[0].mxu0
      %v9711 = vpop.f32.mrb[0].mxu0
      %v9712 = vadd.f32 0.0, %v9711
      %v9713 = vpop.f32.mrb[0].mxu0
      %9714 = vmatprep.mubr.bf16.mxu0 0
      %9715 = vmatmul.mubr.bf16.gmra.mrb[0].mxu0 %v9581
      %v9716 = vpop.f32.mrb[0].mxu0
      %v9717 = vadd.f32 0.0, %v9716
      %v9718 = vpop.f32.mrb[0].mxu0
      %v9719 = vpop.f32.mrb[0].mxu0
      %v9720 = vadd.f32 0.0, %v9719
      %v9721 = vpop.f32.mrb[0].mxu0
      %9722 = vmatprep.mubr.bf16.mxu0 0
      %9723 = vmatmul.mubr.bf16.gmra.mrb[0].mxu0 %v9582
      %v9724 = vpop.f32.mrb[0].mxu0
      %v9725 = vadd.f32 0.0, %v9724
      %v9726 = vpop.f32.mrb[0].mxu0
      %v9727 = vpop.f32.mrb[0].mxu0
      %v9728 = vadd.f32 0.0, %v9727
      %v9729 = vpop.f32.mrb[0].mxu0
      %9730 = vmatprep.mubr.bf16.mxu0 0
      %9731 = vmatmul.mubr.bf16.gmra.mrb[0].mxu0 %v9583
      %v9732 = vpop.f32.mrb[0].mxu0
      %v9733 = vadd.f32 0.0, %v9732
      %v9734 = vpop.f32.mrb[0].mxu0
      %v9735 = vpop.f32.mrb[0].mxu0
      %v9736 = vadd.f32 0.0, %v9735
      %v9737 = vpop.f32.mrb[0].mxu0
      %9738 = vmatprep.mubr.bf16.mxu0 0
      %9739 = vmatmul.mubr.bf16.gmra.mrb[0].mxu0 %v9584
      %v9740 = vpop.f32.mrb[0].mxu0
      %v9741 = vadd.f32 0.0, %v9740
      %v9742 = vpop.f32.mrb[0].mxu0
      %v9743 = vpop.f32.mrb[0].mxu0
      %v9744 = vadd.f32 0.0, %v9743
      %v9745 = vpop.f32.mrb[0].mxu0
      %9746 = vmatprep.mubr.bf16.mxu0 0
      %9747 = vmatmul.mubr.bf16.gmra.mrb[0].mxu0 %v9585
      %v9748 = vpop.f32.mrb[0].mxu0
      %v9749 = vadd.f32 0.0, %v9748
      %v9750 = vpop.f32.mrb[0].mxu0
      %v9751 = vpop.f32.mrb[0].mxu0
      %v9752 = vadd.f32 0.0, %v9751
      %v9753 = vpop.f32.mrb[0].mxu0
      %9754 = vmatprep.mubr.bf16.mxu0 0
      %9755 = vmatmul.mubr.bf16.gmra.mrb[0].mxu0 %v9586
      %v9756 = vpop.f32.mrb[0].mxu0
      %v9757 = vadd.f32 0.0, %v9756
      %v9758 = vpop.f32.mrb[0].mxu0
      %v9759 = vpop.f32.mrb[0].mxu0
      %v9760 = vadd.f32 0.0, %v9759
      %v9761 = vpop.f32.mrb[0].mxu0
      %9762 = vmatprep.mubr.bf16.mxu0 0
      %9763 = vmatmul.mubr.bf16.gmra.mrb[0].mxu0 %v9587
      %v9764 = vpop.f32.mrb[0].mxu0
      %v9765 = vadd.f32 0.0, %v9764
      %v9766 = vpop.f32.mrb[0].mxu0
      %v9767 = vpop.f32.mrb[0].mxu0
      %v9768 = vadd.f32 0.0, %v9767
      %v9769 = vpop.f32.mrb[0].mxu0
      %9770 = vmatprep.mubr.bf16.mxu0 0
      %9771 = vmatmul.mubr.bf16.gmra.mrb[0].mxu0 %v9588
      %v9772 = vpop.f32.mrb[0].mxu0
      %v9773 = vadd.f32 0.0, %v9772
      %v9774 = vpop.f32.mrb[0].mxu0
      %v9775 = vpop.f32.mrb[0].mxu0
      %v9776 = vadd.f32 0.0, %v9775
      %v9777 = vpop.f32.mrb[0].mxu0
      %9778 = vmatprep.mubr.bf16.mxu0 0
      %9779 = vmatmul.mubr.bf16.gmra.mrb[0].mxu0 %v9589
      %v9780 = vpop.f32.mrb[0].mxu0
      %v9781 = vadd.f32 0.0, %v9780
      %v9782 = vpop.f32.mrb[0].mxu0
      %v9783 = vpop.f32.mrb[0].mxu0
      %v9784 = vadd.f32 0.0, %v9783
      %v9785 = vpop.f32.mrb[0].mxu0
      %9786 = vmatprep.mubr.bf16.mxu0 0
      %9787 = vmatmul.mubr.bf16.gmra.mrb[0].mxu0 %v9590
      %v9788 = vpop.f32.mrb[0].mxu0
      %v9789 = vadd.f32 0.0, %v9788
      %v9790 = vpop.f32.mrb[0].mxu0
      %v9791 = vpop.f32.mrb[0].mxu0
      %v9792 = vadd.f32 0.0, %v9791
      %v9793 = vpop.f32.mrb[0].mxu0
      %9794 = vmatprep.mubr.bf16.mxu0 0
      %9795 = vmatmul.mubr.bf16.gmra.mrb[0].mxu0 %v9591
      %v9796 = vpop.f32.mrb[0].mxu0
      %v9797 = vadd.f32 0.0, %v9796
      %v9798 = vpop.f32.mrb[0].mxu0
      %v9799 = vpop.f32.mrb[0].mxu0
      %v9800 = vadd.f32 0.0, %v9799
      %v9801 = vpop.f32.mrb[0].mxu0
      %9802 = vmatprep.mubr.bf16.mxu0 0
      %9803 = vmatmul.mubr.bf16.gmra.mrb[0].mxu0 %v9592
      %v9804 = vpop.f32.mrb[0].mxu0
      %v9805 = vadd.f32 0.0, %v9804
      %v9806 = vpop.f32.mrb[0].mxu0
      %v9807 = vpop.f32.mrb[0].mxu0
      %v9808 = vadd.f32 0.0, %v9807
      %v9809 = vpop.f32.mrb[0].mxu0
      %9810 = vmatprep.mubr.bf16.mxu0 0
      %9811 = vmatmul.mubr.bf16.gmra.mrb[0].mxu0 %v9593
      %v9812 = vpop.f32.mrb[0].mxu0
      %v9813 = vadd.f32 0.0, %v9812
      %v9814 = vpop.f32.mrb[0].mxu0
      %v9815 = vpop.f32.mrb[0].mxu0
      %v9816 = vadd.f32 0.0, %v9815
      %v9817 = vpop.f32.mrb[0].mxu0
      %9818 = vdwg.mxu0
      %v9819 = vadd.f32 %v9433, %v9693
      %v9820 = vadd.f32 %v9434, %v9696
      %v9821 = vadd.f32 %v9435, %v9701
      %v9822 = vadd.f32 %v9436, %v9704
      %v9823 = vadd.f32 %v9437, %v9709
      %v9824 = vadd.f32 %v9438, %v9712
      %v9825 = vadd.f32 %v9439, %v9717
      %v9826 = vadd.f32 %v9440, %v9720
      %v9827 = vadd.f32 %v9441, %v9725
      %v9828 = vadd.f32 %v9442, %v9728
      %v9829 = vadd.f32 %v9443, %v9733
      %v9830 = vadd.f32 %v9444, %v9736
      %v9831 = vadd.f32 %v9445, %v9741
      %v9832 = vadd.f32 %v9446, %v9744
      %v9833 = vadd.f32 %v9447, %v9749
      %v9834 = vadd.f32 %v9448, %v9752
      %v9835 = vadd.f32 %v9449, %v9757
      %v9836 = vadd.f32 %v9450, %v9760
      %v9837 = vadd.f32 %v9451, %v9765
      %v9838 = vadd.f32 %v9452, %v9768
      %v9839 = vadd.f32 %v9453, %v9773
      %v9840 = vadd.f32 %v9454, %v9776
      %v9841 = vadd.f32 %v9455, %v9781
      %v9842 = vadd.f32 %v9456, %v9784
      %v9843 = vadd.f32 %v9457, %v9789
      %v9844 = vadd.f32 %v9458, %v9792
      %v9845 = vadd.f32 %v9459, %v9797
      %v9846 = vadd.f32 %v9460, %v9800
      %v9847 = vadd.f32 %v9461, %v9805
      %v9848 = vadd.f32 %v9462, %v9808
      %v9849 = vadd.f32 %v9463, %v9813
      %v9850 = vadd.f32 %v9464, %v9816
      %v9851 = vld [vmem:[%s4026] sm:$0xf]
      %v9852 = vld [vmem:[%s4026 + $0x4] sm:$0xf]
      %v9853 = vld [vmem:[%s4026 + $0x8] sm:$0x1]
      %v9854 = vld [vmem:[%s4026 + $0xc] sm:$0xf]
      %v9855 = vld [vmem:[%s4026 + $0x10] sm:$0xf]
      %v9856 = vld [vmem:[%s4026 + $0x14] sm:$0x1]
      %v9857 = vld [vmem:[%s4026 + $0x18] sm:$0xf]
      %v9858 = vld [vmem:[%s4026 + $0x1c] sm:$0xf]
      %v9859 = vld [vmem:[%s4026 + $0x20] sm:$0x1]
      %v9860 = vld [vmem:[%s4026 + $0x24] sm:$0xf]
      %v9861 = vld [vmem:[%s4026 + $0x28] sm:$0xf]
      %v9862 = vld [vmem:[%s4026 + $0x2c] sm:$0x1]
      %v9863 = vld [vmem:[%s4026 + $0x30] sm:$0xf]
      %v9864 = vld [vmem:[%s4026 + $0x34] sm:$0xf]
      %v9865 = vld [vmem:[%s4026 + $0x38] sm:$0x1]
      %v9866 = vld [vmem:[%s4026 + $0x3c] sm:$0xf]
      %v9867 = vld [vmem:[%s4026 + $0x40] sm:$0xf]
      %v9868 = vld [vmem:[%s4026 + $0x44] sm:$0x1]
      %v9869 = vld [vmem:[%s4026 + $0x48] sm:$0xf]
      %v9870 = vld [vmem:[%s4026 + $0x4c] sm:$0xf]
      %v9871 = vld [vmem:[%s4026 + $0x50] sm:$0x1]
      %v9872 = vld [vmem:[%s4026 + $0x54] sm:$0xf]
      %v9873 = vld [vmem:[%s4026 + $0x58] sm:$0xf]
      %v9874 = vld [vmem:[%s4026 + $0x5c] sm:$0x1]
      %v9875 = vld [vmem:[%s4026 + $0x60] sm:$0xf]
      %v9876 = vld [vmem:[%s4026 + $0x64] sm:$0xf]
      %v9877 = vld [vmem:[%s4026 + $0x68] sm:$0x1]
      %v9878 = vld [vmem:[%s4026 + $0x6c] sm:$0xf]
      %v9879 = vld [vmem:[%s4026 + $0x70] sm:$0xf]
      %v9880 = vld [vmem:[%s4026 + $0x74] sm:$0x1]
      %v9881 = vld [vmem:[%s4026 + $0x78] sm:$0xf]
      %v9882 = vld [vmem:[%s4026 + $0x7c] sm:$0xf]
      %v9883 = vld [vmem:[%s4026 + $0x80] sm:$0x1]
      %v9884 = vld [vmem:[%s4026 + $0x84] sm:$0xf]
      %v9885 = vld [vmem:[%s4026 + $0x88] sm:$0xf]
      %v9886 = vld [vmem:[%s4026 + $0x8c] sm:$0x1]
      %v9887 = vld [vmem:[%s4026 + $0x90] sm:$0xf]
      %v9888 = vld [vmem:[%s4026 + $0x94] sm:$0xf]
      %v9889 = vld [vmem:[%s4026 + $0x98] sm:$0x1]
      %v9890 = vld [vmem:[%s4026 + $0x9c] sm:$0xf]
      %v9891 = vld [vmem:[%s4026 + $0xa0] sm:$0xf]
      %v9892 = vld [vmem:[%s4026 + $0xa4] sm:$0x1]
      %v9893 = vld [vmem:[%s4026 + $0xa8] sm:$0xf]
      %v9894 = vld [vmem:[%s4026 + $0xac] sm:$0xf]
      %v9895 = vld [vmem:[%s4026 + $0xb0] sm:$0x1]
      %v9896 = vld [vmem:[%s4026 + $0xb4] sm:$0xf]
      %v9897 = vld [vmem:[%s4026 + $0xb8] sm:$0xf]
      %v9898 = vld [vmem:[%s4026 + $0xbc] sm:$0x1]
      %v9900 = vshrl.u32 %v9851, 16
      %v9902 = vrot.slane %v9900, 4
      %v9903 = vshll.u32 %v9851, 16
      %v9905 = vrot.slane %v9903, 5
      %v9906 = vor.u32 %v9902, %v9905
      %v9907 = vrot.slane %v9906, 4
      %v9909 = vshll.u32 %v9852, 16
      %v9911 = vrot.slane %v9909, 5
      %v9912 = vsel %vm923, %v9907, %v9911
      %v9913 = vshrl.u32 %v9852, 16
      %v9915 = vrot.slane %v9913, 4
      %v9916 = vor.u32 %v9915, %v9911
      %v9917 = vrot.slane %v9916, 4
      %v9919 = vshll.u32 %v9853, 16
      %v9921 = vrot.slane %v9919, 5
      %v9922 = vsel %vm923, %v9917, %v9921
      %v9924 = vshrl.u32 %v9854, 16
      %v9926 = vrot.slane %v9924, 4
      %v9927 = vshll.u32 %v9854, 16
      %v9929 = vrot.slane %v9927, 5
      %v9930 = vor.u32 %v9926, %v9929
      %v9931 = vrot.slane %v9930, 4
      %v9933 = vshll.u32 %v9855, 16
      %v9935 = vrot.slane %v9933, 5
      %v9936 = vsel %vm923, %v9931, %v9935
      %v9937 = vshrl.u32 %v9855, 16
      %v9939 = vrot.slane %v9937, 4
      %v9940 = vor.u32 %v9939, %v9935
      %v9941 = vrot.slane %v9940, 4
      %v9943 = vshll.u32 %v9856, 16
      %v9945 = vrot.slane %v9943, 5
      %v9946 = vsel %vm923, %v9941, %v9945
      %v9948 = vshrl.u32 %v9857, 16
      %v9950 = vrot.slane %v9948, 4
      %v9951 = vshll.u32 %v9857, 16
      %v9953 = vrot.slane %v9951, 5
      %v9954 = vor.u32 %v9950, %v9953
      %v9955 = vrot.slane %v9954, 4
      %v9957 = vshll.u32 %v9858, 16
      %v9959 = vrot.slane %v9957, 5
      %v9960 = vsel %vm923, %v9955, %v9959
      %v9961 = vshrl.u32 %v9858, 16
      %v9963 = vrot.slane %v9961, 4
      %v9964 = vor.u32 %v9963, %v9959
      %v9965 = vrot.slane %v9964, 4
      %v9967 = vshll.u32 %v9859, 16
      %v9969 = vrot.slane %v9967, 5
      %v9970 = vsel %vm923, %v9965, %v9969
      %v9972 = vshrl.u32 %v9860, 16
      %v9974 = vrot.slane %v9972, 4
      %v9975 = vshll.u32 %v9860, 16
      %v9977 = vrot.slane %v9975, 5
      %v9978 = vor.u32 %v9974, %v9977
      %v9979 = vrot.slane %v9978, 4
      %v9981 = vshll.u32 %v9861, 16
      %v9983 = vrot.slane %v9981, 5
      %v9984 = vsel %vm923, %v9979, %v9983
      %v9985 = vshrl.u32 %v9861, 16
      %v9987 = vrot.slane %v9985, 4
      %v9988 = vor.u32 %v9987, %v9983
      %v9989 = vrot.slane %v9988, 4
      %v9991 = vshll.u32 %v9862, 16
      %v9993 = vrot.slane %v9991, 5
      %v9994 = vsel %vm923, %v9989, %v9993
      %v9996 = vshrl.u32 %v9863, 16
      %v9998 = vrot.slane %v9996, 4
      %v9999 = vshll.u32 %v9863, 16
      %v10001 = vrot.slane %v9999, 5
      %v10002 = vor.u32 %v9998, %v10001
      %v10003 = vrot.slane %v10002, 4
      %v10005 = vshll.u32 %v9864, 16
      %v10007 = vrot.slane %v10005, 5
      %v10008 = vsel %vm923, %v10003, %v10007
      %v10009 = vshrl.u32 %v9864, 16
      %v10011 = vrot.slane %v10009, 4
      %v10012 = vor.u32 %v10011, %v10007
      %v10013 = vrot.slane %v10012, 4
      %v10015 = vshll.u32 %v9865, 16
      %v10017 = vrot.slane %v10015, 5
      %v10018 = vsel %vm923, %v10013, %v10017
      %v10020 = vshrl.u32 %v9866, 16
      %v10022 = vrot.slane %v10020, 4
      %v10023 = vshll.u32 %v9866, 16
      %v10025 = vrot.slane %v10023, 5
      %v10026 = vor.u32 %v10022, %v10025
      %v10027 = vrot.slane %v10026, 4
      %v10029 = vshll.u32 %v9867, 16
      %v10031 = vrot.slane %v10029, 5
      %v10032 = vsel %vm923, %v10027, %v10031
      %v10033 = vshrl.u32 %v9867, 16
      %v10035 = vrot.slane %v10033, 4
      %v10036 = vor.u32 %v10035, %v10031
      %v10037 = vrot.slane %v10036, 4
      %v10039 = vshll.u32 %v9868, 16
      %v10041 = vrot.slane %v10039, 5
      %v10042 = vsel %vm923, %v10037, %v10041
      %v10044 = vshrl.u32 %v9869, 16
      %v10046 = vrot.slane %v10044, 4
      %v10047 = vshll.u32 %v9869, 16
      %v10049 = vrot.slane %v10047, 5
      %v10050 = vor.u32 %v10046, %v10049
      %v10051 = vrot.slane %v10050, 4
      %v10053 = vshll.u32 %v9870, 16
      %v10055 = vrot.slane %v10053, 5
      %v10056 = vsel %vm923, %v10051, %v10055
      %v10057 = vshrl.u32 %v9870, 16
      %v10059 = vrot.slane %v10057, 4
      %v10060 = vor.u32 %v10059, %v10055
      %v10061 = vrot.slane %v10060, 4
      %v10063 = vshll.u32 %v9871, 16
      %v10065 = vrot.slane %v10063, 5
      %v10066 = vsel %vm923, %v10061, %v10065
      %v10068 = vshrl.u32 %v9872, 16
      %v10070 = vrot.slane %v10068, 4
      %v10071 = vshll.u32 %v9872, 16
      %v10073 = vrot.slane %v10071, 5
      %v10074 = vor.u32 %v10070, %v10073
      %v10075 = vrot.slane %v10074, 4
      %v10077 = vshll.u32 %v9873, 16
      %v10079 = vrot.slane %v10077, 5
      %v10080 = vsel %vm923, %v10075, %v10079
      %v10081 = vshrl.u32 %v9873, 16
      %v10083 = vrot.slane %v10081, 4
      %v10084 = vor.u32 %v10083, %v10079
      %v10085 = vrot.slane %v10084, 4
      %v10087 = vshll.u32 %v9874, 16
      %v10089 = vrot.slane %v10087, 5
      %v10090 = vsel %vm923, %v10085, %v10089
      %v10092 = vshrl.u32 %v9875, 16
      %v10094 = vrot.slane %v10092, 4
      %v10095 = vshll.u32 %v9875, 16
      %v10097 = vrot.slane %v10095, 5
      %v10098 = vor.u32 %v10094, %v10097
      %v10099 = vrot.slane %v10098, 4
      %v10101 = vshll.u32 %v9876, 16
      %v10103 = vrot.slane %v10101, 5
      %v10104 = vsel %vm923, %v10099, %v10103
      %v10105 = vshrl.u32 %v9876, 16
      %v10107 = vrot.slane %v10105, 4
      %v10108 = vor.u32 %v10107, %v10103
      %v10109 = vrot.slane %v10108, 4
      %v10111 = vshll.u32 %v9877, 16
      %v10113 = vrot.slane %v10111, 5
      %v10114 = vsel %vm923, %v10109, %v10113
      %v10116 = vshrl.u32 %v9878, 16
      %v10118 = vrot.slane %v10116, 4
      %v10119 = vshll.u32 %v9878, 16
      %v10121 = vrot.slane %v10119, 5
      %v10122 = vor.u32 %v10118, %v10121
      %v10123 = vrot.slane %v10122, 4
      %v10125 = vshll.u32 %v9879, 16
      %v10127 = vrot.slane %v10125, 5
      %v10128 = vsel %vm923, %v10123, %v10127
      %v10129 = vshrl.u32 %v9879, 16
      %v10131 = vrot.slane %v10129, 4
      %v10132 = vor.u32 %v10131, %v10127
      %v10133 = vrot.slane %v10132, 4
      %v10135 = vshll.u32 %v9880, 16
      %v10137 = vrot.slane %v10135, 5
      %v10138 = vsel %vm923, %v10133, %v10137
      %v10140 = vshrl.u32 %v9881, 16
      %v10142 = vrot.slane %v10140, 4
      %v10143 = vshll.u32 %v9881, 16
      %v10145 = vrot.slane %v10143, 5
      %v10146 = vor.u32 %v10142, %v10145
      %v10147 = vrot.slane %v10146, 4
      %v10149 = vshll.u32 %v9882, 16
      %v10151 = vrot.slane %v10149, 5
      %v10152 = vsel %vm923, %v10147, %v10151
      %v10153 = vshrl.u32 %v9882, 16
      %v10155 = vrot.slane %v10153, 4
      %v10156 = vor.u32 %v10155, %v10151
      %v10157 = vrot.slane %v10156, 4
      %v10159 = vshll.u32 %v9883, 16
      %v10161 = vrot.slane %v10159, 5
      %v10162 = vsel %vm923, %v10157, %v10161
      %v10164 = vshrl.u32 %v9884, 16
      %v10166 = vrot.slane %v10164, 4
      %v10167 = vshll.u32 %v9884, 16
      %v10169 = vrot.slane %v10167, 5
      %v10170 = vor.u32 %v10166, %v10169
      %v10171 = vrot.slane %v10170, 4
      %v10173 = vshll.u32 %v9885, 16
      %v10175 = vrot.slane %v10173, 5
      %v10176 = vsel %vm923, %v10171, %v10175
      %v10177 = vshrl.u32 %v9885, 16
      %v10179 = vrot.slane %v10177, 4
      %v10180 = vor.u32 %v10179, %v10175
      %v10181 = vrot.slane %v10180, 4
      %v10183 = vshll.u32 %v9886, 16
      %v10185 = vrot.slane %v10183, 5
      %v10186 = vsel %vm923, %v10181, %v10185
      %v10188 = vshrl.u32 %v9887, 16
      %v10190 = vrot.slane %v10188, 4
      %v10191 = vshll.u32 %v9887, 16
      %v10193 = vrot.slane %v10191, 5
      %v10194 = vor.u32 %v10190, %v10193
      %v10195 = vrot.slane %v10194, 4
      %v10197 = vshll.u32 %v9888, 16
      %v10199 = vrot.slane %v10197, 5
      %v10200 = vsel %vm923, %v10195, %v10199
      %v10201 = vshrl.u32 %v9888, 16
      %v10203 = vrot.slane %v10201, 4
      %v10204 = vor.u32 %v10203, %v10199
      %v10205 = vrot.slane %v10204, 4
      %v10207 = vshll.u32 %v9889, 16
      %v10209 = vrot.slane %v10207, 5
      %v10210 = vsel %vm923, %v10205, %v10209
      %v10212 = vshrl.u32 %v9890, 16
      %v10214 = vrot.slane %v10212, 4
      %v10215 = vshll.u32 %v9890, 16
      %v10217 = vrot.slane %v10215, 5
      %v10218 = vor.u32 %v10214, %v10217
      %v10219 = vrot.slane %v10218, 4
      %v10221 = vshll.u32 %v9891, 16
      %v10223 = vrot.slane %v10221, 5
      %v10224 = vsel %vm923, %v10219, %v10223
      %v10225 = vshrl.u32 %v9891, 16
      %v10227 = vrot.slane %v10225, 4
      %v10228 = vor.u32 %v10227, %v10223
      %v10229 = vrot.slane %v10228, 4
      %v10231 = vshll.u32 %v9892, 16
      %v10233 = vrot.slane %v10231, 5
      %v10234 = vsel %vm923, %v10229, %v10233
      %v10236 = vshrl.u32 %v9893, 16
      %v10238 = vrot.slane %v10236, 4
      %v10239 = vshll.u32 %v9893, 16
      %v10241 = vrot.slane %v10239, 5
      %v10242 = vor.u32 %v10238, %v10241
      %v10243 = vrot.slane %v10242, 4
      %v10245 = vshll.u32 %v9894, 16
      %v10247 = vrot.slane %v10245, 5
      %v10248 = vsel %vm923, %v10243, %v10247
      %v10249 = vshrl.u32 %v9894, 16
      %v10251 = vrot.slane %v10249, 4
      %v10252 = vor.u32 %v10251, %v10247
      %v10253 = vrot.slane %v10252, 4
      %v10255 = vshll.u32 %v9895, 16
      %v10257 = vrot.slane %v10255, 5
      %v10258 = vsel %vm923, %v10253, %v10257
      %v10260 = vshrl.u32 %v9896, 16
      %v10262 = vrot.slane %v10260, 4
      %v10263 = vshll.u32 %v9896, 16
      %v10265 = vrot.slane %v10263, 5
      %v10266 = vor.u32 %v10262, %v10265
      %v10267 = vrot.slane %v10266, 4
      %v10269 = vshll.u32 %v9897, 16
      %v10271 = vrot.slane %v10269, 5
      %v10272 = vsel %vm923, %v10267, %v10271
      %v10273 = vshrl.u32 %v9897, 16
      %v10275 = vrot.slane %v10273, 4
      %v10276 = vor.u32 %v10275, %v10271
      %v10277 = vrot.slane %v10276, 4
      %v10279 = vshll.u32 %v9898, 16
      %v10281 = vrot.slane %v10279, 5
      %v10282 = vsel %vm923, %v10277, %v10281
      %s10283 = scalar_lea.vmem %s4, 448
      %v10284 = vld [vmem:[%s10283] sm:$0xf]
      %v10285 = vld [vmem:[%s10283 + $0x4] sm:$0xf]
      %v10286 = vld [vmem:[%s10283 + $0x8] sm:$0xf]
      %v10287 = vld [vmem:[%s10283 + $0xc] sm:$0xf]
      %v10288 = vld [vmem:[%s10283 + $0x10] sm:$0xf]
      %v10289 = vld [vmem:[%s10283 + $0x14] sm:$0xf]
      %v10290 = vld [vmem:[%s10283 + $0x18] sm:$0xf]
      %v10291 = vld [vmem:[%s10283 + $0x1c] sm:$0xf]
      %v10292 = vld [vmem:[%s10283 + $0x20] sm:$0xf]
      %v10293 = vld [vmem:[%s10283 + $0x24] sm:$0xf]
      %v10294 = vld [vmem:[%s10283 + $0x28] sm:$0xf]
      %v10295 = vld [vmem:[%s10283 + $0x2c] sm:$0xf]
      %v10296 = vld [vmem:[%s10283 + $0x30] sm:$0xf]
      %v10297 = vld [vmem:[%s10283 + $0x34] sm:$0xf]
      %v10298 = vld [vmem:[%s10283 + $0x38] sm:$0xf]
      %v10299 = vld [vmem:[%s10283 + $0x3c] sm:$0xf]
      %v10300 = vunpack.c.l.b16 %v9912
      %v10301 = vunpack.c.l.b16 %v9922
      %v10302 = vunpack.c.l.b16 %v9936
      %v10303 = vunpack.c.l.b16 %v9946
      %v10304 = vunpack.c.l.b16 %v9960
      %v10305 = vunpack.c.l.b16 %v9970
      %v10306 = vunpack.c.l.b16 %v9984
      %v10307 = vunpack.c.l.b16 %v9994
      %v10308 = vunpack.c.l.b16 %v10008
      %v10309 = vunpack.c.l.b16 %v10018
      %v10310 = vunpack.c.l.b16 %v10032
      %v10311 = vunpack.c.l.b16 %v10042
      %v10312 = vunpack.c.l.b16 %v10056
      %v10313 = vunpack.c.l.b16 %v10066
      %v10314 = vunpack.c.l.b16 %v10080
      %v10315 = vunpack.c.l.b16 %v10090
      %v10316 = vunpack.c.l.b16 %v10104
      %v10317 = vunpack.c.l.b16 %v10114
      %v10318 = vunpack.c.l.b16 %v10128
      %v10319 = vunpack.c.l.b16 %v10138
      %v10320 = vunpack.c.l.b16 %v10152
      %v10321 = vunpack.c.l.b16 %v10162
      %v10322 = vunpack.c.l.b16 %v10176
      %v10323 = vunpack.c.l.b16 %v10186
      %v10324 = vunpack.c.l.b16 %v10200
      %v10325 = vunpack.c.l.b16 %v10210
      %v10326 = vunpack.c.l.b16 %v10224
      %v10327 = vunpack.c.l.b16 %v10234
      %v10328 = vunpack.c.l.b16 %v10248
      %v10329 = vunpack.c.l.b16 %v10258
      %v10330 = vunpack.c.l.b16 %v10272
      %v10331 = vunpack.c.l.b16 %v10282
      %v10332 = vpack.c.b16 %v10301, %v10300
      %v10333 = vpack.c.b16 %v10303, %v10302
      %v10334 = vpack.c.b16 %v10305, %v10304
      %v10335 = vpack.c.b16 %v10307, %v10306
      %v10336 = vpack.c.b16 %v10309, %v10308
      %v10337 = vpack.c.b16 %v10311, %v10310
      %v10338 = vpack.c.b16 %v10313, %v10312
      %v10339 = vpack.c.b16 %v10315, %v10314
      %v10340 = vpack.c.b16 %v10317, %v10316
      %v10341 = vpack.c.b16 %v10319, %v10318
      %v10342 = vpack.c.b16 %v10321, %v10320
      %v10343 = vpack.c.b16 %v10323, %v10322
      %v10344 = vpack.c.b16 %v10325, %v10324
      %v10345 = vpack.c.b16 %v10327, %v10326
      %v10346 = vpack.c.b16 %v10329, %v10328
      %v10347 = vpack.c.b16 %v10331, %v10330
      %v10380 = vunpack.c.l.b16 %v10284
      %v10381 = vunpack.c.l.b16 %v10285
      %v10382 = vunpack.c.l.b16 %v10286
      %v10383 = vunpack.c.l.b16 %v10287
      %v10384 = vunpack.c.l.b16 %v10288
      %v10385 = vunpack.c.l.b16 %v10289
      %v10386 = vunpack.c.l.b16 %v10290
      %v10387 = vunpack.c.l.b16 %v10291
      %v10388 = vunpack.c.l.b16 %v10292
      %v10389 = vunpack.c.l.b16 %v10293
      %v10390 = vunpack.c.l.b16 %v10294
      %v10391 = vunpack.c.l.b16 %v10295
      %v10392 = vunpack.c.l.b16 %v10296
      %v10393 = vunpack.c.l.b16 %v10297
      %v10394 = vunpack.c.l.b16 %v10298
      %v10395 = vunpack.c.l.b16 %v10299
      %v10396 = vpack.c.b16 %v10381, %v10380
      %v10397 = vpack.c.b16 %v10383, %v10382
      %v10398 = vpack.c.b16 %v10385, %v10384
      %v10399 = vpack.c.b16 %v10387, %v10386
      %v10400 = vpack.c.b16 %v10389, %v10388
      %v10401 = vpack.c.b16 %v10391, %v10390
      %v10402 = vpack.c.b16 %v10393, %v10392
      %v10403 = vpack.c.b16 %v10395, %v10394
      %10412 = vmatprep.subr.bf16.mxu0 0
      %10413 = vmatpush1.bf16.msra.mxu0 %v10396
      %10414 = vmatprep.subr.bf16.mxu0 0
      %10415 = vmatpush1.bf16.msra.mxu0 %v10397
      %10416 = vmatprep.subr.bf16.mxu0 0
      %10417 = vmatpush1.bf16.msra.mxu0 %v10398
      %10418 = vmatprep.subr.bf16.mxu0 0
      %10419 = vmatpush1.bf16.msra.mxu0 %v10399
      %10420 = vmatprep.subr.bf16.mxu0 0
      %10421 = vmatpush1.bf16.msra.mxu0 %v10400
      %10422 = vmatprep.subr.bf16.mxu0 0
      %10423 = vmatpush1.bf16.msra.mxu0 %v10401
      %10424 = vmatprep.subr.bf16.mxu0 0
      %10425 = vmatpush1.bf16.msra.mxu0 %v10402
      %10426 = vmatprep.subr.bf16.mxu0 0
      %10427 = vmatpush1.bf16.msra.mxu0 %v10403
      %10428 = vmatprep.subr.bf16.mxu0 0
      %10429 = vmatpush1.bf16.msra.mxu0 0
      %10430 = vmatprep.subr.bf16.mxu0 0
      %10431 = vmatpush1.bf16.msra.mxu0 0
      %10432 = vmatprep.subr.bf16.mxu0 0
      %10433 = vmatpush1.bf16.msra.mxu0 0
      %10434 = vmatprep.subr.bf16.mxu0 0
      %10435 = vmatpush1.bf16.msra.mxu0 0
      %10436 = vmatprep.subr.bf16.mxu0 0
      %10437 = vmatpush1.bf16.msra.mxu0 0
      %10438 = vmatprep.subr.bf16.mxu0 0
      %10439 = vmatpush1.bf16.msra.mxu0 0
      %10440 = vmatprep.subr.bf16.mxu0 0
      %10441 = vmatpush1.bf16.msra.mxu0 0
      %10442 = vmatprep.subr.bf16.mxu0 0
      %10443 = vmatpush1.bf16.msra.mxu0 0
      %10444 = vmatprep.mubr.bf16.mxu0 0
      %10445 = vmatmul.mubr.bf16.gmra.mrb[0].mxu0 %v10332
      %v10446 = vpop.f32.mrb[0].mxu0
      %v10447 = vadd.f32 0.0, %v10446
      %v10448 = vpop.f32.mrb[0].mxu0
      %v10449 = vpop.f32.mrb[0].mxu0
      %v10450 = vadd.f32 0.0, %v10449
      %v10451 = vpop.f32.mrb[0].mxu0
      %10452 = vmatprep.mubr.bf16.mxu0 0
      %10453 = vmatmul.mubr.bf16.gmra.mrb[0].mxu0 %v10333
      %v10454 = vpop.f32.mrb[0].mxu0
      %v10455 = vadd.f32 0.0, %v10454
      %v10456 = vpop.f32.mrb[0].mxu0
      %v10457 = vpop.f32.mrb[0].mxu0
      %v10458 = vadd.f32 0.0, %v10457
      %v10459 = vpop.f32.mrb[0].mxu0
      %10460 = vmatprep.mubr.bf16.mxu0 0
      %10461 = vmatmul.mubr.bf16.gmra.mrb[0].mxu0 %v10334
      %v10462 = vpop.f32.mrb[0].mxu0
      %v10463 = vadd.f32 0.0, %v10462
      %v10464 = vpop.f32.mrb[0].mxu0
      %v10465 = vpop.f32.mrb[0].mxu0
      %v10466 = vadd.f32 0.0, %v10465
      %v10467 = vpop.f32.mrb[0].mxu0
      %10468 = vmatprep.mubr.bf16.mxu0 0
      %10469 = vmatmul.mubr.bf16.gmra.mrb[0].mxu0 %v10335
      %v10470 = vpop.f32.mrb[0].mxu0
      %v10471 = vadd.f32 0.0, %v10470
      %v10472 = vpop.f32.mrb[0].mxu0
      %v10473 = vpop.f32.mrb[0].mxu0
      %v10474 = vadd.f32 0.0, %v10473
      %v10475 = vpop.f32.mrb[0].mxu0
      %10476 = vmatprep.mubr.bf16.mxu0 0
      %10477 = vmatmul.mubr.bf16.gmra.mrb[0].mxu0 %v10336
      %v10478 = vpop.f32.mrb[0].mxu0
      %v10479 = vadd.f32 0.0, %v10478
      %v10480 = vpop.f32.mrb[0].mxu0
      %v10481 = vpop.f32.mrb[0].mxu0
      %v10482 = vadd.f32 0.0, %v10481
      %v10483 = vpop.f32.mrb[0].mxu0
      %10484 = vmatprep.mubr.bf16.mxu0 0
      %10485 = vmatmul.mubr.bf16.gmra.mrb[0].mxu0 %v10337
      %v10486 = vpop.f32.mrb[0].mxu0
      %v10487 = vadd.f32 0.0, %v10486
      %v10488 = vpop.f32.mrb[0].mxu0
      %v10489 = vpop.f32.mrb[0].mxu0
      %v10490 = vadd.f32 0.0, %v10489
      %v10491 = vpop.f32.mrb[0].mxu0
      %10492 = vmatprep.mubr.bf16.mxu0 0
      %10493 = vmatmul.mubr.bf16.gmra.mrb[0].mxu0 %v10338
      %v10494 = vpop.f32.mrb[0].mxu0
      %v10495 = vadd.f32 0.0, %v10494
      %v10496 = vpop.f32.mrb[0].mxu0
      %v10497 = vpop.f32.mrb[0].mxu0
      %v10498 = vadd.f32 0.0, %v10497
      %v10499 = vpop.f32.mrb[0].mxu0
      %10500 = vmatprep.mubr.bf16.mxu0 0
      %10501 = vmatmul.mubr.bf16.gmra.mrb[0].mxu0 %v10339
      %v10502 = vpop.f32.mrb[0].mxu0
      %v10503 = vadd.f32 0.0, %v10502
      %v10504 = vpop.f32.mrb[0].mxu0
      %v10505 = vpop.f32.mrb[0].mxu0
      %v10506 = vadd.f32 0.0, %v10505
      %v10507 = vpop.f32.mrb[0].mxu0
      %10508 = vmatprep.mubr.bf16.mxu0 0
      %10509 = vmatmul.mubr.bf16.gmra.mrb[0].mxu0 %v10340
      %v10510 = vpop.f32.mrb[0].mxu0
      %v10511 = vadd.f32 0.0, %v10510
      %v10512 = vpop.f32.mrb[0].mxu0
      %v10513 = vpop.f32.mrb[0].mxu0
      %v10514 = vadd.f32 0.0, %v10513
      %v10515 = vpop.f32.mrb[0].mxu0
      %10516 = vmatprep.mubr.bf16.mxu0 0
      %10517 = vmatmul.mubr.bf16.gmra.mrb[0].mxu0 %v10341
      %v10518 = vpop.f32.mrb[0].mxu0
      %v10519 = vadd.f32 0.0, %v10518
      %v10520 = vpop.f32.mrb[0].mxu0
      %v10521 = vpop.f32.mrb[0].mxu0
      %v10522 = vadd.f32 0.0, %v10521
      %v10523 = vpop.f32.mrb[0].mxu0
      %10524 = vmatprep.mubr.bf16.mxu0 0
      %10525 = vmatmul.mubr.bf16.gmra.mrb[0].mxu0 %v10342
      %v10526 = vpop.f32.mrb[0].mxu0
      %v10527 = vadd.f32 0.0, %v10526
      %v10528 = vpop.f32.mrb[0].mxu0
      %v10529 = vpop.f32.mrb[0].mxu0
      %v10530 = vadd.f32 0.0, %v10529
      %v10531 = vpop.f32.mrb[0].mxu0
      %10532 = vmatprep.mubr.bf16.mxu0 0
      %10533 = vmatmul.mubr.bf16.gmra.mrb[0].mxu0 %v10343
      %v10534 = vpop.f32.mrb[0].mxu0
      %v10535 = vadd.f32 0.0, %v10534
      %v10536 = vpop.f32.mrb[0].mxu0
      %v10537 = vpop.f32.mrb[0].mxu0
      %v10538 = vadd.f32 0.0, %v10537
      %v10539 = vpop.f32.mrb[0].mxu0
      %10540 = vmatprep.mubr.bf16.mxu0 0
      %10541 = vmatmul.mubr.bf16.gmra.mrb[0].mxu0 %v10344
      %v10542 = vpop.f32.mrb[0].mxu0
      %v10543 = vadd.f32 0.0, %v10542
      %v10544 = vpop.f32.mrb[0].mxu0
      %v10545 = vpop.f32.mrb[0].mxu0
      %v10546 = vadd.f32 0.0, %v10545
      %v10547 = vpop.f32.mrb[0].mxu0
      %10548 = vmatprep.mubr.bf16.mxu0 0
      %10549 = vmatmul.mubr.bf16.gmra.mrb[0].mxu0 %v10345
      %v10550 = vpop.f32.mrb[0].mxu0
      %v10551 = vadd.f32 0.0, %v10550
      %v10552 = vpop.f32.mrb[0].mxu0
      %v10553 = vpop.f32.mrb[0].mxu0
      %v10554 = vadd.f32 0.0, %v10553
      %v10555 = vpop.f32.mrb[0].mxu0
      %10556 = vmatprep.mubr.bf16.mxu0 0
      %10557 = vmatmul.mubr.bf16.gmra.mrb[0].mxu0 %v10346
      %v10558 = vpop.f32.mrb[0].mxu0
      %v10559 = vadd.f32 0.0, %v10558
      %v10560 = vpop.f32.mrb[0].mxu0
      %v10561 = vpop.f32.mrb[0].mxu0
      %v10562 = vadd.f32 0.0, %v10561
      %v10563 = vpop.f32.mrb[0].mxu0
      %10564 = vmatprep.mubr.bf16.mxu0 0
      %10565 = vmatmul.mubr.bf16.gmra.mrb[0].mxu0 %v10347
      %v10566 = vpop.f32.mrb[0].mxu0
      %v10567 = vadd.f32 0.0, %v10566
      %v10568 = vpop.f32.mrb[0].mxu0
      %v10569 = vpop.f32.mrb[0].mxu0
      %v10570 = vadd.f32 0.0, %v10569
      %v10571 = vpop.f32.mrb[0].mxu0
      %10572 = vdwg.mxu0
      %v10573 = vadd.f32 %v9819, %v10447
      %v10574 = vadd.f32 %v9820, %v10450
      %v10575 = vadd.f32 %v9821, %v10455
      %v10576 = vadd.f32 %v9822, %v10458
      %v10577 = vadd.f32 %v9823, %v10463
      %v10578 = vadd.f32 %v9824, %v10466
      %v10579 = vadd.f32 %v9825, %v10471
      %v10580 = vadd.f32 %v9826, %v10474
      %v10581 = vadd.f32 %v9827, %v10479
      %v10582 = vadd.f32 %v9828, %v10482
      %v10583 = vadd.f32 %v9829, %v10487
      %v10584 = vadd.f32 %v9830, %v10490
      %v10585 = vadd.f32 %v9831, %v10495
      %v10586 = vadd.f32 %v9832, %v10498
      %v10587 = vadd.f32 %v9833, %v10503
      %v10588 = vadd.f32 %v9834, %v10506
      %v10589 = vadd.f32 %v9835, %v10511
      %v10590 = vadd.f32 %v9836, %v10514
      %v10591 = vadd.f32 %v9837, %v10519
      %v10592 = vadd.f32 %v9838, %v10522
      %v10593 = vadd.f32 %v9839, %v10527
      %v10594 = vadd.f32 %v9840, %v10530
      %v10595 = vadd.f32 %v9841, %v10535
      %v10596 = vadd.f32 %v9842, %v10538
      %v10597 = vadd.f32 %v9843, %v10543
      %v10598 = vadd.f32 %v9844, %v10546
      %v10599 = vadd.f32 %v9845, %v10551
      %v10600 = vadd.f32 %v9846, %v10554
      %v10601 = vadd.f32 %v9847, %v10559
      %v10602 = vadd.f32 %v9848, %v10562
      %v10603 = vadd.f32 %v9849, %v10567
      %v10604 = vadd.f32 %v9850, %v10570
      %v10605 = vld [vmem:[%s4026] sm:$0xe]
      %v10606 = vld [vmem:[%s4026 + $0xc] sm:$0xe]
      %v10607 = vld [vmem:[%s4026 + $0x18] sm:$0xe]
      %v10608 = vld [vmem:[%s4026 + $0x24] sm:$0xe]
      %v10609 = vld [vmem:[%s4026 + $0x30] sm:$0xe]
      %v10610 = vld [vmem:[%s4026 + $0x3c] sm:$0xe]
      %v10611 = vld [vmem:[%s4026 + $0x48] sm:$0xe]
      %v10612 = vld [vmem:[%s4026 + $0x54] sm:$0xe]
      %v10613 = vld [vmem:[%s4026 + $0x60] sm:$0xe]
      %v10614 = vld [vmem:[%s4026 + $0x6c] sm:$0xe]
      %v10615 = vld [vmem:[%s4026 + $0x78] sm:$0xe]
      %v10616 = vld [vmem:[%s4026 + $0x84] sm:$0xe]
      %v10617 = vld [vmem:[%s4026 + $0x90] sm:$0xe]
      %v10618 = vld [vmem:[%s4026 + $0x9c] sm:$0xe]
      %v10619 = vld [vmem:[%s4026 + $0xa8] sm:$0xe]
      %v10620 = vld [vmem:[%s4026 + $0xb4] sm:$0xe]
      %v10669 = vrot.slane %v10605, 5
      %v10670 = vrot.slane %v10669, 4
      %v10671 = vrot.slane %v9852, 5
      %v10672 = vsel %vm1953, %v10670, %v10671
      %v10673 = vrot.slane %v10671, 4
      %v10674 = vrot.slane %v9853, 5
      %v10675 = vsel %vm1953, %v10673, %v10674
      %v10676 = vrot.slane %v10606, 5
      %v10677 = vrot.slane %v10676, 4
      %v10678 = vrot.slane %v9855, 5
      %v10679 = vsel %vm1953, %v10677, %v10678
      %v10680 = vrot.slane %v10678, 4
      %v10681 = vrot.slane %v9856, 5
      %v10682 = vsel %vm1953, %v10680, %v10681
      %v10683 = vrot.slane %v10607, 5
      %v10684 = vrot.slane %v10683, 4
      %v10685 = vrot.slane %v9858, 5
      %v10686 = vsel %vm1953, %v10684, %v10685
      %v10687 = vrot.slane %v10685, 4
      %v10688 = vrot.slane %v9859, 5
      %v10689 = vsel %vm1953, %v10687, %v10688
      %v10690 = vrot.slane %v10608, 5
      %v10691 = vrot.slane %v10690, 4
      %v10692 = vrot.slane %v9861, 5
      %v10693 = vsel %vm1953, %v10691, %v10692
      %v10694 = vrot.slane %v10692, 4
      %v10695 = vrot.slane %v9862, 5
      %v10696 = vsel %vm1953, %v10694, %v10695
      %v10697 = vrot.slane %v10609, 5
      %v10698 = vrot.slane %v10697, 4
      %v10699 = vrot.slane %v9864, 5
      %v10700 = vsel %vm1953, %v10698, %v10699
      %v10701 = vrot.slane %v10699, 4
      %v10702 = vrot.slane %v9865, 5
      %v10703 = vsel %vm1953, %v10701, %v10702
      %v10704 = vrot.slane %v10610, 5
      %v10705 = vrot.slane %v10704, 4
      %v10706 = vrot.slane %v9867, 5
      %v10707 = vsel %vm1953, %v10705, %v10706
      %v10708 = vrot.slane %v10706, 4
      %v10709 = vrot.slane %v9868, 5
      %v10710 = vsel %vm1953, %v10708, %v10709
      %v10711 = vrot.slane %v10611, 5
      %v10712 = vrot.slane %v10711, 4
      %v10713 = vrot.slane %v9870, 5
      %v10714 = vsel %vm1953, %v10712, %v10713
      %v10715 = vrot.slane %v10713, 4
      %v10716 = vrot.slane %v9871, 5
      %v10717 = vsel %vm1953, %v10715, %v10716
      %v10718 = vrot.slane %v10612, 5
      %v10719 = vrot.slane %v10718, 4
      %v10720 = vrot.slane %v9873, 5
      %v10721 = vsel %vm1953, %v10719, %v10720
      %v10722 = vrot.slane %v10720, 4
      %v10723 = vrot.slane %v9874, 5
      %v10724 = vsel %vm1953, %v10722, %v10723
      %v10725 = vrot.slane %v10613, 5
      %v10726 = vrot.slane %v10725, 4
      %v10727 = vrot.slane %v9876, 5
      %v10728 = vsel %vm1953, %v10726, %v10727
      %v10729 = vrot.slane %v10727, 4
      %v10730 = vrot.slane %v9877, 5
      %v10731 = vsel %vm1953, %v10729, %v10730
      %v10732 = vrot.slane %v10614, 5
      %v10733 = vrot.slane %v10732, 4
      %v10734 = vrot.slane %v9879, 5
      %v10735 = vsel %vm1953, %v10733, %v10734
      %v10736 = vrot.slane %v10734, 4
      %v10737 = vrot.slane %v9880, 5
      %v10738 = vsel %vm1953, %v10736, %v10737
      %v10739 = vrot.slane %v10615, 5
      %v10740 = vrot.slane %v10739, 4
      %v10741 = vrot.slane %v9882, 5
      %v10742 = vsel %vm1953, %v10740, %v10741
      %v10743 = vrot.slane %v10741, 4
      %v10744 = vrot.slane %v9883, 5
      %v10745 = vsel %vm1953, %v10743, %v10744
      %v10746 = vrot.slane %v10616, 5
      %v10747 = vrot.slane %v10746, 4
      %v10748 = vrot.slane %v9885, 5
      %v10749 = vsel %vm1953, %v10747, %v10748
      %v10750 = vrot.slane %v10748, 4
      %v10751 = vrot.slane %v9886, 5
      %v10752 = vsel %vm1953, %v10750, %v10751
      %v10753 = vrot.slane %v10617, 5
      %v10754 = vrot.slane %v10753, 4
      %v10755 = vrot.slane %v9888, 5
      %v10756 = vsel %vm1953, %v10754, %v10755
      %v10757 = vrot.slane %v10755, 4
      %v10758 = vrot.slane %v9889, 5
      %v10759 = vsel %vm1953, %v10757, %v10758
      %v10760 = vrot.slane %v10618, 5
      %v10761 = vrot.slane %v10760, 4
      %v10762 = vrot.slane %v9891, 5
      %v10763 = vsel %vm1953, %v10761, %v10762
      %v10764 = vrot.slane %v10762, 4
      %v10765 = vrot.slane %v9892, 5
      %v10766 = vsel %vm1953, %v10764, %v10765
      %v10767 = vrot.slane %v10619, 5
      %v10768 = vrot.slane %v10767, 4
      %v10769 = vrot.slane %v9894, 5
      %v10770 = vsel %vm1953, %v10768, %v10769
      %v10771 = vrot.slane %v10769, 4
      %v10772 = vrot.slane %v9895, 5
      %v10773 = vsel %vm1953, %v10771, %v10772
      %v10774 = vrot.slane %v10620, 5
      %v10775 = vrot.slane %v10774, 4
      %v10776 = vrot.slane %v9897, 5
      %v10777 = vsel %vm1953, %v10775, %v10776
      %v10778 = vrot.slane %v10776, 4
      %v10779 = vrot.slane %v9898, 5
      %v10780 = vsel %vm1953, %v10778, %v10779
      %s10781 = scalar_lea.vmem %s4, 512
      %v10782 = vld [vmem:[%s10781] sm:$0xf]
      %v10783 = vld [vmem:[%s10781 + $0x4] sm:$0xf]
      %v10784 = vld [vmem:[%s10781 + $0x8] sm:$0xf]
      %v10785 = vld [vmem:[%s10781 + $0xc] sm:$0xf]
      %v10786 = vld [vmem:[%s10781 + $0x10] sm:$0xf]
      %v10787 = vld [vmem:[%s10781 + $0x14] sm:$0xf]
      %v10788 = vld [vmem:[%s10781 + $0x18] sm:$0xf]
      %v10789 = vld [vmem:[%s10781 + $0x1c] sm:$0xf]
      %v10790 = vld [vmem:[%s10781 + $0x20] sm:$0xf]
      %v10791 = vld [vmem:[%s10781 + $0x24] sm:$0xf]
      %v10792 = vld [vmem:[%s10781 + $0x28] sm:$0xf]
      %v10793 = vld [vmem:[%s10781 + $0x2c] sm:$0xf]
      %v10794 = vld [vmem:[%s10781 + $0x30] sm:$0xf]
      %v10795 = vld [vmem:[%s10781 + $0x34] sm:$0xf]
      %v10796 = vld [vmem:[%s10781 + $0x38] sm:$0xf]
      %v10797 = vld [vmem:[%s10781 + $0x3c] sm:$0xf]
      %v10798 = vunpack.c.l.b16 %v10672
      %v10799 = vunpack.c.l.b16 %v10675
      %v10800 = vunpack.c.l.b16 %v10679
      %v10801 = vunpack.c.l.b16 %v10682
      %v10802 = vunpack.c.l.b16 %v10686
      %v10803 = vunpack.c.l.b16 %v10689
      %v10804 = vunpack.c.l.b16 %v10693
      %v10805 = vunpack.c.l.b16 %v10696
      %v10806 = vunpack.c.l.b16 %v10700
      %v10807 = vunpack.c.l.b16 %v10703
      %v10808 = vunpack.c.l.b16 %v10707
      %v10809 = vunpack.c.l.b16 %v10710
      %v10810 = vunpack.c.l.b16 %v10714
      %v10811 = vunpack.c.l.b16 %v10717
      %v10812 = vunpack.c.l.b16 %v10721
      %v10813 = vunpack.c.l.b16 %v10724
      %v10814 = vunpack.c.l.b16 %v10728
      %v10815 = vunpack.c.l.b16 %v10731
      %v10816 = vunpack.c.l.b16 %v10735
      %v10817 = vunpack.c.l.b16 %v10738
      %v10818 = vunpack.c.l.b16 %v10742
      %v10819 = vunpack.c.l.b16 %v10745
      %v10820 = vunpack.c.l.b16 %v10749
      %v10821 = vunpack.c.l.b16 %v10752
      %v10822 = vunpack.c.l.b16 %v10756
      %v10823 = vunpack.c.l.b16 %v10759
      %v10824 = vunpack.c.l.b16 %v10763
      %v10825 = vunpack.c.l.b16 %v10766
      %v10826 = vunpack.c.l.b16 %v10770
      %v10827 = vunpack.c.l.b16 %v10773
      %v10828 = vunpack.c.l.b16 %v10777
      %v10829 = vunpack.c.l.b16 %v10780
      %v10830 = vpack.c.b16 %v10799, %v10798
      %v10831 = vpack.c.b16 %v10801, %v10800
      %v10832 = vpack.c.b16 %v10803, %v10802
      %v10833 = vpack.c.b16 %v10805, %v10804
      %v10834 = vpack.c.b16 %v10807, %v10806
      %v10835 = vpack.c.b16 %v10809, %v10808
      %v10836 = vpack.c.b16 %v10811, %v10810
      %v10837 = vpack.c.b16 %v10813, %v10812
      %v10838 = vpack.c.b16 %v10815, %v10814
      %v10839 = vpack.c.b16 %v10817, %v10816
      %v10840 = vpack.c.b16 %v10819, %v10818
      %v10841 = vpack.c.b16 %v10821, %v10820
      %v10842 = vpack.c.b16 %v10823, %v10822
      %v10843 = vpack.c.b16 %v10825, %v10824
      %v10844 = vpack.c.b16 %v10827, %v10826
      %v10845 = vpack.c.b16 %v10829, %v10828
      %v10878 = vunpack.c.l.b16 %v10782
      %v10879 = vunpack.c.l.b16 %v10783
      %v10880 = vunpack.c.l.b16 %v10784
      %v10881 = vunpack.c.l.b16 %v10785
      %v10882 = vunpack.c.l.b16 %v10786
      %v10883 = vunpack.c.l.b16 %v10787
      %v10884 = vunpack.c.l.b16 %v10788
      %v10885 = vunpack.c.l.b16 %v10789
      %v10886 = vunpack.c.l.b16 %v10790
      %v10887 = vunpack.c.l.b16 %v10791
      %v10888 = vunpack.c.l.b16 %v10792
      %v10889 = vunpack.c.l.b16 %v10793
      %v10890 = vunpack.c.l.b16 %v10794
      %v10891 = vunpack.c.l.b16 %v10795
      %v10892 = vunpack.c.l.b16 %v10796
      %v10893 = vunpack.c.l.b16 %v10797
      %v10894 = vpack.c.b16 %v10879, %v10878
      %v10895 = vpack.c.b16 %v10881, %v10880
      %v10896 = vpack.c.b16 %v10883, %v10882
      %v10897 = vpack.c.b16 %v10885, %v10884
      %v10898 = vpack.c.b16 %v10887, %v10886
      %v10899 = vpack.c.b16 %v10889, %v10888
      %v10900 = vpack.c.b16 %v10891, %v10890
      %v10901 = vpack.c.b16 %v10893, %v10892
      %10910 = vmatprep.subr.bf16.mxu0 0
      %10911 = vmatpush1.bf16.msra.mxu0 %v10894
      %10912 = vmatprep.subr.bf16.mxu0 0
      %10913 = vmatpush1.bf16.msra.mxu0 %v10895
      %10914 = vmatprep.subr.bf16.mxu0 0
      %10915 = vmatpush1.bf16.msra.mxu0 %v10896
      %10916 = vmatprep.subr.bf16.mxu0 0
      %10917 = vmatpush1.bf16.msra.mxu0 %v10897
      %10918 = vmatprep.subr.bf16.mxu0 0
      %10919 = vmatpush1.bf16.msra.mxu0 %v10898
      %10920 = vmatprep.subr.bf16.mxu0 0
      %10921 = vmatpush1.bf16.msra.mxu0 %v10899
      %10922 = vmatprep.subr.bf16.mxu0 0
      %10923 = vmatpush1.bf16.msra.mxu0 %v10900
      %10924 = vmatprep.subr.bf16.mxu0 0
      %10925 = vmatpush1.bf16.msra.mxu0 %v10901
      %10926 = vmatprep.subr.bf16.mxu0 0
      %10927 = vmatpush1.bf16.msra.mxu0 0
      %10928 = vmatprep.subr.bf16.mxu0 0
      %10929 = vmatpush1.bf16.msra.mxu0 0
      %10930 = vmatprep.subr.bf16.mxu0 0
      %10931 = vmatpush1.bf16.msra.mxu0 0
      %10932 = vmatprep.subr.bf16.mxu0 0
      %10933 = vmatpush1.bf16.msra.mxu0 0
      %10934 = vmatprep.subr.bf16.mxu0 0
      %10935 = vmatpush1.bf16.msra.mxu0 0
      %10936 = vmatprep.subr.bf16.mxu0 0
      %10937 = vmatpush1.bf16.msra.mxu0 0
      %10938 = vmatprep.subr.bf16.mxu0 0
      %10939 = vmatpush1.bf16.msra.mxu0 0
      %10940 = vmatprep.subr.bf16.mxu0 0
      %10941 = vmatpush1.bf16.msra.mxu0 0
      %10942 = vmatprep.mubr.bf16.mxu0 0
      %10943 = vmatmul.mubr.bf16.gmra.mrb[0].mxu0 %v10830
      %v10944 = vpop.f32.mrb[0].mxu0
      %v10945 = vadd.f32 0.0, %v10944
      %v10946 = vpop.f32.mrb[0].mxu0
      %v10947 = vpop.f32.mrb[0].mxu0
      %v10948 = vadd.f32 0.0, %v10947
      %v10949 = vpop.f32.mrb[0].mxu0
      %10950 = vmatprep.mubr.bf16.mxu0 0
      %10951 = vmatmul.mubr.bf16.gmra.mrb[0].mxu0 %v10831
      %v10952 = vpop.f32.mrb[0].mxu0
      %v10953 = vadd.f32 0.0, %v10952
      %v10954 = vpop.f32.mrb[0].mxu0
      %v10955 = vpop.f32.mrb[0].mxu0
      %v10956 = vadd.f32 0.0, %v10955
      %v10957 = vpop.f32.mrb[0].mxu0
      %10958 = vmatprep.mubr.bf16.mxu0 0
      %10959 = vmatmul.mubr.bf16.gmra.mrb[0].mxu0 %v10832
      %v10960 = vpop.f32.mrb[0].mxu0
      %v10961 = vadd.f32 0.0, %v10960
      %v10962 = vpop.f32.mrb[0].mxu0
      %v10963 = vpop.f32.mrb[0].mxu0
      %v10964 = vadd.f32 0.0, %v10963
      %v10965 = vpop.f32.mrb[0].mxu0
      %10966 = vmatprep.mubr.bf16.mxu0 0
      %10967 = vmatmul.mubr.bf16.gmra.mrb[0].mxu0 %v10833
      %v10968 = vpop.f32.mrb[0].mxu0
      %v10969 = vadd.f32 0.0, %v10968
      %v10970 = vpop.f32.mrb[0].mxu0
      %v10971 = vpop.f32.mrb[0].mxu0
      %v10972 = vadd.f32 0.0, %v10971
      %v10973 = vpop.f32.mrb[0].mxu0
      %10974 = vmatprep.mubr.bf16.mxu0 0
      %10975 = vmatmul.mubr.bf16.gmra.mrb[0].mxu0 %v10834
      %v10976 = vpop.f32.mrb[0].mxu0
      %v10977 = vadd.f32 0.0, %v10976
      %v10978 = vpop.f32.mrb[0].mxu0
      %v10979 = vpop.f32.mrb[0].mxu0
      %v10980 = vadd.f32 0.0, %v10979
      %v10981 = vpop.f32.mrb[0].mxu0
      %10982 = vmatprep.mubr.bf16.mxu0 0
      %10983 = vmatmul.mubr.bf16.gmra.mrb[0].mxu0 %v10835
      %v10984 = vpop.f32.mrb[0].mxu0
      %v10985 = vadd.f32 0.0, %v10984
      %v10986 = vpop.f32.mrb[0].mxu0
      %v10987 = vpop.f32.mrb[0].mxu0
      %v10988 = vadd.f32 0.0, %v10987
      %v10989 = vpop.f32.mrb[0].mxu0
      %10990 = vmatprep.mubr.bf16.mxu0 0
      %10991 = vmatmul.mubr.bf16.gmra.mrb[0].mxu0 %v10836
      %v10992 = vpop.f32.mrb[0].mxu0
      %v10993 = vadd.f32 0.0, %v10992
      %v10994 = vpop.f32.mrb[0].mxu0
      %v10995 = vpop.f32.mrb[0].mxu0
      %v10996 = vadd.f32 0.0, %v10995
      %v10997 = vpop.f32.mrb[0].mxu0
      %10998 = vmatprep.mubr.bf16.mxu0 0
      %10999 = vmatmul.mubr.bf16.gmra.mrb[0].mxu0 %v10837
      %v11000 = vpop.f32.mrb[0].mxu0
      %v11001 = vadd.f32 0.0, %v11000
      %v11002 = vpop.f32.mrb[0].mxu0
      %v11003 = vpop.f32.mrb[0].mxu0
      %v11004 = vadd.f32 0.0, %v11003
      %v11005 = vpop.f32.mrb[0].mxu0
      %11006 = vmatprep.mubr.bf16.mxu0 0
      %11007 = vmatmul.mubr.bf16.gmra.mrb[0].mxu0 %v10838
      %v11008 = vpop.f32.mrb[0].mxu0
      %v11009 = vadd.f32 0.0, %v11008
      %v11010 = vpop.f32.mrb[0].mxu0
      %v11011 = vpop.f32.mrb[0].mxu0
      %v11012 = vadd.f32 0.0, %v11011
      %v11013 = vpop.f32.mrb[0].mxu0
      %11014 = vmatprep.mubr.bf16.mxu0 0
      %11015 = vmatmul.mubr.bf16.gmra.mrb[0].mxu0 %v10839
      %v11016 = vpop.f32.mrb[0].mxu0
      %v11017 = vadd.f32 0.0, %v11016
      %v11018 = vpop.f32.mrb[0].mxu0
      %v11019 = vpop.f32.mrb[0].mxu0
      %v11020 = vadd.f32 0.0, %v11019
      %v11021 = vpop.f32.mrb[0].mxu0
      %11022 = vmatprep.mubr.bf16.mxu0 0
      %11023 = vmatmul.mubr.bf16.gmra.mrb[0].mxu0 %v10840
      %v11024 = vpop.f32.mrb[0].mxu0
      %v11025 = vadd.f32 0.0, %v11024
      %v11026 = vpop.f32.mrb[0].mxu0
      %v11027 = vpop.f32.mrb[0].mxu0
      %v11028 = vadd.f32 0.0, %v11027
      %v11029 = vpop.f32.mrb[0].mxu0
      %11030 = vmatprep.mubr.bf16.mxu0 0
      %11031 = vmatmul.mubr.bf16.gmra.mrb[0].mxu0 %v10841
      %v11032 = vpop.f32.mrb[0].mxu0
      %v11033 = vadd.f32 0.0, %v11032
      %v11034 = vpop.f32.mrb[0].mxu0
      %v11035 = vpop.f32.mrb[0].mxu0
      %v11036 = vadd.f32 0.0, %v11035
      %v11037 = vpop.f32.mrb[0].mxu0
      %11038 = vmatprep.mubr.bf16.mxu0 0
      %11039 = vmatmul.mubr.bf16.gmra.mrb[0].mxu0 %v10842
      %v11040 = vpop.f32.mrb[0].mxu0
      %v11041 = vadd.f32 0.0, %v11040
      %v11042 = vpop.f32.mrb[0].mxu0
      %v11043 = vpop.f32.mrb[0].mxu0
      %v11044 = vadd.f32 0.0, %v11043
      %v11045 = vpop.f32.mrb[0].mxu0
      %11046 = vmatprep.mubr.bf16.mxu0 0
      %11047 = vmatmul.mubr.bf16.gmra.mrb[0].mxu0 %v10843
      %v11048 = vpop.f32.mrb[0].mxu0
      %v11049 = vadd.f32 0.0, %v11048
      %v11050 = vpop.f32.mrb[0].mxu0
      %v11051 = vpop.f32.mrb[0].mxu0
      %v11052 = vadd.f32 0.0, %v11051
      %v11053 = vpop.f32.mrb[0].mxu0
      %11054 = vmatprep.mubr.bf16.mxu0 0
      %11055 = vmatmul.mubr.bf16.gmra.mrb[0].mxu0 %v10844
      %v11056 = vpop.f32.mrb[0].mxu0
      %v11057 = vadd.f32 0.0, %v11056
      %v11058 = vpop.f32.mrb[0].mxu0
      %v11059 = vpop.f32.mrb[0].mxu0
      %v11060 = vadd.f32 0.0, %v11059
      %v11061 = vpop.f32.mrb[0].mxu0
      %11062 = vmatprep.mubr.bf16.mxu0 0
      %11063 = vmatmul.mubr.bf16.gmra.mrb[0].mxu0 %v10845
      %v11064 = vpop.f32.mrb[0].mxu0
      %v11065 = vadd.f32 0.0, %v11064
      %v11066 = vpop.f32.mrb[0].mxu0
      %v11067 = vpop.f32.mrb[0].mxu0
      %v11068 = vadd.f32 0.0, %v11067
      %v11069 = vpop.f32.mrb[0].mxu0
      %11070 = vdwg.mxu0
      %v11071 = vadd.f32 %v10573, %v10945
      %v11072 = vadd.f32 %v10574, %v10948
      %v11073 = vadd.f32 %v10575, %v10953
      %v11074 = vadd.f32 %v10576, %v10956
      %v11075 = vadd.f32 %v10577, %v10961
      %v11076 = vadd.f32 %v10578, %v10964
      %v11077 = vadd.f32 %v10579, %v10969
      %v11078 = vadd.f32 %v10580, %v10972
      %v11079 = vadd.f32 %v10581, %v10977
      %v11080 = vadd.f32 %v10582, %v10980
      %v11081 = vadd.f32 %v10583, %v10985
      %v11082 = vadd.f32 %v10584, %v10988
      %v11083 = vadd.f32 %v10585, %v10993
      %v11084 = vadd.f32 %v10586, %v10996
      %v11085 = vadd.f32 %v10587, %v11001
      %v11086 = vadd.f32 %v10588, %v11004
      %v11087 = vadd.f32 %v10589, %v11009
      %v11088 = vadd.f32 %v10590, %v11012
      %v11089 = vadd.f32 %v10591, %v11017
      %v11090 = vadd.f32 %v10592, %v11020
      %v11091 = vadd.f32 %v10593, %v11025
      %v11092 = vadd.f32 %v10594, %v11028
      %v11093 = vadd.f32 %v10595, %v11033
      %v11094 = vadd.f32 %v10596, %v11036
      %v11095 = vadd.f32 %v10597, %v11041
      %v11096 = vadd.f32 %v10598, %v11044
      %v11097 = vadd.f32 %v10599, %v11049
      %v11098 = vadd.f32 %v10600, %v11052
      %v11099 = vadd.f32 %v10601, %v11057
      %v11100 = vadd.f32 %v10602, %v11060
      %v11101 = vadd.f32 %v10603, %v11065
      %v11102 = vadd.f32 %v10604, %v11068
      %v11103 = vld [vmem:[%s5] sm:$0x1]
      %v11105 = vlaneseq
      %v11106 = vshrl.u32 %v11105, 7
      %v11107 = vsub.s32 0, %v11106
      %v11108 = vrot.slane %v11103, %v11107
      %v11110 = vmul.f32 %v11071, %v11108
      %v11111 = vmul.f32 %v11072, %v11108
      %v11112 = vmul.f32 %v11073, %v11108
      %v11113 = vmul.f32 %v11074, %v11108
      %v11114 = vmul.f32 %v11075, %v11108
      %v11115 = vmul.f32 %v11076, %v11108
      %v11116 = vmul.f32 %v11077, %v11108
      %v11117 = vmul.f32 %v11078, %v11108
      %v11118 = vmul.f32 %v11079, %v11108
      %v11119 = vmul.f32 %v11080, %v11108
      %v11120 = vmul.f32 %v11081, %v11108
      %v11121 = vmul.f32 %v11082, %v11108
      %v11122 = vmul.f32 %v11083, %v11108
      %v11123 = vmul.f32 %v11084, %v11108
      %v11124 = vmul.f32 %v11085, %v11108
      %v11125 = vmul.f32 %v11086, %v11108
      %v11126 = vmul.f32 %v11087, %v11108
      %v11127 = vmul.f32 %v11088, %v11108
      %v11128 = vmul.f32 %v11089, %v11108
      %v11129 = vmul.f32 %v11090, %v11108
      %v11130 = vmul.f32 %v11091, %v11108
      %v11131 = vmul.f32 %v11092, %v11108
      %v11132 = vmul.f32 %v11093, %v11108
      %v11133 = vmul.f32 %v11094, %v11108
      %v11134 = vmul.f32 %v11095, %v11108
      %v11135 = vmul.f32 %v11096, %v11108
      %v11136 = vmul.f32 %v11097, %v11108
      %v11137 = vmul.f32 %v11098, %v11108
      %v11138 = vmul.f32 %v11099, %v11108
      %v11139 = vmul.f32 %v11100, %v11108
      %v11140 = vmul.f32 %v11101, %v11108
      %v11141 = vmul.f32 %v11102, %v11108
      %v11142 = vld [vmem:[%s6] sm:$0x1]
      %v11144 = vlaneseq
      %v11145 = vshrl.u32 %v11144, 7
      %v11146 = vsub.s32 0, %v11145
      %v11147 = vrot.slane %v11142, %v11146
      %v11149 = vadd.f32 %v11110, %v11147
      %v11150 = vadd.f32 %v11111, %v11147
      %v11151 = vadd.f32 %v11112, %v11147
      %v11152 = vadd.f32 %v11113, %v11147
      %v11153 = vadd.f32 %v11114, %v11147
      %v11154 = vadd.f32 %v11115, %v11147
      %v11155 = vadd.f32 %v11116, %v11147
      %v11156 = vadd.f32 %v11117, %v11147
      %v11157 = vadd.f32 %v11118, %v11147
      %v11158 = vadd.f32 %v11119, %v11147
      %v11159 = vadd.f32 %v11120, %v11147
      %v11160 = vadd.f32 %v11121, %v11147
      %v11161 = vadd.f32 %v11122, %v11147
      %v11162 = vadd.f32 %v11123, %v11147
      %v11163 = vadd.f32 %v11124, %v11147
      %v11164 = vadd.f32 %v11125, %v11147
      %v11165 = vadd.f32 %v11126, %v11147
      %v11166 = vadd.f32 %v11127, %v11147
      %v11167 = vadd.f32 %v11128, %v11147
      %v11168 = vadd.f32 %v11129, %v11147
      %v11169 = vadd.f32 %v11130, %v11147
      %v11170 = vadd.f32 %v11131, %v11147
      %v11171 = vadd.f32 %v11132, %v11147
      %v11172 = vadd.f32 %v11133, %v11147
      %v11173 = vadd.f32 %v11134, %v11147
      %v11174 = vadd.f32 %v11135, %v11147
      %v11175 = vadd.f32 %v11136, %v11147
      %v11176 = vadd.f32 %v11137, %v11147
      %v11177 = vadd.f32 %v11138, %v11147
      %v11178 = vadd.f32 %v11139, %v11147
      %v11179 = vadd.f32 %v11140, %v11147
      %v11180 = vadd.f32 %v11141, %v11147
      %v11181 = vld [vmem:[%s273] sm:$0xf]
      %v11182 = vld [vmem:[%s273 + $0x4] sm:$0xf]
      %v11183 = vld [vmem:[%s273 + $0x8] sm:$0xf]
      %v11184 = vld [vmem:[%s273 + $0xc] sm:$0xf]
      %v11185 = vld [vmem:[%s273 + $0x10] sm:$0xf]
      %v11186 = vld [vmem:[%s273 + $0x14] sm:$0xf]
      %v11187 = vld [vmem:[%s273 + $0x18] sm:$0xf]
      %v11188 = vld [vmem:[%s273 + $0x1c] sm:$0xf]
      %v11189 = vld [vmem:[%s273 + $0x20] sm:$0xf]
      %v11190 = vld [vmem:[%s273 + $0x24] sm:$0xf]
      %v11191 = vld [vmem:[%s273 + $0x28] sm:$0xf]
      %v11192 = vld [vmem:[%s273 + $0x2c] sm:$0xf]
      %v11193 = vld [vmem:[%s273 + $0x30] sm:$0xf]
      %v11194 = vld [vmem:[%s273 + $0x34] sm:$0xf]
      %v11195 = vld [vmem:[%s273 + $0x38] sm:$0xf]
      %v11196 = vld [vmem:[%s273 + $0x3c] sm:$0xf]
      %v11197 = vld [vmem:[%s273 + $0x40] sm:$0xf]
      %v11198 = vld [vmem:[%s273 + $0x44] sm:$0xf]
      %v11199 = vld [vmem:[%s273 + $0x48] sm:$0xf]
      %v11200 = vld [vmem:[%s273 + $0x4c] sm:$0xf]
      %v11201 = vld [vmem:[%s273 + $0x50] sm:$0xf]
      %v11202 = vld [vmem:[%s273 + $0x54] sm:$0xf]
      %v11203 = vld [vmem:[%s273 + $0x58] sm:$0xf]
      %v11204 = vld [vmem:[%s273 + $0x5c] sm:$0xf]
      %v11205 = vld [vmem:[%s273 + $0x60] sm:$0xf]
      %v11206 = vld [vmem:[%s273 + $0x64] sm:$0xf]
      %v11207 = vld [vmem:[%s273 + $0x68] sm:$0xf]
      %v11208 = vld [vmem:[%s273 + $0x6c] sm:$0xf]
      %v11209 = vld [vmem:[%s273 + $0x70] sm:$0xf]
      %v11210 = vld [vmem:[%s273 + $0x74] sm:$0xf]
      %v11211 = vld [vmem:[%s273 + $0x78] sm:$0xf]
      %v11212 = vld [vmem:[%s273 + $0x7c] sm:$0xf]
      %v11213 = vunpack.c.l.bf16 %v11181
      %v11214 = vunpack.c.l.bf16 %v11182
      %v11215 = vunpack.c.l.bf16 %v11183
      %v11216 = vunpack.c.l.bf16 %v11184
      %v11217 = vunpack.c.l.bf16 %v11185
      %v11218 = vunpack.c.l.bf16 %v11186
      %v11219 = vunpack.c.l.bf16 %v11187
      %v11220 = vunpack.c.l.bf16 %v11188
      %v11221 = vunpack.c.l.bf16 %v11189
      %v11222 = vunpack.c.l.bf16 %v11190
      %v11223 = vunpack.c.l.bf16 %v11191
      %v11224 = vunpack.c.l.bf16 %v11192
      %v11225 = vunpack.c.l.bf16 %v11193
      %v11226 = vunpack.c.l.bf16 %v11194
      %v11227 = vunpack.c.l.bf16 %v11195
      %v11228 = vunpack.c.l.bf16 %v11196
      %v11229 = vunpack.c.l.bf16 %v11197
      %v11230 = vunpack.c.l.bf16 %v11198
      %v11231 = vunpack.c.l.bf16 %v11199
      %v11232 = vunpack.c.l.bf16 %v11200
      %v11233 = vunpack.c.l.bf16 %v11201
      %v11234 = vunpack.c.l.bf16 %v11202
      %v11235 = vunpack.c.l.bf16 %v11203
      %v11236 = vunpack.c.l.bf16 %v11204
      %v11237 = vunpack.c.l.bf16 %v11205
      %v11238 = vunpack.c.l.bf16 %v11206
      %v11239 = vunpack.c.l.bf16 %v11207
      %v11240 = vunpack.c.l.bf16 %v11208
      %v11241 = vunpack.c.l.bf16 %v11209
      %v11242 = vunpack.c.l.bf16 %v11210
      %v11243 = vunpack.c.l.bf16 %v11211
      %v11244 = vunpack.c.l.bf16 %v11212
      %v11245 = vadd.f32 %v11149, %v11213
      %v11246 = vadd.f32 %v11150, %v11214
      %v11247 = vadd.f32 %v11151, %v11215
      %v11248 = vadd.f32 %v11152, %v11216
      %v11249 = vadd.f32 %v11153, %v11217
      %v11250 = vadd.f32 %v11154, %v11218
      %v11251 = vadd.f32 %v11155, %v11219
      %v11252 = vadd.f32 %v11156, %v11220
      %v11253 = vadd.f32 %v11157, %v11221
      %v11254 = vadd.f32 %v11158, %v11222
      %v11255 = vadd.f32 %v11159, %v11223
      %v11256 = vadd.f32 %v11160, %v11224
      %v11257 = vadd.f32 %v11161, %v11225
      %v11258 = vadd.f32 %v11162, %v11226
      %v11259 = vadd.f32 %v11163, %v11227
      %v11260 = vadd.f32 %v11164, %v11228
      %v11261 = vadd.f32 %v11165, %v11229
      %v11262 = vadd.f32 %v11166, %v11230
      %v11263 = vadd.f32 %v11167, %v11231
      %v11264 = vadd.f32 %v11168, %v11232
      %v11265 = vadd.f32 %v11169, %v11233
      %v11266 = vadd.f32 %v11170, %v11234
      %v11267 = vadd.f32 %v11171, %v11235
      %v11268 = vadd.f32 %v11172, %v11236
      %v11269 = vadd.f32 %v11173, %v11237
      %v11270 = vadd.f32 %v11174, %v11238
      %v11271 = vadd.f32 %v11175, %v11239
      %v11272 = vadd.f32 %v11176, %v11240
      %v11273 = vadd.f32 %v11177, %v11241
      %v11274 = vadd.f32 %v11178, %v11242
      %v11275 = vadd.f32 %v11179, %v11243
      %v11276 = vadd.f32 %v11180, %v11244
      %v11277 = vmax.f32 %v11245, 0.0
      %v11278 = vmax.f32 %v11246, 0.0
      %v11279 = vmax.f32 %v11247, 0.0
      %v11280 = vmax.f32 %v11248, 0.0
      %v11281 = vmax.f32 %v11249, 0.0
      %v11282 = vmax.f32 %v11250, 0.0
      %v11283 = vmax.f32 %v11251, 0.0
      %v11284 = vmax.f32 %v11252, 0.0
      %v11285 = vmax.f32 %v11253, 0.0
      %v11286 = vmax.f32 %v11254, 0.0
      %v11287 = vmax.f32 %v11255, 0.0
      %v11288 = vmax.f32 %v11256, 0.0
      %v11289 = vmax.f32 %v11257, 0.0
      %v11290 = vmax.f32 %v11258, 0.0
      %v11291 = vmax.f32 %v11259, 0.0
      %v11292 = vmax.f32 %v11260, 0.0
      %v11293 = vmax.f32 %v11261, 0.0
      %v11294 = vmax.f32 %v11262, 0.0
      %v11295 = vmax.f32 %v11263, 0.0
      %v11296 = vmax.f32 %v11264, 0.0
      %v11297 = vmax.f32 %v11265, 0.0
      %v11298 = vmax.f32 %v11266, 0.0
      %v11299 = vmax.f32 %v11267, 0.0
      %v11300 = vmax.f32 %v11268, 0.0
      %v11301 = vmax.f32 %v11269, 0.0
      %v11302 = vmax.f32 %v11270, 0.0
      %v11303 = vmax.f32 %v11271, 0.0
      %v11304 = vmax.f32 %v11272, 0.0
      %v11305 = vmax.f32 %v11273, 0.0
      %v11306 = vmax.f32 %v11274, 0.0
      %v11307 = vmax.f32 %v11275, 0.0
      %v11308 = vmax.f32 %v11276, 0.0
      %11309 = vst [vmem:[%s278] sm:$0xff] %v11277
      %11310 = vst [vmem:[%s278 + $0x8] sm:$0xff] %v11278
      %11311 = vst [vmem:[%s278 + $0x10] sm:$0xff] %v11279
      %11312 = vst [vmem:[%s278 + $0x18] sm:$0xff] %v11280
      %11313 = vst [vmem:[%s278 + $0x20] sm:$0xff] %v11281
      %11314 = vst [vmem:[%s278 + $0x28] sm:$0xff] %v11282
      %11315 = vst [vmem:[%s278 + $0x30] sm:$0xff] %v11283
      %11316 = vst [vmem:[%s278 + $0x38] sm:$0xff] %v11284
      %11317 = vst [vmem:[%s278 + $0x40] sm:$0xff] %v11285
      %11318 = vst [vmem:[%s278 + $0x48] sm:$0xff] %v11286
      %11319 = vst [vmem:[%s278 + $0x50] sm:$0xff] %v11287
      %11320 = vst [vmem:[%s278 + $0x58] sm:$0xff] %v11288
      %11321 = vst [vmem:[%s278 + $0x60] sm:$0xff] %v11289
      %11322 = vst [vmem:[%s278 + $0x68] sm:$0xff] %v11290
      %11323 = vst [vmem:[%s278 + $0x70] sm:$0xff] %v11291
      %11324 = vst [vmem:[%s278 + $0x78] sm:$0xff] %v11292
      %11325 = vst [vmem:[%s278 + $0x80] sm:$0xff] %v11293
      %11326 = vst [vmem:[%s278 + $0x88] sm:$0xff] %v11294
      %11327 = vst [vmem:[%s278 + $0x90] sm:$0xff] %v11295
      %11328 = vst [vmem:[%s278 + $0x98] sm:$0xff] %v11296
      %11329 = vst [vmem:[%s278 + $0xa0] sm:$0xff] %v11297
      %11330 = vst [vmem:[%s278 + $0xa8] sm:$0xff] %v11298
      %11331 = vst [vmem:[%s278 + $0xb0] sm:$0xff] %v11299
      %11332 = vst [vmem:[%s278 + $0xb8] sm:$0xff] %v11300
      %11333 = vst [vmem:[%s278 + $0xc0] sm:$0xff] %v11301
      %11334 = vst [vmem:[%s278 + $0xc8] sm:$0xff] %v11302
      %11335 = vst [vmem:[%s278 + $0xd0] sm:$0xff] %v11303
      %11336 = vst [vmem:[%s278 + $0xd8] sm:$0xff] %v11304
      %11337 = vst [vmem:[%s278 + $0xe0] sm:$0xff] %v11305
      %11338 = vst [vmem:[%s278 + $0xe8] sm:$0xff] %v11306
      %11339 = vst [vmem:[%s278 + $0xf0] sm:$0xff] %v11307
      %11340 = vst [vmem:[%s278 + $0xf8] sm:$0xff] %v11308
      %p11341 = scmp.lt.s32.totalorder %s18, 1
      %s11342 = scalar_select %p11341, %s18, 1
      %s11343 = smul.addr %s11342, 32
      %s11344 = smul.addr %s11343, 8
      %s11345 = scalar_lea.vmem %s7, %s11344
      // Predicated region
      $region49: #{basic_block_pallas.1} parent=47 // pred_check
        %p11346 = pneg %p188
      $region50: #{basic_block_pallas.1} parent=47 // pred_check_branch
        %11348 = sbr.rel (%p11346) target = $region52
      $region51: #{basic_block_pallas.1} parent=47 // pred_region
        _
      $region52: #{basic_block_pallas.1} parent=47 // pred_fallthru
        _
    $region48: #{basic_block_pallas.1} parent=5 // pred_fallthru
      _
    %p11349 = scmp.le.s32.totalorder 2, %s13
    // Predicated region
    $region53: #{basic_block_pallas.1} parent=5 // pred_check
      %p11350 = pneg %p11349
    $region54: #{basic_block_pallas.1} parent=5 // pred_check_branch
      %11352 = sbr.rel (%p11350) target = $region56
    $region55: #{basic_block_pallas.1} parent=5 // pred_region
      %s11353 = ssub.s32 %s13, 2
      // Predicated region
      $region57: #{basic_block_pallas.1} parent=55 // pred_check
        %p11354 = pneg %p194
      $region58: #{basic_block_pallas.1} parent=55 // pred_check_branch
        %11356 = sbr.rel (%p11354) target = $region60
      $region59: #{basic_block_pallas.1} parent=55 // pred_region
        %p11357 = scmp.lt.s32.totalorder %s19, 1
        %s11358 = scalar_select %p11357, %s19, 1
        %s11359 = smul.addr %s11358, 32
        %s11360 = smul.addr %s11359, 8
        %s11361 = scalar_lea.vmem %s7, %s11360
      $region60: #{basic_block_pallas.1} parent=55 // pred_fallthru
        _
    $region56: #{basic_block_pallas.1} parent=5 // pred_fallthru
      _
  $region6: #{basic_block_pallas.1} parent=0 // loop_footer
    %s17 = sadd.s32 1, %s13
  $region7: #{basic_block_pallas.1} parent=0 // loop_footer_branch
    %12 = sbr.rel target = $region3
  $region8: #{basic_block_pallas.1} parent=0 // loop_exit
    _

</llo_original>
